<compile_context>
chip_gen: v6e
topology: v6e:2x2x1
jax: 0.10.0
libtpu: 0.0.40
codegen_flags: <defaults>
</compile_context>

<pallas_src>
import functools

import numpy as np
import jax
import jax.numpy as jnp
from jax import lax
from jax.experimental import pallas as pl
from jax.experimental.pallas import tpu as pltpu

EPS = 1e-5                       # nn.GroupNorm default eps
BF16 = jnp.bfloat16
_HIGHEST = jax.lax.Precision.HIGHEST


# ----------------------------- in-kernel math ------------------------------

def _erf(x):
    # Abramowitz & Stegun 7.1.26, |err| <= 1.5e-7 (f32-accurate); keeps exact-GELU
    # in-kernel without relying on a lax.erf Mosaic lowering.
    p = 0.3275911
    a1, a2, a3, a4, a5 = (0.254829592, -0.284496736, 1.421413741,
                          -1.453152027, 1.061405429)
    s = jnp.where(x >= 0.0, 1.0, -1.0)
    z = x * s
    t = 1.0 / (1.0 + p * z)
    poly = ((((a5 * t + a4) * t + a3) * t + a2) * t + a1) * t
    return s * (1.0 - poly * jnp.exp(-z * z))


def _gelu(x):
    # exact (erf-based) GELU, matching torch.nn.GELU() default
    return 0.5 * x * (1.0 + _erf(x * 0.7071067811865476))


# --------------------- fused conv3x3 + GroupNorm kernel ---------------------

def _conv_gn_kernel(x_ref, w_ref, g_ref, b_ref, mask_ref, *rest, mode, Ho, Wo):
    """Fused Conv3x3(pad=1, bias=False) + GroupNorm(1, Cout) + activation.

    x_ref   : (1, Cin, Hp*Wp) bf16 zero-padded-flat activation (Hp=Ho+2, Wp=Wo+2)
    w_ref   : (9, Cout, Cin)  bf16 conv weights, tap index k = ky*3 + kx
    g_ref/b_ref : (Cout, 1)   f32 GroupNorm affine (broadcast over lanes)
    mask_ref: (1, L)          f32, 1.0 at valid flat positions (L = Ho*Wp - 2)
    rest    : [extra_ref,] o_ref ; o_ref: (1, Cout, Hp*Wp) padded-flat output
    """
    if mode == "gelu":
        (o_ref,) = rest
        extra_ref = None
    else:
        extra_ref, o_ref = rest
    Cout = o_ref.shape[1]
    hpwp = o_ref.shape[2]
    Wp = Wo + 2
    L = Ho * Wp - 2

    x = x_ref[0]                                    # (Cin, Hp*Wp) bf16
    # 3x3 conv = 9 shifted bf16 MXU dots with f32 accumulation (no im2col in HBM;
    # the shifts are VMEM-local lane relayouts).
    acc = jnp.zeros((Cout, L), jnp.float32)
    for ky in range(3):
        for kx in range(3):
            off = ky * Wp + kx
            acc = acc + jnp.dot(w_ref[ky * 3 + kx], x[:, off:off + L],
                                preferred_element_type=jnp.float32)

    # GroupNorm(num_groups=1): stats over all channels & valid spatial positions.
    mask = mask_ref[...]                            # (1, L)
    inv_n = 1.0 / float(Cout * Ho * Wo)
    mean = jnp.sum(acc * mask, keepdims=True) * inv_n
    cent = acc - mean
    var = jnp.sum(jnp.square(cent) * mask, keepdims=True) * inv_n
    y = cent * lax.rsqrt(var + EPS) * g_ref[...] + b_ref[...]

    if mode == "gelu":                              # GN -> GELU
        y = _gelu(y)
    elif mode == "residual_gelu":                   # GELU(residual + GN(conv(x)))
        res = extra_ref[0][:, Wp + 1:Wp + 1 + L].astype(jnp.float32)
        y = _gelu(res + y)
    else:                                           # "add": GN(conv(x)) + time emb
        y = y + extra_ref[0].astype(jnp.float32)    # (Cout, 1) broadcast over lanes

    y = y * mask                                    # zero junk cols -> acts as zero pad
    # store in padded-flat layout (zero border) so the next conv consumes it directly
    o_ref[0, :, :] = jnp.zeros((Cout, hpwp), o_ref.dtype)
    o_ref[0, :, Wp + 1:Wp + 1 + L] = y.astype(o_ref.dtype)


def pallas_conv_gn(x, w_pack, gamma, beta, mask, *, mode, extra=None, Ho, Wo,
                   out_dtype=BF16):
    """x: [N, Cin, Hp*Wp] bf16 padded-flat -> [N, Cout, Hp*Wp] padded-flat."""
    # TODO(synk): for very large Ho*Wo the per-sample block should be L-tiled with
    # two-pass GroupNorm stats to stay within VMEM (v7x 64 MiB / v5e 16 MiB scoped).
    N, Cin, hpwp = x.shape
    Cout = w_pack.shape[1]
    L = mask.shape[1]
    in_specs = [pl.BlockSpec((1, Cin, hpwp), lambda n: (n, 0, 0)),
                pl.BlockSpec((9, Cout, Cin), lambda n: (0, 0, 0)),
                pl.BlockSpec((Cout, 1), lambda n: (0, 0)),
                pl.BlockSpec((Cout, 1), lambda n: (0, 0)),
                pl.BlockSpec((1, L), lambda n: (0, 0))]
    args = [x, w_pack, gamma, beta, mask]
    if mode == "residual_gelu":
        in_specs.append(pl.BlockSpec((1, extra.shape[1], hpwp), lambda n: (n, 0, 0)))
        args.append(extra)
    elif mode == "add":
        in_specs.append(pl.BlockSpec((1, extra.shape[1], 1), lambda n: (n, 0, 0)))
        args.append(extra)
    return pl.pallas_call(
        functools.partial(_conv_gn_kernel, mode=mode, Ho=Ho, Wo=Wo),
        out_shape=jax.ShapeDtypeStruct((N, Cout, hpwp), out_dtype),
        grid=(N,),
        in_specs=in_specs,
        out_specs=pl.BlockSpec((1, Cout, hpwp), lambda n: (n, 0, 0)),
        compiler_params=pltpu.CompilerParams(dimension_semantics=("parallel",)),
    )(*args)


# ------------------------ fused bilinear x2 upsample ------------------------

def _upsample_kernel(x_ref, ah_ref, awt_ref, o_ref, *, Ho, Wo):
    # bilinear x2 (align_corners=True) for one (n, c) plane: Ah @ x @ Aw^T,
    # written zero-padded so it drops straight into the padded-flat conv layout.
    tmp = jnp.dot(x_ref[0], awt_ref[...], preferred_element_type=jnp.float32)
    up = jnp.dot(ah_ref[...], tmp.astype(BF16), preferred_element_type=jnp.float32)
    o_ref[0, :, :] = jnp.zeros((Ho + 2, Wo + 2), o_ref.dtype)
    o_ref[0, 1:1 + Ho, 1:1 + Wo] = up.astype(o_ref.dtype)


def pallas_upsample2x_pad(x, ah, awt):
    """x: [N, C, H, W] -> [N, C, (2H+2)*(2W+2)] f32, zero-padded-flat upsampled."""
    N, C, H, W = x.shape
    Ho, Wo = ah.shape[0], awt.shape[1]
    Hp, Wp = Ho + 2, Wo + 2
    xr = x.reshape(N * C, H, W).astype(BF16)
    out = pl.pallas_call(
        functools.partial(_upsample_kernel, Ho=Ho, Wo=Wo),
        out_shape=jax.ShapeDtypeStruct((N * C, Hp, Wp), jnp.float32),
        grid=(N * C,),
        in_specs=[pl.BlockSpec((1, H, W), lambda i: (i, 0, 0)),
                  pl.BlockSpec((Ho, H), lambda i: (0, 0)),
                  pl.BlockSpec((W, Wo), lambda i: (0, 0))],
        out_specs=pl.BlockSpec((1, Hp, Wp), lambda i: (i, 0, 0)),
        compiler_params=pltpu.CompilerParams(dimension_semantics=("parallel",)),
    )(xr, ah, awt)
    return out.reshape(N, C, Hp * Wp)


# --------------------------- SiLU + Linear (emb) ----------------------------

def _emb_kernel(t_ref, w_ref, b_ref, o_ref):
    t = t_ref[...]
    silu = t * (1.0 / (1.0 + jnp.exp(-t)))
    o_ref[...] = jnp.dot(silu.astype(BF16), w_ref[...],
                         preferred_element_type=jnp.float32) + b_ref[...]


def pallas_emb(t, w, b):
    """t: [N, E] f32, w: [E, Cout] bf16, b: [1, Cout] f32 -> [N, Cout] f32."""
    N, E = t.shape
    Co = w.shape[1]
    return pl.pallas_call(
        _emb_kernel,
        out_shape=jax.ShapeDtypeStruct((N, Co), jnp.float32),
        grid=(1,),
        in_specs=[pl.BlockSpec((N, E), lambda i: (0, 0)),
                  pl.BlockSpec((E, Co), lambda i: (0, 0)),
                  pl.BlockSpec((1, Co), lambda i: (0, 0))],
        out_specs=pl.BlockSpec((N, Co), lambda i: (0, 0)),
        compiler_params=pltpu.CompilerParams(dimension_semantics=("arbitrary",)),
    )(t.astype(jnp.float32), w, b)


# ------------------------------ JAX glue ------------------------------------

def _interp_matrix(n_in, n_out):
    # bilinear, align_corners=True (nn.Upsample(scale_factor=2, mode='bilinear',
    # align_corners=True)); 1-D interpolation matrix: out = A @ in.  (numpy, static)
    i = np.arange(n_out, dtype=np.float64)
    src = i * (n_in - 1) / (n_out - 1)
    j0 = np.clip(np.floor(src).astype(np.int64), 0, n_in - 2)
    frac = src - j0
    A = np.zeros((n_out, n_in), np.float64)
    A[np.arange(n_out), j0] += 1.0 - frac
    A[np.arange(n_out), j0 + 1] += frac
    return A.astype(np.float32)


def _valid_mask(Ho, Wo):
    # 1.0 at flat positions i = y*Wp + x with x < Wo (valid conv outputs), else 0.
    Wp = Wo + 2
    L = Ho * Wp - 2
    return jnp.asarray(((np.arange(L) % Wp) < Wo).reshape(1, L), jnp.float32)


def prepare_params(params):
    """One-time packing into MXU/VPU-friendly layouts & dtypes (outside the hot path)."""
    def pack_w(w):     # OIHW -> (tap = ky*3+kx, Cout, Cin), bf16
        co, ci = w.shape[0], w.shape[1]
        return jnp.transpose(w, (2, 3, 0, 1)).reshape(9, co, ci).astype(BF16)

    def col(v):        # (C,) -> (C, 1) f32 (sublane vector, broadcasts over lanes)
        return v.reshape(-1, 1).astype(jnp.float32)

    out = {}
    for tag in ("1a", "1b", "2a", "2b"):
        out["w" + tag] = pack_w(params["w" + tag])
        out["g" + tag] = col(params["g" + tag])
        out["b" + tag] = col(params["b" + tag])
    out["we"] = params["we"].astype(BF16)
    out["be"] = params["be"].reshape(1, -1).astype(jnp.float32)
    return out


def upscaler_forward(pp, x, skip_x, t):
    """pp = prepare_params(...); x:[N,Cx,H,W], skip_x:[N,Cs,2H,2W], t:[N,emb] -> NCHW."""
    x = x.astype(jnp.float32)
    skip_x = skip_x.astype(jnp.float32)
    N, Cx, H, W = x.shape
    Ho, Wo = 2 * H, 2 * W
    Hp, Wp = Ho + 2, Wo + 2

    ah = jnp.asarray(_interp_matrix(H, Ho), BF16)          # (Ho, H)
    awt = jnp.asarray(_interp_matrix(W, Wo).T, BF16)       # (W, Wo)
    mask = _valid_mask(Ho, Wo)

    # --- bilinear x2 upsample, fused per (n, c), already in padded-flat layout ---
    x_up = pallas_upsample2x_pad(x, ah, awt)               # (N, Cx, Hp*Wp) f32

    # --- torch.cat([skip_x, x], dim=1): zero-pad + concat glue (single cheap pass) ---
    Cs = skip_x.shape[1]
    skip_p = jnp.pad(skip_x, ((0, 0), (0, 0), (1, 1), (1, 1))).reshape(N, Cs, Hp * Wp)
    h = jnp.concatenate([skip_p, x_up], axis=1).astype(BF16)   # (N, Cin, Hp*Wp)

    # --- DoubleConv(Cin, Cin, residual=True): two fused conv+GN kernels ---
    y1 = pallas_conv_gn(h, pp["w1a"], pp["g1a"], pp["b1a"], mask,
                        mode="gelu", Ho=Ho, Wo=Wo)
    h1 = pallas_conv_gn(y1, pp["w1b"], pp["g1b"], pp["b1b"], mask,
                        mode="residual_gelu", extra=h, Ho=Ho, Wo=Wo)

    # --- DoubleConv(Cin, Cout, mid=Cin//2) + fused emb broadcast add ---
    z1 = pallas_conv_gn(h1, pp["w2a"], pp["g2a"], pp["b2a"], mask,
                        mode="gelu", Ho=Ho, Wo=Wo)
    emb = pallas_emb(t.astype(jnp.float32), pp["we"], pp["be"])     # (N, Cout)
    out = pallas_conv_gn(z1, pp["w2b"], pp["g2b"], pp["b2b"], mask,
                         mode="add", extra=emb[:, :, None], Ho=Ho, Wo=Wo,
                         out_dtype=jnp.float32)

    # --- un-pad: padded-flat -> NCHW ---
    Cout = out.shape[1]
    return out.reshape(N, Cout, Hp, Wp)[:, :, 1:1 + Ho, 1:1 + Wo]


# ----------------------- parameters & pure-JAX reference --------------------

def init_params(key, in_channels, out_channels, emb_dim):
    mid = in_channels // 2
    ks = jax.random.split(key, 14)

    def conv_w(k, co, ci):
        return jax.random.normal(k, (co, ci, 3, 3), jnp.float32) / jnp.sqrt(9.0 * ci)

    return {
        "w1a": conv_w(ks[0], in_channels, in_channels),
        "g1a": 1.0 + 0.1 * jax.random.normal(ks[1], (in_channels,), jnp.float32),
        "b1a": 0.1 * jax.random.normal(ks[2], (in_channels,), jnp.float32),
        "w1b": conv_w(ks[3], in_channels, in_channels),
        "g1b": 1.0 + 0.1 * jax.random.normal(ks[4], (in_channels,), jnp.float32),
        "b1b": 0.1 * jax.random.normal(ks[5], (in_channels,), jnp.float32),
        "w2a": conv_w(ks[6], mid, in_channels),
        "g2a": 1.0 + 0.1 * jax.random.normal(ks[7], (mid,), jnp.float32),
        "b2a": 0.1 * jax.random.normal(ks[8], (mid,), jnp.float32),
        "w2b": conv_w(ks[9], out_channels, mid),
        "g2b": 1.0 + 0.1 * jax.random.normal(ks[10], (out_channels,), jnp.float32),
        "b2b": 0.1 * jax.random.normal(ks[11], (out_channels,), jnp.float32),
        "we": jax.random.normal(ks[12], (emb_dim, out_channels), jnp.float32) / jnp.sqrt(emb_dim),
        "be": 0.1 * jax.random.normal(ks[13], (out_channels,), jnp.float32),
    }


def reference_forward(params, x, skip_x, t):
    # straightforward pure-JAX (f32 HIGHEST) reference of the PyTorch forward
    N, Cx, H, W = x.shape
    Ho, Wo = 2 * H, 2 * W
    Ah = jnp.asarray(_interp_matrix(H, Ho))
    Aw = jnp.asarray(_interp_matrix(W, Wo))
    xu = jnp.einsum("oh,nchw->ncow", Ah, x, precision=_HIGHEST)
    xu = jnp.einsum("pw,ncow->ncop", Aw, xu, precision=_HIGHEST)
    h = jnp.concatenate([skip_x, xu], axis=1)

    def conv(v, w):
        return lax.conv_general_dilated(v, w, (1, 1), ((1, 1), (1, 1)),
                                        dimension_numbers=("NCHW", "OIHW", "NCHW"),
                                        precision=_HIGHEST)

    def gn(v, g, b):
        m = jnp.mean(v, axis=(1, 2, 3), keepdims=True)
        var = jnp.mean((v - m) ** 2, axis=(1, 2, 3), keepdims=True)
        return (v - m) / jnp.sqrt(var + EPS) * g[None, :, None, None] + b[None, :, None, None]

    gelu = lambda v: jax.nn.gelu(v, approximate=False)
    y = gelu(gn(conv(h, params["w1a"]), params["g1a"], params["b1a"]))
    y = gn(conv(y, params["w1b"]), params["g1b"], params["b1b"])
    h1 = gelu(h + y)
    z = gelu(gn(conv(h1, params["w2a"]), params["g2a"], params["b2a"]))
    z = gn(conv(z, params["w2b"]), params["g2b"], params["b2b"])
    emb = jnp.dot(jax.nn.silu(t), params["we"], precision=_HIGHEST) + params["be"]
    return z + emb[:, :, None, None]


if __name__ == "__main__":
    key = jax.random.PRNGKey(0)
    kp, kx, ks, kt = jax.random.split(key, 4)

    N = 2
    in_channels, out_channels, emb_dim = 16, 8, 32   # channels after concat = in_channels
    Cx = in_channels // 2                            # low-res feature channels
    H = W = 8                                        # low-res spatial; output is 16x16

    params = init_params(kp, in_channels, out_channels, emb_dim)
    packed = prepare_params(params)                  # one-time weight packing / bf16 cast
    x = jax.random.normal(kx, (N, Cx, H, W), jnp.float32)
    skip_x = jax.random.normal(ks, (N, in_channels - Cx, 2 * H, 2 * W), jnp.float32)
    t = jax.random.normal(kt, (N, emb_dim), jnp.float32)

    fwd = jax.jit(upscaler_forward)
    out = jax.block_until_ready(fwd(packed, x, skip_x, t))
    assert out.shape == (N, out_channels, 2 * H, 2 * W), out.shape

    ref = jax.block_until_ready(reference_forward(params, x, skip_x, t))
    max_err = float(jnp.max(jnp.abs(out - ref)))
    rel_l2 = float(jnp.linalg.norm(out - ref) / jnp.linalg.norm(ref))
    # bf16 MXU operands (f32 accumulation) across 4 convs: loosen max-abs slightly,
    # keep a tight aggregate (relative L2) check.
    assert max_err < 7.5e-2, f"max abs err {max_err}"
    assert rel_l2 < 2e-2, f"rel l2 err {rel_l2}"

    print("KERNEL_OK")
</pallas_src>

<mosaic_0001>
module attributes {stable_mosaic.version = 11 : i64} {
  func.func @_upsample_kernel(%arg0: i32, %arg1: memref<1x8x8xbf16, #tpu.memory_space<vmem>>, %arg2: memref<16x8xbf16, #tpu.memory_space<vmem>>, %arg3: memref<8x16xbf16, #tpu.memory_space<vmem>>, %arg4: memref<1x18x18xf32, #tpu.memory_space<vmem>>) attributes {dimension_semantics = [#tpu.dimension_semantics<parallel>], iteration_bounds = array<i64: 16>, scalar_prefetch = 0 : i64, scratch_operands = 0 : i64, tpu.core_type = #tpu.core_type<tc>, window_params = [{transform_indices = @transform_0, window_bounds = array<i64: 1, 8, 8>}, {pipeline_mode = #tpu.pipeline_mode<synchronous>, transform_indices = @transform_1, window_bounds = array<i64: 16, 8>}, {pipeline_mode = #tpu.pipeline_mode<synchronous>, transform_indices = @transform_2, window_bounds = array<i64: 8, 16>}, {transform_indices = @transform_3, window_bounds = array<i64: 1, 18, 18>}]} {
    %c0 = arith.constant 0 : index
    %c0_0 = arith.constant 0 : index
    %c0_1 = arith.constant 0 : index
    %0 = vector.load %arg1[%c0, %c0_0, %c0_1] : memref<1x8x8xbf16, #tpu.memory_space<vmem>>, vector<1x8x8xbf16>
    %1 = vector.shape_cast %0 : vector<1x8x8xbf16> to vector<8x8xbf16>
    %c0_2 = arith.constant 0 : index
    %c0_3 = arith.constant 0 : index
    %2 = vector.load %arg3[%c0_2, %c0_3] : memref<8x16xbf16, #tpu.memory_space<vmem>>, vector<8x16xbf16>
    %cst = arith.constant dense<0.000000e+00> : vector<8x16xf32>
    %3 = tpu.matmul %1, %2, %cst {dimension_numbers = #tpu.dot_dimension_numbers<[1], [0], [0], [1], [0, 0, 1, 1], [], []>} : vector<8x8xbf16>, vector<8x16xbf16>, vector<8x16xf32> -> vector<8x16xf32>
    %c0_4 = arith.constant 0 : index
    %c0_5 = arith.constant 0 : index
    %4 = vector.load %arg2[%c0_4, %c0_5] : memref<16x8xbf16, #tpu.memory_space<vmem>>, vector<16x8xbf16>
    %5 = arith.truncf %3 : vector<8x16xf32> to vector<8x16xbf16>
    %cst_6 = arith.constant dense<0.000000e+00> : vector<16x16xf32>
    %6 = tpu.matmul %4, %5, %cst_6 {dimension_numbers = #tpu.dot_dimension_numbers<[1], [0], [0], [1], [0, 0, 1, 1], [], []>} : vector<16x8xbf16>, vector<8x16xbf16>, vector<16x16xf32> -> vector<16x16xf32>
    %cst_7 = arith.constant 0.000000e+00 : f32
    %7 = vector.broadcast %cst_7 : f32 to vector<18x18xf32>
    %c0_8 = arith.constant 0 : index
    %c0_9 = arith.constant 0 : index
    %c0_10 = arith.constant 0 : index
    %8 = vector.load %arg4[%c0_8, %c0_9, %c0_10] : memref<1x18x18xf32, #tpu.memory_space<vmem>>, vector<1x18x18xf32>
    %9 = vector.shape_cast %8 : vector<1x18x18xf32> to vector<18x18xf32>
    %10 = vector.shape_cast %7 : vector<18x18xf32> to vector<1x18x18xf32>
    tpu.vector_store %arg4[%c0_8, %c0_9, %c0_10], %10 {strides = array<i32>} : memref<1x18x18xf32, #tpu.memory_space<vmem>>, vector<1x18x18xf32>,
    %c0_11 = arith.constant 0 : index
    %c1 = arith.constant 1 : index
    %c1_12 = arith.constant 1 : index
    %11 = vector.load %arg4[%c0_11, %c1, %c1_12] : memref<1x18x18xf32, #tpu.memory_space<vmem>>, vector<1x16x16xf32>
    %12 = vector.shape_cast %11 : vector<1x16x16xf32> to vector<16x16xf32>
    %13 = vector.shape_cast %6 : vector<16x16xf32> to vector<1x16x16xf32>
    tpu.vector_store %arg4[%c0_11, %c1, %c1_12], %13 {strides = array<i32>} : memref<1x18x18xf32, #tpu.memory_space<vmem>>, vector<1x16x16xf32>,
    return
  }
  func.func @transform_0(%arg0: i32) -> (i32, i32, i32) {
    %c0_i32 = arith.constant 0 : i32
    %c0_i32_0 = arith.constant 0 : i32
    %c0_i32_1 = arith.constant 0 : i32
    return %arg0, %c0_i32, %c0_i32_0 : i32, i32, i32
  }
  func.func @transform_1(%arg0: i32) -> (i32, i32) {
    %c0_i32 = arith.constant 0 : i32
    %c0_i32_0 = arith.constant 0 : i32
    %c0_i32_1 = arith.constant 0 : i32
    return %c0_i32, %c0_i32_0 : i32, i32
  }
  func.func @transform_2(%arg0: i32) -> (i32, i32) {
    %c0_i32 = arith.constant 0 : i32
    %c0_i32_0 = arith.constant 0 : i32
    %c0_i32_1 = arith.constant 0 : i32
    return %c0_i32, %c0_i32_0 : i32, i32
  }
  func.func @transform_3(%arg0: i32) -> (i32, i32, i32) {
    %c0_i32 = arith.constant 0 : i32
    %c0_i32_0 = arith.constant 0 : i32
    %c0_i32_1 = arith.constant 0 : i32
    return %arg0, %c0_i32, %c0_i32_0 : i32, i32, i32
  }
}

module attributes {stable_mosaic.version = 11 : i64} {
  func.func @_conv_gn_kernel(%arg0: i32, %arg1: memref<1x16x324xbf16, #tpu.memory_space<vmem>>, %arg2: memref<9x16x16xbf16, #tpu.memory_space<vmem>>, %arg3: memref<16x1xf32, #tpu.memory_space<vmem>>, %arg4: memref<16x1xf32, #tpu.memory_space<vmem>>, %arg5: memref<1x286xf32, #tpu.memory_space<vmem>>, %arg6: memref<1x16x324xbf16, #tpu.memory_space<vmem>>, %arg7: memref<1x16x324xbf16, #tpu.memory_space<vmem>>) attributes {dimension_semantics = [#tpu.dimension_semantics<parallel>], iteration_bounds = array<i64: 2>, scalar_prefetch = 0 : i64, scratch_operands = 0 : i64, tpu.core_type = #tpu.core_type<tc>, window_params = [{transform_indices = @transform_0, window_bounds = array<i64: 1, 16, 324>}, {pipeline_mode = #tpu.pipeline_mode<synchronous>, transform_indices = @transform_1, window_bounds = array<i64: 9, 16, 16>}, {pipeline_mode = #tpu.pipeline_mode<synchronous>, transform_indices = @transform_2, window_bounds = array<i64: 16, 1>}, {pipeline_mode = #tpu.pipeline_mode<synchronous>, transform_indices = @transform_3, window_bounds = array<i64: 16, 1>}, {pipeline_mode = #tpu.pipeline_mode<synchronous>, transform_indices = @transform_4, window_bounds = array<i64: 1, 286>}, {transform_indices = @transform_5, window_bounds = array<i64: 1, 16, 324>}, {transform_indices = @transform_6, window_bounds = array<i64: 1, 16, 324>}]} {
    %c0 = arith.constant 0 : index
    %c0_0 = arith.constant 0 : index
    %c0_1 = arith.constant 0 : index
    %0 = vector.load %arg1[%c0, %c0_0, %c0_1] : memref<1x16x324xbf16, #tpu.memory_space<vmem>>, vector<1x16x324xbf16>
    %1 = vector.shape_cast %0 : vector<1x16x324xbf16> to vector<16x324xbf16>
    %cst = arith.constant 0.000000e+00 : f32
    %2 = vector.broadcast %cst : f32 to vector<16x286xf32>
    %c0_2 = arith.constant 0 : index
    %c0_3 = arith.constant 0 : index
    %c0_4 = arith.constant 0 : index
    %3 = vector.load %arg2[%c0_2, %c0_3, %c0_4] : memref<9x16x16xbf16, #tpu.memory_space<vmem>>, vector<1x16x16xbf16>
    %4 = vector.shape_cast %3 : vector<1x16x16xbf16> to vector<16x16xbf16>
    %5 = vector.extract_strided_slice %1 {offsets = [0, 0], sizes = [16, 286], strides = [1, 1]} : vector<16x324xbf16> to vector<16x286xbf16>
    %cst_5 = arith.constant dense<0.000000e+00> : vector<16x286xf32>
    %6 = tpu.matmul %4, %5, %cst_5 {dimension_numbers = #tpu.dot_dimension_numbers<[1], [0], [0], [1], [0, 0, 1, 1], [], []>} : vector<16x16xbf16>, vector<16x286xbf16>, vector<16x286xf32> -> vector<16x286xf32>
    %7 = arith.addf %2, %6 : vector<16x286xf32>
    %c1 = arith.constant 1 : index
    %c0_6 = arith.constant 0 : index
    %c0_7 = arith.constant 0 : index
    %8 = vector.load %arg2[%c1, %c0_6, %c0_7] : memref<9x16x16xbf16, #tpu.memory_space<vmem>>, vector<1x16x16xbf16>
    %9 = vector.shape_cast %8 : vector<1x16x16xbf16> to vector<16x16xbf16>
    %10 = vector.extract_strided_slice %1 {offsets = [0, 1], sizes = [16, 286], strides = [1, 1]} : vector<16x324xbf16> to vector<16x286xbf16>
    %cst_8 = arith.constant dense<0.000000e+00> : vector<16x286xf32>
    %11 = tpu.matmul %9, %10, %cst_8 {dimension_numbers = #tpu.dot_dimension_numbers<[1], [0], [0], [1], [0, 0, 1, 1], [], []>} : vector<16x16xbf16>, vector<16x286xbf16>, vector<16x286xf32> -> vector<16x286xf32>
    %12 = arith.addf %7, %11 : vector<16x286xf32>
    %c2 = arith.constant 2 : index
    %c0_9 = arith.constant 0 : index
    %c0_10 = arith.constant 0 : index
    %13 = vector.load %arg2[%c2, %c0_9, %c0_10] : memref<9x16x16xbf16, #tpu.memory_space<vmem>>, vector<1x16x16xbf16>
    %14 = vector.shape_cast %13 : vector<1x16x16xbf16> to vector<16x16xbf16>
    %15 = vector.extract_strided_slice %1 {offsets = [0, 2], sizes = [16, 286], strides = [1, 1]} : vector<16x324xbf16> to vector<16x286xbf16>
    %cst_11 = arith.constant dense<0.000000e+00> : vector<16x286xf32>
    %16 = tpu.matmul %14, %15, %cst_11 {dimension_numbers = #tpu.dot_dimension_numbers<[1], [0], [0], [1], [0, 0, 1, 1], [], []>} : vector<16x16xbf16>, vector<16x286xbf16>, vector<16x286xf32> -> vector<16x286xf32>
    %17 = arith.addf %12, %16 : vector<16x286xf32>
    %c3 = arith.constant 3 : index
    %c0_12 = arith.constant 0 : index
    %c0_13 = arith.constant 0 : index
    %18 = vector.load %arg2[%c3, %c0_12, %c0_13] : memref<9x16x16xbf16, #tpu.memory_space<vmem>>, vector<1x16x16xbf16>
    %19 = vector.shape_cast %18 : vector<1x16x16xbf16> to vector<16x16xbf16>
    %20 = vector.extract_strided_slice %1 {offsets = [0, 18], sizes = [16, 286], strides = [1, 1]} : vector<16x324xbf16> to vector<16x286xbf16>
    %cst_14 = arith.constant dense<0.000000e+00> : vector<16x286xf32>
    %21 = tpu.matmul %19, %20, %cst_14 {dimension_numbers = #tpu.dot_dimension_numbers<[1], [0], [0], [1], [0, 0, 1, 1], [], []>} : vector<16x16xbf16>, vector<16x286xbf16>, vector<16x286xf32> -> vector<16x286xf32>
    %22 = arith.addf %17, %21 : vector<16x286xf32>
    %c4 = arith.constant 4 : index
    %c0_15 = arith.constant 0 : index
    %c0_16 = arith.constant 0 : index
    %23 = vector.load %arg2[%c4, %c0_15, %c0_16] : memref<9x16x16xbf16, #tpu.memory_space<vmem>>, vector<1x16x16xbf16>
    %24 = vector.shape_cast %23 : vector<1x16x16xbf16> to vector<16x16xbf16>
    %25 = vector.extract_strided_slice %1 {offsets = [0, 19], sizes = [16, 286], strides = [1, 1]} : vector<16x324xbf16> to vector<16x286xbf16>
    %cst_17 = arith.constant dense<0.000000e+00> : vector<16x286xf32>
    %26 = tpu.matmul %24, %25, %cst_17 {dimension_numbers = #tpu.dot_dimension_numbers<[1], [0], [0], [1], [0, 0, 1, 1], [], []>} : vector<16x16xbf16>, vector<16x286xbf16>, vector<16x286xf32> -> vector<16x286xf32>
    %27 = arith.addf %22, %26 : vector<16x286xf32>
    %c5 = arith.constant 5 : index
    %c0_18 = arith.constant 0 : index
    %c0_19 = arith.constant 0 : index
    %28 = vector.load %arg2[%c5, %c0_18, %c0_19] : memref<9x16x16xbf16, #tpu.memory_space<vmem>>, vector<1x16x16xbf16>
    %29 = vector.shape_cast %28 : vector<1x16x16xbf16> to vector<16x16xbf16>
    %30 = vector.extract_strided_slice %1 {offsets = [0, 20], sizes = [16, 286], strides = [1, 1]} : vector<16x324xbf16> to vector<16x286xbf16>
    %cst_20 = arith.constant dense<0.000000e+00> : vector<16x286xf32>
    %31 = tpu.matmul %29, %30, %cst_20 {dimension_numbers = #tpu.dot_dimension_numbers<[1], [0], [0], [1], [0, 0, 1, 1], [], []>} : vector<16x16xbf16>, vector<16x286xbf16>, vector<16x286xf32> -> vector<16x286xf32>
    %32 = arith.addf %27, %31 : vector<16x286xf32>
    %c6 = arith.constant 6 : index
    %c0_21 = arith.constant 0 : index
    %c0_22 = arith.constant 0 : index
    %33 = vector.load %arg2[%c6, %c0_21, %c0_22] : memref<9x16x16xbf16, #tpu.memory_space<vmem>>, vector<1x16x16xbf16>
    %34 = vector.shape_cast %33 : vector<1x16x16xbf16> to vector<16x16xbf16>
    %35 = vector.extract_strided_slice %1 {offsets = [0, 36], sizes = [16, 286], strides = [1, 1]} : vector<16x324xbf16> to vector<16x286xbf16>
    %cst_23 = arith.constant dense<0.000000e+00> : vector<16x286xf32>
    %36 = tpu.matmul %34, %35, %cst_23 {dimension_numbers = #tpu.dot_dimension_numbers<[1], [0], [0], [1], [0, 0, 1, 1], [], []>} : vector<16x16xbf16>, vector<16x286xbf16>, vector<16x286xf32> -> vector<16x286xf32>
    %37 = arith.addf %32, %36 : vector<16x286xf32>
    %c7 = arith.constant 7 : index
    %c0_24 = arith.constant 0 : index
    %c0_25 = arith.constant 0 : index
    %38 = vector.load %arg2[%c7, %c0_24, %c0_25] : memref<9x16x16xbf16, #tpu.memory_space<vmem>>, vector<1x16x16xbf16>
    %39 = vector.shape_cast %38 : vector<1x16x16xbf16> to vector<16x16xbf16>
    %40 = vector.extract_strided_slice %1 {offsets = [0, 37], sizes = [16, 286], strides = [1, 1]} : vector<16x324xbf16> to vector<16x286xbf16>
    %cst_26 = arith.constant dense<0.000000e+00> : vector<16x286xf32>
    %41 = tpu.matmul %39, %40, %cst_26 {dimension_numbers = #tpu.dot_dimension_numbers<[1], [0], [0], [1], [0, 0, 1, 1], [], []>} : vector<16x16xbf16>, vector<16x286xbf16>, vector<16x286xf32> -> vector<16x286xf32>
    %42 = arith.addf %37, %41 : vector<16x286xf32>
    %c8 = arith.constant 8 : index
    %c0_27 = arith.constant 0 : index
    %c0_28 = arith.constant 0 : index
    %43 = vector.load %arg2[%c8, %c0_27, %c0_28] : memref<9x16x16xbf16, #tpu.memory_space<vmem>>, vector<1x16x16xbf16>
    %44 = vector.shape_cast %43 : vector<1x16x16xbf16> to vector<16x16xbf16>
    %45 = vector.extract_strided_slice %1 {offsets = [0, 38], sizes = [16, 286], strides = [1, 1]} : vector<16x324xbf16> to vector<16x286xbf16>
    %cst_29 = arith.constant dense<0.000000e+00> : vector<16x286xf32>
    %46 = tpu.matmul %44, %45, %cst_29 {dimension_numbers = #tpu.dot_dimension_numbers<[1], [0], [0], [1], [0, 0, 1, 1], [], []>} : vector<16x16xbf16>, vector<16x286xbf16>, vector<16x286xf32> -> vector<16x286xf32>
    %47 = arith.addf %42, %46 : vector<16x286xf32>
    %c0_30 = arith.constant 0 : index
    %c0_31 = arith.constant 0 : index
    %48 = vector.load %arg5[%c0_30, %c0_31] : memref<1x286xf32, #tpu.memory_space<vmem>>, vector<1x286xf32>
    %49 = vector.broadcast %48 : vector<1x286xf32> to vector<16x286xf32>
    %50 = arith.mulf %47, %49 : vector<16x286xf32>
    %51 = vector.shape_cast %50 : vector<16x286xf32> to vector<1x16x286xf32>
    %cst_32 = arith.constant dense<0.000000e+00> : vector<1xf32>
    %52 = vector.multi_reduction <add>, %51, %cst_32 [1, 2] : vector<1x16x286xf32> to vector<1xf32>
    %53 = vector.shape_cast %52 : vector<1xf32> to vector<1x1x1xf32>
    %54 = vector.extract %53[0, 0, 0] : f32 from vector<1x1x1xf32>
    %55 = vector.broadcast %54 : f32 to vector<1x1xf32>
    %cst_33 = arith.constant 2.44140625E-4 : f32
    %56 = vector.broadcast %cst_33 : f32 to vector<1x1xf32>
    %57 = arith.mulf %55, %56 : vector<1x1xf32>
    %58 = vector.broadcast %57 : vector<1x1xf32> to vector<16x286xf32>
    %59 = arith.subf %47, %58 : vector<16x286xf32>
    %60 = arith.mulf %59, %59 : vector<16x286xf32>
    %61 = vector.broadcast %48 : vector<1x286xf32> to vector<16x286xf32>
    %62 = arith.mulf %60, %61 : vector<16x286xf32>
    %63 = vector.shape_cast %62 : vector<16x286xf32> to vector<1x16x286xf32>
    %cst_34 = arith.constant dense<0.000000e+00> : vector<1xf32>
    %64 = vector.multi_reduction <add>, %63, %cst_34 [1, 2] : vector<1x16x286xf32> to vector<1xf32>
    %65 = vector.shape_cast %64 : vector<1xf32> to vector<1x1x1xf32>
    %66 = vector.extract %65[0, 0, 0] : f32 from vector<1x1x1xf32>
    %67 = vector.broadcast %66 : f32 to vector<1x1xf32>
    %cst_35 = arith.constant 2.44140625E-4 : f32
    %68 = vector.broadcast %cst_35 : f32 to vector<1x1xf32>
    %69 = arith.mulf %67, %68 : vector<1x1xf32>
    %cst_36 = arith.constant 9.99999974E-6 : f32
    %70 = vector.broadcast %cst_36 : f32 to vector<1x1xf32>
    %71 = arith.addf %69, %70 : vector<1x1xf32>
    %72 = math.rsqrt %71 : vector<1x1xf32>
    %73 = vector.broadcast %72 : vector<1x1xf32> to vector<16x286xf32>
    %74 = arith.mulf %59, %73 : vector<16x286xf32>
    %c0_37 = arith.constant 0 : index
    %c0_38 = arith.constant 0 : index
    %75 = vector.load %arg3[%c0_37, %c0_38] : memref<16x1xf32, #tpu.memory_space<vmem>>, vector<16x1xf32>
    %76 = vector.broadcast %75 : vector<16x1xf32> to vector<16x286xf32>
    %77 = arith.mulf %74, %76 : vector<16x286xf32>
    %c0_39 = arith.constant 0 : index
    %c0_40 = arith.constant 0 : index
    %78 = vector.load %arg4[%c0_39, %c0_40] : memref<16x1xf32, #tpu.memory_space<vmem>>, vector<16x1xf32>
    %79 = vector.broadcast %78 : vector<16x1xf32> to vector<16x286xf32>
    %80 = arith.addf %77, %79 : vector<16x286xf32>
    %c0_41 = arith.constant 0 : index
    %c0_42 = arith.constant 0 : index
    %c0_43 = arith.constant 0 : index
    %81 = vector.load %arg6[%c0_41, %c0_42, %c0_43] : memref<1x16x324xbf16, #tpu.memory_space<vmem>>, vector<1x16x324xbf16>
    %82 = vector.shape_cast %81 : vector<1x16x324xbf16> to vector<16x324xbf16>
    %83 = vector.extract_strided_slice %82 {offsets = [0, 19], sizes = [16, 286], strides = [1, 1]} : vector<16x324xbf16> to vector<16x286xbf16>
    %84 = arith.extf %83 : vector<16x286xbf16> to vector<16x286xf32>
    %85 = arith.addf %84, %80 : vector<16x286xf32>
    %cst_44 = arith.constant 5.000000e-01 : f32
    %86 = vector.broadcast %cst_44 : f32 to vector<16x286xf32>
    %87 = arith.mulf %86, %85 : vector<16x286xf32>
    %cst_45 = arith.constant 0.707106769 : f32
    %88 = vector.broadcast %cst_45 : f32 to vector<16x286xf32>
    %89 = arith.mulf %85, %88 : vector<16x286xf32>
    %cst_46 = arith.constant 0.000000e+00 : f32
    %90 = vector.broadcast %cst_46 : f32 to vector<16x286xf32>
    %91 = arith.cmpf oge, %89, %90 : vector<16x286xf32>
    %cst_47 = arith.constant 1.000000e+00 : f32
    %cst_48 = arith.constant -1.000000e+00 : f32
    %92 = vector.broadcast %cst_47 : f32 to vector<16x286xf32>
    %93 = vector.broadcast %cst_48 : f32 to vector<16x286xf32>
    %94 = arith.select %91, %92, %93 : vector<16x286xi1>, vector<16x286xf32>
    %95 = arith.mulf %89, %94 : vector<16x286xf32>
    %cst_49 = arith.constant 0.327591091 : f32
    %96 = vector.broadcast %cst_49 : f32 to vector<16x286xf32>
    %97 = arith.mulf %96, %95 : vector<16x286xf32>
    %cst_50 = arith.constant 1.000000e+00 : f32
    %98 = vector.broadcast %cst_50 : f32 to vector<16x286xf32>
    %99 = arith.addf %98, %97 : vector<16x286xf32>
    %cst_51 = arith.constant 1.000000e+00 : f32
    %100 = vector.broadcast %cst_51 : f32 to vector<16x286xf32>
    %101 = arith.divf %100, %99 : vector<16x286xf32>
    %cst_52 = arith.constant 1.06140542 : f32
    %102 = vector.broadcast %cst_52 : f32 to vector<16x286xf32>
    %103 = arith.mulf %102, %101 : vector<16x286xf32>
    %cst_53 = arith.constant -1.45315206 : f32
    %104 = vector.broadcast %cst_53 : f32 to vector<16x286xf32>
    %105 = arith.addf %103, %104 : vector<16x286xf32>
    %106 = arith.mulf %105, %101 : vector<16x286xf32>
    %cst_54 = arith.constant 1.42141378 : f32
    %107 = vector.broadcast %cst_54 : f32 to vector<16x286xf32>
    %108 = arith.addf %106, %107 : vector<16x286xf32>
    %109 = arith.mulf %108, %101 : vector<16x286xf32>
    %cst_55 = arith.constant -0.284496725 : f32
    %110 = vector.broadcast %cst_55 : f32 to vector<16x286xf32>
    %111 = arith.addf %109, %110 : vector<16x286xf32>
    %112 = arith.mulf %111, %101 : vector<16x286xf32>
    %cst_56 = arith.constant 0.254829586 : f32
    %113 = vector.broadcast %cst_56 : f32 to vector<16x286xf32>
    %114 = arith.addf %112, %113 : vector<16x286xf32>
    %115 = arith.mulf %114, %101 : vector<16x286xf32>
    %cst_57 = arith.constant 0.000000e+00 : f32
    %116 = vector.broadcast %cst_57 : f32 to vector<16x286xf32>
    %117 = arith.subf %116, %95 : vector<16x286xf32>
    %118 = arith.mulf %117, %95 : vector<16x286xf32>
    %119 = math.exp %118 : vector<16x286xf32>
    %120 = arith.mulf %115, %119 : vector<16x286xf32>
    %cst_58 = arith.constant 1.000000e+00 : f32
    %121 = vector.broadcast %cst_58 : f32 to vector<16x286xf32>
    %122 = arith.subf %121, %120 : vector<16x286xf32>
    %123 = arith.mulf %94, %122 : vector<16x286xf32>
    %cst_59 = arith.constant 1.000000e+00 : f32
    %124 = vector.broadcast %cst_59 : f32 to vector<16x286xf32>
    %125 = arith.addf %124, %123 : vector<16x286xf32>
    %126 = arith.mulf %87, %125 : vector<16x286xf32>
    %127 = vector.broadcast %48 : vector<1x286xf32> to vector<16x286xf32>
    %128 = arith.mulf %126, %127 : vector<16x286xf32>
    %cst_60 = arith.constant 0.000000e+00 : bf16
    %129 = vector.broadcast %cst_60 : bf16 to vector<16x324xbf16>
    %c0_61 = arith.constant 0 : index
    %c0_62 = arith.constant 0 : index
    %c0_63 = arith.constant 0 : index
    %130 = vector.load %arg7[%c0_61, %c0_62, %c0_63] : memref<1x16x324xbf16, #tpu.memory_space<vmem>>, vector<1x16x324xbf16>
    %131 = vector.shape_cast %130 : vector<1x16x324xbf16> to vector<16x324xbf16>
    %132 = vector.shape_cast %129 : vector<16x324xbf16> to vector<1x16x324xbf16>
    tpu.vector_store %arg7[%c0_61, %c0_62, %c0_63], %132 {strides = array<i32>} : memref<1x16x324xbf16, #tpu.memory_space<vmem>>, vector<1x16x324xbf16>,
    %133 = arith.truncf %128 : vector<16x286xf32> to vector<16x286xbf16>
    %c0_64 = arith.constant 0 : index
    %c0_65 = arith.constant 0 : index
    %c19 = arith.constant 19 : index
    %134 = vector.load %arg7[%c0_64, %c0_65, %c19] : memref<1x16x324xbf16, #tpu.memory_space<vmem>>, vector<1x16x286xbf16>
    %135 = vector.shape_cast %134 : vector<1x16x286xbf16> to vector<16x286xbf16>
    %136 = vector.shape_cast %133 : vector<16x286xbf16> to vector<1x16x286xbf16>
    tpu.vector_store %arg7[%c0_64, %c0_65, %c19], %136 {strides = array<i32>} : memref<1x16x324xbf16, #tpu.memory_space<vmem>>, vector<1x16x286xbf16>,
    return
  }
  func.func @transform_0(%arg0: i32) -> (i32, i32, i32) {
    %c0_i32 = arith.constant 0 : i32
    %c0_i32_0 = arith.constant 0 : i32
    %c0_i32_1 = arith.constant 0 : i32
    return %arg0, %c0_i32, %c0_i32_0 : i32, i32, i32
  }
  func.func @transform_1(%arg0: i32) -> (i32, i32, i32) {
    %c0_i32 = arith.constant 0 : i32
    %c0_i32_0 = arith.constant 0 : i32
    %c0_i32_1 = arith.constant 0 : i32
    %c0_i32_2 = arith.constant 0 : i32
    return %c0_i32, %c0_i32_0, %c0_i32_1 : i32, i32, i32
  }
  func.func @transform_2(%arg0: i32) -> (i32, i32) {
    %c0_i32 = arith.constant 0 : i32
    %c0_i32_0 = arith.constant 0 : i32
    %c0_i32_1 = arith.constant 0 : i32
    return %c0_i32, %c0_i32_0 : i32, i32
  }
  func.func @transform_3(%arg0: i32) -> (i32, i32) {
    %c0_i32 = arith.constant 0 : i32
    %c0_i32_0 = arith.constant 0 : i32
    %c0_i32_1 = arith.constant 0 : i32
    return %c0_i32, %c0_i32_0 : i32, i32
  }
  func.func @transform_4(%arg0: i32) -> (i32, i32) {
    %c0_i32 = arith.constant 0 : i32
    %c0_i32_0 = arith.constant 0 : i32
    %c0_i32_1 = arith.constant 0 : i32
    return %c0_i32, %c0_i32_0 : i32, i32
  }
  func.func @transform_5(%arg0: i32) -> (i32, i32, i32) {
    %c0_i32 = arith.constant 0 : i32
    %c0_i32_0 = arith.constant 0 : i32
    %c0_i32_1 = arith.constant 0 : i32
    return %arg0, %c0_i32, %c0_i32_0 : i32, i32, i32
  }
  func.func @transform_6(%arg0: i32) -> (i32, i32, i32) {
    %c0_i32 = arith.constant 0 : i32
    %c0_i32_0 = arith.constant 0 : i32
    %c0_i32_1 = arith.constant 0 : i32
    return %arg0, %c0_i32, %c0_i32_0 : i32, i32, i32
  }
}

module attributes {stable_mosaic.version = 11 : i64} {
  func.func @_conv_gn_kernel(%arg0: i32, %arg1: memref<1x16x324xbf16, #tpu.memory_space<vmem>>, %arg2: memref<9x16x16xbf16, #tpu.memory_space<vmem>>, %arg3: memref<16x1xf32, #tpu.memory_space<vmem>>, %arg4: memref<16x1xf32, #tpu.memory_space<vmem>>, %arg5: memref<1x286xf32, #tpu.memory_space<vmem>>, %arg6: memref<1x16x324xbf16, #tpu.memory_space<vmem>>) attributes {dimension_semantics = [#tpu.dimension_semantics<parallel>], iteration_bounds = array<i64: 2>, scalar_prefetch = 0 : i64, scratch_operands = 0 : i64, tpu.core_type = #tpu.core_type<tc>, window_params = [{transform_indices = @transform_0, window_bounds = array<i64: 1, 16, 324>}, {pipeline_mode = #tpu.pipeline_mode<synchronous>, transform_indices = @transform_1, window_bounds = array<i64: 9, 16, 16>}, {pipeline_mode = #tpu.pipeline_mode<synchronous>, transform_indices = @transform_2, window_bounds = array<i64: 16, 1>}, {pipeline_mode = #tpu.pipeline_mode<synchronous>, transform_indices = @transform_3, window_bounds = array<i64: 16, 1>}, {pipeline_mode = #tpu.pipeline_mode<synchronous>, transform_indices = @transform_4, window_bounds = array<i64: 1, 286>}, {transform_indices = @transform_5, window_bounds = array<i64: 1, 16, 324>}]} {
    %c0 = arith.constant 0 : index
    %c0_0 = arith.constant 0 : index
    %c0_1 = arith.constant 0 : index
    %0 = vector.load %arg1[%c0, %c0_0, %c0_1] : memref<1x16x324xbf16, #tpu.memory_space<vmem>>, vector<1x16x324xbf16>
    %1 = vector.shape_cast %0 : vector<1x16x324xbf16> to vector<16x324xbf16>
    %cst = arith.constant 0.000000e+00 : f32
    %2 = vector.broadcast %cst : f32 to vector<16x286xf32>
    %c0_2 = arith.constant 0 : index
    %c0_3 = arith.constant 0 : index
    %c0_4 = arith.constant 0 : index
    %3 = vector.load %arg2[%c0_2, %c0_3, %c0_4] : memref<9x16x16xbf16, #tpu.memory_space<vmem>>, vector<1x16x16xbf16>
    %4 = vector.shape_cast %3 : vector<1x16x16xbf16> to vector<16x16xbf16>
    %5 = vector.extract_strided_slice %1 {offsets = [0, 0], sizes = [16, 286], strides = [1, 1]} : vector<16x324xbf16> to vector<16x286xbf16>
    %cst_5 = arith.constant dense<0.000000e+00> : vector<16x286xf32>
    %6 = tpu.matmul %4, %5, %cst_5 {dimension_numbers = #tpu.dot_dimension_numbers<[1], [0], [0], [1], [0, 0, 1, 1], [], []>} : vector<16x16xbf16>, vector<16x286xbf16>, vector<16x286xf32> -> vector<16x286xf32>
    %7 = arith.addf %2, %6 : vector<16x286xf32>
    %c1 = arith.constant 1 : index
    %c0_6 = arith.constant 0 : index
    %c0_7 = arith.constant 0 : index
    %8 = vector.load %arg2[%c1, %c0_6, %c0_7] : memref<9x16x16xbf16, #tpu.memory_space<vmem>>, vector<1x16x16xbf16>
    %9 = vector.shape_cast %8 : vector<1x16x16xbf16> to vector<16x16xbf16>
    %10 = vector.extract_strided_slice %1 {offsets = [0, 1], sizes = [16, 286], strides = [1, 1]} : vector<16x324xbf16> to vector<16x286xbf16>
    %cst_8 = arith.constant dense<0.000000e+00> : vector<16x286xf32>
    %11 = tpu.matmul %9, %10, %cst_8 {dimension_numbers = #tpu.dot_dimension_numbers<[1], [0], [0], [1], [0, 0, 1, 1], [], []>} : vector<16x16xbf16>, vector<16x286xbf16>, vector<16x286xf32> -> vector<16x286xf32>
    %12 = arith.addf %7, %11 : vector<16x286xf32>
    %c2 = arith.constant 2 : index
    %c0_9 = arith.constant 0 : index
    %c0_10 = arith.constant 0 : index
    %13 = vector.load %arg2[%c2, %c0_9, %c0_10] : memref<9x16x16xbf16, #tpu.memory_space<vmem>>, vector<1x16x16xbf16>
    %14 = vector.shape_cast %13 : vector<1x16x16xbf16> to vector<16x16xbf16>
    %15 = vector.extract_strided_slice %1 {offsets = [0, 2], sizes = [16, 286], strides = [1, 1]} : vector<16x324xbf16> to vector<16x286xbf16>
    %cst_11 = arith.constant dense<0.000000e+00> : vector<16x286xf32>
    %16 = tpu.matmul %14, %15, %cst_11 {dimension_numbers = #tpu.dot_dimension_numbers<[1], [0], [0], [1], [0, 0, 1, 1], [], []>} : vector<16x16xbf16>, vector<16x286xbf16>, vector<16x286xf32> -> vector<16x286xf32>
    %17 = arith.addf %12, %16 : vector<16x286xf32>
    %c3 = arith.constant 3 : index
    %c0_12 = arith.constant 0 : index
    %c0_13 = arith.constant 0 : index
    %18 = vector.load %arg2[%c3, %c0_12, %c0_13] : memref<9x16x16xbf16, #tpu.memory_space<vmem>>, vector<1x16x16xbf16>
    %19 = vector.shape_cast %18 : vector<1x16x16xbf16> to vector<16x16xbf16>
    %20 = vector.extract_strided_slice %1 {offsets = [0, 18], sizes = [16, 286], strides = [1, 1]} : vector<16x324xbf16> to vector<16x286xbf16>
    %cst_14 = arith.constant dense<0.000000e+00> : vector<16x286xf32>
    %21 = tpu.matmul %19, %20, %cst_14 {dimension_numbers = #tpu.dot_dimension_numbers<[1], [0], [0], [1], [0, 0, 1, 1], [], []>} : vector<16x16xbf16>, vector<16x286xbf16>, vector<16x286xf32> -> vector<16x286xf32>
    %22 = arith.addf %17, %21 : vector<16x286xf32>
    %c4 = arith.constant 4 : index
    %c0_15 = arith.constant 0 : index
    %c0_16 = arith.constant 0 : index
    %23 = vector.load %arg2[%c4, %c0_15, %c0_16] : memref<9x16x16xbf16, #tpu.memory_space<vmem>>, vector<1x16x16xbf16>
    %24 = vector.shape_cast %23 : vector<1x16x16xbf16> to vector<16x16xbf16>
    %25 = vector.extract_strided_slice %1 {offsets = [0, 19], sizes = [16, 286], strides = [1, 1]} : vector<16x324xbf16> to vector<16x286xbf16>
    %cst_17 = arith.constant dense<0.000000e+00> : vector<16x286xf32>
    %26 = tpu.matmul %24, %25, %cst_17 {dimension_numbers = #tpu.dot_dimension_numbers<[1], [0], [0], [1], [0, 0, 1, 1], [], []>} : vector<16x16xbf16>, vector<16x286xbf16>, vector<16x286xf32> -> vector<16x286xf32>
    %27 = arith.addf %22, %26 : vector<16x286xf32>
    %c5 = arith.constant 5 : index
    %c0_18 = arith.constant 0 : index
    %c0_19 = arith.constant 0 : index
    %28 = vector.load %arg2[%c5, %c0_18, %c0_19] : memref<9x16x16xbf16, #tpu.memory_space<vmem>>, vector<1x16x16xbf16>
    %29 = vector.shape_cast %28 : vector<1x16x16xbf16> to vector<16x16xbf16>
    %30 = vector.extract_strided_slice %1 {offsets = [0, 20], sizes = [16, 286], strides = [1, 1]} : vector<16x324xbf16> to vector<16x286xbf16>
    %cst_20 = arith.constant dense<0.000000e+00> : vector<16x286xf32>
    %31 = tpu.matmul %29, %30, %cst_20 {dimension_numbers = #tpu.dot_dimension_numbers<[1], [0], [0], [1], [0, 0, 1, 1], [], []>} : vector<16x16xbf16>, vector<16x286xbf16>, vector<16x286xf32> -> vector<16x286xf32>
    %32 = arith.addf %27, %31 : vector<16x286xf32>
    %c6 = arith.constant 6 : index
    %c0_21 = arith.constant 0 : index
    %c0_22 = arith.constant 0 : index
    %33 = vector.load %arg2[%c6, %c0_21, %c0_22] : memref<9x16x16xbf16, #tpu.memory_space<vmem>>, vector<1x16x16xbf16>
    %34 = vector.shape_cast %33 : vector<1x16x16xbf16> to vector<16x16xbf16>
    %35 = vector.extract_strided_slice %1 {offsets = [0, 36], sizes = [16, 286], strides = [1, 1]} : vector<16x324xbf16> to vector<16x286xbf16>
    %cst_23 = arith.constant dense<0.000000e+00> : vector<16x286xf32>
    %36 = tpu.matmul %34, %35, %cst_23 {dimension_numbers = #tpu.dot_dimension_numbers<[1], [0], [0], [1], [0, 0, 1, 1], [], []>} : vector<16x16xbf16>, vector<16x286xbf16>, vector<16x286xf32> -> vector<16x286xf32>
    %37 = arith.addf %32, %36 : vector<16x286xf32>
    %c7 = arith.constant 7 : index
    %c0_24 = arith.constant 0 : index
    %c0_25 = arith.constant 0 : index
    %38 = vector.load %arg2[%c7, %c0_24, %c0_25] : memref<9x16x16xbf16, #tpu.memory_space<vmem>>, vector<1x16x16xbf16>
    %39 = vector.shape_cast %38 : vector<1x16x16xbf16> to vector<16x16xbf16>
    %40 = vector.extract_strided_slice %1 {offsets = [0, 37], sizes = [16, 286], strides = [1, 1]} : vector<16x324xbf16> to vector<16x286xbf16>
    %cst_26 = arith.constant dense<0.000000e+00> : vector<16x286xf32>
    %41 = tpu.matmul %39, %40, %cst_26 {dimension_numbers = #tpu.dot_dimension_numbers<[1], [0], [0], [1], [0, 0, 1, 1], [], []>} : vector<16x16xbf16>, vector<16x286xbf16>, vector<16x286xf32> -> vector<16x286xf32>
    %42 = arith.addf %37, %41 : vector<16x286xf32>
    %c8 = arith.constant 8 : index
    %c0_27 = arith.constant 0 : index
    %c0_28 = arith.constant 0 : index
    %43 = vector.load %arg2[%c8, %c0_27, %c0_28] : memref<9x16x16xbf16, #tpu.memory_space<vmem>>, vector<1x16x16xbf16>
    %44 = vector.shape_cast %43 : vector<1x16x16xbf16> to vector<16x16xbf16>
    %45 = vector.extract_strided_slice %1 {offsets = [0, 38], sizes = [16, 286], strides = [1, 1]} : vector<16x324xbf16> to vector<16x286xbf16>
    %cst_29 = arith.constant dense<0.000000e+00> : vector<16x286xf32>
    %46 = tpu.matmul %44, %45, %cst_29 {dimension_numbers = #tpu.dot_dimension_numbers<[1], [0], [0], [1], [0, 0, 1, 1], [], []>} : vector<16x16xbf16>, vector<16x286xbf16>, vector<16x286xf32> -> vector<16x286xf32>
    %47 = arith.addf %42, %46 : vector<16x286xf32>
    %c0_30 = arith.constant 0 : index
    %c0_31 = arith.constant 0 : index
    %48 = vector.load %arg5[%c0_30, %c0_31] : memref<1x286xf32, #tpu.memory_space<vmem>>, vector<1x286xf32>
    %49 = vector.broadcast %48 : vector<1x286xf32> to vector<16x286xf32>
    %50 = arith.mulf %47, %49 : vector<16x286xf32>
    %51 = vector.shape_cast %50 : vector<16x286xf32> to vector<1x16x286xf32>
    %cst_32 = arith.constant dense<0.000000e+00> : vector<1xf32>
    %52 = vector.multi_reduction <add>, %51, %cst_32 [1, 2] : vector<1x16x286xf32> to vector<1xf32>
    %53 = vector.shape_cast %52 : vector<1xf32> to vector<1x1x1xf32>
    %54 = vector.extract %53[0, 0, 0] : f32 from vector<1x1x1xf32>
    %55 = vector.broadcast %54 : f32 to vector<1x1xf32>
    %cst_33 = arith.constant 2.44140625E-4 : f32
    %56 = vector.broadcast %cst_33 : f32 to vector<1x1xf32>
    %57 = arith.mulf %55, %56 : vector<1x1xf32>
    %58 = vector.broadcast %57 : vector<1x1xf32> to vector<16x286xf32>
    %59 = arith.subf %47, %58 : vector<16x286xf32>
    %60 = arith.mulf %59, %59 : vector<16x286xf32>
    %61 = vector.broadcast %48 : vector<1x286xf32> to vector<16x286xf32>
    %62 = arith.mulf %60, %61 : vector<16x286xf32>
    %63 = vector.shape_cast %62 : vector<16x286xf32> to vector<1x16x286xf32>
    %cst_34 = arith.constant dense<0.000000e+00> : vector<1xf32>
    %64 = vector.multi_reduction <add>, %63, %cst_34 [1, 2] : vector<1x16x286xf32> to vector<1xf32>
    %65 = vector.shape_cast %64 : vector<1xf32> to vector<1x1x1xf32>
    %66 = vector.extract %65[0, 0, 0] : f32 from vector<1x1x1xf32>
    %67 = vector.broadcast %66 : f32 to vector<1x1xf32>
    %cst_35 = arith.constant 2.44140625E-4 : f32
    %68 = vector.broadcast %cst_35 : f32 to vector<1x1xf32>
    %69 = arith.mulf %67, %68 : vector<1x1xf32>
    %cst_36 = arith.constant 9.99999974E-6 : f32
    %70 = vector.broadcast %cst_36 : f32 to vector<1x1xf32>
    %71 = arith.addf %69, %70 : vector<1x1xf32>
    %72 = math.rsqrt %71 : vector<1x1xf32>
    %73 = vector.broadcast %72 : vector<1x1xf32> to vector<16x286xf32>
    %74 = arith.mulf %59, %73 : vector<16x286xf32>
    %c0_37 = arith.constant 0 : index
    %c0_38 = arith.constant 0 : index
    %75 = vector.load %arg3[%c0_37, %c0_38] : memref<16x1xf32, #tpu.memory_space<vmem>>, vector<16x1xf32>
    %76 = vector.broadcast %75 : vector<16x1xf32> to vector<16x286xf32>
    %77 = arith.mulf %74, %76 : vector<16x286xf32>
    %c0_39 = arith.constant 0 : index
    %c0_40 = arith.constant 0 : index
    %78 = vector.load %arg4[%c0_39, %c0_40] : memref<16x1xf32, #tpu.memory_space<vmem>>, vector<16x1xf32>
    %79 = vector.broadcast %78 : vector<16x1xf32> to vector<16x286xf32>
    %80 = arith.addf %77, %79 : vector<16x286xf32>
    %cst_41 = arith.constant 5.000000e-01 : f32
    %81 = vector.broadcast %cst_41 : f32 to vector<16x286xf32>
    %82 = arith.mulf %81, %80 : vector<16x286xf32>
    %cst_42 = arith.constant 0.707106769 : f32
    %83 = vector.broadcast %cst_42 : f32 to vector<16x286xf32>
    %84 = arith.mulf %80, %83 : vector<16x286xf32>
    %cst_43 = arith.constant 0.000000e+00 : f32
    %85 = vector.broadcast %cst_43 : f32 to vector<16x286xf32>
    %86 = arith.cmpf oge, %84, %85 : vector<16x286xf32>
    %cst_44 = arith.constant 1.000000e+00 : f32
    %cst_45 = arith.constant -1.000000e+00 : f32
    %87 = vector.broadcast %cst_44 : f32 to vector<16x286xf32>
    %88 = vector.broadcast %cst_45 : f32 to vector<16x286xf32>
    %89 = arith.select %86, %87, %88 : vector<16x286xi1>, vector<16x286xf32>
    %90 = arith.mulf %84, %89 : vector<16x286xf32>
    %cst_46 = arith.constant 0.327591091 : f32
    %91 = vector.broadcast %cst_46 : f32 to vector<16x286xf32>
    %92 = arith.mulf %91, %90 : vector<16x286xf32>
    %cst_47 = arith.constant 1.000000e+00 : f32
    %93 = vector.broadcast %cst_47 : f32 to vector<16x286xf32>
    %94 = arith.addf %93, %92 : vector<16x286xf32>
    %cst_48 = arith.constant 1.000000e+00 : f32
    %95 = vector.broadcast %cst_48 : f32 to vector<16x286xf32>
    %96 = arith.divf %95, %94 : vector<16x286xf32>
    %cst_49 = arith.constant 1.06140542 : f32
    %97 = vector.broadcast %cst_49 : f32 to vector<16x286xf32>
    %98 = arith.mulf %97, %96 : vector<16x286xf32>
    %cst_50 = arith.constant -1.45315206 : f32
    %99 = vector.broadcast %cst_50 : f32 to vector<16x286xf32>
    %100 = arith.addf %98, %99 : vector<16x286xf32>
    %101 = arith.mulf %100, %96 : vector<16x286xf32>
    %cst_51 = arith.constant 1.42141378 : f32
    %102 = vector.broadcast %cst_51 : f32 to vector<16x286xf32>
    %103 = arith.addf %101, %102 : vector<16x286xf32>
    %104 = arith.mulf %103, %96 : vector<16x286xf32>
    %cst_52 = arith.constant -0.284496725 : f32
    %105 = vector.broadcast %cst_52 : f32 to vector<16x286xf32>
    %106 = arith.addf %104, %105 : vector<16x286xf32>
    %107 = arith.mulf %106, %96 : vector<16x286xf32>
    %cst_53 = arith.constant 0.254829586 : f32
    %108 = vector.broadcast %cst_53 : f32 to vector<16x286xf32>
    %109 = arith.addf %107, %108 : vector<16x286xf32>
    %110 = arith.mulf %109, %96 : vector<16x286xf32>
    %cst_54 = arith.constant 0.000000e+00 : f32
    %111 = vector.broadcast %cst_54 : f32 to vector<16x286xf32>
    %112 = arith.subf %111, %90 : vector<16x286xf32>
    %113 = arith.mulf %112, %90 : vector<16x286xf32>
    %114 = math.exp %113 : vector<16x286xf32>
    %115 = arith.mulf %110, %114 : vector<16x286xf32>
    %cst_55 = arith.constant 1.000000e+00 : f32
    %116 = vector.broadcast %cst_55 : f32 to vector<16x286xf32>
    %117 = arith.subf %116, %115 : vector<16x286xf32>
    %118 = arith.mulf %89, %117 : vector<16x286xf32>
    %cst_56 = arith.constant 1.000000e+00 : f32
    %119 = vector.broadcast %cst_56 : f32 to vector<16x286xf32>
    %120 = arith.addf %119, %118 : vector<16x286xf32>
    %121 = arith.mulf %82, %120 : vector<16x286xf32>
    %122 = vector.broadcast %48 : vector<1x286xf32> to vector<16x286xf32>
    %123 = arith.mulf %121, %122 : vector<16x286xf32>
    %cst_57 = arith.constant 0.000000e+00 : bf16
    %124 = vector.broadcast %cst_57 : bf16 to vector<16x324xbf16>
    %c0_58 = arith.constant 0 : index
    %c0_59 = arith.constant 0 : index
    %c0_60 = arith.constant 0 : index
    %125 = vector.load %arg6[%c0_58, %c0_59, %c0_60] : memref<1x16x324xbf16, #tpu.memory_space<vmem>>, vector<1x16x324xbf16>
    %126 = vector.shape_cast %125 : vector<1x16x324xbf16> to vector<16x324xbf16>
    %127 = vector.shape_cast %124 : vector<16x324xbf16> to vector<1x16x324xbf16>
    tpu.vector_store %arg6[%c0_58, %c0_59, %c0_60], %127 {strides = array<i32>} : memref<1x16x324xbf16, #tpu.memory_space<vmem>>, vector<1x16x324xbf16>,
    %128 = arith.truncf %123 : vector<16x286xf32> to vector<16x286xbf16>
    %c0_61 = arith.constant 0 : index
    %c0_62 = arith.constant 0 : index
    %c19 = arith.constant 19 : index
    %129 = vector.load %arg6[%c0_61, %c0_62, %c19] : memref<1x16x324xbf16, #tpu.memory_space<vmem>>, vector<1x16x286xbf16>
    %130 = vector.shape_cast %129 : vector<1x16x286xbf16> to vector<16x286xbf16>
    %131 = vector.shape_cast %128 : vector<16x286xbf16> to vector<1x16x286xbf16>
    tpu.vector_store %arg6[%c0_61, %c0_62, %c19], %131 {strides = array<i32>} : memref<1x16x324xbf16, #tpu.memory_space<vmem>>, vector<1x16x286xbf16>,
    return
  }
  func.func @transform_0(%arg0: i32) -> (i32, i32, i32) {
    %c0_i32 = arith.constant 0 : i32
    %c0_i32_0 = arith.constant 0 : i32
    %c0_i32_1 = arith.constant 0 : i32
    return %arg0, %c0_i32, %c0_i32_0 : i32, i32, i32
  }
  func.func @transform_1(%arg0: i32) -> (i32, i32, i32) {
    %c0_i32 = arith.constant 0 : i32
    %c0_i32_0 = arith.constant 0 : i32
    %c0_i32_1 = arith.constant 0 : i32
    %c0_i32_2 = arith.constant 0 : i32
    return %c0_i32, %c0_i32_0, %c0_i32_1 : i32, i32, i32
  }
  func.func @transform_2(%arg0: i32) -> (i32, i32) {
    %c0_i32 = arith.constant 0 : i32
    %c0_i32_0 = arith.constant 0 : i32
    %c0_i32_1 = arith.constant 0 : i32
    return %c0_i32, %c0_i32_0 : i32, i32
  }
  func.func @transform_3(%arg0: i32) -> (i32, i32) {
    %c0_i32 = arith.constant 0 : i32
    %c0_i32_0 = arith.constant 0 : i32
    %c0_i32_1 = arith.constant 0 : i32
    return %c0_i32, %c0_i32_0 : i32, i32
  }
  func.func @transform_4(%arg0: i32) -> (i32, i32) {
    %c0_i32 = arith.constant 0 : i32
    %c0_i32_0 = arith.constant 0 : i32
    %c0_i32_1 = arith.constant 0 : i32
    return %c0_i32, %c0_i32_0 : i32, i32
  }
  func.func @transform_5(%arg0: i32) -> (i32, i32, i32) {
    %c0_i32 = arith.constant 0 : i32
    %c0_i32_0 = arith.constant 0 : i32
    %c0_i32_1 = arith.constant 0 : i32
    return %arg0, %c0_i32, %c0_i32_0 : i32, i32, i32
  }
}

module attributes {stable_mosaic.version = 11 : i64} {
  func.func @_conv_gn_kernel(%arg0: i32, %arg1: memref<1x16x324xbf16, #tpu.memory_space<vmem>>, %arg2: memref<9x8x16xbf16, #tpu.memory_space<vmem>>, %arg3: memref<8x1xf32, #tpu.memory_space<vmem>>, %arg4: memref<8x1xf32, #tpu.memory_space<vmem>>, %arg5: memref<1x286xf32, #tpu.memory_space<vmem>>, %arg6: memref<1x8x324xbf16, #tpu.memory_space<vmem>>) attributes {dimension_semantics = [#tpu.dimension_semantics<parallel>], iteration_bounds = array<i64: 2>, scalar_prefetch = 0 : i64, scratch_operands = 0 : i64, tpu.core_type = #tpu.core_type<tc>, window_params = [{transform_indices = @transform_0, window_bounds = array<i64: 1, 16, 324>}, {pipeline_mode = #tpu.pipeline_mode<synchronous>, transform_indices = @transform_1, window_bounds = array<i64: 9, 8, 16>}, {pipeline_mode = #tpu.pipeline_mode<synchronous>, transform_indices = @transform_2, window_bounds = array<i64: 8, 1>}, {pipeline_mode = #tpu.pipeline_mode<synchronous>, transform_indices = @transform_3, window_bounds = array<i64: 8, 1>}, {pipeline_mode = #tpu.pipeline_mode<synchronous>, transform_indices = @transform_4, window_bounds = array<i64: 1, 286>}, {transform_indices = @transform_5, window_bounds = array<i64: 1, 8, 324>}]} {
    %c0 = arith.constant 0 : index
    %c0_0 = arith.constant 0 : index
    %c0_1 = arith.constant 0 : index
    %0 = vector.load %arg1[%c0, %c0_0, %c0_1] : memref<1x16x324xbf16, #tpu.memory_space<vmem>>, vector<1x16x324xbf16>
    %1 = vector.shape_cast %0 : vector<1x16x324xbf16> to vector<16x324xbf16>
    %cst = arith.constant 0.000000e+00 : f32
    %2 = vector.broadcast %cst : f32 to vector<8x286xf32>
    %c0_2 = arith.constant 0 : index
    %c0_3 = arith.constant 0 : index
    %c0_4 = arith.constant 0 : index
    %3 = vector.load %arg2[%c0_2, %c0_3, %c0_4] : memref<9x8x16xbf16, #tpu.memory_space<vmem>>, vector<1x8x16xbf16>
    %4 = vector.shape_cast %3 : vector<1x8x16xbf16> to vector<8x16xbf16>
    %5 = vector.extract_strided_slice %1 {offsets = [0, 0], sizes = [16, 286], strides = [1, 1]} : vector<16x324xbf16> to vector<16x286xbf16>
    %cst_5 = arith.constant dense<0.000000e+00> : vector<8x286xf32>
    %6 = tpu.matmul %4, %5, %cst_5 {dimension_numbers = #tpu.dot_dimension_numbers<[1], [0], [0], [1], [0, 0, 1, 1], [], []>} : vector<8x16xbf16>, vector<16x286xbf16>, vector<8x286xf32> -> vector<8x286xf32>
    %7 = arith.addf %2, %6 : vector<8x286xf32>
    %c1 = arith.constant 1 : index
    %c0_6 = arith.constant 0 : index
    %c0_7 = arith.constant 0 : index
    %8 = vector.load %arg2[%c1, %c0_6, %c0_7] : memref<9x8x16xbf16, #tpu.memory_space<vmem>>, vector<1x8x16xbf16>
    %9 = vector.shape_cast %8 : vector<1x8x16xbf16> to vector<8x16xbf16>
    %10 = vector.extract_strided_slice %1 {offsets = [0, 1], sizes = [16, 286], strides = [1, 1]} : vector<16x324xbf16> to vector<16x286xbf16>
    %cst_8 = arith.constant dense<0.000000e+00> : vector<8x286xf32>
    %11 = tpu.matmul %9, %10, %cst_8 {dimension_numbers = #tpu.dot_dimension_numbers<[1], [0], [0], [1], [0, 0, 1, 1], [], []>} : vector<8x16xbf16>, vector<16x286xbf16>, vector<8x286xf32> -> vector<8x286xf32>
    %12 = arith.addf %7, %11 : vector<8x286xf32>
    %c2 = arith.constant 2 : index
    %c0_9 = arith.constant 0 : index
    %c0_10 = arith.constant 0 : index
    %13 = vector.load %arg2[%c2, %c0_9, %c0_10] : memref<9x8x16xbf16, #tpu.memory_space<vmem>>, vector<1x8x16xbf16>
    %14 = vector.shape_cast %13 : vector<1x8x16xbf16> to vector<8x16xbf16>
    %15 = vector.extract_strided_slice %1 {offsets = [0, 2], sizes = [16, 286], strides = [1, 1]} : vector<16x324xbf16> to vector<16x286xbf16>
    %cst_11 = arith.constant dense<0.000000e+00> : vector<8x286xf32>
    %16 = tpu.matmul %14, %15, %cst_11 {dimension_numbers = #tpu.dot_dimension_numbers<[1], [0], [0], [1], [0, 0, 1, 1], [], []>} : vector<8x16xbf16>, vector<16x286xbf16>, vector<8x286xf32> -> vector<8x286xf32>
    %17 = arith.addf %12, %16 : vector<8x286xf32>
    %c3 = arith.constant 3 : index
    %c0_12 = arith.constant 0 : index
    %c0_13 = arith.constant 0 : index
    %18 = vector.load %arg2[%c3, %c0_12, %c0_13] : memref<9x8x16xbf16, #tpu.memory_space<vmem>>, vector<1x8x16xbf16>
    %19 = vector.shape_cast %18 : vector<1x8x16xbf16> to vector<8x16xbf16>
    %20 = vector.extract_strided_slice %1 {offsets = [0, 18], sizes = [16, 286], strides = [1, 1]} : vector<16x324xbf16> to vector<16x286xbf16>
    %cst_14 = arith.constant dense<0.000000e+00> : vector<8x286xf32>
    %21 = tpu.matmul %19, %20, %cst_14 {dimension_numbers = #tpu.dot_dimension_numbers<[1], [0], [0], [1], [0, 0, 1, 1], [], []>} : vector<8x16xbf16>, vector<16x286xbf16>, vector<8x286xf32> -> vector<8x286xf32>
    %22 = arith.addf %17, %21 : vector<8x286xf32>
    %c4 = arith.constant 4 : index
    %c0_15 = arith.constant 0 : index
    %c0_16 = arith.constant 0 : index
    %23 = vector.load %arg2[%c4, %c0_15, %c0_16] : memref<9x8x16xbf16, #tpu.memory_space<vmem>>, vector<1x8x16xbf16>
    %24 = vector.shape_cast %23 : vector<1x8x16xbf16> to vector<8x16xbf16>
    %25 = vector.extract_strided_slice %1 {offsets = [0, 19], sizes = [16, 286], strides = [1, 1]} : vector<16x324xbf16> to vector<16x286xbf16>
    %cst_17 = arith.constant dense<0.000000e+00> : vector<8x286xf32>
    %26 = tpu.matmul %24, %25, %cst_17 {dimension_numbers = #tpu.dot_dimension_numbers<[1], [0], [0], [1], [0, 0, 1, 1], [], []>} : vector<8x16xbf16>, vector<16x286xbf16>, vector<8x286xf32> -> vector<8x286xf32>
    %27 = arith.addf %22, %26 : vector<8x286xf32>
    %c5 = arith.constant 5 : index
    %c0_18 = arith.constant 0 : index
    %c0_19 = arith.constant 0 : index
    %28 = vector.load %arg2[%c5, %c0_18, %c0_19] : memref<9x8x16xbf16, #tpu.memory_space<vmem>>, vector<1x8x16xbf16>
    %29 = vector.shape_cast %28 : vector<1x8x16xbf16> to vector<8x16xbf16>
    %30 = vector.extract_strided_slice %1 {offsets = [0, 20], sizes = [16, 286], strides = [1, 1]} : vector<16x324xbf16> to vector<16x286xbf16>
    %cst_20 = arith.constant dense<0.000000e+00> : vector<8x286xf32>
    %31 = tpu.matmul %29, %30, %cst_20 {dimension_numbers = #tpu.dot_dimension_numbers<[1], [0], [0], [1], [0, 0, 1, 1], [], []>} : vector<8x16xbf16>, vector<16x286xbf16>, vector<8x286xf32> -> vector<8x286xf32>
    %32 = arith.addf %27, %31 : vector<8x286xf32>
    %c6 = arith.constant 6 : index
    %c0_21 = arith.constant 0 : index
    %c0_22 = arith.constant 0 : index
    %33 = vector.load %arg2[%c6, %c0_21, %c0_22] : memref<9x8x16xbf16, #tpu.memory_space<vmem>>, vector<1x8x16xbf16>
    %34 = vector.shape_cast %33 : vector<1x8x16xbf16> to vector<8x16xbf16>
    %35 = vector.extract_strided_slice %1 {offsets = [0, 36], sizes = [16, 286], strides = [1, 1]} : vector<16x324xbf16> to vector<16x286xbf16>
    %cst_23 = arith.constant dense<0.000000e+00> : vector<8x286xf32>
    %36 = tpu.matmul %34, %35, %cst_23 {dimension_numbers = #tpu.dot_dimension_numbers<[1], [0], [0], [1], [0, 0, 1, 1], [], []>} : vector<8x16xbf16>, vector<16x286xbf16>, vector<8x286xf32> -> vector<8x286xf32>
    %37 = arith.addf %32, %36 : vector<8x286xf32>
    %c7 = arith.constant 7 : index
    %c0_24 = arith.constant 0 : index
    %c0_25 = arith.constant 0 : index
    %38 = vector.load %arg2[%c7, %c0_24, %c0_25] : memref<9x8x16xbf16, #tpu.memory_space<vmem>>, vector<1x8x16xbf16>
    %39 = vector.shape_cast %38 : vector<1x8x16xbf16> to vector<8x16xbf16>
    %40 = vector.extract_strided_slice %1 {offsets = [0, 37], sizes = [16, 286], strides = [1, 1]} : vector<16x324xbf16> to vector<16x286xbf16>
    %cst_26 = arith.constant dense<0.000000e+00> : vector<8x286xf32>
    %41 = tpu.matmul %39, %40, %cst_26 {dimension_numbers = #tpu.dot_dimension_numbers<[1], [0], [0], [1], [0, 0, 1, 1], [], []>} : vector<8x16xbf16>, vector<16x286xbf16>, vector<8x286xf32> -> vector<8x286xf32>
    %42 = arith.addf %37, %41 : vector<8x286xf32>
    %c8 = arith.constant 8 : index
    %c0_27 = arith.constant 0 : index
    %c0_28 = arith.constant 0 : index
    %43 = vector.load %arg2[%c8, %c0_27, %c0_28] : memref<9x8x16xbf16, #tpu.memory_space<vmem>>, vector<1x8x16xbf16>
    %44 = vector.shape_cast %43 : vector<1x8x16xbf16> to vector<8x16xbf16>
    %45 = vector.extract_strided_slice %1 {offsets = [0, 38], sizes = [16, 286], strides = [1, 1]} : vector<16x324xbf16> to vector<16x286xbf16>
    %cst_29 = arith.constant dense<0.000000e+00> : vector<8x286xf32>
    %46 = tpu.matmul %44, %45, %cst_29 {dimension_numbers = #tpu.dot_dimension_numbers<[1], [0], [0], [1], [0, 0, 1, 1], [], []>} : vector<8x16xbf16>, vector<16x286xbf16>, vector<8x286xf32> -> vector<8x286xf32>
    %47 = arith.addf %42, %46 : vector<8x286xf32>
    %c0_30 = arith.constant 0 : index
    %c0_31 = arith.constant 0 : index
    %48 = vector.load %arg5[%c0_30, %c0_31] : memref<1x286xf32, #tpu.memory_space<vmem>>, vector<1x286xf32>
    %49 = vector.broadcast %48 : vector<1x286xf32> to vector<8x286xf32>
    %50 = arith.mulf %47, %49 : vector<8x286xf32>
    %51 = vector.shape_cast %50 : vector<8x286xf32> to vector<1x8x286xf32>
    %cst_32 = arith.constant dense<0.000000e+00> : vector<1xf32>
    %52 = vector.multi_reduction <add>, %51, %cst_32 [1, 2] : vector<1x8x286xf32> to vector<1xf32>
    %53 = vector.shape_cast %52 : vector<1xf32> to vector<1x1x1xf32>
    %54 = vector.extract %53[0, 0, 0] : f32 from vector<1x1x1xf32>
    %55 = vector.broadcast %54 : f32 to vector<1x1xf32>
    %cst_33 = arith.constant 4.8828125E-4 : f32
    %56 = vector.broadcast %cst_33 : f32 to vector<1x1xf32>
    %57 = arith.mulf %55, %56 : vector<1x1xf32>
    %58 = vector.broadcast %57 : vector<1x1xf32> to vector<8x286xf32>
    %59 = arith.subf %47, %58 : vector<8x286xf32>
    %60 = arith.mulf %59, %59 : vector<8x286xf32>
    %61 = vector.broadcast %48 : vector<1x286xf32> to vector<8x286xf32>
    %62 = arith.mulf %60, %61 : vector<8x286xf32>
    %63 = vector.shape_cast %62 : vector<8x286xf32> to vector<1x8x286xf32>
    %cst_34 = arith.constant dense<0.000000e+00> : vector<1xf32>
    %64 = vector.multi_reduction <add>, %63, %cst_34 [1, 2] : vector<1x8x286xf32> to vector<1xf32>
    %65 = vector.shape_cast %64 : vector<1xf32> to vector<1x1x1xf32>
    %66 = vector.extract %65[0, 0, 0] : f32 from vector<1x1x1xf32>
    %67 = vector.broadcast %66 : f32 to vector<1x1xf32>
    %cst_35 = arith.constant 4.8828125E-4 : f32
    %68 = vector.broadcast %cst_35 : f32 to vector<1x1xf32>
    %69 = arith.mulf %67, %68 : vector<1x1xf32>
    %cst_36 = arith.constant 9.99999974E-6 : f32
    %70 = vector.broadcast %cst_36 : f32 to vector<1x1xf32>
    %71 = arith.addf %69, %70 : vector<1x1xf32>
    %72 = math.rsqrt %71 : vector<1x1xf32>
    %73 = vector.broadcast %72 : vector<1x1xf32> to vector<8x286xf32>
    %74 = arith.mulf %59, %73 : vector<8x286xf32>
    %c0_37 = arith.constant 0 : index
    %c0_38 = arith.constant 0 : index
    %75 = vector.load %arg3[%c0_37, %c0_38] : memref<8x1xf32, #tpu.memory_space<vmem>>, vector<8x1xf32>
    %76 = vector.broadcast %75 : vector<8x1xf32> to vector<8x286xf32>
    %77 = arith.mulf %74, %76 : vector<8x286xf32>
    %c0_39 = arith.constant 0 : index
    %c0_40 = arith.constant 0 : index
    %78 = vector.load %arg4[%c0_39, %c0_40] : memref<8x1xf32, #tpu.memory_space<vmem>>, vector<8x1xf32>
    %79 = vector.broadcast %78 : vector<8x1xf32> to vector<8x286xf32>
    %80 = arith.addf %77, %79 : vector<8x286xf32>
    %cst_41 = arith.constant 5.000000e-01 : f32
    %81 = vector.broadcast %cst_41 : f32 to vector<8x286xf32>
    %82 = arith.mulf %81, %80 : vector<8x286xf32>
    %cst_42 = arith.constant 0.707106769 : f32
    %83 = vector.broadcast %cst_42 : f32 to vector<8x286xf32>
    %84 = arith.mulf %80, %83 : vector<8x286xf32>
    %cst_43 = arith.constant 0.000000e+00 : f32
    %85 = vector.broadcast %cst_43 : f32 to vector<8x286xf32>
    %86 = arith.cmpf oge, %84, %85 : vector<8x286xf32>
    %cst_44 = arith.constant 1.000000e+00 : f32
    %cst_45 = arith.constant -1.000000e+00 : f32
    %87 = vector.broadcast %cst_44 : f32 to vector<8x286xf32>
    %88 = vector.broadcast %cst_45 : f32 to vector<8x286xf32>
    %89 = arith.select %86, %87, %88 : vector<8x286xi1>, vector<8x286xf32>
    %90 = arith.mulf %84, %89 : vector<8x286xf32>
    %cst_46 = arith.constant 0.327591091 : f32
    %91 = vector.broadcast %cst_46 : f32 to vector<8x286xf32>
    %92 = arith.mulf %91, %90 : vector<8x286xf32>
    %cst_47 = arith.constant 1.000000e+00 : f32
    %93 = vector.broadcast %cst_47 : f32 to vector<8x286xf32>
    %94 = arith.addf %93, %92 : vector<8x286xf32>
    %cst_48 = arith.constant 1.000000e+00 : f32
    %95 = vector.broadcast %cst_48 : f32 to vector<8x286xf32>
    %96 = arith.divf %95, %94 : vector<8x286xf32>
    %cst_49 = arith.constant 1.06140542 : f32
    %97 = vector.broadcast %cst_49 : f32 to vector<8x286xf32>
    %98 = arith.mulf %97, %96 : vector<8x286xf32>
    %cst_50 = arith.constant -1.45315206 : f32
    %99 = vector.broadcast %cst_50 : f32 to vector<8x286xf32>
    %100 = arith.addf %98, %99 : vector<8x286xf32>
    %101 = arith.mulf %100, %96 : vector<8x286xf32>
    %cst_51 = arith.constant 1.42141378 : f32
    %102 = vector.broadcast %cst_51 : f32 to vector<8x286xf32>
    %103 = arith.addf %101, %102 : vector<8x286xf32>
    %104 = arith.mulf %103, %96 : vector<8x286xf32>
    %cst_52 = arith.constant -0.284496725 : f32
    %105 = vector.broadcast %cst_52 : f32 to vector<8x286xf32>
    %106 = arith.addf %104, %105 : vector<8x286xf32>
    %107 = arith.mulf %106, %96 : vector<8x286xf32>
    %cst_53 = arith.constant 0.254829586 : f32
    %108 = vector.broadcast %cst_53 : f32 to vector<8x286xf32>
    %109 = arith.addf %107, %108 : vector<8x286xf32>
    %110 = arith.mulf %109, %96 : vector<8x286xf32>
    %cst_54 = arith.constant 0.000000e+00 : f32
    %111 = vector.broadcast %cst_54 : f32 to vector<8x286xf32>
    %112 = arith.subf %111, %90 : vector<8x286xf32>
    %113 = arith.mulf %112, %90 : vector<8x286xf32>
    %114 = math.exp %113 : vector<8x286xf32>
    %115 = arith.mulf %110, %114 : vector<8x286xf32>
    %cst_55 = arith.constant 1.000000e+00 : f32
    %116 = vector.broadcast %cst_55 : f32 to vector<8x286xf32>
    %117 = arith.subf %116, %115 : vector<8x286xf32>
    %118 = arith.mulf %89, %117 : vector<8x286xf32>
    %cst_56 = arith.constant 1.000000e+00 : f32
    %119 = vector.broadcast %cst_56 : f32 to vector<8x286xf32>
    %120 = arith.addf %119, %118 : vector<8x286xf32>
    %121 = arith.mulf %82, %120 : vector<8x286xf32>
    %122 = vector.broadcast %48 : vector<1x286xf32> to vector<8x286xf32>
    %123 = arith.mulf %121, %122 : vector<8x286xf32>
    %cst_57 = arith.constant 0.000000e+00 : bf16
    %124 = vector.broadcast %cst_57 : bf16 to vector<8x324xbf16>
    %c0_58 = arith.constant 0 : index
    %c0_59 = arith.constant 0 : index
    %c0_60 = arith.constant 0 : index
    %125 = vector.load %arg6[%c0_58, %c0_59, %c0_60] : memref<1x8x324xbf16, #tpu.memory_space<vmem>>, vector<1x8x324xbf16>
    %126 = vector.shape_cast %125 : vector<1x8x324xbf16> to vector<8x324xbf16>
    %127 = vector.shape_cast %124 : vector<8x324xbf16> to vector<1x8x324xbf16>
    tpu.vector_store %arg6[%c0_58, %c0_59, %c0_60], %127 {strides = array<i32>} : memref<1x8x324xbf16, #tpu.memory_space<vmem>>, vector<1x8x324xbf16>,
    %128 = arith.truncf %123 : vector<8x286xf32> to vector<8x286xbf16>
    %c0_61 = arith.constant 0 : index
    %c0_62 = arith.constant 0 : index
    %c19 = arith.constant 19 : index
    %129 = vector.load %arg6[%c0_61, %c0_62, %c19] : memref<1x8x324xbf16, #tpu.memory_space<vmem>>, vector<1x8x286xbf16>
    %130 = vector.shape_cast %129 : vector<1x8x286xbf16> to vector<8x286xbf16>
    %131 = vector.shape_cast %128 : vector<8x286xbf16> to vector<1x8x286xbf16>
    tpu.vector_store %arg6[%c0_61, %c0_62, %c19], %131 {strides = array<i32>} : memref<1x8x324xbf16, #tpu.memory_space<vmem>>, vector<1x8x286xbf16>,
    return
  }
  func.func @transform_0(%arg0: i32) -> (i32, i32, i32) {
    %c0_i32 = arith.constant 0 : i32
    %c0_i32_0 = arith.constant 0 : i32
    %c0_i32_1 = arith.constant 0 : i32
    return %arg0, %c0_i32, %c0_i32_0 : i32, i32, i32
  }
  func.func @transform_1(%arg0: i32) -> (i32, i32, i32) {
    %c0_i32 = arith.constant 0 : i32
    %c0_i32_0 = arith.constant 0 : i32
    %c0_i32_1 = arith.constant 0 : i32
    %c0_i32_2 = arith.constant 0 : i32
    return %c0_i32, %c0_i32_0, %c0_i32_1 : i32, i32, i32
  }
  func.func @transform_2(%arg0: i32) -> (i32, i32) {
    %c0_i32 = arith.constant 0 : i32
    %c0_i32_0 = arith.constant 0 : i32
    %c0_i32_1 = arith.constant 0 : i32
    return %c0_i32, %c0_i32_0 : i32, i32
  }
  func.func @transform_3(%arg0: i32) -> (i32, i32) {
    %c0_i32 = arith.constant 0 : i32
    %c0_i32_0 = arith.constant 0 : i32
    %c0_i32_1 = arith.constant 0 : i32
    return %c0_i32, %c0_i32_0 : i32, i32
  }
  func.func @transform_4(%arg0: i32) -> (i32, i32) {
    %c0_i32 = arith.constant 0 : i32
    %c0_i32_0 = arith.constant 0 : i32
    %c0_i32_1 = arith.constant 0 : i32
    return %c0_i32, %c0_i32_0 : i32, i32
  }
  func.func @transform_5(%arg0: i32) -> (i32, i32, i32) {
    %c0_i32 = arith.constant 0 : i32
    %c0_i32_0 = arith.constant 0 : i32
    %c0_i32_1 = arith.constant 0 : i32
    return %arg0, %c0_i32, %c0_i32_0 : i32, i32, i32
  }
}

module attributes {stable_mosaic.version = 11 : i64} {
  func.func @_emb_kernel(%arg0: i32, %arg1: memref<2x32xf32, #tpu.memory_space<vmem>>, %arg2: memref<32x8xbf16, #tpu.memory_space<vmem>>, %arg3: memref<1x8xf32, #tpu.memory_space<vmem>>, %arg4: memref<2x8xf32, #tpu.memory_space<vmem>>) attributes {dimension_semantics = [#tpu.dimension_semantics<arbitrary>], iteration_bounds = array<i64: 1>, scalar_prefetch = 0 : i64, scratch_operands = 0 : i64, tpu.core_type = #tpu.core_type<tc>, window_params = [{pipeline_mode = #tpu.pipeline_mode<synchronous>, transform_indices = @transform_0, window_bounds = array<i64: 2, 32>}, {pipeline_mode = #tpu.pipeline_mode<synchronous>, transform_indices = @transform_1, window_bounds = array<i64: 32, 8>}, {pipeline_mode = #tpu.pipeline_mode<synchronous>, transform_indices = @transform_2, window_bounds = array<i64: 1, 8>}, {pipeline_mode = #tpu.pipeline_mode<synchronous>, transform_indices = @transform_3, window_bounds = array<i64: 2, 8>}]} {
    %c0 = arith.constant 0 : index
    %c0_0 = arith.constant 0 : index
    %0 = vector.load %arg1[%c0, %c0_0] : memref<2x32xf32, #tpu.memory_space<vmem>>, vector<2x32xf32>
    %cst = arith.constant 0.000000e+00 : f32
    %1 = vector.broadcast %cst : f32 to vector<2x32xf32>
    %2 = arith.subf %1, %0 : vector<2x32xf32>
    %3 = math.exp %2 : vector<2x32xf32>
    %cst_1 = arith.constant 1.000000e+00 : f32
    %4 = vector.broadcast %cst_1 : f32 to vector<2x32xf32>
    %5 = arith.addf %4, %3 : vector<2x32xf32>
    %cst_2 = arith.constant 1.000000e+00 : f32
    %6 = vector.broadcast %cst_2 : f32 to vector<2x32xf32>
    %7 = arith.divf %6, %5 : vector<2x32xf32>
    %8 = arith.mulf %0, %7 : vector<2x32xf32>
    %9 = arith.truncf %8 : vector<2x32xf32> to vector<2x32xbf16>
    %c0_3 = arith.constant 0 : index
    %c0_4 = arith.constant 0 : index
    %10 = vector.load %arg2[%c0_3, %c0_4] : memref<32x8xbf16, #tpu.memory_space<vmem>>, vector<32x8xbf16>
    %cst_5 = arith.constant dense<0.000000e+00> : vector<2x8xf32>
    %11 = tpu.matmul %9, %10, %cst_5 {dimension_numbers = #tpu.dot_dimension_numbers<[1], [0], [0], [1], [0, 0, 1, 1], [], []>} : vector<2x32xbf16>, vector<32x8xbf16>, vector<2x8xf32> -> vector<2x8xf32>
    %c0_6 = arith.constant 0 : index
    %c0_7 = arith.constant 0 : index
    %12 = vector.load %arg3[%c0_6, %c0_7] : memref<1x8xf32, #tpu.memory_space<vmem>>, vector<1x8xf32>
    %13 = vector.broadcast %12 : vector<1x8xf32> to vector<2x8xf32>
    %14 = arith.addf %11, %13 : vector<2x8xf32>
    %c0_8 = arith.constant 0 : index
    %c0_9 = arith.constant 0 : index
    %15 = vector.load %arg4[%c0_8, %c0_9] : memref<2x8xf32, #tpu.memory_space<vmem>>, vector<2x8xf32>
    tpu.vector_store %arg4[%c0_8, %c0_9], %14 {strides = array<i32>} : memref<2x8xf32, #tpu.memory_space<vmem>>, vector<2x8xf32>,
    return
  }
  func.func @transform_0(%arg0: i32) -> (i32, i32) {
    %c0_i32 = arith.constant 0 : i32
    %c0_i32_0 = arith.constant 0 : i32
    %c0_i32_1 = arith.constant 0 : i32
    return %c0_i32, %c0_i32_0 : i32, i32
  }
  func.func @transform_1(%arg0: i32) -> (i32, i32) {
    %c0_i32 = arith.constant 0 : i32
    %c0_i32_0 = arith.constant 0 : i32
    %c0_i32_1 = arith.constant 0 : i32
    return %c0_i32, %c0_i32_0 : i32, i32
  }
  func.func @transform_2(%arg0: i32) -> (i32, i32) {
    %c0_i32 = arith.constant 0 : i32
    %c0_i32_0 = arith.constant 0 : i32
    %c0_i32_1 = arith.constant 0 : i32
    return %c0_i32, %c0_i32_0 : i32, i32
  }
  func.func @transform_3(%arg0: i32) -> (i32, i32) {
    %c0_i32 = arith.constant 0 : i32
    %c0_i32_0 = arith.constant 0 : i32
    %c0_i32_1 = arith.constant 0 : i32
    return %c0_i32, %c0_i32_0 : i32, i32
  }
}

module attributes {stable_mosaic.version = 11 : i64} {
  func.func @_conv_gn_kernel(%arg0: i32, %arg1: memref<1x8x324xbf16, #tpu.memory_space<vmem>>, %arg2: memref<9x8x8xbf16, #tpu.memory_space<vmem>>, %arg3: memref<8x1xf32, #tpu.memory_space<vmem>>, %arg4: memref<8x1xf32, #tpu.memory_space<vmem>>, %arg5: memref<1x286xf32, #tpu.memory_space<vmem>>, %arg6: memref<1x8x1xf32, #tpu.memory_space<vmem>>, %arg7: memref<1x8x324xf32, #tpu.memory_space<vmem>>) attributes {dimension_semantics = [#tpu.dimension_semantics<parallel>], iteration_bounds = array<i64: 2>, scalar_prefetch = 0 : i64, scratch_operands = 0 : i64, tpu.core_type = #tpu.core_type<tc>, window_params = [{transform_indices = @transform_0, window_bounds = array<i64: 1, 8, 324>}, {pipeline_mode = #tpu.pipeline_mode<synchronous>, transform_indices = @transform_1, window_bounds = array<i64: 9, 8, 8>}, {pipeline_mode = #tpu.pipeline_mode<synchronous>, transform_indices = @transform_2, window_bounds = array<i64: 8, 1>}, {pipeline_mode = #tpu.pipeline_mode<synchronous>, transform_indices = @transform_3, window_bounds = array<i64: 8, 1>}, {pipeline_mode = #tpu.pipeline_mode<synchronous>, transform_indices = @transform_4, window_bounds = array<i64: 1, 286>}, {transform_indices = @transform_5, window_bounds = array<i64: 1, 8, 1>}, {transform_indices = @transform_6, window_bounds = array<i64: 1, 8, 324>}]} {
    %c0 = arith.constant 0 : index
    %c0_0 = arith.constant 0 : index
    %c0_1 = arith.constant 0 : index
    %0 = vector.load %arg1[%c0, %c0_0, %c0_1] : memref<1x8x324xbf16, #tpu.memory_space<vmem>>, vector<1x8x324xbf16>
    %1 = vector.shape_cast %0 : vector<1x8x324xbf16> to vector<8x324xbf16>
    %cst = arith.constant 0.000000e+00 : f32
    %2 = vector.broadcast %cst : f32 to vector<8x286xf32>
    %c0_2 = arith.constant 0 : index
    %c0_3 = arith.constant 0 : index
    %c0_4 = arith.constant 0 : index
    %3 = vector.load %arg2[%c0_2, %c0_3, %c0_4] : memref<9x8x8xbf16, #tpu.memory_space<vmem>>, vector<1x8x8xbf16>
    %4 = vector.shape_cast %3 : vector<1x8x8xbf16> to vector<8x8xbf16>
    %5 = vector.extract_strided_slice %1 {offsets = [0, 0], sizes = [8, 286], strides = [1, 1]} : vector<8x324xbf16> to vector<8x286xbf16>
    %cst_5 = arith.constant dense<0.000000e+00> : vector<8x286xf32>
    %6 = tpu.matmul %4, %5, %cst_5 {dimension_numbers = #tpu.dot_dimension_numbers<[1], [0], [0], [1], [0, 0, 1, 1], [], []>} : vector<8x8xbf16>, vector<8x286xbf16>, vector<8x286xf32> -> vector<8x286xf32>
    %7 = arith.addf %2, %6 : vector<8x286xf32>
    %c1 = arith.constant 1 : index
    %c0_6 = arith.constant 0 : index
    %c0_7 = arith.constant 0 : index
    %8 = vector.load %arg2[%c1, %c0_6, %c0_7] : memref<9x8x8xbf16, #tpu.memory_space<vmem>>, vector<1x8x8xbf16>
    %9 = vector.shape_cast %8 : vector<1x8x8xbf16> to vector<8x8xbf16>
    %10 = vector.extract_strided_slice %1 {offsets = [0, 1], sizes = [8, 286], strides = [1, 1]} : vector<8x324xbf16> to vector<8x286xbf16>
    %cst_8 = arith.constant dense<0.000000e+00> : vector<8x286xf32>
    %11 = tpu.matmul %9, %10, %cst_8 {dimension_numbers = #tpu.dot_dimension_numbers<[1], [0], [0], [1], [0, 0, 1, 1], [], []>} : vector<8x8xbf16>, vector<8x286xbf16>, vector<8x286xf32> -> vector<8x286xf32>
    %12 = arith.addf %7, %11 : vector<8x286xf32>
    %c2 = arith.constant 2 : index
    %c0_9 = arith.constant 0 : index
    %c0_10 = arith.constant 0 : index
    %13 = vector.load %arg2[%c2, %c0_9, %c0_10] : memref<9x8x8xbf16, #tpu.memory_space<vmem>>, vector<1x8x8xbf16>
    %14 = vector.shape_cast %13 : vector<1x8x8xbf16> to vector<8x8xbf16>
    %15 = vector.extract_strided_slice %1 {offsets = [0, 2], sizes = [8, 286], strides = [1, 1]} : vector<8x324xbf16> to vector<8x286xbf16>
    %cst_11 = arith.constant dense<0.000000e+00> : vector<8x286xf32>
    %16 = tpu.matmul %14, %15, %cst_11 {dimension_numbers = #tpu.dot_dimension_numbers<[1], [0], [0], [1], [0, 0, 1, 1], [], []>} : vector<8x8xbf16>, vector<8x286xbf16>, vector<8x286xf32> -> vector<8x286xf32>
    %17 = arith.addf %12, %16 : vector<8x286xf32>
    %c3 = arith.constant 3 : index
    %c0_12 = arith.constant 0 : index
    %c0_13 = arith.constant 0 : index
    %18 = vector.load %arg2[%c3, %c0_12, %c0_13] : memref<9x8x8xbf16, #tpu.memory_space<vmem>>, vector<1x8x8xbf16>
    %19 = vector.shape_cast %18 : vector<1x8x8xbf16> to vector<8x8xbf16>
    %20 = vector.extract_strided_slice %1 {offsets = [0, 18], sizes = [8, 286], strides = [1, 1]} : vector<8x324xbf16> to vector<8x286xbf16>
    %cst_14 = arith.constant dense<0.000000e+00> : vector<8x286xf32>
    %21 = tpu.matmul %19, %20, %cst_14 {dimension_numbers = #tpu.dot_dimension_numbers<[1], [0], [0], [1], [0, 0, 1, 1], [], []>} : vector<8x8xbf16>, vector<8x286xbf16>, vector<8x286xf32> -> vector<8x286xf32>
    %22 = arith.addf %17, %21 : vector<8x286xf32>
    %c4 = arith.constant 4 : index
    %c0_15 = arith.constant 0 : index
    %c0_16 = arith.constant 0 : index
    %23 = vector.load %arg2[%c4, %c0_15, %c0_16] : memref<9x8x8xbf16, #tpu.memory_space<vmem>>, vector<1x8x8xbf16>
    %24 = vector.shape_cast %23 : vector<1x8x8xbf16> to vector<8x8xbf16>
    %25 = vector.extract_strided_slice %1 {offsets = [0, 19], sizes = [8, 286], strides = [1, 1]} : vector<8x324xbf16> to vector<8x286xbf16>
    %cst_17 = arith.constant dense<0.000000e+00> : vector<8x286xf32>
    %26 = tpu.matmul %24, %25, %cst_17 {dimension_numbers = #tpu.dot_dimension_numbers<[1], [0], [0], [1], [0, 0, 1, 1], [], []>} : vector<8x8xbf16>, vector<8x286xbf16>, vector<8x286xf32> -> vector<8x286xf32>
    %27 = arith.addf %22, %26 : vector<8x286xf32>
    %c5 = arith.constant 5 : index
    %c0_18 = arith.constant 0 : index
    %c0_19 = arith.constant 0 : index
    %28 = vector.load %arg2[%c5, %c0_18, %c0_19] : memref<9x8x8xbf16, #tpu.memory_space<vmem>>, vector<1x8x8xbf16>
    %29 = vector.shape_cast %28 : vector<1x8x8xbf16> to vector<8x8xbf16>
    %30 = vector.extract_strided_slice %1 {offsets = [0, 20], sizes = [8, 286], strides = [1, 1]} : vector<8x324xbf16> to vector<8x286xbf16>
    %cst_20 = arith.constant dense<0.000000e+00> : vector<8x286xf32>
    %31 = tpu.matmul %29, %30, %cst_20 {dimension_numbers = #tpu.dot_dimension_numbers<[1], [0], [0], [1], [0, 0, 1, 1], [], []>} : vector<8x8xbf16>, vector<8x286xbf16>, vector<8x286xf32> -> vector<8x286xf32>
    %32 = arith.addf %27, %31 : vector<8x286xf32>
    %c6 = arith.constant 6 : index
    %c0_21 = arith.constant 0 : index
    %c0_22 = arith.constant 0 : index
    %33 = vector.load %arg2[%c6, %c0_21, %c0_22] : memref<9x8x8xbf16, #tpu.memory_space<vmem>>, vector<1x8x8xbf16>
    %34 = vector.shape_cast %33 : vector<1x8x8xbf16> to vector<8x8xbf16>
    %35 = vector.extract_strided_slice %1 {offsets = [0, 36], sizes = [8, 286], strides = [1, 1]} : vector<8x324xbf16> to vector<8x286xbf16>
    %cst_23 = arith.constant dense<0.000000e+00> : vector<8x286xf32>
    %36 = tpu.matmul %34, %35, %cst_23 {dimension_numbers = #tpu.dot_dimension_numbers<[1], [0], [0], [1], [0, 0, 1, 1], [], []>} : vector<8x8xbf16>, vector<8x286xbf16>, vector<8x286xf32> -> vector<8x286xf32>
    %37 = arith.addf %32, %36 : vector<8x286xf32>
    %c7 = arith.constant 7 : index
    %c0_24 = arith.constant 0 : index
    %c0_25 = arith.constant 0 : index
    %38 = vector.load %arg2[%c7, %c0_24, %c0_25] : memref<9x8x8xbf16, #tpu.memory_space<vmem>>, vector<1x8x8xbf16>
    %39 = vector.shape_cast %38 : vector<1x8x8xbf16> to vector<8x8xbf16>
    %40 = vector.extract_strided_slice %1 {offsets = [0, 37], sizes = [8, 286], strides = [1, 1]} : vector<8x324xbf16> to vector<8x286xbf16>
    %cst_26 = arith.constant dense<0.000000e+00> : vector<8x286xf32>
    %41 = tpu.matmul %39, %40, %cst_26 {dimension_numbers = #tpu.dot_dimension_numbers<[1], [0], [0], [1], [0, 0, 1, 1], [], []>} : vector<8x8xbf16>, vector<8x286xbf16>, vector<8x286xf32> -> vector<8x286xf32>
    %42 = arith.addf %37, %41 : vector<8x286xf32>
    %c8 = arith.constant 8 : index
    %c0_27 = arith.constant 0 : index
    %c0_28 = arith.constant 0 : index
    %43 = vector.load %arg2[%c8, %c0_27, %c0_28] : memref<9x8x8xbf16, #tpu.memory_space<vmem>>, vector<1x8x8xbf16>
    %44 = vector.shape_cast %43 : vector<1x8x8xbf16> to vector<8x8xbf16>
    %45 = vector.extract_strided_slice %1 {offsets = [0, 38], sizes = [8, 286], strides = [1, 1]} : vector<8x324xbf16> to vector<8x286xbf16>
    %cst_29 = arith.constant dense<0.000000e+00> : vector<8x286xf32>
    %46 = tpu.matmul %44, %45, %cst_29 {dimension_numbers = #tpu.dot_dimension_numbers<[1], [0], [0], [1], [0, 0, 1, 1], [], []>} : vector<8x8xbf16>, vector<8x286xbf16>, vector<8x286xf32> -> vector<8x286xf32>
    %47 = arith.addf %42, %46 : vector<8x286xf32>
    %c0_30 = arith.constant 0 : index
    %c0_31 = arith.constant 0 : index
    %48 = vector.load %arg5[%c0_30, %c0_31] : memref<1x286xf32, #tpu.memory_space<vmem>>, vector<1x286xf32>
    %49 = vector.broadcast %48 : vector<1x286xf32> to vector<8x286xf32>
    %50 = arith.mulf %47, %49 : vector<8x286xf32>
    %51 = vector.shape_cast %50 : vector<8x286xf32> to vector<1x8x286xf32>
    %cst_32 = arith.constant dense<0.000000e+00> : vector<1xf32>
    %52 = vector.multi_reduction <add>, %51, %cst_32 [1, 2] : vector<1x8x286xf32> to vector<1xf32>
    %53 = vector.shape_cast %52 : vector<1xf32> to vector<1x1x1xf32>
    %54 = vector.extract %53[0, 0, 0] : f32 from vector<1x1x1xf32>
    %55 = vector.broadcast %54 : f32 to vector<1x1xf32>
    %cst_33 = arith.constant 4.8828125E-4 : f32
    %56 = vector.broadcast %cst_33 : f32 to vector<1x1xf32>
    %57 = arith.mulf %55, %56 : vector<1x1xf32>
    %58 = vector.broadcast %57 : vector<1x1xf32> to vector<8x286xf32>
    %59 = arith.subf %47, %58 : vector<8x286xf32>
    %60 = arith.mulf %59, %59 : vector<8x286xf32>
    %61 = vector.broadcast %48 : vector<1x286xf32> to vector<8x286xf32>
    %62 = arith.mulf %60, %61 : vector<8x286xf32>
    %63 = vector.shape_cast %62 : vector<8x286xf32> to vector<1x8x286xf32>
    %cst_34 = arith.constant dense<0.000000e+00> : vector<1xf32>
    %64 = vector.multi_reduction <add>, %63, %cst_34 [1, 2] : vector<1x8x286xf32> to vector<1xf32>
    %65 = vector.shape_cast %64 : vector<1xf32> to vector<1x1x1xf32>
    %66 = vector.extract %65[0, 0, 0] : f32 from vector<1x1x1xf32>
    %67 = vector.broadcast %66 : f32 to vector<1x1xf32>
    %cst_35 = arith.constant 4.8828125E-4 : f32
    %68 = vector.broadcast %cst_35 : f32 to vector<1x1xf32>
    %69 = arith.mulf %67, %68 : vector<1x1xf32>
    %cst_36 = arith.constant 9.99999974E-6 : f32
    %70 = vector.broadcast %cst_36 : f32 to vector<1x1xf32>
    %71 = arith.addf %69, %70 : vector<1x1xf32>
    %72 = math.rsqrt %71 : vector<1x1xf32>
    %73 = vector.broadcast %72 : vector<1x1xf32> to vector<8x286xf32>
    %74 = arith.mulf %59, %73 : vector<8x286xf32>
    %c0_37 = arith.constant 0 : index
    %c0_38 = arith.constant 0 : index
    %75 = vector.load %arg3[%c0_37, %c0_38] : memref<8x1xf32, #tpu.memory_space<vmem>>, vector<8x1xf32>
    %76 = vector.broadcast %75 : vector<8x1xf32> to vector<8x286xf32>
    %77 = arith.mulf %74, %76 : vector<8x286xf32>
    %c0_39 = arith.constant 0 : index
    %c0_40 = arith.constant 0 : index
    %78 = vector.load %arg4[%c0_39, %c0_40] : memref<8x1xf32, #tpu.memory_space<vmem>>, vector<8x1xf32>
    %79 = vector.broadcast %78 : vector<8x1xf32> to vector<8x286xf32>
    %80 = arith.addf %77, %79 : vector<8x286xf32>
    %c0_41 = arith.constant 0 : index
    %c0_42 = arith.constant 0 : index
    %c0_43 = arith.constant 0 : index
    %81 = vector.load %arg6[%c0_41, %c0_42, %c0_43] : memref<1x8x1xf32, #tpu.memory_space<vmem>>, vector<1x8x1xf32>
    %82 = vector.shape_cast %81 : vector<1x8x1xf32> to vector<8x1xf32>
    %83 = vector.broadcast %82 : vector<8x1xf32> to vector<8x286xf32>
    %84 = arith.addf %80, %83 : vector<8x286xf32>
    %85 = vector.broadcast %48 : vector<1x286xf32> to vector<8x286xf32>
    %86 = arith.mulf %84, %85 : vector<8x286xf32>
    %cst_44 = arith.constant 0.000000e+00 : f32
    %87 = vector.broadcast %cst_44 : f32 to vector<8x324xf32>
    %c0_45 = arith.constant 0 : index
    %c0_46 = arith.constant 0 : index
    %c0_47 = arith.constant 0 : index
    %88 = vector.load %arg7[%c0_45, %c0_46, %c0_47] : memref<1x8x324xf32, #tpu.memory_space<vmem>>, vector<1x8x324xf32>
    %89 = vector.shape_cast %88 : vector<1x8x324xf32> to vector<8x324xf32>
    %90 = vector.shape_cast %87 : vector<8x324xf32> to vector<1x8x324xf32>
    tpu.vector_store %arg7[%c0_45, %c0_46, %c0_47], %90 {strides = array<i32>} : memref<1x8x324xf32, #tpu.memory_space<vmem>>, vector<1x8x324xf32>,
    %c0_48 = arith.constant 0 : index
    %c0_49 = arith.constant 0 : index
    %c19 = arith.constant 19 : index
    %91 = vector.load %arg7[%c0_48, %c0_49, %c19] : memref<1x8x324xf32, #tpu.memory_space<vmem>>, vector<1x8x286xf32>
    %92 = vector.shape_cast %91 : vector<1x8x286xf32> to vector<8x286xf32>
    %93 = vector.shape_cast %86 : vector<8x286xf32> to vector<1x8x286xf32>
    tpu.vector_store %arg7[%c0_48, %c0_49, %c19], %93 {strides = array<i32>} : memref<1x8x324xf32, #tpu.memory_space<vmem>>, vector<1x8x286xf32>,
    return
  }
  func.func @transform_0(%arg0: i32) -> (i32, i32, i32) {
    %c0_i32 = arith.constant 0 : i32
    %c0_i32_0 = arith.constant 0 : i32
    %c0_i32_1 = arith.constant 0 : i32
    return %arg0, %c0_i32, %c0_i32_0 : i32, i32, i32
  }
  func.func @transform_1(%arg0: i32) -> (i32, i32, i32) {
    %c0_i32 = arith.constant 0 : i32
    %c0_i32_0 = arith.constant 0 : i32
    %c0_i32_1 = arith.constant 0 : i32
    %c0_i32_2 = arith.constant 0 : i32
    return %c0_i32, %c0_i32_0, %c0_i32_1 : i32, i32, i32
  }
  func.func @transform_2(%arg0: i32) -> (i32, i32) {
    %c0_i32 = arith.constant 0 : i32
    %c0_i32_0 = arith.constant 0 : i32
    %c0_i32_1 = arith.constant 0 : i32
    return %c0_i32, %c0_i32_0 : i32, i32
  }
  func.func @transform_3(%arg0: i32) -> (i32, i32) {
    %c0_i32 = arith.constant 0 : i32
    %c0_i32_0 = arith.constant 0 : i32
    %c0_i32_1 = arith.constant 0 : i32
    return %c0_i32, %c0_i32_0 : i32, i32
  }
  func.func @transform_4(%arg0: i32) -> (i32, i32) {
    %c0_i32 = arith.constant 0 : i32
    %c0_i32_0 = arith.constant 0 : i32
    %c0_i32_1 = arith.constant 0 : i32
    return %c0_i32, %c0_i32_0 : i32, i32
  }
  func.func @transform_5(%arg0: i32) -> (i32, i32, i32) {
    %c0_i32 = arith.constant 0 : i32
    %c0_i32_0 = arith.constant 0 : i32
    %c0_i32_1 = arith.constant 0 : i32
    return %arg0, %c0_i32, %c0_i32_0 : i32, i32, i32
  }
  func.func @transform_6(%arg0: i32) -> (i32, i32, i32) {
    %c0_i32 = arith.constant 0 : i32
    %c0_i32_0 = arith.constant 0 : i32
    %c0_i32_1 = arith.constant 0 : i32
    return %arg0, %c0_i32, %c0_i32_0 : i32, i32, i32
  }
}

</mosaic_0001>

<llo_original>
// kernel: upscaler_forward.6
$region0: #{upscaler_forward.6}
  #allocation0 [shape = 'u32[]', space=smem, size = 0x4, offset = 0x4, fixed_abs, tag = 'smem constant byte address 0x4 - core index']
  #allocation1 [shape = 'u32[144,128]{1,0:T(1,128)}', space=vmem, size = 0x12000, scoped, tag = 'internal scratch']
  %s0 = inlined_call_operand.vmem [shape: bf16[16,8,8], index: 0, kind: input, shape index: {}]
  %s1 = inlined_call_operand.vmem [shape: bf16[16,8], index: 1, kind: input, shape index: {}]
  %s2 = inlined_call_operand.vmem [shape: bf16[8,16], index: 2, kind: input, shape index: {}]
  %s3 = inlined_call_operand.vmem [shape: f32[16,18,18], index: 3, kind: output, shape index: {}]
  %s4 = sld [smem:[#allocation0]]
  $region45: #{upscaler_forward.6} parent=0
    _
  %s6 = ssub.s32 1, %s4
  %s7 = scalar_select 0, %s6, %s4
  loop: start=0, step=1, limit=18
  $region2: #{upscaler_forward.6} parent=0 // loop_pre_header
    _
  $region3: #{upscaler_forward.6} parent=0 // loop_header
    %s9 = sphi 0, %s13
    %p10 = scmp.ge.s32.totalorder %s9, 18
    %s19 = sphi 0, %s21
    %s22 = sphi 0, %s19
    %s23 = sphi 0, %s22
    %s39 = sphi 0, %s23
    %s43 = sphi 0, %s43
    %s45 = sphi 0, %s43
    %s46 = sphi 0, %s45
    %s60 = sphi 0, %s46
    %s64 = sphi 0, %s64
    %s66 = sphi 0, %s64
    %s67 = sphi 0, %s66
    %s81 = sphi 0, %s67
    %s87 = sphi 0, %s89
    %s90 = sphi 0, %s87
    %s91 = sphi 0, %s90
    %s107 = sphi 0, %s91
  $region4: #{upscaler_forward.6} parent=0 // loop_header_branch
    %12 = sbr.rel (%p10) target = $region8
  $region5: #{upscaler_forward.6} parent=0 // loop_body
    %s14 = ssub.s32 %s9, 1
    %s15 = ssub.s32 %s9, 2
    %s16 = sadd.s32 %s9, 1
    %s17 = ssub.s32 %s9, %s16
    %p18 = scmp.eq.s32.totalorder %s17, 0
    %s20 = sadd.s32 %s19, 1
    %s21 = scalar_select %p18, %s19, %s20
    %p24 = pneg %p18
    %p25 = scmp.eq.s32.totalorder %s9, 15
    %p26 = por %p24, %p25
    %p27 = scmp.ne.s32.totalorder %s19, %s22
    %p28 = scmp.eq.s32.totalorder %s9, 0
    %p29 = por %p27, %p28
    %p30 = scmp.ne.s32.totalorder %s19, %s22
    %p31 = scmp.eq.s32.totalorder %s14, 15
    %p32 = por %p30, %p31
    %p33 = scmp.ne.s32.totalorder %s22, %s23
    %p34 = scmp.eq.s32.totalorder %s14, 0
    %p35 = por %p33, %p34
    %p36 = scmp.ne.s32.totalorder %s22, %s23
    %p37 = scmp.eq.s32.totalorder %s15, 15
    %p38 = por %p36, %p37
    %p40 = scmp.ne.s32.totalorder %s23, %s39
    %p41 = scmp.eq.s32.totalorder %s15, 0
    %p42 = por %p40, %p41
    %s44 = sadd.s32 %s43, 1
    %p47 = scmp.eq.s32.totalorder %s9, 15
    %p48 = scmp.ne.s32.totalorder %s43, %s45
    %p49 = scmp.eq.s32.totalorder %s9, 0
    %p50 = por %p48, %p49
    %p51 = scmp.ne.s32.totalorder %s43, %s45
    %p52 = scmp.eq.s32.totalorder %s14, 15
    %p53 = por %p51, %p52
    %p54 = scmp.ne.s32.totalorder %s45, %s46
    %p55 = scmp.eq.s32.totalorder %s14, 0
    %p56 = por %p54, %p55
    %p57 = scmp.ne.s32.totalorder %s45, %s46
    %p58 = scmp.eq.s32.totalorder %s15, 15
    %p59 = por %p57, %p58
    %p61 = scmp.ne.s32.totalorder %s46, %s60
    %p62 = scmp.eq.s32.totalorder %s15, 0
    %p63 = por %p61, %p62
    %s65 = sadd.s32 %s64, 1
    %p68 = scmp.eq.s32.totalorder %s9, 15
    %p69 = scmp.ne.s32.totalorder %s64, %s66
    %p70 = scmp.eq.s32.totalorder %s9, 0
    %p71 = por %p69, %p70
    %p72 = scmp.ne.s32.totalorder %s64, %s66
    %p73 = scmp.eq.s32.totalorder %s14, 15
    %p74 = por %p72, %p73
    %p75 = scmp.ne.s32.totalorder %s66, %s67
    %p76 = scmp.eq.s32.totalorder %s14, 0
    %p77 = por %p75, %p76
    %p78 = scmp.ne.s32.totalorder %s66, %s67
    %p79 = scmp.eq.s32.totalorder %s15, 15
    %p80 = por %p78, %p79
    %p82 = scmp.ne.s32.totalorder %s67, %s81
    %p83 = scmp.eq.s32.totalorder %s15, 0
    %p84 = por %p82, %p83
    %s85 = ssub.s32 %s9, %s16
    %p86 = scmp.eq.s32.totalorder %s85, 0
    %s88 = sadd.s32 %s87, 1
    %s89 = scalar_select %p86, %s87, %s88
    %p92 = pneg %p86
    %p93 = scmp.eq.s32.totalorder %s9, 15
    %p94 = por %p92, %p93
    %p95 = scmp.ne.s32.totalorder %s87, %s90
    %p96 = scmp.eq.s32.totalorder %s9, 0
    %p97 = por %p95, %p96
    %p98 = scmp.ne.s32.totalorder %s87, %s90
    %p99 = scmp.eq.s32.totalorder %s14, 15
    %p100 = por %p98, %p99
    %p101 = scmp.ne.s32.totalorder %s90, %s91
    %p102 = scmp.eq.s32.totalorder %s14, 0
    %p103 = por %p101, %p102
    %p104 = scmp.ne.s32.totalorder %s90, %s91
    %p105 = scmp.eq.s32.totalorder %s15, 15
    %p106 = por %p104, %p105
    %p108 = scmp.ne.s32.totalorder %s91, %s107
    %p109 = scmp.eq.s32.totalorder %s15, 0
    %p110 = por %p108, %p109
    %p111 = scmp.le.s32.totalorder 1, %s9
    %p112 = scmp.lt.s32.totalorder %s9, 17
    %p113 = pnand %p111, %p112
    %p114 = pneg %p113
    // Predicated region
    $region9: #{upscaler_forward.6} parent=5 // pred_check
      _
    $region10: #{upscaler_forward.6} parent=5 // pred_check_branch
      %116 = sbr.rel (%p113) target = $region12
    $region11: #{upscaler_forward.6} parent=5 // pred_region
      %s117 = ssub.s32 %s9, 1
      // Predicated region
      $region13: #{upscaler_forward.6} parent=11 // pred_check
        %p118 = pneg %p56
      $region14: #{upscaler_forward.6} parent=11 // pred_check_branch
        %120 = sbr.rel (%p118) target = $region16
      $region15: #{upscaler_forward.6} parent=11 // pred_region
        _
      $region16: #{upscaler_forward.6} parent=11 // pred_fallthru
        _
      // Predicated region
      $region17: #{upscaler_forward.6} parent=11 // pred_check
        %p121 = pneg %p77
      $region18: #{upscaler_forward.6} parent=11 // pred_check_branch
        %123 = sbr.rel (%p121) target = $region20
      $region19: #{upscaler_forward.6} parent=11 // pred_region
        _
      $region20: #{upscaler_forward.6} parent=11 // pred_fallthru
        _
    $region12: #{upscaler_forward.6} parent=5 // pred_fallthru
      _
    %p124 = scmp.lt.s32.totalorder %s9, 16
    // Predicated region
    $region21: #{upscaler_forward.6} parent=5 // pred_check
      %p125 = pneg %p124
    $region22: #{upscaler_forward.6} parent=5 // pred_check_branch
      %127 = sbr.rel (%p125) target = $region24
    $region23: #{upscaler_forward.6} parent=5 // pred_region
      // Predicated region
      $region25: #{upscaler_forward.6} parent=23 // pred_check
        %p128 = pneg %p29
      $region26: #{upscaler_forward.6} parent=23 // pred_check_branch
        %130 = sbr.rel (%p128) target = $region28
      $region27: #{upscaler_forward.6} parent=23 // pred_region
        %p131 = scmp.lt.s32.totalorder %s9, 15
        %s132 = scalar_select %p131, %s9, 15
        %s133 = smul.addr %s132, 4
        %s134 = scalar_lea.vmem %s0, %s133
      $region28: #{upscaler_forward.6} parent=23 // pred_fallthru
        _
    $region24: #{upscaler_forward.6} parent=5 // pred_fallthru
      _
    %p135 = scmp.le.s32.totalorder 1, %s9
    %p136 = scmp.lt.s32.totalorder %s9, 17
    %p137 = pnand %p135, %p136
    %p138 = pneg %p137
    // Predicated region
    $region29: #{upscaler_forward.6} parent=5 // pred_check
      _
    $region30: #{upscaler_forward.6} parent=5 // pred_check_branch
      %140 = sbr.rel (%p137) target = $region32
    $region31: #{upscaler_forward.6} parent=5 // pred_region
      %s141 = ssub.s32 %s9, 1
      %p142 = scmp.lt.s32.totalorder %s14, 15
      %s143 = scalar_select %p142, %s14, 15
      %s144 = smul.addr %s143, 4
      %s145 = scalar_lea.vmem %s0, %s144
      %p146 = pneg %p35
      %p147 = pneg %p32
      %p148 = pneg %p56
      %p149 = pneg %p53
      %p150 = pneg %p77
      %p151 = pneg %p74
      %p152 = pneg %p103
      %p153 = pneg %p100
      %p154 = scmp.lt.s32.totalorder %s14, 15
      %s155 = scalar_select %p154, %s14, 15
      %s156 = smul.addr %s155, 3
      %s157 = smul.addr %s156, 8
      %s158 = scalar_lea.vmem %s3, %s157
      %p159 = scmp.lt.s32.totalorder %s14, 15
      %s160 = scalar_select %p159, %s14, 15
      %s161 = smul.addr %s160, 4
      %s162 = scalar_lea.vmem %s0, %s161
      %p163 = scmp.lt.s32.totalorder %s14, 15
      %s164 = scalar_select %p163, %s14, 15
      %s165 = smul.addr %s164, 3
      %s166 = smul.addr %s165, 8
      %s167 = scalar_lea.vmem %s3, %s166
      %v169 = vld [vmem:[%s162] sm:$0xf]
      %v170 = vld [vmem:[%s2] sm:$0xf]
      %vm171 = vcmask 64512
      %v173 = vsel %vm171, %v169, 0
      %vm175 = vcmask 1043456
      %v177 = vsel %vm175, %v170, 0
      %179 = vmatprep.subr.bf16.mxu0 0
      %180 = vmatpush1.bf16.msra.mxu0 0
      %181 = vmatprep.subr.bf16.mxu0 0
      %182 = vmatpush1.bf16.msra.mxu0 0
      %183 = vmatprep.subr.bf16.mxu0 0
      %184 = vmatpush1.bf16.msra.mxu0 0
      %185 = vmatprep.subr.bf16.mxu0 0
      %186 = vmatpush1.bf16.msra.mxu0 0
      %187 = vmatprep.subr.bf16.mxu0 0
      %188 = vmatpush1.bf16.msra.mxu0 0
      %189 = vmatprep.subr.bf16.mxu0 0
      %190 = vmatpush1.bf16.msra.mxu0 0
      %191 = vmatprep.subr.bf16.mxu0 0
      %192 = vmatpush1.bf16.msra.mxu0 0
      %193 = vmatprep.subr.bf16.mxu0 0
      %194 = vmatpush1.bf16.msra.mxu0 %v177
      %195 = vmatprep.subr.bf16.mxu0 0
      %196 = vmatpush2.bf16.msra.mxu0 0
      %197 = vmatprep.subr.bf16.mxu0 0
      %198 = vmatpush2.bf16.msra.mxu0 0
      %199 = vmatprep.subr.bf16.mxu0 0
      %200 = vmatpush2.bf16.msra.mxu0 0
      %201 = vmatprep.subr.bf16.mxu0 0
      %202 = vmatpush2.bf16.msra.mxu0 0
      %203 = vmatprep.subr.bf16.mxu0 0
      %204 = vmatpush2.bf16.msra.mxu0 0
      %205 = vmatprep.subr.bf16.mxu0 0
      %206 = vmatpush2.bf16.msra.mxu0 0
      %207 = vmatprep.subr.bf16.mxu0 0
      %208 = vmatpush2.bf16.msra.mxu0 0
      %209 = vmatprep.subr.bf16.mxu0 0
      %210 = vmatpush2.bf16.msra.mxu0 0
      %211 = vmatprep.mubr.bf16.mxu0 0
      %212 = vmatmul.mubr.bf16.gmra.mxu0 %v173
      %v213 = vpop.f32.mrf.mxu0
      %v214 = vadd.f32 0.0, %v213
      %v215 = vpop.f32.mrf.mxu0
      %v216 = vpop.f32.mrf.mxu0
      %v217 = vpop.f32.mrf.mxu0
      %218 = vdwg.mxu0
      %v219 = vld [vmem:[%s1] sm:$0xf]
      %v220 = vld [vmem:[%s1 + $0x4] sm:$0xf]
      %v221 = vpack.c.bf16 %v214, %v214
      %v224 = vunpack.c.l.b16 %v219
      %v225 = vunpack.c.l.b16 %v220
      %v226 = vpack.c.b16 %v225, %v224
      %v228 = vsel %vm171, %v226, 0
      %v231 = vsel %vm175, %v221, 0
      %233 = vmatprep.subr.bf16.mxu0 0
      %234 = vmatpush1.bf16.msra.mxu0 0
      %235 = vmatprep.subr.bf16.mxu0 0
      %236 = vmatpush1.bf16.msra.mxu0 0
      %237 = vmatprep.subr.bf16.mxu0 0
      %238 = vmatpush1.bf16.msra.mxu0 0
      %239 = vmatprep.subr.bf16.mxu0 0
      %240 = vmatpush1.bf16.msra.mxu0 0
      %241 = vmatprep.subr.bf16.mxu0 0
      %242 = vmatpush1.bf16.msra.mxu0 0
      %243 = vmatprep.subr.bf16.mxu0 0
      %244 = vmatpush1.bf16.msra.mxu0 0
      %245 = vmatprep.subr.bf16.mxu0 0
      %246 = vmatpush1.bf16.msra.mxu0 0
      %247 = vmatprep.subr.bf16.mxu0 0
      %248 = vmatpush1.bf16.msra.mxu0 %v231
      %249 = vmatprep.subr.bf16.mxu0 0
      %250 = vmatpush2.bf16.msra.mxu0 0
      %251 = vmatprep.subr.bf16.mxu0 0
      %252 = vmatpush2.bf16.msra.mxu0 0
      %253 = vmatprep.subr.bf16.mxu0 0
      %254 = vmatpush2.bf16.msra.mxu0 0
      %255 = vmatprep.subr.bf16.mxu0 0
      %256 = vmatpush2.bf16.msra.mxu0 0
      %257 = vmatprep.subr.bf16.mxu0 0
      %258 = vmatpush2.bf16.msra.mxu0 0
      %259 = vmatprep.subr.bf16.mxu0 0
      %260 = vmatpush2.bf16.msra.mxu0 0
      %261 = vmatprep.subr.bf16.mxu0 0
      %262 = vmatpush2.bf16.msra.mxu0 0
      %263 = vmatprep.subr.bf16.mxu0 0
      %264 = vmatpush2.bf16.msra.mxu0 0
      %265 = vmatprep.mubr.bf16.mxu0 0
      %266 = vmatmul.mubr.bf16.gmra.mxu0 %v228
      %v267 = vpop.f32.mrf.mxu0
      %v268 = vadd.f32 0.0, %v267
      %v269 = vpop.f32.mrf.mxu0
      %v270 = vpop.f32.mrf.mxu0
      %v271 = vadd.f32 0.0, %v270
      %v272 = vpop.f32.mrf.mxu0
      %273 = vdwg.mxu0
      %vm274 = vcmask 146432
      %275 = vst.msk [vmem:[%s167] sm:$0xff] %vm274, 0.0
      %276 = vst.msk [vmem:[%s167 + $0x8] sm:$0xff] %vm274, 0.0
      %vm277 = vcmask 140288
      %278 = vst.msk [vmem:[%s167 + $0x10] sm:$0x3] %vm277, 0.0
      %281 = vrot.lane.b32.xlu0 %v268, 1
      %v282 = vpop.permute.xlu0 %281
      %283 = vrot.lane.b32.xlu0 %v271, 1
      %v284 = vpop.permute.xlu0 %283
      %vm287 = vcmask 138248
      %288 = vst.msk [vmem:[%s167 + $0x1] sm:$0xff] %vm287, %v282
      %289 = vst.msk [vmem:[%s167 + $0x9] sm:$0xff] %vm287, %v284
      %p290 = scmp.lt.s32.totalorder %s14, 15
      %s291 = scalar_select %p290, %s14, 15
      %s292 = smul.addr %s291, 3
      %s293 = smul.addr %s292, 8
      %s294 = scalar_lea.vmem %s3, %s293
      // Predicated region
      $region33: #{upscaler_forward.6} parent=31 // pred_check
        %p295 = pneg %p100
      $region34: #{upscaler_forward.6} parent=31 // pred_check_branch
        %297 = sbr.rel (%p295) target = $region36
      $region35: #{upscaler_forward.6} parent=31 // pred_region
        _
      $region36: #{upscaler_forward.6} parent=31 // pred_fallthru
        _
    $region32: #{upscaler_forward.6} parent=5 // pred_fallthru
      _
    %p298 = scmp.le.s32.totalorder 2, %s9
    // Predicated region
    $region37: #{upscaler_forward.6} parent=5 // pred_check
      %p299 = pneg %p298
    $region38: #{upscaler_forward.6} parent=5 // pred_check_branch
      %301 = sbr.rel (%p299) target = $region40
    $region39: #{upscaler_forward.6} parent=5 // pred_region
      %s302 = ssub.s32 %s9, 2
      // Predicated region
      $region41: #{upscaler_forward.6} parent=39 // pred_check
        %p303 = pneg %p106
      $region42: #{upscaler_forward.6} parent=39 // pred_check_branch
        %305 = sbr.rel (%p303) target = $region44
      $region43: #{upscaler_forward.6} parent=39 // pred_region
        %p306 = scmp.lt.s32.totalorder %s15, 15
        %s307 = scalar_select %p306, %s15, 15
        %s308 = smul.addr %s307, 3
        %s309 = smul.addr %s308, 8
        %s310 = scalar_lea.vmem %s3, %s309
      $region44: #{upscaler_forward.6} parent=39 // pred_fallthru
        _
    $region40: #{upscaler_forward.6} parent=5 // pred_fallthru
      _
  $region6: #{upscaler_forward.6} parent=0 // loop_footer
    %s13 = sadd.s32 1, %s9
  $region7: #{upscaler_forward.6} parent=0 // loop_footer_branch
    %8 = sbr.rel target = $region3
  $region8: #{upscaler_forward.6} parent=0 // loop_exit
    _

// kernel: upscaler_forward.10
$region0: #{upscaler_forward.10}
  #allocation0 [shape = 'u32[]', space=smem, size = 0x4, offset = 0x4, fixed_abs, tag = 'smem constant byte address 0x4 - core index']
  #allocation1 [shape = 'u32[144,128]{1,0:T(1,128)}', space=vmem, size = 0x12000, scoped, tag = 'internal scratch']
  %s0 = inlined_call_operand.vmem [shape: f32[2,32], index: 0, kind: input, shape index: {}]
  %s1 = inlined_call_operand.vmem [shape: bf16[32,8], index: 1, kind: input, shape index: {}]
  %s2 = inlined_call_operand.vmem [shape: f32[1,8], index: 2, kind: input, shape index: {}]
  %s3 = inlined_call_operand.vmem [shape: f32[2,8], index: 3, kind: output, shape index: {}]
  %s4 = sld [smem:[#allocation0]]
  $region22: #{upscaler_forward.10} parent=0
    _
  %s6 = ssub.s32 1, %s4
  %s7 = scalar_select 0, %s6, %s4
  // Predicated region
  $region2: #{upscaler_forward.10} parent=0 // pred_check
    _
  $region3: #{upscaler_forward.10} parent=0 // pred_check_branch
    %9 = sbr.rel (0) target = $region5
  $region4: #{upscaler_forward.10} parent=0 // pred_region
    _
  $region5: #{upscaler_forward.10} parent=0 // pred_fallthru
    _
  // Predicated region
  $region6: #{upscaler_forward.10} parent=0 // pred_check
    _
  $region7: #{upscaler_forward.10} parent=0 // pred_check_branch
    %11 = sbr.rel (0) target = $region9
  $region8: #{upscaler_forward.10} parent=0 // pred_region
    _
  $region9: #{upscaler_forward.10} parent=0 // pred_fallthru
    _
  // Predicated region
  $region10: #{upscaler_forward.10} parent=0 // pred_check
    _
  $region11: #{upscaler_forward.10} parent=0 // pred_check_branch
    %13 = sbr.rel (0) target = $region13
  $region12: #{upscaler_forward.10} parent=0 // pred_region
    _
  $region13: #{upscaler_forward.10} parent=0 // pred_fallthru
    _
  %v15 = vld [vmem:[%s0] sm:$0x3]
  %v16 = vsub.f32 0.0, %v15
  %v17 = vmul.f32 %v16, 1.442695
  %v18 = vpow.pop %v17
  %v19 = vadd.f32 %v18, 1.0
  %v20 = vrcp.pop %v19
  %v21 = vmul.f32 1.0, %v20
  %v22 = vmul.f32 %v15, %v21
  %v23 = vpack.c.bf16 %v22, %v22
  %v24 = vld [vmem:[%s1] sm:$0xf]
  %v25 = vld [vmem:[%s1 + $0x4] sm:$0xf]
  %v26 = vld [vmem:[%s1 + $0x8] sm:$0xf]
  %v27 = vld [vmem:[%s1 + $0xc] sm:$0xf]
  %v28 = vld [vmem:[%s2] sm:$0x1]
  %v30 = vlaneseq
  %v31 = vshrl.u32 %v30, 7
  %v32 = vsub.s32 0, %v31
  %v33 = vrot.slane %v28, %v32
  %v39 = vunpack.c.l.b16 %v24
  %v40 = vunpack.c.l.b16 %v25
  %v41 = vunpack.c.l.b16 %v26
  %v42 = vunpack.c.l.b16 %v27
  %v43 = vpack.c.b16 %v40, %v39
  %v44 = vpack.c.b16 %v42, %v41
  %vm47 = vcmask 261120
  %v49 = vsel %vm47, %v23, 0
  %51 = vmatprep.subr.bf16.mxu0 0
  %52 = vmatpush1.bf16.msra.mxu0 0
  %53 = vmatprep.subr.bf16.mxu0 0
  %54 = vmatpush1.bf16.msra.mxu0 0
  %55 = vmatprep.subr.bf16.mxu0 0
  %56 = vmatpush1.bf16.msra.mxu0 0
  %57 = vmatprep.subr.bf16.mxu0 0
  %58 = vmatpush1.bf16.msra.mxu0 0
  %59 = vmatprep.subr.bf16.mxu0 0
  %60 = vmatpush1.bf16.msra.mxu0 0
  %61 = vmatprep.subr.bf16.mxu0 0
  %62 = vmatpush1.bf16.msra.mxu0 0
  %63 = vmatprep.subr.bf16.mxu0 0
  %64 = vmatpush1.bf16.msra.mxu0 %v44
  %65 = vmatprep.subr.bf16.mxu0 0
  %66 = vmatpush1.bf16.msra.mxu0 %v43
  %67 = vmatprep.subr.bf16.mxu0 0
  %68 = vmatpush2.bf16.msra.mxu0 0
  %69 = vmatprep.subr.bf16.mxu0 0
  %70 = vmatpush2.bf16.msra.mxu0 0
  %71 = vmatprep.subr.bf16.mxu0 0
  %72 = vmatpush2.bf16.msra.mxu0 0
  %73 = vmatprep.subr.bf16.mxu0 0
  %74 = vmatpush2.bf16.msra.mxu0 0
  %75 = vmatprep.subr.bf16.mxu0 0
  %76 = vmatpush2.bf16.msra.mxu0 0
  %77 = vmatprep.subr.bf16.mxu0 0
  %78 = vmatpush2.bf16.msra.mxu0 0
  %79 = vmatprep.subr.bf16.mxu0 0
  %80 = vmatpush2.bf16.msra.mxu0 0
  %81 = vmatprep.subr.bf16.mxu0 0
  %82 = vmatpush2.bf16.msra.mxu0 0
  %83 = vmatprep.mubr.bf16.mxu0 0
  %84 = vmatmul.mubr.bf16.gmra.mxu0 %v49
  %v85 = vpop.f32.mrf.mxu0
  %v86 = vadd.f32 %v33, %v85
  %v87 = vpop.f32.mrf.mxu0
  %v88 = vpop.f32.mrf.mxu0
  %v89 = vpop.f32.mrf.mxu0
  %90 = vdwg.mxu0
  %vm91 = vcmask 58368
  %92 = vst.msk [vmem:[%s3] sm:$0x3] %vm91, %v86
  // Predicated region
  $region14: #{upscaler_forward.10} parent=0 // pred_check
    _
  $region15: #{upscaler_forward.10} parent=0 // pred_check_branch
    %94 = sbr.rel (0) target = $region17
  $region16: #{upscaler_forward.10} parent=0 // pred_region
    _
  $region17: #{upscaler_forward.10} parent=0 // pred_fallthru
    _
  // Predicated region
  $region18: #{upscaler_forward.10} parent=0 // pred_check
    _
  $region19: #{upscaler_forward.10} parent=0 // pred_check_branch
    %96 = sbr.rel (0) target = $region21
  $region20: #{upscaler_forward.10} parent=0 // pred_region
    _
  $region21: #{upscaler_forward.10} parent=0 // pred_fallthru
    _

// kernel: upscaler_forward.7
$region0: #{upscaler_forward.7}
  #allocation0 [shape = 'u32[]', space=smem, size = 0x4, offset = 0x4, fixed_abs, tag = 'smem constant byte address 0x4 - core index']
  #allocation1 [shape = 'u32[144,128]{1,0:T(1,128)}', space=vmem, size = 0x12000, scoped, tag = 'internal scratch']
  %s0 = inlined_call_operand.vmem [shape: bf16[2,16,324], index: 0, kind: input, shape index: {}]
  %s1 = inlined_call_operand.vmem [shape: bf16[9,16,16], index: 1, kind: input, shape index: {}]
  %s2 = inlined_call_operand.vmem [shape: f32[16,1], index: 2, kind: input, shape index: {}]
  %s3 = inlined_call_operand.vmem [shape: f32[16,1], index: 3, kind: input, shape index: {}]
  %s4 = inlined_call_operand.vmem [shape: f32[1,286], index: 4, kind: input, shape index: {}]
  %s5 = inlined_call_operand.vmem [shape: bf16[2,16,324], index: 5, kind: output, shape index: {}]
  %s6 = sld [smem:[#allocation0]]
  $region53: #{upscaler_forward.7} parent=0
    _
  %s8 = ssub.s32 1, %s6
  %s9 = scalar_select 0, %s8, %s6
  loop: start=0, step=1, limit=4
  $region2: #{upscaler_forward.7} parent=0 // loop_pre_header
    _
  $region3: #{upscaler_forward.7} parent=0 // loop_header
    %s11 = sphi 0, %s15
    %p12 = scmp.ge.s32.totalorder %s11, 4
    %s21 = sphi 0, %s23
    %s24 = sphi 0, %s21
    %s25 = sphi 0, %s24
    %s41 = sphi 0, %s25
    %s45 = sphi 0, %s45
    %s47 = sphi 0, %s45
    %s48 = sphi 0, %s47
    %s62 = sphi 0, %s48
    %s66 = sphi 0, %s66
    %s68 = sphi 0, %s66
    %s69 = sphi 0, %s68
    %s83 = sphi 0, %s69
    %s87 = sphi 0, %s87
    %s89 = sphi 0, %s87
    %s90 = sphi 0, %s89
    %s104 = sphi 0, %s90
    %s108 = sphi 0, %s108
    %s110 = sphi 0, %s108
    %s111 = sphi 0, %s110
    %s125 = sphi 0, %s111
    %s131 = sphi 0, %s133
    %s134 = sphi 0, %s131
    %s135 = sphi 0, %s134
    %s151 = sphi 0, %s135
  $region4: #{upscaler_forward.7} parent=0 // loop_header_branch
    %14 = sbr.rel (%p12) target = $region8
  $region5: #{upscaler_forward.7} parent=0 // loop_body
    %s16 = ssub.s32 %s11, 1
    %s17 = ssub.s32 %s11, 2
    %s18 = sadd.s32 %s11, 1
    %s19 = ssub.s32 %s11, %s18
    %p20 = scmp.eq.s32.totalorder %s19, 0
    %s22 = sadd.s32 %s21, 1
    %s23 = scalar_select %p20, %s21, %s22
    %p26 = pneg %p20
    %p27 = scmp.eq.s32.totalorder %s11, 1
    %p28 = por %p26, %p27
    %p29 = scmp.ne.s32.totalorder %s21, %s24
    %p30 = scmp.eq.s32.totalorder %s11, 0
    %p31 = por %p29, %p30
    %p32 = scmp.ne.s32.totalorder %s21, %s24
    %p33 = scmp.eq.s32.totalorder %s16, 1
    %p34 = por %p32, %p33
    %p35 = scmp.ne.s32.totalorder %s24, %s25
    %p36 = scmp.eq.s32.totalorder %s16, 0
    %p37 = por %p35, %p36
    %p38 = scmp.ne.s32.totalorder %s24, %s25
    %p39 = scmp.eq.s32.totalorder %s17, 1
    %p40 = por %p38, %p39
    %p42 = scmp.ne.s32.totalorder %s25, %s41
    %p43 = scmp.eq.s32.totalorder %s17, 0
    %p44 = por %p42, %p43
    %s46 = sadd.s32 %s45, 1
    %p49 = scmp.eq.s32.totalorder %s11, 1
    %p50 = scmp.ne.s32.totalorder %s45, %s47
    %p51 = scmp.eq.s32.totalorder %s11, 0
    %p52 = por %p50, %p51
    %p53 = scmp.ne.s32.totalorder %s45, %s47
    %p54 = scmp.eq.s32.totalorder %s16, 1
    %p55 = por %p53, %p54
    %p56 = scmp.ne.s32.totalorder %s47, %s48
    %p57 = scmp.eq.s32.totalorder %s16, 0
    %p58 = por %p56, %p57
    %p59 = scmp.ne.s32.totalorder %s47, %s48
    %p60 = scmp.eq.s32.totalorder %s17, 1
    %p61 = por %p59, %p60
    %p63 = scmp.ne.s32.totalorder %s48, %s62
    %p64 = scmp.eq.s32.totalorder %s17, 0
    %p65 = por %p63, %p64
    %s67 = sadd.s32 %s66, 1
    %p70 = scmp.eq.s32.totalorder %s11, 1
    %p71 = scmp.ne.s32.totalorder %s66, %s68
    %p72 = scmp.eq.s32.totalorder %s11, 0
    %p73 = por %p71, %p72
    %p74 = scmp.ne.s32.totalorder %s66, %s68
    %p75 = scmp.eq.s32.totalorder %s16, 1
    %p76 = por %p74, %p75
    %p77 = scmp.ne.s32.totalorder %s68, %s69
    %p78 = scmp.eq.s32.totalorder %s16, 0
    %p79 = por %p77, %p78
    %p80 = scmp.ne.s32.totalorder %s68, %s69
    %p81 = scmp.eq.s32.totalorder %s17, 1
    %p82 = por %p80, %p81
    %p84 = scmp.ne.s32.totalorder %s69, %s83
    %p85 = scmp.eq.s32.totalorder %s17, 0
    %p86 = por %p84, %p85
    %s88 = sadd.s32 %s87, 1
    %p91 = scmp.eq.s32.totalorder %s11, 1
    %p92 = scmp.ne.s32.totalorder %s87, %s89
    %p93 = scmp.eq.s32.totalorder %s11, 0
    %p94 = por %p92, %p93
    %p95 = scmp.ne.s32.totalorder %s87, %s89
    %p96 = scmp.eq.s32.totalorder %s16, 1
    %p97 = por %p95, %p96
    %p98 = scmp.ne.s32.totalorder %s89, %s90
    %p99 = scmp.eq.s32.totalorder %s16, 0
    %p100 = por %p98, %p99
    %p101 = scmp.ne.s32.totalorder %s89, %s90
    %p102 = scmp.eq.s32.totalorder %s17, 1
    %p103 = por %p101, %p102
    %p105 = scmp.ne.s32.totalorder %s90, %s104
    %p106 = scmp.eq.s32.totalorder %s17, 0
    %p107 = por %p105, %p106
    %s109 = sadd.s32 %s108, 1
    %p112 = scmp.eq.s32.totalorder %s11, 1
    %p113 = scmp.ne.s32.totalorder %s108, %s110
    %p114 = scmp.eq.s32.totalorder %s11, 0
    %p115 = por %p113, %p114
    %p116 = scmp.ne.s32.totalorder %s108, %s110
    %p117 = scmp.eq.s32.totalorder %s16, 1
    %p118 = por %p116, %p117
    %p119 = scmp.ne.s32.totalorder %s110, %s111
    %p120 = scmp.eq.s32.totalorder %s16, 0
    %p121 = por %p119, %p120
    %p122 = scmp.ne.s32.totalorder %s110, %s111
    %p123 = scmp.eq.s32.totalorder %s17, 1
    %p124 = por %p122, %p123
    %p126 = scmp.ne.s32.totalorder %s111, %s125
    %p127 = scmp.eq.s32.totalorder %s17, 0
    %p128 = por %p126, %p127
    %s129 = ssub.s32 %s11, %s18
    %p130 = scmp.eq.s32.totalorder %s129, 0
    %s132 = sadd.s32 %s131, 1
    %s133 = scalar_select %p130, %s131, %s132
    %p136 = pneg %p130
    %p137 = scmp.eq.s32.totalorder %s11, 1
    %p138 = por %p136, %p137
    %p139 = scmp.ne.s32.totalorder %s131, %s134
    %p140 = scmp.eq.s32.totalorder %s11, 0
    %p141 = por %p139, %p140
    %p142 = scmp.ne.s32.totalorder %s131, %s134
    %p143 = scmp.eq.s32.totalorder %s16, 1
    %p144 = por %p142, %p143
    %p145 = scmp.ne.s32.totalorder %s134, %s135
    %p146 = scmp.eq.s32.totalorder %s16, 0
    %p147 = por %p145, %p146
    %p148 = scmp.ne.s32.totalorder %s134, %s135
    %p149 = scmp.eq.s32.totalorder %s17, 1
    %p150 = por %p148, %p149
    %p152 = scmp.ne.s32.totalorder %s135, %s151
    %p153 = scmp.eq.s32.totalorder %s17, 0
    %p154 = por %p152, %p153
    %p155 = scmp.le.s32.totalorder 1, %s11
    %p156 = scmp.lt.s32.totalorder %s11, 3
    %p157 = pnand %p155, %p156
    %p158 = pneg %p157
    // Predicated region
    $region9: #{upscaler_forward.7} parent=5 // pred_check
      _
    $region10: #{upscaler_forward.7} parent=5 // pred_check_branch
      %160 = sbr.rel (%p157) target = $region12
    $region11: #{upscaler_forward.7} parent=5 // pred_region
      %s161 = ssub.s32 %s11, 1
      // Predicated region
      $region13: #{upscaler_forward.7} parent=11 // pred_check
        %p162 = pneg %p58
      $region14: #{upscaler_forward.7} parent=11 // pred_check_branch
        %164 = sbr.rel (%p162) target = $region16
      $region15: #{upscaler_forward.7} parent=11 // pred_region
        _
      $region16: #{upscaler_forward.7} parent=11 // pred_fallthru
        _
      // Predicated region
      $region17: #{upscaler_forward.7} parent=11 // pred_check
        %p165 = pneg %p79
      $region18: #{upscaler_forward.7} parent=11 // pred_check_branch
        %167 = sbr.rel (%p165) target = $region20
      $region19: #{upscaler_forward.7} parent=11 // pred_region
        _
      $region20: #{upscaler_forward.7} parent=11 // pred_fallthru
        _
      // Predicated region
      $region21: #{upscaler_forward.7} parent=11 // pred_check
        %p168 = pneg %p100
      $region22: #{upscaler_forward.7} parent=11 // pred_check_branch
        %170 = sbr.rel (%p168) target = $region24
      $region23: #{upscaler_forward.7} parent=11 // pred_region
        _
      $region24: #{upscaler_forward.7} parent=11 // pred_fallthru
        _
      // Predicated region
      $region25: #{upscaler_forward.7} parent=11 // pred_check
        %p171 = pneg %p121
      $region26: #{upscaler_forward.7} parent=11 // pred_check_branch
        %173 = sbr.rel (%p171) target = $region28
      $region27: #{upscaler_forward.7} parent=11 // pred_region
        _
      $region28: #{upscaler_forward.7} parent=11 // pred_fallthru
        _
    $region12: #{upscaler_forward.7} parent=5 // pred_fallthru
      _
    %p174 = scmp.lt.s32.totalorder %s11, 2
    // Predicated region
    $region29: #{upscaler_forward.7} parent=5 // pred_check
      %p175 = pneg %p174
    $region30: #{upscaler_forward.7} parent=5 // pred_check_branch
      %177 = sbr.rel (%p175) target = $region32
    $region31: #{upscaler_forward.7} parent=5 // pred_region
      // Predicated region
      $region33: #{upscaler_forward.7} parent=31 // pred_check
        %p178 = pneg %p31
      $region34: #{upscaler_forward.7} parent=31 // pred_check_branch
        %180 = sbr.rel (%p178) target = $region36
      $region35: #{upscaler_forward.7} parent=31 // pred_region
        %p181 = scmp.lt.s32.totalorder %s11, 1
        %s182 = scalar_select %p181, %s11, 1
        %s183 = smul.addr %s182, 6
        %s184 = smul.addr %s183, 4
        %s185 = scalar_lea.vmem %s0, %s184
      $region36: #{upscaler_forward.7} parent=31 // pred_fallthru
        _
    $region32: #{upscaler_forward.7} parent=5 // pred_fallthru
      _
    %p186 = scmp.le.s32.totalorder 1, %s11
    %p187 = scmp.lt.s32.totalorder %s11, 3
    %p188 = pnand %p186, %p187
    %p189 = pneg %p188
    // Predicated region
    $region37: #{upscaler_forward.7} parent=5 // pred_check
      _
    $region38: #{upscaler_forward.7} parent=5 // pred_check_branch
      %191 = sbr.rel (%p188) target = $region40
    $region39: #{upscaler_forward.7} parent=5 // pred_region
      %s192 = ssub.s32 %s11, 1
      %p193 = scmp.lt.s32.totalorder %s16, 1
      %s194 = scalar_select %p193, %s16, 1
      %s195 = smul.addr %s194, 6
      %s196 = smul.addr %s195, 4
      %s197 = scalar_lea.vmem %s0, %s196
      %p198 = pneg %p37
      %p199 = pneg %p34
      %p200 = pneg %p58
      %p201 = pneg %p55
      %p202 = pneg %p79
      %p203 = pneg %p76
      %p204 = pneg %p100
      %p205 = pneg %p97
      %p206 = pneg %p121
      %p207 = pneg %p118
      %p208 = pneg %p147
      %p209 = pneg %p144
      %p210 = scmp.lt.s32.totalorder %s16, 1
      %s211 = scalar_select %p210, %s16, 1
      %s212 = smul.addr %s211, 6
      %s213 = smul.addr %s212, 4
      %s214 = scalar_lea.vmem %s5, %s213
      %p215 = scmp.lt.s32.totalorder %s16, 1
      %s216 = scalar_select %p215, %s16, 1
      %s217 = smul.addr %s216, 6
      %s218 = smul.addr %s217, 4
      %s219 = scalar_lea.vmem %s0, %s218
      %p220 = scmp.lt.s32.totalorder %s16, 1
      %s221 = scalar_select %p220, %s16, 1
      %s222 = smul.addr %s221, 6
      %s223 = smul.addr %s222, 4
      %s224 = scalar_lea.vmem %s5, %s223
      %v226 = vld [vmem:[%s219] sm:$0xff]
      %v227 = vld [vmem:[%s219 + $0x8] sm:$0xf]
      %v228 = vld [vmem:[%s219 + $0xc] sm:$0xff]
      %v229 = vld [vmem:[%s219 + $0x14] sm:$0xf]
      %v230 = vld [vmem:[%s1] sm:$0xf]
      %v231 = vld [vmem:[%s1 + $0x4] sm:$0xf]
      %s232 = scalar_lea.vmem %s1, 8
      %v233 = vld [vmem:[%s232] sm:$0xf]
      %v234 = vld [vmem:[%s232 + $0x4] sm:$0xf]
      %v237 = vunpack.c.l.b16 %v233
      %v238 = vunpack.c.l.b16 %v234
      %v239 = vpack.c.b16 %v238, %v237
      %v244 = vunpack.c.l.b16 %v226
      %v245 = vunpack.c.h.b16 %v226
      %v246 = vunpack.c.l.b16 %v227
      %v247 = vunpack.c.l.b16 %v228
      %v248 = vunpack.c.h.b16 %v228
      %v249 = vunpack.c.l.b16 %v229
      %v250 = vpack.c.b16 %v247, %v244
      %v251 = vpack.c.b16 %v248, %v245
      %v252 = vpack.c.b16 %v249, %v246
      %253 = vrot.lane.b32.xlu0 %v250, 127
      %v254 = vpop.permute.xlu0 %253
      %255 = vrot.lane.b32.xlu0 %v251, 127
      %v256 = vpop.permute.xlu0 %255
      %257 = vrot.lane.b32.xlu0 %v252, 127
      %v258 = vpop.permute.xlu0 %257
      %vm259 = vcmask 1039360
      %v260 = vsel %vm259, %v254, %v256
      %v261 = vsel %vm259, %v256, %v258
      %vm265 = vcmask 130048
      %v267 = vsel %vm265, %v239, 0
      %269 = vmatprep.subr.bf16.mxu0 0
      %270 = vmatpush1.bf16.msra.mxu0 0
      %271 = vmatprep.subr.bf16.mxu0 0
      %272 = vmatpush1.bf16.msra.mxu0 0
      %273 = vmatprep.subr.bf16.mxu0 0
      %274 = vmatpush1.bf16.msra.mxu0 0
      %275 = vmatprep.subr.bf16.mxu0 0
      %276 = vmatpush1.bf16.msra.mxu0 0
      %277 = vmatprep.subr.bf16.mxu0 0
      %278 = vmatpush1.bf16.msra.mxu0 0
      %279 = vmatprep.subr.bf16.mxu0 0
      %280 = vmatpush1.bf16.msra.mxu0 0
      %281 = vmatprep.subr.bf16.mxu0 0
      %282 = vmatpush1.bf16.msra.mxu0 0
      %283 = vmatprep.subr.bf16.mxu0 %v261
      %284 = vmatpush1.bf16.msra.mxu0 %v260
      %285 = vmatprep.subr.bf16.mxu0 0
      %286 = vmatpush2.bf16.msra.mxu0 0
      %287 = vmatprep.subr.bf16.mxu0 0
      %288 = vmatpush2.bf16.msra.mxu0 0
      %289 = vmatprep.subr.bf16.mxu0 0
      %290 = vmatpush2.bf16.msra.mxu0 0
      %291 = vmatprep.subr.bf16.mxu0 0
      %292 = vmatpush2.bf16.msra.mxu0 0
      %293 = vmatprep.subr.bf16.mxu0 0
      %294 = vmatpush2.bf16.msra.mxu0 0
      %295 = vmatprep.subr.bf16.mxu0 0
      %296 = vmatpush2.bf16.msra.mxu0 0
      %297 = vmatprep.subr.bf16.mxu0 0
      %298 = vmatpush2.bf16.msra.mxu0 0
      %299 = vmatprep.subr.bf16.mxu0 0
      %300 = vmatpush2.bf16.msra.mxu0 0
      %301 = vmatprep.mubr.bf16.mxu0 0
      %302 = vmatmul.mubr.bf16.gmra.mxu0 %v267
      %v303 = vpop.f32.mrf.mxu0
      %v304 = vadd.f32 0.0, %v303
      %v305 = vpop.f32.mrf.mxu0
      %v306 = vadd.f32 0.0, %v305
      %v307 = vpop.f32.mrf.mxu0
      %v308 = vadd.f32 0.0, %v307
      %v309 = vpop.f32.mrf.mxu0
      %v310 = vadd.f32 0.0, %v309
      %311 = vdwg.mxu0
      %312 = vmatprep.subr.bf16.mxu0 0
      %313 = vmatpush1.bf16.msra.mxu0 0
      %314 = vmatprep.subr.bf16.mxu0 0
      %315 = vmatpush1.bf16.msra.mxu0 0
      %316 = vmatprep.subr.bf16.mxu0 0
      %317 = vmatpush1.bf16.msra.mxu0 0
      %318 = vmatprep.subr.bf16.mxu0 0
      %319 = vmatpush1.bf16.msra.mxu0 0
      %320 = vmatprep.subr.bf16.mxu0 0
      %321 = vmatpush1.bf16.msra.mxu0 0
      %322 = vmatprep.subr.bf16.mxu0 0
      %323 = vmatpush1.bf16.msra.mxu0 0
      %324 = vmatprep.subr.bf16.mxu0 0
      %325 = vmatpush1.bf16.msra.mxu0 0
      %326 = vmatprep.subr.bf16.mxu0 0
      %327 = vmatpush1.bf16.msra.mxu0 %v258
      %328 = vmatprep.subr.bf16.mxu0 0
      %329 = vmatpush2.bf16.msra.mxu0 0
      %330 = vmatprep.subr.bf16.mxu0 0
      %331 = vmatpush2.bf16.msra.mxu0 0
      %332 = vmatprep.subr.bf16.mxu0 0
      %333 = vmatpush2.bf16.msra.mxu0 0
      %334 = vmatprep.subr.bf16.mxu0 0
      %335 = vmatpush2.bf16.msra.mxu0 0
      %336 = vmatprep.subr.bf16.mxu0 0
      %337 = vmatpush2.bf16.msra.mxu0 0
      %338 = vmatprep.subr.bf16.mxu0 0
      %339 = vmatpush2.bf16.msra.mxu0 0
      %340 = vmatprep.subr.bf16.mxu0 0
      %341 = vmatpush2.bf16.msra.mxu0 0
      %342 = vmatprep.subr.bf16.mxu0 0
      %343 = vmatpush2.bf16.msra.mxu0 0
      %344 = vmatprep.mubr.bf16.mxu0 0
      %345 = vmatmul.mubr.bf16.gmra.mxu0 %v267
      %v346 = vpop.f32.mrf.mxu0
      %v347 = vadd.f32 0.0, %v346
      %v348 = vpop.f32.mrf.mxu0
      %v349 = vpop.f32.mrf.mxu0
      %v350 = vadd.f32 0.0, %v349
      %v351 = vpop.f32.mrf.mxu0
      %352 = vdwg.mxu0
      %v355 = vunpack.c.l.b16 %v230
      %v356 = vunpack.c.l.b16 %v231
      %v357 = vpack.c.b16 %v356, %v355
      %v362 = vsel %vm265, %v357, 0
      %364 = vmatprep.subr.bf16.mxu0 0
      %365 = vmatpush1.bf16.msra.mxu0 0
      %366 = vmatprep.subr.bf16.mxu0 0
      %367 = vmatpush1.bf16.msra.mxu0 0
      %368 = vmatprep.subr.bf16.mxu0 0
      %369 = vmatpush1.bf16.msra.mxu0 0
      %370 = vmatprep.subr.bf16.mxu0 0
      %371 = vmatpush1.bf16.msra.mxu0 0
      %372 = vmatprep.subr.bf16.mxu0 0
      %373 = vmatpush1.bf16.msra.mxu0 0
      %374 = vmatprep.subr.bf16.mxu0 0
      %375 = vmatpush1.bf16.msra.mxu0 0
      %376 = vmatprep.subr.bf16.mxu0 0
      %377 = vmatpush1.bf16.msra.mxu0 0
      %378 = vmatprep.subr.bf16.mxu0 %v251
      %379 = vmatpush1.bf16.msra.mxu0 %v250
      %380 = vmatprep.subr.bf16.mxu0 0
      %381 = vmatpush2.bf16.msra.mxu0 0
      %382 = vmatprep.subr.bf16.mxu0 0
      %383 = vmatpush2.bf16.msra.mxu0 0
      %384 = vmatprep.subr.bf16.mxu0 0
      %385 = vmatpush2.bf16.msra.mxu0 0
      %386 = vmatprep.subr.bf16.mxu0 0
      %387 = vmatpush2.bf16.msra.mxu0 0
      %388 = vmatprep.subr.bf16.mxu0 0
      %389 = vmatpush2.bf16.msra.mxu0 0
      %390 = vmatprep.subr.bf16.mxu0 0
      %391 = vmatpush2.bf16.msra.mxu0 0
      %392 = vmatprep.subr.bf16.mxu0 0
      %393 = vmatpush2.bf16.msra.mxu0 0
      %394 = vmatprep.subr.bf16.mxu0 0
      %395 = vmatpush2.bf16.msra.mxu0 0
      %396 = vmatprep.mubr.bf16.mxu0 0
      %397 = vmatmul.mubr.bf16.gmra.mxu0 %v362
      %v398 = vpop.f32.mrf.mxu0
      %v399 = vadd.f32 %v304, %v398
      %v400 = vpop.f32.mrf.mxu0
      %v401 = vadd.f32 %v306, %v400
      %v402 = vpop.f32.mrf.mxu0
      %v403 = vadd.f32 %v308, %v402
      %v404 = vpop.f32.mrf.mxu0
      %v405 = vadd.f32 %v310, %v404
      %406 = vdwg.mxu0
      %407 = vmatprep.subr.bf16.mxu0 0
      %408 = vmatpush1.bf16.msra.mxu0 0
      %409 = vmatprep.subr.bf16.mxu0 0
      %410 = vmatpush1.bf16.msra.mxu0 0
      %411 = vmatprep.subr.bf16.mxu0 0
      %412 = vmatpush1.bf16.msra.mxu0 0
      %413 = vmatprep.subr.bf16.mxu0 0
      %414 = vmatpush1.bf16.msra.mxu0 0
      %415 = vmatprep.subr.bf16.mxu0 0
      %416 = vmatpush1.bf16.msra.mxu0 0
      %417 = vmatprep.subr.bf16.mxu0 0
      %418 = vmatpush1.bf16.msra.mxu0 0
      %419 = vmatprep.subr.bf16.mxu0 0
      %420 = vmatpush1.bf16.msra.mxu0 0
      %421 = vmatprep.subr.bf16.mxu0 0
      %422 = vmatpush1.bf16.msra.mxu0 %v252
      %423 = vmatprep.subr.bf16.mxu0 0
      %424 = vmatpush2.bf16.msra.mxu0 0
      %425 = vmatprep.subr.bf16.mxu0 0
      %426 = vmatpush2.bf16.msra.mxu0 0
      %427 = vmatprep.subr.bf16.mxu0 0
      %428 = vmatpush2.bf16.msra.mxu0 0
      %429 = vmatprep.subr.bf16.mxu0 0
      %430 = vmatpush2.bf16.msra.mxu0 0
      %431 = vmatprep.subr.bf16.mxu0 0
      %432 = vmatpush2.bf16.msra.mxu0 0
      %433 = vmatprep.subr.bf16.mxu0 0
      %434 = vmatpush2.bf16.msra.mxu0 0
      %435 = vmatprep.subr.bf16.mxu0 0
      %436 = vmatpush2.bf16.msra.mxu0 0
      %437 = vmatprep.subr.bf16.mxu0 0
      %438 = vmatpush2.bf16.msra.mxu0 0
      %439 = vmatprep.mubr.bf16.mxu0 0
      %440 = vmatmul.mubr.bf16.gmra.mxu0 %v362
      %v441 = vpop.f32.mrf.mxu0
      %v442 = vadd.f32 %v347, %v441
      %v443 = vpop.f32.mrf.mxu0
      %v444 = vpop.f32.mrf.mxu0
      %v445 = vadd.f32 %v350, %v444
      %v446 = vpop.f32.mrf.mxu0
      %447 = vdwg.mxu0
      %s448 = scalar_lea.vmem %s1, 16
      %v449 = vld [vmem:[%s448] sm:$0xf]
      %v450 = vld [vmem:[%s448 + $0x4] sm:$0xf]
      %v453 = vunpack.c.l.b16 %v449
      %v454 = vunpack.c.l.b16 %v450
      %v455 = vpack.c.b16 %v454, %v453
      %456 = vrot.lane.b32.xlu0 %v250, 126
      %v457 = vpop.permute.xlu0 %456
      %458 = vrot.lane.b32.xlu0 %v251, 126
      %v459 = vpop.permute.xlu0 %458
      %460 = vrot.lane.b32.xlu0 %v252, 126
      %v461 = vpop.permute.xlu0 %460
      %vm462 = vcmask 1031168
      %v463 = vsel %vm462, %v457, %v459
      %v464 = vsel %vm462, %v459, %v461
      %v469 = vsel %vm265, %v455, 0
      %471 = vmatprep.subr.bf16.mxu0 0
      %472 = vmatpush1.bf16.msra.mxu0 0
      %473 = vmatprep.subr.bf16.mxu0 0
      %474 = vmatpush1.bf16.msra.mxu0 0
      %475 = vmatprep.subr.bf16.mxu0 0
      %476 = vmatpush1.bf16.msra.mxu0 0
      %477 = vmatprep.subr.bf16.mxu0 0
      %478 = vmatpush1.bf16.msra.mxu0 0
      %479 = vmatprep.subr.bf16.mxu0 0
      %480 = vmatpush1.bf16.msra.mxu0 0
      %481 = vmatprep.subr.bf16.mxu0 0
      %482 = vmatpush1.bf16.msra.mxu0 0
      %483 = vmatprep.subr.bf16.mxu0 0
      %484 = vmatpush1.bf16.msra.mxu0 0
      %485 = vmatprep.subr.bf16.mxu0 %v464
      %486 = vmatpush1.bf16.msra.mxu0 %v463
      %487 = vmatprep.subr.bf16.mxu0 0
      %488 = vmatpush2.bf16.msra.mxu0 0
      %489 = vmatprep.subr.bf16.mxu0 0
      %490 = vmatpush2.bf16.msra.mxu0 0
      %491 = vmatprep.subr.bf16.mxu0 0
      %492 = vmatpush2.bf16.msra.mxu0 0
      %493 = vmatprep.subr.bf16.mxu0 0
      %494 = vmatpush2.bf16.msra.mxu0 0
      %495 = vmatprep.subr.bf16.mxu0 0
      %496 = vmatpush2.bf16.msra.mxu0 0
      %497 = vmatprep.subr.bf16.mxu0 0
      %498 = vmatpush2.bf16.msra.mxu0 0
      %499 = vmatprep.subr.bf16.mxu0 0
      %500 = vmatpush2.bf16.msra.mxu0 0
      %501 = vmatprep.subr.bf16.mxu0 0
      %502 = vmatpush2.bf16.msra.mxu0 0
      %503 = vmatprep.mubr.bf16.mxu0 0
      %504 = vmatmul.mubr.bf16.gmra.mxu0 %v469
      %v505 = vpop.f32.mrf.mxu0
      %v506 = vadd.f32 0.0, %v505
      %v507 = vpop.f32.mrf.mxu0
      %v508 = vadd.f32 0.0, %v507
      %v509 = vpop.f32.mrf.mxu0
      %v510 = vadd.f32 0.0, %v509
      %v511 = vpop.f32.mrf.mxu0
      %v512 = vadd.f32 0.0, %v511
      %513 = vdwg.mxu0
      %514 = vmatprep.subr.bf16.mxu0 0
      %515 = vmatpush1.bf16.msra.mxu0 0
      %516 = vmatprep.subr.bf16.mxu0 0
      %517 = vmatpush1.bf16.msra.mxu0 0
      %518 = vmatprep.subr.bf16.mxu0 0
      %519 = vmatpush1.bf16.msra.mxu0 0
      %520 = vmatprep.subr.bf16.mxu0 0
      %521 = vmatpush1.bf16.msra.mxu0 0
      %522 = vmatprep.subr.bf16.mxu0 0
      %523 = vmatpush1.bf16.msra.mxu0 0
      %524 = vmatprep.subr.bf16.mxu0 0
      %525 = vmatpush1.bf16.msra.mxu0 0
      %526 = vmatprep.subr.bf16.mxu0 0
      %527 = vmatpush1.bf16.msra.mxu0 0
      %528 = vmatprep.subr.bf16.mxu0 0
      %529 = vmatpush1.bf16.msra.mxu0 %v461
      %530 = vmatprep.subr.bf16.mxu0 0
      %531 = vmatpush2.bf16.msra.mxu0 0
      %532 = vmatprep.subr.bf16.mxu0 0
      %533 = vmatpush2.bf16.msra.mxu0 0
      %534 = vmatprep.subr.bf16.mxu0 0
      %535 = vmatpush2.bf16.msra.mxu0 0
      %536 = vmatprep.subr.bf16.mxu0 0
      %537 = vmatpush2.bf16.msra.mxu0 0
      %538 = vmatprep.subr.bf16.mxu0 0
      %539 = vmatpush2.bf16.msra.mxu0 0
      %540 = vmatprep.subr.bf16.mxu0 0
      %541 = vmatpush2.bf16.msra.mxu0 0
      %542 = vmatprep.subr.bf16.mxu0 0
      %543 = vmatpush2.bf16.msra.mxu0 0
      %544 = vmatprep.subr.bf16.mxu0 0
      %545 = vmatpush2.bf16.msra.mxu0 0
      %546 = vmatprep.mubr.bf16.mxu0 0
      %547 = vmatmul.mubr.bf16.gmra.mxu0 %v469
      %v548 = vpop.f32.mrf.mxu0
      %v549 = vadd.f32 0.0, %v548
      %v550 = vpop.f32.mrf.mxu0
      %v551 = vpop.f32.mrf.mxu0
      %v552 = vadd.f32 0.0, %v551
      %v553 = vpop.f32.mrf.mxu0
      %554 = vdwg.mxu0
      %v555 = vadd.f32 %v399, %v506
      %v556 = vadd.f32 %v401, %v508
      %v557 = vadd.f32 %v442, %v549
      %v558 = vadd.f32 %v403, %v510
      %v559 = vadd.f32 %v405, %v512
      %v560 = vadd.f32 %v445, %v552
      %s561 = scalar_lea.vmem %s1, 24
      %v562 = vld [vmem:[%s561] sm:$0xf]
      %v563 = vld [vmem:[%s561 + $0x4] sm:$0xf]
      %v566 = vunpack.c.l.b16 %v562
      %v567 = vunpack.c.l.b16 %v563
      %v568 = vpack.c.b16 %v567, %v566
      %569 = vrot.lane.b32.xlu0 %v250, 110
      %v570 = vpop.permute.xlu0 %569
      %571 = vrot.lane.b32.xlu0 %v251, 110
      %v572 = vpop.permute.xlu0 %571
      %573 = vrot.lane.b32.xlu0 %v252, 110
      %v574 = vpop.permute.xlu0 %573
      %vm575 = vcmask 900096
      %v576 = vsel %vm575, %v570, %v572
      %v577 = vsel %vm575, %v572, %v574
      %v582 = vsel %vm265, %v568, 0
      %584 = vmatprep.subr.bf16.mxu0 0
      %585 = vmatpush1.bf16.msra.mxu0 0
      %586 = vmatprep.subr.bf16.mxu0 0
      %587 = vmatpush1.bf16.msra.mxu0 0
      %588 = vmatprep.subr.bf16.mxu0 0
      %589 = vmatpush1.bf16.msra.mxu0 0
      %590 = vmatprep.subr.bf16.mxu0 0
      %591 = vmatpush1.bf16.msra.mxu0 0
      %592 = vmatprep.subr.bf16.mxu0 0
      %593 = vmatpush1.bf16.msra.mxu0 0
      %594 = vmatprep.subr.bf16.mxu0 0
      %595 = vmatpush1.bf16.msra.mxu0 0
      %596 = vmatprep.subr.bf16.mxu0 0
      %597 = vmatpush1.bf16.msra.mxu0 0
      %598 = vmatprep.subr.bf16.mxu0 %v577
      %599 = vmatpush1.bf16.msra.mxu0 %v576
      %600 = vmatprep.subr.bf16.mxu0 0
      %601 = vmatpush2.bf16.msra.mxu0 0
      %602 = vmatprep.subr.bf16.mxu0 0
      %603 = vmatpush2.bf16.msra.mxu0 0
      %604 = vmatprep.subr.bf16.mxu0 0
      %605 = vmatpush2.bf16.msra.mxu0 0
      %606 = vmatprep.subr.bf16.mxu0 0
      %607 = vmatpush2.bf16.msra.mxu0 0
      %608 = vmatprep.subr.bf16.mxu0 0
      %609 = vmatpush2.bf16.msra.mxu0 0
      %610 = vmatprep.subr.bf16.mxu0 0
      %611 = vmatpush2.bf16.msra.mxu0 0
      %612 = vmatprep.subr.bf16.mxu0 0
      %613 = vmatpush2.bf16.msra.mxu0 0
      %614 = vmatprep.subr.bf16.mxu0 0
      %615 = vmatpush2.bf16.msra.mxu0 0
      %616 = vmatprep.mubr.bf16.mxu0 0
      %617 = vmatmul.mubr.bf16.gmra.mxu0 %v582
      %v618 = vpop.f32.mrf.mxu0
      %v619 = vadd.f32 0.0, %v618
      %v620 = vpop.f32.mrf.mxu0
      %v621 = vadd.f32 0.0, %v620
      %v622 = vpop.f32.mrf.mxu0
      %v623 = vadd.f32 0.0, %v622
      %v624 = vpop.f32.mrf.mxu0
      %v625 = vadd.f32 0.0, %v624
      %626 = vdwg.mxu0
      %627 = vmatprep.subr.bf16.mxu0 0
      %628 = vmatpush1.bf16.msra.mxu0 0
      %629 = vmatprep.subr.bf16.mxu0 0
      %630 = vmatpush1.bf16.msra.mxu0 0
      %631 = vmatprep.subr.bf16.mxu0 0
      %632 = vmatpush1.bf16.msra.mxu0 0
      %633 = vmatprep.subr.bf16.mxu0 0
      %634 = vmatpush1.bf16.msra.mxu0 0
      %635 = vmatprep.subr.bf16.mxu0 0
      %636 = vmatpush1.bf16.msra.mxu0 0
      %637 = vmatprep.subr.bf16.mxu0 0
      %638 = vmatpush1.bf16.msra.mxu0 0
      %639 = vmatprep.subr.bf16.mxu0 0
      %640 = vmatpush1.bf16.msra.mxu0 0
      %641 = vmatprep.subr.bf16.mxu0 0
      %642 = vmatpush1.bf16.msra.mxu0 %v574
      %643 = vmatprep.subr.bf16.mxu0 0
      %644 = vmatpush2.bf16.msra.mxu0 0
      %645 = vmatprep.subr.bf16.mxu0 0
      %646 = vmatpush2.bf16.msra.mxu0 0
      %647 = vmatprep.subr.bf16.mxu0 0
      %648 = vmatpush2.bf16.msra.mxu0 0
      %649 = vmatprep.subr.bf16.mxu0 0
      %650 = vmatpush2.bf16.msra.mxu0 0
      %651 = vmatprep.subr.bf16.mxu0 0
      %652 = vmatpush2.bf16.msra.mxu0 0
      %653 = vmatprep.subr.bf16.mxu0 0
      %654 = vmatpush2.bf16.msra.mxu0 0
      %655 = vmatprep.subr.bf16.mxu0 0
      %656 = vmatpush2.bf16.msra.mxu0 0
      %657 = vmatprep.subr.bf16.mxu0 0
      %658 = vmatpush2.bf16.msra.mxu0 0
      %659 = vmatprep.mubr.bf16.mxu0 0
      %660 = vmatmul.mubr.bf16.gmra.mxu0 %v582
      %v661 = vpop.f32.mrf.mxu0
      %v662 = vadd.f32 0.0, %v661
      %v663 = vpop.f32.mrf.mxu0
      %v664 = vpop.f32.mrf.mxu0
      %v665 = vadd.f32 0.0, %v664
      %v666 = vpop.f32.mrf.mxu0
      %667 = vdwg.mxu0
      %v668 = vadd.f32 %v555, %v619
      %v669 = vadd.f32 %v556, %v621
      %v670 = vadd.f32 %v557, %v662
      %v671 = vadd.f32 %v558, %v623
      %v672 = vadd.f32 %v559, %v625
      %v673 = vadd.f32 %v560, %v665
      %s674 = scalar_lea.vmem %s1, 32
      %v675 = vld [vmem:[%s674] sm:$0xf]
      %v676 = vld [vmem:[%s674 + $0x4] sm:$0xf]
      %v679 = vunpack.c.l.b16 %v675
      %v680 = vunpack.c.l.b16 %v676
      %v681 = vpack.c.b16 %v680, %v679
      %682 = vrot.lane.b32.xlu0 %v250, 109
      %v683 = vpop.permute.xlu0 %682
      %684 = vrot.lane.b32.xlu0 %v251, 109
      %v685 = vpop.permute.xlu0 %684
      %686 = vrot.lane.b32.xlu0 %v252, 109
      %v687 = vpop.permute.xlu0 %686
      %vm688 = vcmask 891904
      %v689 = vsel %vm688, %v683, %v685
      %v690 = vsel %vm688, %v685, %v687
      %v695 = vsel %vm265, %v681, 0
      %697 = vmatprep.subr.bf16.mxu0 0
      %698 = vmatpush1.bf16.msra.mxu0 0
      %699 = vmatprep.subr.bf16.mxu0 0
      %700 = vmatpush1.bf16.msra.mxu0 0
      %701 = vmatprep.subr.bf16.mxu0 0
      %702 = vmatpush1.bf16.msra.mxu0 0
      %703 = vmatprep.subr.bf16.mxu0 0
      %704 = vmatpush1.bf16.msra.mxu0 0
      %705 = vmatprep.subr.bf16.mxu0 0
      %706 = vmatpush1.bf16.msra.mxu0 0
      %707 = vmatprep.subr.bf16.mxu0 0
      %708 = vmatpush1.bf16.msra.mxu0 0
      %709 = vmatprep.subr.bf16.mxu0 0
      %710 = vmatpush1.bf16.msra.mxu0 0
      %711 = vmatprep.subr.bf16.mxu0 %v690
      %712 = vmatpush1.bf16.msra.mxu0 %v689
      %713 = vmatprep.subr.bf16.mxu0 0
      %714 = vmatpush2.bf16.msra.mxu0 0
      %715 = vmatprep.subr.bf16.mxu0 0
      %716 = vmatpush2.bf16.msra.mxu0 0
      %717 = vmatprep.subr.bf16.mxu0 0
      %718 = vmatpush2.bf16.msra.mxu0 0
      %719 = vmatprep.subr.bf16.mxu0 0
      %720 = vmatpush2.bf16.msra.mxu0 0
      %721 = vmatprep.subr.bf16.mxu0 0
      %722 = vmatpush2.bf16.msra.mxu0 0
      %723 = vmatprep.subr.bf16.mxu0 0
      %724 = vmatpush2.bf16.msra.mxu0 0
      %725 = vmatprep.subr.bf16.mxu0 0
      %726 = vmatpush2.bf16.msra.mxu0 0
      %727 = vmatprep.subr.bf16.mxu0 0
      %728 = vmatpush2.bf16.msra.mxu0 0
      %729 = vmatprep.mubr.bf16.mxu0 0
      %730 = vmatmul.mubr.bf16.gmra.mxu0 %v695
      %v731 = vpop.f32.mrf.mxu0
      %v732 = vadd.f32 0.0, %v731
      %v733 = vpop.f32.mrf.mxu0
      %v734 = vadd.f32 0.0, %v733
      %v735 = vpop.f32.mrf.mxu0
      %v736 = vadd.f32 0.0, %v735
      %v737 = vpop.f32.mrf.mxu0
      %v738 = vadd.f32 0.0, %v737
      %739 = vdwg.mxu0
      %740 = vmatprep.subr.bf16.mxu0 0
      %741 = vmatpush1.bf16.msra.mxu0 0
      %742 = vmatprep.subr.bf16.mxu0 0
      %743 = vmatpush1.bf16.msra.mxu0 0
      %744 = vmatprep.subr.bf16.mxu0 0
      %745 = vmatpush1.bf16.msra.mxu0 0
      %746 = vmatprep.subr.bf16.mxu0 0
      %747 = vmatpush1.bf16.msra.mxu0 0
      %748 = vmatprep.subr.bf16.mxu0 0
      %749 = vmatpush1.bf16.msra.mxu0 0
      %750 = vmatprep.subr.bf16.mxu0 0
      %751 = vmatpush1.bf16.msra.mxu0 0
      %752 = vmatprep.subr.bf16.mxu0 0
      %753 = vmatpush1.bf16.msra.mxu0 0
      %754 = vmatprep.subr.bf16.mxu0 0
      %755 = vmatpush1.bf16.msra.mxu0 %v687
      %756 = vmatprep.subr.bf16.mxu0 0
      %757 = vmatpush2.bf16.msra.mxu0 0
      %758 = vmatprep.subr.bf16.mxu0 0
      %759 = vmatpush2.bf16.msra.mxu0 0
      %760 = vmatprep.subr.bf16.mxu0 0
      %761 = vmatpush2.bf16.msra.mxu0 0
      %762 = vmatprep.subr.bf16.mxu0 0
      %763 = vmatpush2.bf16.msra.mxu0 0
      %764 = vmatprep.subr.bf16.mxu0 0
      %765 = vmatpush2.bf16.msra.mxu0 0
      %766 = vmatprep.subr.bf16.mxu0 0
      %767 = vmatpush2.bf16.msra.mxu0 0
      %768 = vmatprep.subr.bf16.mxu0 0
      %769 = vmatpush2.bf16.msra.mxu0 0
      %770 = vmatprep.subr.bf16.mxu0 0
      %771 = vmatpush2.bf16.msra.mxu0 0
      %772 = vmatprep.mubr.bf16.mxu0 0
      %773 = vmatmul.mubr.bf16.gmra.mxu0 %v695
      %v774 = vpop.f32.mrf.mxu0
      %v775 = vadd.f32 0.0, %v774
      %v776 = vpop.f32.mrf.mxu0
      %v777 = vpop.f32.mrf.mxu0
      %v778 = vadd.f32 0.0, %v777
      %v779 = vpop.f32.mrf.mxu0
      %780 = vdwg.mxu0
      %v781 = vadd.f32 %v668, %v732
      %v782 = vadd.f32 %v669, %v734
      %v783 = vadd.f32 %v670, %v775
      %v784 = vadd.f32 %v671, %v736
      %v785 = vadd.f32 %v672, %v738
      %v786 = vadd.f32 %v673, %v778
      %s787 = scalar_lea.vmem %s1, 40
      %v788 = vld [vmem:[%s787] sm:$0xf]
      %v789 = vld [vmem:[%s787 + $0x4] sm:$0xf]
      %v792 = vunpack.c.l.b16 %v788
      %v793 = vunpack.c.l.b16 %v789
      %v794 = vpack.c.b16 %v793, %v792
      %795 = vrot.lane.b32.xlu0 %v250, 108
      %v796 = vpop.permute.xlu0 %795
      %797 = vrot.lane.b32.xlu0 %v251, 108
      %v798 = vpop.permute.xlu0 %797
      %799 = vrot.lane.b32.xlu0 %v252, 108
      %v800 = vpop.permute.xlu0 %799
      %vm801 = vcmask 883712
      %v802 = vsel %vm801, %v796, %v798
      %v803 = vsel %vm801, %v798, %v800
      %v808 = vsel %vm265, %v794, 0
      %810 = vmatprep.subr.bf16.mxu0 0
      %811 = vmatpush1.bf16.msra.mxu0 0
      %812 = vmatprep.subr.bf16.mxu0 0
      %813 = vmatpush1.bf16.msra.mxu0 0
      %814 = vmatprep.subr.bf16.mxu0 0
      %815 = vmatpush1.bf16.msra.mxu0 0
      %816 = vmatprep.subr.bf16.mxu0 0
      %817 = vmatpush1.bf16.msra.mxu0 0
      %818 = vmatprep.subr.bf16.mxu0 0
      %819 = vmatpush1.bf16.msra.mxu0 0
      %820 = vmatprep.subr.bf16.mxu0 0
      %821 = vmatpush1.bf16.msra.mxu0 0
      %822 = vmatprep.subr.bf16.mxu0 0
      %823 = vmatpush1.bf16.msra.mxu0 0
      %824 = vmatprep.subr.bf16.mxu0 %v803
      %825 = vmatpush1.bf16.msra.mxu0 %v802
      %826 = vmatprep.subr.bf16.mxu0 0
      %827 = vmatpush2.bf16.msra.mxu0 0
      %828 = vmatprep.subr.bf16.mxu0 0
      %829 = vmatpush2.bf16.msra.mxu0 0
      %830 = vmatprep.subr.bf16.mxu0 0
      %831 = vmatpush2.bf16.msra.mxu0 0
      %832 = vmatprep.subr.bf16.mxu0 0
      %833 = vmatpush2.bf16.msra.mxu0 0
      %834 = vmatprep.subr.bf16.mxu0 0
      %835 = vmatpush2.bf16.msra.mxu0 0
      %836 = vmatprep.subr.bf16.mxu0 0
      %837 = vmatpush2.bf16.msra.mxu0 0
      %838 = vmatprep.subr.bf16.mxu0 0
      %839 = vmatpush2.bf16.msra.mxu0 0
      %840 = vmatprep.subr.bf16.mxu0 0
      %841 = vmatpush2.bf16.msra.mxu0 0
      %842 = vmatprep.mubr.bf16.mxu0 0
      %843 = vmatmul.mubr.bf16.gmra.mxu0 %v808
      %v844 = vpop.f32.mrf.mxu0
      %v845 = vadd.f32 0.0, %v844
      %v846 = vpop.f32.mrf.mxu0
      %v847 = vadd.f32 0.0, %v846
      %v848 = vpop.f32.mrf.mxu0
      %v849 = vadd.f32 0.0, %v848
      %v850 = vpop.f32.mrf.mxu0
      %v851 = vadd.f32 0.0, %v850
      %852 = vdwg.mxu0
      %853 = vmatprep.subr.bf16.mxu0 0
      %854 = vmatpush1.bf16.msra.mxu0 0
      %855 = vmatprep.subr.bf16.mxu0 0
      %856 = vmatpush1.bf16.msra.mxu0 0
      %857 = vmatprep.subr.bf16.mxu0 0
      %858 = vmatpush1.bf16.msra.mxu0 0
      %859 = vmatprep.subr.bf16.mxu0 0
      %860 = vmatpush1.bf16.msra.mxu0 0
      %861 = vmatprep.subr.bf16.mxu0 0
      %862 = vmatpush1.bf16.msra.mxu0 0
      %863 = vmatprep.subr.bf16.mxu0 0
      %864 = vmatpush1.bf16.msra.mxu0 0
      %865 = vmatprep.subr.bf16.mxu0 0
      %866 = vmatpush1.bf16.msra.mxu0 0
      %867 = vmatprep.subr.bf16.mxu0 0
      %868 = vmatpush1.bf16.msra.mxu0 %v800
      %869 = vmatprep.subr.bf16.mxu0 0
      %870 = vmatpush2.bf16.msra.mxu0 0
      %871 = vmatprep.subr.bf16.mxu0 0
      %872 = vmatpush2.bf16.msra.mxu0 0
      %873 = vmatprep.subr.bf16.mxu0 0
      %874 = vmatpush2.bf16.msra.mxu0 0
      %875 = vmatprep.subr.bf16.mxu0 0
      %876 = vmatpush2.bf16.msra.mxu0 0
      %877 = vmatprep.subr.bf16.mxu0 0
      %878 = vmatpush2.bf16.msra.mxu0 0
      %879 = vmatprep.subr.bf16.mxu0 0
      %880 = vmatpush2.bf16.msra.mxu0 0
      %881 = vmatprep.subr.bf16.mxu0 0
      %882 = vmatpush2.bf16.msra.mxu0 0
      %883 = vmatprep.subr.bf16.mxu0 0
      %884 = vmatpush2.bf16.msra.mxu0 0
      %885 = vmatprep.mubr.bf16.mxu0 0
      %886 = vmatmul.mubr.bf16.gmra.mxu0 %v808
      %v887 = vpop.f32.mrf.mxu0
      %v888 = vadd.f32 0.0, %v887
      %v889 = vpop.f32.mrf.mxu0
      %v890 = vpop.f32.mrf.mxu0
      %v891 = vadd.f32 0.0, %v890
      %v892 = vpop.f32.mrf.mxu0
      %893 = vdwg.mxu0
      %v894 = vadd.f32 %v781, %v845
      %v895 = vadd.f32 %v782, %v847
      %v896 = vadd.f32 %v783, %v888
      %v897 = vadd.f32 %v784, %v849
      %v898 = vadd.f32 %v785, %v851
      %v899 = vadd.f32 %v786, %v891
      %s900 = scalar_lea.vmem %s1, 48
      %v901 = vld [vmem:[%s900] sm:$0xf]
      %v902 = vld [vmem:[%s900 + $0x4] sm:$0xf]
      %v905 = vunpack.c.l.b16 %v901
      %v906 = vunpack.c.l.b16 %v902
      %v907 = vpack.c.b16 %v906, %v905
      %908 = vrot.lane.b32.xlu0 %v250, 92
      %v909 = vpop.permute.xlu0 %908
      %910 = vrot.lane.b32.xlu0 %v251, 92
      %v911 = vpop.permute.xlu0 %910
      %912 = vrot.lane.b32.xlu0 %v252, 92
      %v913 = vpop.permute.xlu0 %912
      %vm914 = vcmask 752640
      %v915 = vsel %vm914, %v909, %v911
      %v916 = vsel %vm914, %v911, %v913
      %v921 = vsel %vm265, %v907, 0
      %923 = vmatprep.subr.bf16.mxu0 0
      %924 = vmatpush1.bf16.msra.mxu0 0
      %925 = vmatprep.subr.bf16.mxu0 0
      %926 = vmatpush1.bf16.msra.mxu0 0
      %927 = vmatprep.subr.bf16.mxu0 0
      %928 = vmatpush1.bf16.msra.mxu0 0
      %929 = vmatprep.subr.bf16.mxu0 0
      %930 = vmatpush1.bf16.msra.mxu0 0
      %931 = vmatprep.subr.bf16.mxu0 0
      %932 = vmatpush1.bf16.msra.mxu0 0
      %933 = vmatprep.subr.bf16.mxu0 0
      %934 = vmatpush1.bf16.msra.mxu0 0
      %935 = vmatprep.subr.bf16.mxu0 0
      %936 = vmatpush1.bf16.msra.mxu0 0
      %937 = vmatprep.subr.bf16.mxu0 %v916
      %938 = vmatpush1.bf16.msra.mxu0 %v915
      %939 = vmatprep.subr.bf16.mxu0 0
      %940 = vmatpush2.bf16.msra.mxu0 0
      %941 = vmatprep.subr.bf16.mxu0 0
      %942 = vmatpush2.bf16.msra.mxu0 0
      %943 = vmatprep.subr.bf16.mxu0 0
      %944 = vmatpush2.bf16.msra.mxu0 0
      %945 = vmatprep.subr.bf16.mxu0 0
      %946 = vmatpush2.bf16.msra.mxu0 0
      %947 = vmatprep.subr.bf16.mxu0 0
      %948 = vmatpush2.bf16.msra.mxu0 0
      %949 = vmatprep.subr.bf16.mxu0 0
      %950 = vmatpush2.bf16.msra.mxu0 0
      %951 = vmatprep.subr.bf16.mxu0 0
      %952 = vmatpush2.bf16.msra.mxu0 0
      %953 = vmatprep.subr.bf16.mxu0 0
      %954 = vmatpush2.bf16.msra.mxu0 0
      %955 = vmatprep.mubr.bf16.mxu0 0
      %956 = vmatmul.mubr.bf16.gmra.mxu0 %v921
      %v957 = vpop.f32.mrf.mxu0
      %v958 = vadd.f32 0.0, %v957
      %v959 = vpop.f32.mrf.mxu0
      %v960 = vadd.f32 0.0, %v959
      %v961 = vpop.f32.mrf.mxu0
      %v962 = vadd.f32 0.0, %v961
      %v963 = vpop.f32.mrf.mxu0
      %v964 = vadd.f32 0.0, %v963
      %965 = vdwg.mxu0
      %966 = vmatprep.subr.bf16.mxu0 0
      %967 = vmatpush1.bf16.msra.mxu0 0
      %968 = vmatprep.subr.bf16.mxu0 0
      %969 = vmatpush1.bf16.msra.mxu0 0
      %970 = vmatprep.subr.bf16.mxu0 0
      %971 = vmatpush1.bf16.msra.mxu0 0
      %972 = vmatprep.subr.bf16.mxu0 0
      %973 = vmatpush1.bf16.msra.mxu0 0
      %974 = vmatprep.subr.bf16.mxu0 0
      %975 = vmatpush1.bf16.msra.mxu0 0
      %976 = vmatprep.subr.bf16.mxu0 0
      %977 = vmatpush1.bf16.msra.mxu0 0
      %978 = vmatprep.subr.bf16.mxu0 0
      %979 = vmatpush1.bf16.msra.mxu0 0
      %980 = vmatprep.subr.bf16.mxu0 0
      %981 = vmatpush1.bf16.msra.mxu0 %v913
      %982 = vmatprep.subr.bf16.mxu0 0
      %983 = vmatpush2.bf16.msra.mxu0 0
      %984 = vmatprep.subr.bf16.mxu0 0
      %985 = vmatpush2.bf16.msra.mxu0 0
      %986 = vmatprep.subr.bf16.mxu0 0
      %987 = vmatpush2.bf16.msra.mxu0 0
      %988 = vmatprep.subr.bf16.mxu0 0
      %989 = vmatpush2.bf16.msra.mxu0 0
      %990 = vmatprep.subr.bf16.mxu0 0
      %991 = vmatpush2.bf16.msra.mxu0 0
      %992 = vmatprep.subr.bf16.mxu0 0
      %993 = vmatpush2.bf16.msra.mxu0 0
      %994 = vmatprep.subr.bf16.mxu0 0
      %995 = vmatpush2.bf16.msra.mxu0 0
      %996 = vmatprep.subr.bf16.mxu0 0
      %997 = vmatpush2.bf16.msra.mxu0 0
      %998 = vmatprep.mubr.bf16.mxu0 0
      %999 = vmatmul.mubr.bf16.gmra.mxu0 %v921
      %v1000 = vpop.f32.mrf.mxu0
      %v1001 = vadd.f32 0.0, %v1000
      %v1002 = vpop.f32.mrf.mxu0
      %v1003 = vpop.f32.mrf.mxu0
      %v1004 = vadd.f32 0.0, %v1003
      %v1005 = vpop.f32.mrf.mxu0
      %1006 = vdwg.mxu0
      %v1007 = vadd.f32 %v894, %v958
      %v1008 = vadd.f32 %v895, %v960
      %v1009 = vadd.f32 %v896, %v1001
      %v1010 = vadd.f32 %v897, %v962
      %v1011 = vadd.f32 %v898, %v964
      %v1012 = vadd.f32 %v899, %v1004
      %s1013 = scalar_lea.vmem %s1, 56
      %v1014 = vld [vmem:[%s1013] sm:$0xf]
      %v1015 = vld [vmem:[%s1013 + $0x4] sm:$0xf]
      %v1018 = vunpack.c.l.b16 %v1014
      %v1019 = vunpack.c.l.b16 %v1015
      %v1020 = vpack.c.b16 %v1019, %v1018
      %1021 = vrot.lane.b32.xlu0 %v250, 91
      %v1022 = vpop.permute.xlu0 %1021
      %1023 = vrot.lane.b32.xlu0 %v251, 91
      %v1024 = vpop.permute.xlu0 %1023
      %1025 = vrot.lane.b32.xlu0 %v252, 91
      %v1026 = vpop.permute.xlu0 %1025
      %vm1027 = vcmask 744448
      %v1028 = vsel %vm1027, %v1022, %v1024
      %v1029 = vsel %vm1027, %v1024, %v1026
      %v1034 = vsel %vm265, %v1020, 0
      %1036 = vmatprep.subr.bf16.mxu0 0
      %1037 = vmatpush1.bf16.msra.mxu0 0
      %1038 = vmatprep.subr.bf16.mxu0 0
      %1039 = vmatpush1.bf16.msra.mxu0 0
      %1040 = vmatprep.subr.bf16.mxu0 0
      %1041 = vmatpush1.bf16.msra.mxu0 0
      %1042 = vmatprep.subr.bf16.mxu0 0
      %1043 = vmatpush1.bf16.msra.mxu0 0
      %1044 = vmatprep.subr.bf16.mxu0 0
      %1045 = vmatpush1.bf16.msra.mxu0 0
      %1046 = vmatprep.subr.bf16.mxu0 0
      %1047 = vmatpush1.bf16.msra.mxu0 0
      %1048 = vmatprep.subr.bf16.mxu0 0
      %1049 = vmatpush1.bf16.msra.mxu0 0
      %1050 = vmatprep.subr.bf16.mxu0 %v1029
      %1051 = vmatpush1.bf16.msra.mxu0 %v1028
      %1052 = vmatprep.subr.bf16.mxu0 0
      %1053 = vmatpush2.bf16.msra.mxu0 0
      %1054 = vmatprep.subr.bf16.mxu0 0
      %1055 = vmatpush2.bf16.msra.mxu0 0
      %1056 = vmatprep.subr.bf16.mxu0 0
      %1057 = vmatpush2.bf16.msra.mxu0 0
      %1058 = vmatprep.subr.bf16.mxu0 0
      %1059 = vmatpush2.bf16.msra.mxu0 0
      %1060 = vmatprep.subr.bf16.mxu0 0
      %1061 = vmatpush2.bf16.msra.mxu0 0
      %1062 = vmatprep.subr.bf16.mxu0 0
      %1063 = vmatpush2.bf16.msra.mxu0 0
      %1064 = vmatprep.subr.bf16.mxu0 0
      %1065 = vmatpush2.bf16.msra.mxu0 0
      %1066 = vmatprep.subr.bf16.mxu0 0
      %1067 = vmatpush2.bf16.msra.mxu0 0
      %1068 = vmatprep.mubr.bf16.mxu0 0
      %1069 = vmatmul.mubr.bf16.gmra.mxu0 %v1034
      %v1070 = vpop.f32.mrf.mxu0
      %v1071 = vadd.f32 0.0, %v1070
      %v1072 = vpop.f32.mrf.mxu0
      %v1073 = vadd.f32 0.0, %v1072
      %v1074 = vpop.f32.mrf.mxu0
      %v1075 = vadd.f32 0.0, %v1074
      %v1076 = vpop.f32.mrf.mxu0
      %v1077 = vadd.f32 0.0, %v1076
      %1078 = vdwg.mxu0
      %1079 = vmatprep.subr.bf16.mxu0 0
      %1080 = vmatpush1.bf16.msra.mxu0 0
      %1081 = vmatprep.subr.bf16.mxu0 0
      %1082 = vmatpush1.bf16.msra.mxu0 0
      %1083 = vmatprep.subr.bf16.mxu0 0
      %1084 = vmatpush1.bf16.msra.mxu0 0
      %1085 = vmatprep.subr.bf16.mxu0 0
      %1086 = vmatpush1.bf16.msra.mxu0 0
      %1087 = vmatprep.subr.bf16.mxu0 0
      %1088 = vmatpush1.bf16.msra.mxu0 0
      %1089 = vmatprep.subr.bf16.mxu0 0
      %1090 = vmatpush1.bf16.msra.mxu0 0
      %1091 = vmatprep.subr.bf16.mxu0 0
      %1092 = vmatpush1.bf16.msra.mxu0 0
      %1093 = vmatprep.subr.bf16.mxu0 0
      %1094 = vmatpush1.bf16.msra.mxu0 %v1026
      %1095 = vmatprep.subr.bf16.mxu0 0
      %1096 = vmatpush2.bf16.msra.mxu0 0
      %1097 = vmatprep.subr.bf16.mxu0 0
      %1098 = vmatpush2.bf16.msra.mxu0 0
      %1099 = vmatprep.subr.bf16.mxu0 0
      %1100 = vmatpush2.bf16.msra.mxu0 0
      %1101 = vmatprep.subr.bf16.mxu0 0
      %1102 = vmatpush2.bf16.msra.mxu0 0
      %1103 = vmatprep.subr.bf16.mxu0 0
      %1104 = vmatpush2.bf16.msra.mxu0 0
      %1105 = vmatprep.subr.bf16.mxu0 0
      %1106 = vmatpush2.bf16.msra.mxu0 0
      %1107 = vmatprep.subr.bf16.mxu0 0
      %1108 = vmatpush2.bf16.msra.mxu0 0
      %1109 = vmatprep.subr.bf16.mxu0 0
      %1110 = vmatpush2.bf16.msra.mxu0 0
      %1111 = vmatprep.mubr.bf16.mxu0 0
      %1112 = vmatmul.mubr.bf16.gmra.mxu0 %v1034
      %v1113 = vpop.f32.mrf.mxu0
      %v1114 = vadd.f32 0.0, %v1113
      %v1115 = vpop.f32.mrf.mxu0
      %v1116 = vpop.f32.mrf.mxu0
      %v1117 = vadd.f32 0.0, %v1116
      %v1118 = vpop.f32.mrf.mxu0
      %1119 = vdwg.mxu0
      %v1120 = vadd.f32 %v1007, %v1071
      %v1121 = vadd.f32 %v1008, %v1073
      %v1122 = vadd.f32 %v1009, %v1114
      %v1123 = vadd.f32 %v1010, %v1075
      %v1124 = vadd.f32 %v1011, %v1077
      %v1125 = vadd.f32 %v1012, %v1117
      %s1126 = scalar_lea.vmem %s1, 64
      %v1127 = vld [vmem:[%s1126] sm:$0xf]
      %v1128 = vld [vmem:[%s1126 + $0x4] sm:$0xf]
      %v1131 = vunpack.c.l.b16 %v1127
      %v1132 = vunpack.c.l.b16 %v1128
      %v1133 = vpack.c.b16 %v1132, %v1131
      %1134 = vrot.lane.b32.xlu0 %v250, 90
      %v1135 = vpop.permute.xlu0 %1134
      %1136 = vrot.lane.b32.xlu0 %v251, 90
      %v1137 = vpop.permute.xlu0 %1136
      %1138 = vrot.lane.b32.xlu0 %v252, 90
      %v1139 = vpop.permute.xlu0 %1138
      %vm1140 = vcmask 736256
      %v1141 = vsel %vm1140, %v1135, %v1137
      %v1142 = vsel %vm1140, %v1137, %v1139
      %v1147 = vsel %vm265, %v1133, 0
      %1149 = vmatprep.subr.bf16.mxu0 0
      %1150 = vmatpush1.bf16.msra.mxu0 0
      %1151 = vmatprep.subr.bf16.mxu0 0
      %1152 = vmatpush1.bf16.msra.mxu0 0
      %1153 = vmatprep.subr.bf16.mxu0 0
      %1154 = vmatpush1.bf16.msra.mxu0 0
      %1155 = vmatprep.subr.bf16.mxu0 0
      %1156 = vmatpush1.bf16.msra.mxu0 0
      %1157 = vmatprep.subr.bf16.mxu0 0
      %1158 = vmatpush1.bf16.msra.mxu0 0
      %1159 = vmatprep.subr.bf16.mxu0 0
      %1160 = vmatpush1.bf16.msra.mxu0 0
      %1161 = vmatprep.subr.bf16.mxu0 0
      %1162 = vmatpush1.bf16.msra.mxu0 0
      %1163 = vmatprep.subr.bf16.mxu0 %v1142
      %1164 = vmatpush1.bf16.msra.mxu0 %v1141
      %1165 = vmatprep.subr.bf16.mxu0 0
      %1166 = vmatpush2.bf16.msra.mxu0 0
      %1167 = vmatprep.subr.bf16.mxu0 0
      %1168 = vmatpush2.bf16.msra.mxu0 0
      %1169 = vmatprep.subr.bf16.mxu0 0
      %1170 = vmatpush2.bf16.msra.mxu0 0
      %1171 = vmatprep.subr.bf16.mxu0 0
      %1172 = vmatpush2.bf16.msra.mxu0 0
      %1173 = vmatprep.subr.bf16.mxu0 0
      %1174 = vmatpush2.bf16.msra.mxu0 0
      %1175 = vmatprep.subr.bf16.mxu0 0
      %1176 = vmatpush2.bf16.msra.mxu0 0
      %1177 = vmatprep.subr.bf16.mxu0 0
      %1178 = vmatpush2.bf16.msra.mxu0 0
      %1179 = vmatprep.subr.bf16.mxu0 0
      %1180 = vmatpush2.bf16.msra.mxu0 0
      %1181 = vmatprep.mubr.bf16.mxu0 0
      %1182 = vmatmul.mubr.bf16.gmra.mxu0 %v1147
      %v1183 = vpop.f32.mrf.mxu0
      %v1184 = vadd.f32 0.0, %v1183
      %v1185 = vpop.f32.mrf.mxu0
      %v1186 = vadd.f32 0.0, %v1185
      %v1187 = vpop.f32.mrf.mxu0
      %v1188 = vadd.f32 0.0, %v1187
      %v1189 = vpop.f32.mrf.mxu0
      %v1190 = vadd.f32 0.0, %v1189
      %1191 = vdwg.mxu0
      %1192 = vmatprep.subr.bf16.mxu0 0
      %1193 = vmatpush1.bf16.msra.mxu0 0
      %1194 = vmatprep.subr.bf16.mxu0 0
      %1195 = vmatpush1.bf16.msra.mxu0 0
      %1196 = vmatprep.subr.bf16.mxu0 0
      %1197 = vmatpush1.bf16.msra.mxu0 0
      %1198 = vmatprep.subr.bf16.mxu0 0
      %1199 = vmatpush1.bf16.msra.mxu0 0
      %1200 = vmatprep.subr.bf16.mxu0 0
      %1201 = vmatpush1.bf16.msra.mxu0 0
      %1202 = vmatprep.subr.bf16.mxu0 0
      %1203 = vmatpush1.bf16.msra.mxu0 0
      %1204 = vmatprep.subr.bf16.mxu0 0
      %1205 = vmatpush1.bf16.msra.mxu0 0
      %1206 = vmatprep.subr.bf16.mxu0 0
      %1207 = vmatpush1.bf16.msra.mxu0 %v1139
      %1208 = vmatprep.subr.bf16.mxu0 0
      %1209 = vmatpush2.bf16.msra.mxu0 0
      %1210 = vmatprep.subr.bf16.mxu0 0
      %1211 = vmatpush2.bf16.msra.mxu0 0
      %1212 = vmatprep.subr.bf16.mxu0 0
      %1213 = vmatpush2.bf16.msra.mxu0 0
      %1214 = vmatprep.subr.bf16.mxu0 0
      %1215 = vmatpush2.bf16.msra.mxu0 0
      %1216 = vmatprep.subr.bf16.mxu0 0
      %1217 = vmatpush2.bf16.msra.mxu0 0
      %1218 = vmatprep.subr.bf16.mxu0 0
      %1219 = vmatpush2.bf16.msra.mxu0 0
      %1220 = vmatprep.subr.bf16.mxu0 0
      %1221 = vmatpush2.bf16.msra.mxu0 0
      %1222 = vmatprep.subr.bf16.mxu0 0
      %1223 = vmatpush2.bf16.msra.mxu0 0
      %1224 = vmatprep.mubr.bf16.mxu0 0
      %1225 = vmatmul.mubr.bf16.gmra.mxu0 %v1147
      %v1226 = vpop.f32.mrf.mxu0
      %v1227 = vadd.f32 0.0, %v1226
      %v1228 = vpop.f32.mrf.mxu0
      %v1229 = vpop.f32.mrf.mxu0
      %v1230 = vadd.f32 0.0, %v1229
      %v1231 = vpop.f32.mrf.mxu0
      %1232 = vdwg.mxu0
      %v1233 = vadd.f32 %v1120, %v1184
      %v1234 = vadd.f32 %v1121, %v1186
      %v1235 = vadd.f32 %v1122, %v1227
      %v1236 = vadd.f32 %v1123, %v1188
      %v1237 = vadd.f32 %v1124, %v1190
      %v1238 = vadd.f32 %v1125, %v1230
      %v1239 = vld [vmem:[%s4] sm:$0x7]
      %v1241 = vlaneseq
      %v1242 = vshrl.u32 %v1241, 7
      %v1243 = vsub.s32 0, %v1242
      %v1244 = vrot.slane %v1239, %v1243
      %v1245 = vlaneseq
      %v1246 = vshrl.u32 %v1245, 7
      %v1247 = vsub.s32 1, %v1246
      %v1248 = vrot.slane %v1239, %v1247
      %v1249 = vlaneseq
      %v1250 = vshrl.u32 %v1249, 7
      %v1251 = vsub.s32 2, %v1250
      %v1252 = vrot.slane %v1239, %v1251
      %v1256 = vmul.f32 %v1233, %v1244
      %v1257 = vmul.f32 %v1234, %v1248
      %v1258 = vmul.f32 %v1235, %v1252
      %v1259 = vmul.f32 %v1236, %v1244
      %v1260 = vmul.f32 %v1237, %v1248
      %v1261 = vmul.f32 %v1238, %v1252
      %v1262 = vadd.f32 %v1256, %v1257
      %vm1263 = vcmask 244736
      %v1264 = vsel %vm1263, %v1258, 0.0
      %v1265 = vadd.f32 %v1262, %v1264
      %v1266 = vadd.f32 %v1265, %v1259
      %v1267 = vadd.f32 %v1266, %v1260
      %v1268 = vsel %vm1263, %v1261, 0.0
      %v1269 = vadd.f32 %v1267, %v1268
      %1270 = vadd.xlane.f32.xlu0 %v1269
      %v1271 = vpop.xlane.xlu0 %1270
      %v1272 = vrot.slane %v1271, 4
      %v1273 = vadd.f32 %v1271, %v1272
      %v1274 = vrot.slane %v1273, 2
      %v1275 = vadd.f32 %v1273, %v1274
      %v1276 = vrot.slane %v1275, 1
      %v1277 = vadd.f32 %v1275, %v1276
      %s1278 = vtos %v1277
      %v1279 = vstv %s1278
      %v1280 = vmul.f32 %v1279, 0.00024414063
      %v1281 = vsub.f32 %v1233, %v1280
      %v1282 = vsub.f32 %v1234, %v1280
      %v1283 = vsub.f32 %v1235, %v1280
      %v1284 = vsub.f32 %v1236, %v1280
      %v1285 = vsub.f32 %v1237, %v1280
      %v1286 = vsub.f32 %v1238, %v1280
      %v1287 = vmul.f32 %v1281, %v1281
      %v1288 = vmul.f32 %v1282, %v1282
      %v1289 = vmul.f32 %v1283, %v1283
      %v1290 = vmul.f32 %v1284, %v1284
      %v1291 = vmul.f32 %v1285, %v1285
      %v1292 = vmul.f32 %v1286, %v1286
      %v1293 = vmul.f32 %v1287, %v1244
      %v1294 = vmul.f32 %v1288, %v1248
      %v1295 = vmul.f32 %v1289, %v1252
      %v1296 = vmul.f32 %v1290, %v1244
      %v1297 = vmul.f32 %v1291, %v1248
      %v1298 = vmul.f32 %v1292, %v1252
      %v1299 = vadd.f32 %v1293, %v1294
      %v1300 = vsel %vm1263, %v1295, 0.0
      %v1301 = vadd.f32 %v1299, %v1300
      %v1302 = vadd.f32 %v1301, %v1296
      %v1303 = vadd.f32 %v1302, %v1297
      %v1304 = vsel %vm1263, %v1298, 0.0
      %v1305 = vadd.f32 %v1303, %v1304
      %1306 = vadd.xlane.f32.xlu0 %v1305
      %v1307 = vpop.xlane.xlu0 %1306
      %v1308 = vrot.slane %v1307, 4
      %v1309 = vadd.f32 %v1307, %v1308
      %v1310 = vrot.slane %v1309, 2
      %v1311 = vadd.f32 %v1309, %v1310
      %v1312 = vrot.slane %v1311, 1
      %v1313 = vadd.f32 %v1311, %v1312
      %s1314 = vtos %v1313
      %v1315 = vstv %s1314
      %v1316 = vmul.f32 %v1315, 0.00024414063
      %v1317 = vadd.f32 %v1316, 1e-05
      %v1318 = vrsqrt.pop %v1317
      %v1319 = vmul.f32 %v1281, %v1318
      %v1320 = vmul.f32 %v1282, %v1318
      %v1321 = vmul.f32 %v1283, %v1318
      %v1322 = vmul.f32 %v1284, %v1318
      %v1323 = vmul.f32 %v1285, %v1318
      %v1324 = vmul.f32 %v1286, %v1318
      %v1325 = vld [vmem:[%s2] sm:$0xff]
      %v1326 = vld [vmem:[%s2 + $0x8] sm:$0xff]
      %1328 = vset.pattern.permute.xlu0 0
      %1329 = vperm.xlu0 %1328, %v1325
      %v1330 = vpop.permute.xlu0 %1329
      %1333 = vset.pattern.permute.xlu0 0
      %1334 = vperm.xlu0 %1333, %v1326
      %v1335 = vpop.permute.xlu0 %1334
      %v1337 = vmul.f32 %v1319, %v1330
      %v1338 = vmul.f32 %v1320, %v1330
      %v1339 = vmul.f32 %v1321, %v1330
      %v1340 = vmul.f32 %v1322, %v1335
      %v1341 = vmul.f32 %v1323, %v1335
      %v1342 = vmul.f32 %v1324, %v1335
      %v1343 = vld [vmem:[%s3] sm:$0xff]
      %v1344 = vld [vmem:[%s3 + $0x8] sm:$0xff]
      %1346 = vset.pattern.permute.xlu0 0
      %1347 = vperm.xlu0 %1346, %v1343
      %v1348 = vpop.permute.xlu0 %1347
      %1351 = vset.pattern.permute.xlu0 0
      %1352 = vperm.xlu0 %1351, %v1344
      %v1353 = vpop.permute.xlu0 %1352
      %v1355 = vadd.f32 %v1337, %v1348
      %v1356 = vadd.f32 %v1338, %v1348
      %v1357 = vadd.f32 %v1339, %v1348
      %v1358 = vadd.f32 %v1340, %v1353
      %v1359 = vadd.f32 %v1341, %v1353
      %v1360 = vadd.f32 %v1342, %v1353
      %v1361 = vmul.f32 %v1355, 0.5
      %v1362 = vmul.f32 %v1356, 0.5
      %v1363 = vmul.f32 %v1357, 0.5
      %v1364 = vmul.f32 %v1358, 0.5
      %v1365 = vmul.f32 %v1359, 0.5
      %v1366 = vmul.f32 %v1360, 0.5
      %v1367 = vmul.f32 %v1355, 0.70710677
      %v1368 = vmul.f32 %v1356, 0.70710677
      %v1369 = vmul.f32 %v1357, 0.70710677
      %v1370 = vmul.f32 %v1358, 0.70710677
      %v1371 = vmul.f32 %v1359, 0.70710677
      %v1372 = vmul.f32 %v1360, 0.70710677
      %vm1373 = vcmp.ge.f32.partialorder %v1367, 0.0
      %vm1374 = vcmp.ge.f32.partialorder %v1368, 0.0
      %vm1375 = vcmp.ge.f32.partialorder %v1369, 0.0
      %vm1376 = vcmp.ge.f32.partialorder %v1370, 0.0
      %vm1377 = vcmp.ge.f32.partialorder %v1371, 0.0
      %vm1378 = vcmp.ge.f32.partialorder %v1372, 0.0
      %v1379 = vsel %vm1373, 1.0, -1.0
      %v1380 = vsel %vm1374, 1.0, -1.0
      %v1381 = vsel %vm1375, 1.0, -1.0
      %v1382 = vsel %vm1376, 1.0, -1.0
      %v1383 = vsel %vm1377, 1.0, -1.0
      %v1384 = vsel %vm1378, 1.0, -1.0
      %v1385 = vmul.f32 %v1367, %v1379
      %v1386 = vmul.f32 %v1368, %v1380
      %v1387 = vmul.f32 %v1369, %v1381
      %v1388 = vmul.f32 %v1370, %v1382
      %v1389 = vmul.f32 %v1371, %v1383
      %v1390 = vmul.f32 %v1372, %v1384
      %v1391 = vmul.f32 %v1385, 0.3275911
      %v1392 = vmul.f32 %v1386, 0.3275911
      %v1393 = vmul.f32 %v1387, 0.3275911
      %v1394 = vmul.f32 %v1388, 0.3275911
      %v1395 = vmul.f32 %v1389, 0.3275911
      %v1396 = vmul.f32 %v1390, 0.3275911
      %v1397 = vadd.f32 %v1391, 1.0
      %v1398 = vadd.f32 %v1392, 1.0
      %v1399 = vadd.f32 %v1393, 1.0
      %v1400 = vadd.f32 %v1394, 1.0
      %v1401 = vadd.f32 %v1395, 1.0
      %v1402 = vadd.f32 %v1396, 1.0
      %v1403 = vrcp.pop %v1397
      %v1404 = vmul.f32 1.0, %v1403
      %v1405 = vrcp.pop %v1398
      %v1406 = vmul.f32 1.0, %v1405
      %v1407 = vrcp.pop %v1399
      %v1408 = vmul.f32 1.0, %v1407
      %v1409 = vrcp.pop %v1400
      %v1410 = vmul.f32 1.0, %v1409
      %v1411 = vrcp.pop %v1401
      %v1412 = vmul.f32 1.0, %v1411
      %v1413 = vrcp.pop %v1402
      %v1414 = vmul.f32 1.0, %v1413
      %v1415 = vmul.f32 %v1404, 1.0614054
      %v1416 = vmul.f32 %v1406, 1.0614054
      %v1417 = vmul.f32 %v1408, 1.0614054
      %v1418 = vmul.f32 %v1410, 1.0614054
      %v1419 = vmul.f32 %v1412, 1.0614054
      %v1420 = vmul.f32 %v1414, 1.0614054
      %v1421 = vadd.f32 %v1415, -1.4531521
      %v1422 = vadd.f32 %v1416, -1.4531521
      %v1423 = vadd.f32 %v1417, -1.4531521
      %v1424 = vadd.f32 %v1418, -1.4531521
      %v1425 = vadd.f32 %v1419, -1.4531521
      %v1426 = vadd.f32 %v1420, -1.4531521
      %v1427 = vmul.f32 %v1421, %v1404
      %v1428 = vmul.f32 %v1422, %v1406
      %v1429 = vmul.f32 %v1423, %v1408
      %v1430 = vmul.f32 %v1424, %v1410
      %v1431 = vmul.f32 %v1425, %v1412
      %v1432 = vmul.f32 %v1426, %v1414
      %v1433 = vadd.f32 %v1427, 1.4214138
      %v1434 = vadd.f32 %v1428, 1.4214138
      %v1435 = vadd.f32 %v1429, 1.4214138
      %v1436 = vadd.f32 %v1430, 1.4214138
      %v1437 = vadd.f32 %v1431, 1.4214138
      %v1438 = vadd.f32 %v1432, 1.4214138
      %v1439 = vmul.f32 %v1433, %v1404
      %v1440 = vmul.f32 %v1434, %v1406
      %v1441 = vmul.f32 %v1435, %v1408
      %v1442 = vmul.f32 %v1436, %v1410
      %v1443 = vmul.f32 %v1437, %v1412
      %v1444 = vmul.f32 %v1438, %v1414
      %v1445 = vadd.f32 %v1439, -0.28449672
      %v1446 = vadd.f32 %v1440, -0.28449672
      %v1447 = vadd.f32 %v1441, -0.28449672
      %v1448 = vadd.f32 %v1442, -0.28449672
      %v1449 = vadd.f32 %v1443, -0.28449672
      %v1450 = vadd.f32 %v1444, -0.28449672
      %v1451 = vmul.f32 %v1445, %v1404
      %v1452 = vmul.f32 %v1446, %v1406
      %v1453 = vmul.f32 %v1447, %v1408
      %v1454 = vmul.f32 %v1448, %v1410
      %v1455 = vmul.f32 %v1449, %v1412
      %v1456 = vmul.f32 %v1450, %v1414
      %v1457 = vadd.f32 %v1451, 0.2548296
      %v1458 = vadd.f32 %v1452, 0.2548296
      %v1459 = vadd.f32 %v1453, 0.2548296
      %v1460 = vadd.f32 %v1454, 0.2548296
      %v1461 = vadd.f32 %v1455, 0.2548296
      %v1462 = vadd.f32 %v1456, 0.2548296
      %v1463 = vmul.f32 %v1457, %v1404
      %v1464 = vmul.f32 %v1458, %v1406
      %v1465 = vmul.f32 %v1459, %v1408
      %v1466 = vmul.f32 %v1460, %v1410
      %v1467 = vmul.f32 %v1461, %v1412
      %v1468 = vmul.f32 %v1462, %v1414
      %v1469 = vsub.f32 0.0, %v1385
      %v1470 = vsub.f32 0.0, %v1386
      %v1471 = vsub.f32 0.0, %v1387
      %v1472 = vsub.f32 0.0, %v1388
      %v1473 = vsub.f32 0.0, %v1389
      %v1474 = vsub.f32 0.0, %v1390
      %v1475 = vmul.f32 %v1469, %v1385
      %v1476 = vmul.f32 %v1470, %v1386
      %v1477 = vmul.f32 %v1471, %v1387
      %v1478 = vmul.f32 %v1472, %v1388
      %v1479 = vmul.f32 %v1473, %v1389
      %v1480 = vmul.f32 %v1474, %v1390
      %v1481 = vmul.f32 %v1475, 1.442695
      %v1482 = vpow.pop %v1481
      %v1483 = vmul.f32 %v1476, 1.442695
      %v1484 = vpow.pop %v1483
      %v1485 = vmul.f32 %v1477, 1.442695
      %v1486 = vpow.pop %v1485
      %v1487 = vmul.f32 %v1478, 1.442695
      %v1488 = vpow.pop %v1487
      %v1489 = vmul.f32 %v1479, 1.442695
      %v1490 = vpow.pop %v1489
      %v1491 = vmul.f32 %v1480, 1.442695
      %v1492 = vpow.pop %v1491
      %v1493 = vmul.f32 %v1463, %v1482
      %v1494 = vmul.f32 %v1464, %v1484
      %v1495 = vmul.f32 %v1465, %v1486
      %v1496 = vmul.f32 %v1466, %v1488
      %v1497 = vmul.f32 %v1467, %v1490
      %v1498 = vmul.f32 %v1468, %v1492
      %v1499 = vsub.f32 1.0, %v1493
      %v1500 = vsub.f32 1.0, %v1494
      %v1501 = vsub.f32 1.0, %v1495
      %v1502 = vsub.f32 1.0, %v1496
      %v1503 = vsub.f32 1.0, %v1497
      %v1504 = vsub.f32 1.0, %v1498
      %v1505 = vmul.f32 %v1379, %v1499
      %v1506 = vmul.f32 %v1380, %v1500
      %v1507 = vmul.f32 %v1381, %v1501
      %v1508 = vmul.f32 %v1382, %v1502
      %v1509 = vmul.f32 %v1383, %v1503
      %v1510 = vmul.f32 %v1384, %v1504
      %v1511 = vadd.f32 %v1505, 1.0
      %v1512 = vadd.f32 %v1506, 1.0
      %v1513 = vadd.f32 %v1507, 1.0
      %v1514 = vadd.f32 %v1508, 1.0
      %v1515 = vadd.f32 %v1509, 1.0
      %v1516 = vadd.f32 %v1510, 1.0
      %v1517 = vmul.f32 %v1361, %v1511
      %v1518 = vmul.f32 %v1362, %v1512
      %v1519 = vmul.f32 %v1363, %v1513
      %v1520 = vmul.f32 %v1364, %v1514
      %v1521 = vmul.f32 %v1365, %v1515
      %v1522 = vmul.f32 %v1366, %v1516
      %v1523 = vmul.f32 %v1517, %v1244
      %v1524 = vmul.f32 %v1518, %v1248
      %v1525 = vmul.f32 %v1519, %v1252
      %v1526 = vmul.f32 %v1520, %v1244
      %v1527 = vmul.f32 %v1521, %v1248
      %v1528 = vmul.f32 %v1522, %v1252
      %1529 = vst [vmem:[%s224] sm:$0xff] 0
      %vm1530 = vcmask 551936
      %1531 = vst.msk [vmem:[%s224 + $0x8] sm:$0xf] %vm1530, 0
      %1532 = vst [vmem:[%s224 + $0xc] sm:$0xff] 0
      %1533 = vst.msk [vmem:[%s224 + $0x14] sm:$0xf] %vm1530, 0
      %v1534 = vpack.c.bf16 %v1526, %v1523
      %v1535 = vpack.c.bf16 %v1527, %v1524
      %v1536 = vpack.c.bf16 %v1528, %v1525
      %v1540 = vunpack.c.l.b16 %v1534
      %v1541 = vunpack.c.l.b16 %v1535
      %v1542 = vunpack.c.l.b16 %v1536
      %v1543 = vunpack.c.h.b16 %v1534
      %v1544 = vunpack.c.h.b16 %v1535
      %v1545 = vunpack.c.h.b16 %v1536
      %v1546 = vpack.c.b16 %v1541, %v1540
      %v1547 = vpack.c.b16 %v1542, %v1542
      %v1548 = vpack.c.b16 %v1544, %v1543
      %v1549 = vpack.c.b16 %v1545, %v1545
      %1550 = vrot.lane.b32.xlu0 %v1546, 19
      %v1551 = vpop.permute.xlu0 %1550
      %1552 = vrot.lane.b32.xlu0 %v1547, 19
      %v1553 = vpop.permute.xlu0 %1552
      %1554 = vrot.lane.b32.xlu0 %v1548, 19
      %v1555 = vpop.permute.xlu0 %1554
      %1556 = vrot.lane.b32.xlu0 %v1549, 19
      %v1557 = vpop.permute.xlu0 %1556
      %v1558 = vrot.slane %v1551, 4
      %v1559 = vrot.slane %v1555, 4
      %vm1560 = vcmask 154624
      %v1561 = vsel %vm1560, %v1558, %v1551
      %v1562 = vsel %vm1560, %v1558, %v1553
      %v1563 = vsel %vm1560, %v1559, %v1555
      %v1564 = vsel %vm1560, %v1559, %v1557
      %vm1569 = vcmask 1043608
      %vm1570 = vcmask 1047556
      %vm1571 = vmor %vm1570, %vm1569
      %1572 = vst.msk [vmem:[%s224] sm:$0xff] %vm1571, %v1561
      %vm1573 = vcmask 396288
      %1574 = vst.msk [vmem:[%s224 + $0x8] sm:$0xf] %vm1573, %v1562
      %1575 = vst.msk [vmem:[%s224 + $0xc] sm:$0xff] %vm1571, %v1563
      %1576 = vst.msk [vmem:[%s224 + $0x14] sm:$0xf] %vm1573, %v1564
      %p1577 = scmp.lt.s32.totalorder %s16, 1
      %s1578 = scalar_select %p1577, %s16, 1
      %s1579 = smul.addr %s1578, 6
      %s1580 = smul.addr %s1579, 4
      %s1581 = scalar_lea.vmem %s5, %s1580
      // Predicated region
      $region41: #{upscaler_forward.7} parent=39 // pred_check
        %p1582 = pneg %p144
      $region42: #{upscaler_forward.7} parent=39 // pred_check_branch
        %1584 = sbr.rel (%p1582) target = $region44
      $region43: #{upscaler_forward.7} parent=39 // pred_region
        _
      $region44: #{upscaler_forward.7} parent=39 // pred_fallthru
        _
    $region40: #{upscaler_forward.7} parent=5 // pred_fallthru
      _
    %p1585 = scmp.le.s32.totalorder 2, %s11
    // Predicated region
    $region45: #{upscaler_forward.7} parent=5 // pred_check
      %p1586 = pneg %p1585
    $region46: #{upscaler_forward.7} parent=5 // pred_check_branch
      %1588 = sbr.rel (%p1586) target = $region48
    $region47: #{upscaler_forward.7} parent=5 // pred_region
      %s1589 = ssub.s32 %s11, 2
      // Predicated region
      $region49: #{upscaler_forward.7} parent=47 // pred_check
        %p1590 = pneg %p150
      $region50: #{upscaler_forward.7} parent=47 // pred_check_branch
        %1592 = sbr.rel (%p1590) target = $region52
      $region51: #{upscaler_forward.7} parent=47 // pred_region
        %p1593 = scmp.lt.s32.totalorder %s17, 1
        %s1594 = scalar_select %p1593, %s17, 1
        %s1595 = smul.addr %s1594, 6
        %s1596 = smul.addr %s1595, 4
        %s1597 = scalar_lea.vmem %s5, %s1596
      $region52: #{upscaler_forward.7} parent=47 // pred_fallthru
        _
    $region48: #{upscaler_forward.7} parent=5 // pred_fallthru
      _
  $region6: #{upscaler_forward.7} parent=0 // loop_footer
    %s15 = sadd.s32 1, %s11
  $region7: #{upscaler_forward.7} parent=0 // loop_footer_branch
    %10 = sbr.rel target = $region3
  $region8: #{upscaler_forward.7} parent=0 // loop_exit
    _

// kernel: upscaler_forward.8
$region0: #{upscaler_forward.8}
  #allocation0 [shape = 'u32[]', space=smem, size = 0x4, offset = 0x4, fixed_abs, tag = 'smem constant byte address 0x4 - core index']
  #allocation1 [shape = 'u32[144,128]{1,0:T(1,128)}', space=vmem, size = 0x12000, scoped, tag = 'internal scratch']
  %s0 = inlined_call_operand.vmem [shape: bf16[2,16,324], index: 0, kind: input, shape index: {}]
  %s1 = inlined_call_operand.vmem [shape: bf16[9,16,16], index: 1, kind: input, shape index: {}]
  %s2 = inlined_call_operand.vmem [shape: f32[16,1], index: 2, kind: input, shape index: {}]
  %s3 = inlined_call_operand.vmem [shape: f32[16,1], index: 3, kind: input, shape index: {}]
  %s4 = inlined_call_operand.vmem [shape: f32[1,286], index: 4, kind: input, shape index: {}]
  %s5 = inlined_call_operand.vmem [shape: bf16[2,16,324], index: 5, kind: input, shape index: {}]
  %s6 = inlined_call_operand.vmem [shape: bf16[2,16,324], index: 6, kind: output, shape index: {}]
  %s7 = sld [smem:[#allocation0]]
  $region57: #{upscaler_forward.8} parent=0
    _
  %s9 = ssub.s32 1, %s7
  %s10 = scalar_select 0, %s9, %s7
  loop: start=0, step=1, limit=4
  $region2: #{upscaler_forward.8} parent=0 // loop_pre_header
    _
  $region3: #{upscaler_forward.8} parent=0 // loop_header
    %s12 = sphi 0, %s16
    %p13 = scmp.ge.s32.totalorder %s12, 4
    %s22 = sphi 0, %s24
    %s25 = sphi 0, %s22
    %s26 = sphi 0, %s25
    %s42 = sphi 0, %s26
    %s46 = sphi 0, %s46
    %s48 = sphi 0, %s46
    %s49 = sphi 0, %s48
    %s63 = sphi 0, %s49
    %s67 = sphi 0, %s67
    %s69 = sphi 0, %s67
    %s70 = sphi 0, %s69
    %s84 = sphi 0, %s70
    %s88 = sphi 0, %s88
    %s90 = sphi 0, %s88
    %s91 = sphi 0, %s90
    %s105 = sphi 0, %s91
    %s109 = sphi 0, %s109
    %s111 = sphi 0, %s109
    %s112 = sphi 0, %s111
    %s126 = sphi 0, %s112
    %s132 = sphi 0, %s134
    %s135 = sphi 0, %s132
    %s136 = sphi 0, %s135
    %s152 = sphi 0, %s136
    %s158 = sphi 0, %s160
    %s161 = sphi 0, %s158
    %s162 = sphi 0, %s161
    %s178 = sphi 0, %s162
  $region4: #{upscaler_forward.8} parent=0 // loop_header_branch
    %15 = sbr.rel (%p13) target = $region8
  $region5: #{upscaler_forward.8} parent=0 // loop_body
    %s17 = ssub.s32 %s12, 1
    %s18 = ssub.s32 %s12, 2
    %s19 = sadd.s32 %s12, 1
    %s20 = ssub.s32 %s12, %s19
    %p21 = scmp.eq.s32.totalorder %s20, 0
    %s23 = sadd.s32 %s22, 1
    %s24 = scalar_select %p21, %s22, %s23
    %p27 = pneg %p21
    %p28 = scmp.eq.s32.totalorder %s12, 1
    %p29 = por %p27, %p28
    %p30 = scmp.ne.s32.totalorder %s22, %s25
    %p31 = scmp.eq.s32.totalorder %s12, 0
    %p32 = por %p30, %p31
    %p33 = scmp.ne.s32.totalorder %s22, %s25
    %p34 = scmp.eq.s32.totalorder %s17, 1
    %p35 = por %p33, %p34
    %p36 = scmp.ne.s32.totalorder %s25, %s26
    %p37 = scmp.eq.s32.totalorder %s17, 0
    %p38 = por %p36, %p37
    %p39 = scmp.ne.s32.totalorder %s25, %s26
    %p40 = scmp.eq.s32.totalorder %s18, 1
    %p41 = por %p39, %p40
    %p43 = scmp.ne.s32.totalorder %s26, %s42
    %p44 = scmp.eq.s32.totalorder %s18, 0
    %p45 = por %p43, %p44
    %s47 = sadd.s32 %s46, 1
    %p50 = scmp.eq.s32.totalorder %s12, 1
    %p51 = scmp.ne.s32.totalorder %s46, %s48
    %p52 = scmp.eq.s32.totalorder %s12, 0
    %p53 = por %p51, %p52
    %p54 = scmp.ne.s32.totalorder %s46, %s48
    %p55 = scmp.eq.s32.totalorder %s17, 1
    %p56 = por %p54, %p55
    %p57 = scmp.ne.s32.totalorder %s48, %s49
    %p58 = scmp.eq.s32.totalorder %s17, 0
    %p59 = por %p57, %p58
    %p60 = scmp.ne.s32.totalorder %s48, %s49
    %p61 = scmp.eq.s32.totalorder %s18, 1
    %p62 = por %p60, %p61
    %p64 = scmp.ne.s32.totalorder %s49, %s63
    %p65 = scmp.eq.s32.totalorder %s18, 0
    %p66 = por %p64, %p65
    %s68 = sadd.s32 %s67, 1
    %p71 = scmp.eq.s32.totalorder %s12, 1
    %p72 = scmp.ne.s32.totalorder %s67, %s69
    %p73 = scmp.eq.s32.totalorder %s12, 0
    %p74 = por %p72, %p73
    %p75 = scmp.ne.s32.totalorder %s67, %s69
    %p76 = scmp.eq.s32.totalorder %s17, 1
    %p77 = por %p75, %p76
    %p78 = scmp.ne.s32.totalorder %s69, %s70
    %p79 = scmp.eq.s32.totalorder %s17, 0
    %p80 = por %p78, %p79
    %p81 = scmp.ne.s32.totalorder %s69, %s70
    %p82 = scmp.eq.s32.totalorder %s18, 1
    %p83 = por %p81, %p82
    %p85 = scmp.ne.s32.totalorder %s70, %s84
    %p86 = scmp.eq.s32.totalorder %s18, 0
    %p87 = por %p85, %p86
    %s89 = sadd.s32 %s88, 1
    %p92 = scmp.eq.s32.totalorder %s12, 1
    %p93 = scmp.ne.s32.totalorder %s88, %s90
    %p94 = scmp.eq.s32.totalorder %s12, 0
    %p95 = por %p93, %p94
    %p96 = scmp.ne.s32.totalorder %s88, %s90
    %p97 = scmp.eq.s32.totalorder %s17, 1
    %p98 = por %p96, %p97
    %p99 = scmp.ne.s32.totalorder %s90, %s91
    %p100 = scmp.eq.s32.totalorder %s17, 0
    %p101 = por %p99, %p100
    %p102 = scmp.ne.s32.totalorder %s90, %s91
    %p103 = scmp.eq.s32.totalorder %s18, 1
    %p104 = por %p102, %p103
    %p106 = scmp.ne.s32.totalorder %s91, %s105
    %p107 = scmp.eq.s32.totalorder %s18, 0
    %p108 = por %p106, %p107
    %s110 = sadd.s32 %s109, 1
    %p113 = scmp.eq.s32.totalorder %s12, 1
    %p114 = scmp.ne.s32.totalorder %s109, %s111
    %p115 = scmp.eq.s32.totalorder %s12, 0
    %p116 = por %p114, %p115
    %p117 = scmp.ne.s32.totalorder %s109, %s111
    %p118 = scmp.eq.s32.totalorder %s17, 1
    %p119 = por %p117, %p118
    %p120 = scmp.ne.s32.totalorder %s111, %s112
    %p121 = scmp.eq.s32.totalorder %s17, 0
    %p122 = por %p120, %p121
    %p123 = scmp.ne.s32.totalorder %s111, %s112
    %p124 = scmp.eq.s32.totalorder %s18, 1
    %p125 = por %p123, %p124
    %p127 = scmp.ne.s32.totalorder %s112, %s126
    %p128 = scmp.eq.s32.totalorder %s18, 0
    %p129 = por %p127, %p128
    %s130 = ssub.s32 %s12, %s19
    %p131 = scmp.eq.s32.totalorder %s130, 0
    %s133 = sadd.s32 %s132, 1
    %s134 = scalar_select %p131, %s132, %s133
    %p137 = pneg %p131
    %p138 = scmp.eq.s32.totalorder %s12, 1
    %p139 = por %p137, %p138
    %p140 = scmp.ne.s32.totalorder %s132, %s135
    %p141 = scmp.eq.s32.totalorder %s12, 0
    %p142 = por %p140, %p141
    %p143 = scmp.ne.s32.totalorder %s132, %s135
    %p144 = scmp.eq.s32.totalorder %s17, 1
    %p145 = por %p143, %p144
    %p146 = scmp.ne.s32.totalorder %s135, %s136
    %p147 = scmp.eq.s32.totalorder %s17, 0
    %p148 = por %p146, %p147
    %p149 = scmp.ne.s32.totalorder %s135, %s136
    %p150 = scmp.eq.s32.totalorder %s18, 1
    %p151 = por %p149, %p150
    %p153 = scmp.ne.s32.totalorder %s136, %s152
    %p154 = scmp.eq.s32.totalorder %s18, 0
    %p155 = por %p153, %p154
    %s156 = ssub.s32 %s12, %s19
    %p157 = scmp.eq.s32.totalorder %s156, 0
    %s159 = sadd.s32 %s158, 1
    %s160 = scalar_select %p157, %s158, %s159
    %p163 = pneg %p157
    %p164 = scmp.eq.s32.totalorder %s12, 1
    %p165 = por %p163, %p164
    %p166 = scmp.ne.s32.totalorder %s158, %s161
    %p167 = scmp.eq.s32.totalorder %s12, 0
    %p168 = por %p166, %p167
    %p169 = scmp.ne.s32.totalorder %s158, %s161
    %p170 = scmp.eq.s32.totalorder %s17, 1
    %p171 = por %p169, %p170
    %p172 = scmp.ne.s32.totalorder %s161, %s162
    %p173 = scmp.eq.s32.totalorder %s17, 0
    %p174 = por %p172, %p173
    %p175 = scmp.ne.s32.totalorder %s161, %s162
    %p176 = scmp.eq.s32.totalorder %s18, 1
    %p177 = por %p175, %p176
    %p179 = scmp.ne.s32.totalorder %s162, %s178
    %p180 = scmp.eq.s32.totalorder %s18, 0
    %p181 = por %p179, %p180
    %p182 = scmp.le.s32.totalorder 1, %s12
    %p183 = scmp.lt.s32.totalorder %s12, 3
    %p184 = pnand %p182, %p183
    %p185 = pneg %p184
    // Predicated region
    $region9: #{upscaler_forward.8} parent=5 // pred_check
      _
    $region10: #{upscaler_forward.8} parent=5 // pred_check_branch
      %187 = sbr.rel (%p184) target = $region12
    $region11: #{upscaler_forward.8} parent=5 // pred_region
      %s188 = ssub.s32 %s12, 1
      // Predicated region
      $region13: #{upscaler_forward.8} parent=11 // pred_check
        %p189 = pneg %p59
      $region14: #{upscaler_forward.8} parent=11 // pred_check_branch
        %191 = sbr.rel (%p189) target = $region16
      $region15: #{upscaler_forward.8} parent=11 // pred_region
        _
      $region16: #{upscaler_forward.8} parent=11 // pred_fallthru
        _
      // Predicated region
      $region17: #{upscaler_forward.8} parent=11 // pred_check
        %p192 = pneg %p80
      $region18: #{upscaler_forward.8} parent=11 // pred_check_branch
        %194 = sbr.rel (%p192) target = $region20
      $region19: #{upscaler_forward.8} parent=11 // pred_region
        _
      $region20: #{upscaler_forward.8} parent=11 // pred_fallthru
        _
      // Predicated region
      $region21: #{upscaler_forward.8} parent=11 // pred_check
        %p195 = pneg %p101
      $region22: #{upscaler_forward.8} parent=11 // pred_check_branch
        %197 = sbr.rel (%p195) target = $region24
      $region23: #{upscaler_forward.8} parent=11 // pred_region
        _
      $region24: #{upscaler_forward.8} parent=11 // pred_fallthru
        _
      // Predicated region
      $region25: #{upscaler_forward.8} parent=11 // pred_check
        %p198 = pneg %p122
      $region26: #{upscaler_forward.8} parent=11 // pred_check_branch
        %200 = sbr.rel (%p198) target = $region28
      $region27: #{upscaler_forward.8} parent=11 // pred_region
        _
      $region28: #{upscaler_forward.8} parent=11 // pred_fallthru
        _
    $region12: #{upscaler_forward.8} parent=5 // pred_fallthru
      _
    %p201 = scmp.lt.s32.totalorder %s12, 2
    // Predicated region
    $region29: #{upscaler_forward.8} parent=5 // pred_check
      %p202 = pneg %p201
    $region30: #{upscaler_forward.8} parent=5 // pred_check_branch
      %204 = sbr.rel (%p202) target = $region32
    $region31: #{upscaler_forward.8} parent=5 // pred_region
      // Predicated region
      $region33: #{upscaler_forward.8} parent=31 // pred_check
        %p205 = pneg %p32
      $region34: #{upscaler_forward.8} parent=31 // pred_check_branch
        %207 = sbr.rel (%p205) target = $region36
      $region35: #{upscaler_forward.8} parent=31 // pred_region
        %p208 = scmp.lt.s32.totalorder %s12, 1
        %s209 = scalar_select %p208, %s12, 1
        %s210 = smul.addr %s209, 6
        %s211 = smul.addr %s210, 4
        %s212 = scalar_lea.vmem %s0, %s211
      $region36: #{upscaler_forward.8} parent=31 // pred_fallthru
        _
      // Predicated region
      $region37: #{upscaler_forward.8} parent=31 // pred_check
        %p213 = pneg %p142
      $region38: #{upscaler_forward.8} parent=31 // pred_check_branch
        %215 = sbr.rel (%p213) target = $region40
      $region39: #{upscaler_forward.8} parent=31 // pred_region
        %p216 = scmp.lt.s32.totalorder %s12, 1
        %s217 = scalar_select %p216, %s12, 1
        %s218 = smul.addr %s217, 6
        %s219 = smul.addr %s218, 4
        %s220 = scalar_lea.vmem %s5, %s219
      $region40: #{upscaler_forward.8} parent=31 // pred_fallthru
        _
    $region32: #{upscaler_forward.8} parent=5 // pred_fallthru
      _
    %p221 = scmp.le.s32.totalorder 1, %s12
    %p222 = scmp.lt.s32.totalorder %s12, 3
    %p223 = pnand %p221, %p222
    %p224 = pneg %p223
    // Predicated region
    $region41: #{upscaler_forward.8} parent=5 // pred_check
      _
    $region42: #{upscaler_forward.8} parent=5 // pred_check_branch
      %226 = sbr.rel (%p223) target = $region44
    $region43: #{upscaler_forward.8} parent=5 // pred_region
      %s227 = ssub.s32 %s12, 1
      %p228 = scmp.lt.s32.totalorder %s17, 1
      %s229 = scalar_select %p228, %s17, 1
      %s230 = smul.addr %s229, 6
      %s231 = smul.addr %s230, 4
      %s232 = scalar_lea.vmem %s0, %s231
      %p233 = pneg %p38
      %p234 = pneg %p35
      %p235 = pneg %p59
      %p236 = pneg %p56
      %p237 = pneg %p80
      %p238 = pneg %p77
      %p239 = pneg %p101
      %p240 = pneg %p98
      %p241 = pneg %p122
      %p242 = pneg %p119
      %p243 = scmp.lt.s32.totalorder %s17, 1
      %s244 = scalar_select %p243, %s17, 1
      %s245 = smul.addr %s244, 6
      %s246 = smul.addr %s245, 4
      %s247 = scalar_lea.vmem %s5, %s246
      %p248 = pneg %p148
      %p249 = pneg %p145
      %p250 = pneg %p174
      %p251 = pneg %p171
      %p252 = scmp.lt.s32.totalorder %s17, 1
      %s253 = scalar_select %p252, %s17, 1
      %s254 = smul.addr %s253, 6
      %s255 = smul.addr %s254, 4
      %s256 = scalar_lea.vmem %s6, %s255
      %p257 = scmp.lt.s32.totalorder %s17, 1
      %s258 = scalar_select %p257, %s17, 1
      %s259 = smul.addr %s258, 6
      %s260 = smul.addr %s259, 4
      %s261 = scalar_lea.vmem %s0, %s260
      %p262 = scmp.lt.s32.totalorder %s17, 1
      %s263 = scalar_select %p262, %s17, 1
      %s264 = smul.addr %s263, 6
      %s265 = smul.addr %s264, 4
      %s266 = scalar_lea.vmem %s5, %s265
      %p267 = scmp.lt.s32.totalorder %s17, 1
      %s268 = scalar_select %p267, %s17, 1
      %s269 = smul.addr %s268, 6
      %s270 = smul.addr %s269, 4
      %s271 = scalar_lea.vmem %s6, %s270
      %v273 = vld [vmem:[%s261] sm:$0xff]
      %v274 = vld [vmem:[%s261 + $0x8] sm:$0xf]
      %v275 = vld [vmem:[%s261 + $0xc] sm:$0xff]
      %v276 = vld [vmem:[%s261 + $0x14] sm:$0xf]
      %v277 = vld [vmem:[%s1] sm:$0xf]
      %v278 = vld [vmem:[%s1 + $0x4] sm:$0xf]
      %s279 = scalar_lea.vmem %s1, 8
      %v280 = vld [vmem:[%s279] sm:$0xf]
      %v281 = vld [vmem:[%s279 + $0x4] sm:$0xf]
      %v284 = vunpack.c.l.b16 %v280
      %v285 = vunpack.c.l.b16 %v281
      %v286 = vpack.c.b16 %v285, %v284
      %v291 = vunpack.c.l.b16 %v273
      %v292 = vunpack.c.h.b16 %v273
      %v293 = vunpack.c.l.b16 %v274
      %v294 = vunpack.c.l.b16 %v275
      %v295 = vunpack.c.h.b16 %v275
      %v296 = vunpack.c.l.b16 %v276
      %v297 = vpack.c.b16 %v294, %v291
      %v298 = vpack.c.b16 %v295, %v292
      %v299 = vpack.c.b16 %v296, %v293
      %300 = vrot.lane.b32.xlu0 %v297, 127
      %v301 = vpop.permute.xlu0 %300
      %302 = vrot.lane.b32.xlu0 %v298, 127
      %v303 = vpop.permute.xlu0 %302
      %304 = vrot.lane.b32.xlu0 %v299, 127
      %v305 = vpop.permute.xlu0 %304
      %vm306 = vcmask 1039360
      %v307 = vsel %vm306, %v301, %v303
      %v308 = vsel %vm306, %v303, %v305
      %vm312 = vcmask 130048
      %v314 = vsel %vm312, %v286, 0
      %316 = vmatprep.subr.bf16.mxu0 0
      %317 = vmatpush1.bf16.msra.mxu0 0
      %318 = vmatprep.subr.bf16.mxu0 0
      %319 = vmatpush1.bf16.msra.mxu0 0
      %320 = vmatprep.subr.bf16.mxu0 0
      %321 = vmatpush1.bf16.msra.mxu0 0
      %322 = vmatprep.subr.bf16.mxu0 0
      %323 = vmatpush1.bf16.msra.mxu0 0
      %324 = vmatprep.subr.bf16.mxu0 0
      %325 = vmatpush1.bf16.msra.mxu0 0
      %326 = vmatprep.subr.bf16.mxu0 0
      %327 = vmatpush1.bf16.msra.mxu0 0
      %328 = vmatprep.subr.bf16.mxu0 0
      %329 = vmatpush1.bf16.msra.mxu0 0
      %330 = vmatprep.subr.bf16.mxu0 %v308
      %331 = vmatpush1.bf16.msra.mxu0 %v307
      %332 = vmatprep.subr.bf16.mxu0 0
      %333 = vmatpush2.bf16.msra.mxu0 0
      %334 = vmatprep.subr.bf16.mxu0 0
      %335 = vmatpush2.bf16.msra.mxu0 0
      %336 = vmatprep.subr.bf16.mxu0 0
      %337 = vmatpush2.bf16.msra.mxu0 0
      %338 = vmatprep.subr.bf16.mxu0 0
      %339 = vmatpush2.bf16.msra.mxu0 0
      %340 = vmatprep.subr.bf16.mxu0 0
      %341 = vmatpush2.bf16.msra.mxu0 0
      %342 = vmatprep.subr.bf16.mxu0 0
      %343 = vmatpush2.bf16.msra.mxu0 0
      %344 = vmatprep.subr.bf16.mxu0 0
      %345 = vmatpush2.bf16.msra.mxu0 0
      %346 = vmatprep.subr.bf16.mxu0 0
      %347 = vmatpush2.bf16.msra.mxu0 0
      %348 = vmatprep.mubr.bf16.mxu0 0
      %349 = vmatmul.mubr.bf16.gmra.mxu0 %v314
      %v350 = vpop.f32.mrf.mxu0
      %v351 = vadd.f32 0.0, %v350
      %v352 = vpop.f32.mrf.mxu0
      %v353 = vadd.f32 0.0, %v352
      %v354 = vpop.f32.mrf.mxu0
      %v355 = vadd.f32 0.0, %v354
      %v356 = vpop.f32.mrf.mxu0
      %v357 = vadd.f32 0.0, %v356
      %358 = vdwg.mxu0
      %359 = vmatprep.subr.bf16.mxu0 0
      %360 = vmatpush1.bf16.msra.mxu0 0
      %361 = vmatprep.subr.bf16.mxu0 0
      %362 = vmatpush1.bf16.msra.mxu0 0
      %363 = vmatprep.subr.bf16.mxu0 0
      %364 = vmatpush1.bf16.msra.mxu0 0
      %365 = vmatprep.subr.bf16.mxu0 0
      %366 = vmatpush1.bf16.msra.mxu0 0
      %367 = vmatprep.subr.bf16.mxu0 0
      %368 = vmatpush1.bf16.msra.mxu0 0
      %369 = vmatprep.subr.bf16.mxu0 0
      %370 = vmatpush1.bf16.msra.mxu0 0
      %371 = vmatprep.subr.bf16.mxu0 0
      %372 = vmatpush1.bf16.msra.mxu0 0
      %373 = vmatprep.subr.bf16.mxu0 0
      %374 = vmatpush1.bf16.msra.mxu0 %v305
      %375 = vmatprep.subr.bf16.mxu0 0
      %376 = vmatpush2.bf16.msra.mxu0 0
      %377 = vmatprep.subr.bf16.mxu0 0
      %378 = vmatpush2.bf16.msra.mxu0 0
      %379 = vmatprep.subr.bf16.mxu0 0
      %380 = vmatpush2.bf16.msra.mxu0 0
      %381 = vmatprep.subr.bf16.mxu0 0
      %382 = vmatpush2.bf16.msra.mxu0 0
      %383 = vmatprep.subr.bf16.mxu0 0
      %384 = vmatpush2.bf16.msra.mxu0 0
      %385 = vmatprep.subr.bf16.mxu0 0
      %386 = vmatpush2.bf16.msra.mxu0 0
      %387 = vmatprep.subr.bf16.mxu0 0
      %388 = vmatpush2.bf16.msra.mxu0 0
      %389 = vmatprep.subr.bf16.mxu0 0
      %390 = vmatpush2.bf16.msra.mxu0 0
      %391 = vmatprep.mubr.bf16.mxu0 0
      %392 = vmatmul.mubr.bf16.gmra.mxu0 %v314
      %v393 = vpop.f32.mrf.mxu0
      %v394 = vadd.f32 0.0, %v393
      %v395 = vpop.f32.mrf.mxu0
      %v396 = vpop.f32.mrf.mxu0
      %v397 = vadd.f32 0.0, %v396
      %v398 = vpop.f32.mrf.mxu0
      %399 = vdwg.mxu0
      %v402 = vunpack.c.l.b16 %v277
      %v403 = vunpack.c.l.b16 %v278
      %v404 = vpack.c.b16 %v403, %v402
      %v409 = vsel %vm312, %v404, 0
      %411 = vmatprep.subr.bf16.mxu0 0
      %412 = vmatpush1.bf16.msra.mxu0 0
      %413 = vmatprep.subr.bf16.mxu0 0
      %414 = vmatpush1.bf16.msra.mxu0 0
      %415 = vmatprep.subr.bf16.mxu0 0
      %416 = vmatpush1.bf16.msra.mxu0 0
      %417 = vmatprep.subr.bf16.mxu0 0
      %418 = vmatpush1.bf16.msra.mxu0 0
      %419 = vmatprep.subr.bf16.mxu0 0
      %420 = vmatpush1.bf16.msra.mxu0 0
      %421 = vmatprep.subr.bf16.mxu0 0
      %422 = vmatpush1.bf16.msra.mxu0 0
      %423 = vmatprep.subr.bf16.mxu0 0
      %424 = vmatpush1.bf16.msra.mxu0 0
      %425 = vmatprep.subr.bf16.mxu0 %v298
      %426 = vmatpush1.bf16.msra.mxu0 %v297
      %427 = vmatprep.subr.bf16.mxu0 0
      %428 = vmatpush2.bf16.msra.mxu0 0
      %429 = vmatprep.subr.bf16.mxu0 0
      %430 = vmatpush2.bf16.msra.mxu0 0
      %431 = vmatprep.subr.bf16.mxu0 0
      %432 = vmatpush2.bf16.msra.mxu0 0
      %433 = vmatprep.subr.bf16.mxu0 0
      %434 = vmatpush2.bf16.msra.mxu0 0
      %435 = vmatprep.subr.bf16.mxu0 0
      %436 = vmatpush2.bf16.msra.mxu0 0
      %437 = vmatprep.subr.bf16.mxu0 0
      %438 = vmatpush2.bf16.msra.mxu0 0
      %439 = vmatprep.subr.bf16.mxu0 0
      %440 = vmatpush2.bf16.msra.mxu0 0
      %441 = vmatprep.subr.bf16.mxu0 0
      %442 = vmatpush2.bf16.msra.mxu0 0
      %443 = vmatprep.mubr.bf16.mxu0 0
      %444 = vmatmul.mubr.bf16.gmra.mxu0 %v409
      %v445 = vpop.f32.mrf.mxu0
      %v446 = vadd.f32 %v351, %v445
      %v447 = vpop.f32.mrf.mxu0
      %v448 = vadd.f32 %v353, %v447
      %v449 = vpop.f32.mrf.mxu0
      %v450 = vadd.f32 %v355, %v449
      %v451 = vpop.f32.mrf.mxu0
      %v452 = vadd.f32 %v357, %v451
      %453 = vdwg.mxu0
      %454 = vmatprep.subr.bf16.mxu0 0
      %455 = vmatpush1.bf16.msra.mxu0 0
      %456 = vmatprep.subr.bf16.mxu0 0
      %457 = vmatpush1.bf16.msra.mxu0 0
      %458 = vmatprep.subr.bf16.mxu0 0
      %459 = vmatpush1.bf16.msra.mxu0 0
      %460 = vmatprep.subr.bf16.mxu0 0
      %461 = vmatpush1.bf16.msra.mxu0 0
      %462 = vmatprep.subr.bf16.mxu0 0
      %463 = vmatpush1.bf16.msra.mxu0 0
      %464 = vmatprep.subr.bf16.mxu0 0
      %465 = vmatpush1.bf16.msra.mxu0 0
      %466 = vmatprep.subr.bf16.mxu0 0
      %467 = vmatpush1.bf16.msra.mxu0 0
      %468 = vmatprep.subr.bf16.mxu0 0
      %469 = vmatpush1.bf16.msra.mxu0 %v299
      %470 = vmatprep.subr.bf16.mxu0 0
      %471 = vmatpush2.bf16.msra.mxu0 0
      %472 = vmatprep.subr.bf16.mxu0 0
      %473 = vmatpush2.bf16.msra.mxu0 0
      %474 = vmatprep.subr.bf16.mxu0 0
      %475 = vmatpush2.bf16.msra.mxu0 0
      %476 = vmatprep.subr.bf16.mxu0 0
      %477 = vmatpush2.bf16.msra.mxu0 0
      %478 = vmatprep.subr.bf16.mxu0 0
      %479 = vmatpush2.bf16.msra.mxu0 0
      %480 = vmatprep.subr.bf16.mxu0 0
      %481 = vmatpush2.bf16.msra.mxu0 0
      %482 = vmatprep.subr.bf16.mxu0 0
      %483 = vmatpush2.bf16.msra.mxu0 0
      %484 = vmatprep.subr.bf16.mxu0 0
      %485 = vmatpush2.bf16.msra.mxu0 0
      %486 = vmatprep.mubr.bf16.mxu0 0
      %487 = vmatmul.mubr.bf16.gmra.mxu0 %v409
      %v488 = vpop.f32.mrf.mxu0
      %v489 = vadd.f32 %v394, %v488
      %v490 = vpop.f32.mrf.mxu0
      %v491 = vpop.f32.mrf.mxu0
      %v492 = vadd.f32 %v397, %v491
      %v493 = vpop.f32.mrf.mxu0
      %494 = vdwg.mxu0
      %s495 = scalar_lea.vmem %s1, 16
      %v496 = vld [vmem:[%s495] sm:$0xf]
      %v497 = vld [vmem:[%s495 + $0x4] sm:$0xf]
      %v500 = vunpack.c.l.b16 %v496
      %v501 = vunpack.c.l.b16 %v497
      %v502 = vpack.c.b16 %v501, %v500
      %503 = vrot.lane.b32.xlu0 %v297, 126
      %v504 = vpop.permute.xlu0 %503
      %505 = vrot.lane.b32.xlu0 %v298, 126
      %v506 = vpop.permute.xlu0 %505
      %507 = vrot.lane.b32.xlu0 %v299, 126
      %v508 = vpop.permute.xlu0 %507
      %vm509 = vcmask 1031168
      %v510 = vsel %vm509, %v504, %v506
      %v511 = vsel %vm509, %v506, %v508
      %v516 = vsel %vm312, %v502, 0
      %518 = vmatprep.subr.bf16.mxu0 0
      %519 = vmatpush1.bf16.msra.mxu0 0
      %520 = vmatprep.subr.bf16.mxu0 0
      %521 = vmatpush1.bf16.msra.mxu0 0
      %522 = vmatprep.subr.bf16.mxu0 0
      %523 = vmatpush1.bf16.msra.mxu0 0
      %524 = vmatprep.subr.bf16.mxu0 0
      %525 = vmatpush1.bf16.msra.mxu0 0
      %526 = vmatprep.subr.bf16.mxu0 0
      %527 = vmatpush1.bf16.msra.mxu0 0
      %528 = vmatprep.subr.bf16.mxu0 0
      %529 = vmatpush1.bf16.msra.mxu0 0
      %530 = vmatprep.subr.bf16.mxu0 0
      %531 = vmatpush1.bf16.msra.mxu0 0
      %532 = vmatprep.subr.bf16.mxu0 %v511
      %533 = vmatpush1.bf16.msra.mxu0 %v510
      %534 = vmatprep.subr.bf16.mxu0 0
      %535 = vmatpush2.bf16.msra.mxu0 0
      %536 = vmatprep.subr.bf16.mxu0 0
      %537 = vmatpush2.bf16.msra.mxu0 0
      %538 = vmatprep.subr.bf16.mxu0 0
      %539 = vmatpush2.bf16.msra.mxu0 0
      %540 = vmatprep.subr.bf16.mxu0 0
      %541 = vmatpush2.bf16.msra.mxu0 0
      %542 = vmatprep.subr.bf16.mxu0 0
      %543 = vmatpush2.bf16.msra.mxu0 0
      %544 = vmatprep.subr.bf16.mxu0 0
      %545 = vmatpush2.bf16.msra.mxu0 0
      %546 = vmatprep.subr.bf16.mxu0 0
      %547 = vmatpush2.bf16.msra.mxu0 0
      %548 = vmatprep.subr.bf16.mxu0 0
      %549 = vmatpush2.bf16.msra.mxu0 0
      %550 = vmatprep.mubr.bf16.mxu0 0
      %551 = vmatmul.mubr.bf16.gmra.mxu0 %v516
      %v552 = vpop.f32.mrf.mxu0
      %v553 = vadd.f32 0.0, %v552
      %v554 = vpop.f32.mrf.mxu0
      %v555 = vadd.f32 0.0, %v554
      %v556 = vpop.f32.mrf.mxu0
      %v557 = vadd.f32 0.0, %v556
      %v558 = vpop.f32.mrf.mxu0
      %v559 = vadd.f32 0.0, %v558
      %560 = vdwg.mxu0
      %561 = vmatprep.subr.bf16.mxu0 0
      %562 = vmatpush1.bf16.msra.mxu0 0
      %563 = vmatprep.subr.bf16.mxu0 0
      %564 = vmatpush1.bf16.msra.mxu0 0
      %565 = vmatprep.subr.bf16.mxu0 0
      %566 = vmatpush1.bf16.msra.mxu0 0
      %567 = vmatprep.subr.bf16.mxu0 0
      %568 = vmatpush1.bf16.msra.mxu0 0
      %569 = vmatprep.subr.bf16.mxu0 0
      %570 = vmatpush1.bf16.msra.mxu0 0
      %571 = vmatprep.subr.bf16.mxu0 0
      %572 = vmatpush1.bf16.msra.mxu0 0
      %573 = vmatprep.subr.bf16.mxu0 0
      %574 = vmatpush1.bf16.msra.mxu0 0
      %575 = vmatprep.subr.bf16.mxu0 0
      %576 = vmatpush1.bf16.msra.mxu0 %v508
      %577 = vmatprep.subr.bf16.mxu0 0
      %578 = vmatpush2.bf16.msra.mxu0 0
      %579 = vmatprep.subr.bf16.mxu0 0
      %580 = vmatpush2.bf16.msra.mxu0 0
      %581 = vmatprep.subr.bf16.mxu0 0
      %582 = vmatpush2.bf16.msra.mxu0 0
      %583 = vmatprep.subr.bf16.mxu0 0
      %584 = vmatpush2.bf16.msra.mxu0 0
      %585 = vmatprep.subr.bf16.mxu0 0
      %586 = vmatpush2.bf16.msra.mxu0 0
      %587 = vmatprep.subr.bf16.mxu0 0
      %588 = vmatpush2.bf16.msra.mxu0 0
      %589 = vmatprep.subr.bf16.mxu0 0
      %590 = vmatpush2.bf16.msra.mxu0 0
      %591 = vmatprep.subr.bf16.mxu0 0
      %592 = vmatpush2.bf16.msra.mxu0 0
      %593 = vmatprep.mubr.bf16.mxu0 0
      %594 = vmatmul.mubr.bf16.gmra.mxu0 %v516
      %v595 = vpop.f32.mrf.mxu0
      %v596 = vadd.f32 0.0, %v595
      %v597 = vpop.f32.mrf.mxu0
      %v598 = vpop.f32.mrf.mxu0
      %v599 = vadd.f32 0.0, %v598
      %v600 = vpop.f32.mrf.mxu0
      %601 = vdwg.mxu0
      %v602 = vadd.f32 %v446, %v553
      %v603 = vadd.f32 %v448, %v555
      %v604 = vadd.f32 %v489, %v596
      %v605 = vadd.f32 %v450, %v557
      %v606 = vadd.f32 %v452, %v559
      %v607 = vadd.f32 %v492, %v599
      %s608 = scalar_lea.vmem %s1, 24
      %v609 = vld [vmem:[%s608] sm:$0xf]
      %v610 = vld [vmem:[%s608 + $0x4] sm:$0xf]
      %v613 = vunpack.c.l.b16 %v609
      %v614 = vunpack.c.l.b16 %v610
      %v615 = vpack.c.b16 %v614, %v613
      %616 = vrot.lane.b32.xlu0 %v297, 110
      %v617 = vpop.permute.xlu0 %616
      %618 = vrot.lane.b32.xlu0 %v298, 110
      %v619 = vpop.permute.xlu0 %618
      %620 = vrot.lane.b32.xlu0 %v299, 110
      %v621 = vpop.permute.xlu0 %620
      %vm622 = vcmask 900096
      %v623 = vsel %vm622, %v617, %v619
      %v624 = vsel %vm622, %v619, %v621
      %v629 = vsel %vm312, %v615, 0
      %631 = vmatprep.subr.bf16.mxu0 0
      %632 = vmatpush1.bf16.msra.mxu0 0
      %633 = vmatprep.subr.bf16.mxu0 0
      %634 = vmatpush1.bf16.msra.mxu0 0
      %635 = vmatprep.subr.bf16.mxu0 0
      %636 = vmatpush1.bf16.msra.mxu0 0
      %637 = vmatprep.subr.bf16.mxu0 0
      %638 = vmatpush1.bf16.msra.mxu0 0
      %639 = vmatprep.subr.bf16.mxu0 0
      %640 = vmatpush1.bf16.msra.mxu0 0
      %641 = vmatprep.subr.bf16.mxu0 0
      %642 = vmatpush1.bf16.msra.mxu0 0
      %643 = vmatprep.subr.bf16.mxu0 0
      %644 = vmatpush1.bf16.msra.mxu0 0
      %645 = vmatprep.subr.bf16.mxu0 %v624
      %646 = vmatpush1.bf16.msra.mxu0 %v623
      %647 = vmatprep.subr.bf16.mxu0 0
      %648 = vmatpush2.bf16.msra.mxu0 0
      %649 = vmatprep.subr.bf16.mxu0 0
      %650 = vmatpush2.bf16.msra.mxu0 0
      %651 = vmatprep.subr.bf16.mxu0 0
      %652 = vmatpush2.bf16.msra.mxu0 0
      %653 = vmatprep.subr.bf16.mxu0 0
      %654 = vmatpush2.bf16.msra.mxu0 0
      %655 = vmatprep.subr.bf16.mxu0 0
      %656 = vmatpush2.bf16.msra.mxu0 0
      %657 = vmatprep.subr.bf16.mxu0 0
      %658 = vmatpush2.bf16.msra.mxu0 0
      %659 = vmatprep.subr.bf16.mxu0 0
      %660 = vmatpush2.bf16.msra.mxu0 0
      %661 = vmatprep.subr.bf16.mxu0 0
      %662 = vmatpush2.bf16.msra.mxu0 0
      %663 = vmatprep.mubr.bf16.mxu0 0
      %664 = vmatmul.mubr.bf16.gmra.mxu0 %v629
      %v665 = vpop.f32.mrf.mxu0
      %v666 = vadd.f32 0.0, %v665
      %v667 = vpop.f32.mrf.mxu0
      %v668 = vadd.f32 0.0, %v667
      %v669 = vpop.f32.mrf.mxu0
      %v670 = vadd.f32 0.0, %v669
      %v671 = vpop.f32.mrf.mxu0
      %v672 = vadd.f32 0.0, %v671
      %673 = vdwg.mxu0
      %674 = vmatprep.subr.bf16.mxu0 0
      %675 = vmatpush1.bf16.msra.mxu0 0
      %676 = vmatprep.subr.bf16.mxu0 0
      %677 = vmatpush1.bf16.msra.mxu0 0
      %678 = vmatprep.subr.bf16.mxu0 0
      %679 = vmatpush1.bf16.msra.mxu0 0
      %680 = vmatprep.subr.bf16.mxu0 0
      %681 = vmatpush1.bf16.msra.mxu0 0
      %682 = vmatprep.subr.bf16.mxu0 0
      %683 = vmatpush1.bf16.msra.mxu0 0
      %684 = vmatprep.subr.bf16.mxu0 0
      %685 = vmatpush1.bf16.msra.mxu0 0
      %686 = vmatprep.subr.bf16.mxu0 0
      %687 = vmatpush1.bf16.msra.mxu0 0
      %688 = vmatprep.subr.bf16.mxu0 0
      %689 = vmatpush1.bf16.msra.mxu0 %v621
      %690 = vmatprep.subr.bf16.mxu0 0
      %691 = vmatpush2.bf16.msra.mxu0 0
      %692 = vmatprep.subr.bf16.mxu0 0
      %693 = vmatpush2.bf16.msra.mxu0 0
      %694 = vmatprep.subr.bf16.mxu0 0
      %695 = vmatpush2.bf16.msra.mxu0 0
      %696 = vmatprep.subr.bf16.mxu0 0
      %697 = vmatpush2.bf16.msra.mxu0 0
      %698 = vmatprep.subr.bf16.mxu0 0
      %699 = vmatpush2.bf16.msra.mxu0 0
      %700 = vmatprep.subr.bf16.mxu0 0
      %701 = vmatpush2.bf16.msra.mxu0 0
      %702 = vmatprep.subr.bf16.mxu0 0
      %703 = vmatpush2.bf16.msra.mxu0 0
      %704 = vmatprep.subr.bf16.mxu0 0
      %705 = vmatpush2.bf16.msra.mxu0 0
      %706 = vmatprep.mubr.bf16.mxu0 0
      %707 = vmatmul.mubr.bf16.gmra.mxu0 %v629
      %v708 = vpop.f32.mrf.mxu0
      %v709 = vadd.f32 0.0, %v708
      %v710 = vpop.f32.mrf.mxu0
      %v711 = vpop.f32.mrf.mxu0
      %v712 = vadd.f32 0.0, %v711
      %v713 = vpop.f32.mrf.mxu0
      %714 = vdwg.mxu0
      %v715 = vadd.f32 %v602, %v666
      %v716 = vadd.f32 %v603, %v668
      %v717 = vadd.f32 %v604, %v709
      %v718 = vadd.f32 %v605, %v670
      %v719 = vadd.f32 %v606, %v672
      %v720 = vadd.f32 %v607, %v712
      %s721 = scalar_lea.vmem %s1, 32
      %v722 = vld [vmem:[%s721] sm:$0xf]
      %v723 = vld [vmem:[%s721 + $0x4] sm:$0xf]
      %v726 = vunpack.c.l.b16 %v722
      %v727 = vunpack.c.l.b16 %v723
      %v728 = vpack.c.b16 %v727, %v726
      %729 = vrot.lane.b32.xlu0 %v297, 109
      %v730 = vpop.permute.xlu0 %729
      %731 = vrot.lane.b32.xlu0 %v298, 109
      %v732 = vpop.permute.xlu0 %731
      %733 = vrot.lane.b32.xlu0 %v299, 109
      %v734 = vpop.permute.xlu0 %733
      %vm735 = vcmask 891904
      %v736 = vsel %vm735, %v730, %v732
      %v737 = vsel %vm735, %v732, %v734
      %v742 = vsel %vm312, %v728, 0
      %744 = vmatprep.subr.bf16.mxu0 0
      %745 = vmatpush1.bf16.msra.mxu0 0
      %746 = vmatprep.subr.bf16.mxu0 0
      %747 = vmatpush1.bf16.msra.mxu0 0
      %748 = vmatprep.subr.bf16.mxu0 0
      %749 = vmatpush1.bf16.msra.mxu0 0
      %750 = vmatprep.subr.bf16.mxu0 0
      %751 = vmatpush1.bf16.msra.mxu0 0
      %752 = vmatprep.subr.bf16.mxu0 0
      %753 = vmatpush1.bf16.msra.mxu0 0
      %754 = vmatprep.subr.bf16.mxu0 0
      %755 = vmatpush1.bf16.msra.mxu0 0
      %756 = vmatprep.subr.bf16.mxu0 0
      %757 = vmatpush1.bf16.msra.mxu0 0
      %758 = vmatprep.subr.bf16.mxu0 %v737
      %759 = vmatpush1.bf16.msra.mxu0 %v736
      %760 = vmatprep.subr.bf16.mxu0 0
      %761 = vmatpush2.bf16.msra.mxu0 0
      %762 = vmatprep.subr.bf16.mxu0 0
      %763 = vmatpush2.bf16.msra.mxu0 0
      %764 = vmatprep.subr.bf16.mxu0 0
      %765 = vmatpush2.bf16.msra.mxu0 0
      %766 = vmatprep.subr.bf16.mxu0 0
      %767 = vmatpush2.bf16.msra.mxu0 0
      %768 = vmatprep.subr.bf16.mxu0 0
      %769 = vmatpush2.bf16.msra.mxu0 0
      %770 = vmatprep.subr.bf16.mxu0 0
      %771 = vmatpush2.bf16.msra.mxu0 0
      %772 = vmatprep.subr.bf16.mxu0 0
      %773 = vmatpush2.bf16.msra.mxu0 0
      %774 = vmatprep.subr.bf16.mxu0 0
      %775 = vmatpush2.bf16.msra.mxu0 0
      %776 = vmatprep.mubr.bf16.mxu0 0
      %777 = vmatmul.mubr.bf16.gmra.mxu0 %v742
      %v778 = vpop.f32.mrf.mxu0
      %v779 = vadd.f32 0.0, %v778
      %v780 = vpop.f32.mrf.mxu0
      %v781 = vadd.f32 0.0, %v780
      %v782 = vpop.f32.mrf.mxu0
      %v783 = vadd.f32 0.0, %v782
      %v784 = vpop.f32.mrf.mxu0
      %v785 = vadd.f32 0.0, %v784
      %786 = vdwg.mxu0
      %787 = vmatprep.subr.bf16.mxu0 0
      %788 = vmatpush1.bf16.msra.mxu0 0
      %789 = vmatprep.subr.bf16.mxu0 0
      %790 = vmatpush1.bf16.msra.mxu0 0
      %791 = vmatprep.subr.bf16.mxu0 0
      %792 = vmatpush1.bf16.msra.mxu0 0
      %793 = vmatprep.subr.bf16.mxu0 0
      %794 = vmatpush1.bf16.msra.mxu0 0
      %795 = vmatprep.subr.bf16.mxu0 0
      %796 = vmatpush1.bf16.msra.mxu0 0
      %797 = vmatprep.subr.bf16.mxu0 0
      %798 = vmatpush1.bf16.msra.mxu0 0
      %799 = vmatprep.subr.bf16.mxu0 0
      %800 = vmatpush1.bf16.msra.mxu0 0
      %801 = vmatprep.subr.bf16.mxu0 0
      %802 = vmatpush1.bf16.msra.mxu0 %v734
      %803 = vmatprep.subr.bf16.mxu0 0
      %804 = vmatpush2.bf16.msra.mxu0 0
      %805 = vmatprep.subr.bf16.mxu0 0
      %806 = vmatpush2.bf16.msra.mxu0 0
      %807 = vmatprep.subr.bf16.mxu0 0
      %808 = vmatpush2.bf16.msra.mxu0 0
      %809 = vmatprep.subr.bf16.mxu0 0
      %810 = vmatpush2.bf16.msra.mxu0 0
      %811 = vmatprep.subr.bf16.mxu0 0
      %812 = vmatpush2.bf16.msra.mxu0 0
      %813 = vmatprep.subr.bf16.mxu0 0
      %814 = vmatpush2.bf16.msra.mxu0 0
      %815 = vmatprep.subr.bf16.mxu0 0
      %816 = vmatpush2.bf16.msra.mxu0 0
      %817 = vmatprep.subr.bf16.mxu0 0
      %818 = vmatpush2.bf16.msra.mxu0 0
      %819 = vmatprep.mubr.bf16.mxu0 0
      %820 = vmatmul.mubr.bf16.gmra.mxu0 %v742
      %v821 = vpop.f32.mrf.mxu0
      %v822 = vadd.f32 0.0, %v821
      %v823 = vpop.f32.mrf.mxu0
      %v824 = vpop.f32.mrf.mxu0
      %v825 = vadd.f32 0.0, %v824
      %v826 = vpop.f32.mrf.mxu0
      %827 = vdwg.mxu0
      %v828 = vadd.f32 %v715, %v779
      %v829 = vadd.f32 %v716, %v781
      %v830 = vadd.f32 %v717, %v822
      %v831 = vadd.f32 %v718, %v783
      %v832 = vadd.f32 %v719, %v785
      %v833 = vadd.f32 %v720, %v825
      %s834 = scalar_lea.vmem %s1, 40
      %v835 = vld [vmem:[%s834] sm:$0xf]
      %v836 = vld [vmem:[%s834 + $0x4] sm:$0xf]
      %v839 = vunpack.c.l.b16 %v835
      %v840 = vunpack.c.l.b16 %v836
      %v841 = vpack.c.b16 %v840, %v839
      %842 = vrot.lane.b32.xlu0 %v297, 108
      %v843 = vpop.permute.xlu0 %842
      %844 = vrot.lane.b32.xlu0 %v298, 108
      %v845 = vpop.permute.xlu0 %844
      %846 = vrot.lane.b32.xlu0 %v299, 108
      %v847 = vpop.permute.xlu0 %846
      %vm848 = vcmask 883712
      %v849 = vsel %vm848, %v843, %v845
      %v850 = vsel %vm848, %v845, %v847
      %v855 = vsel %vm312, %v841, 0
      %857 = vmatprep.subr.bf16.mxu0 0
      %858 = vmatpush1.bf16.msra.mxu0 0
      %859 = vmatprep.subr.bf16.mxu0 0
      %860 = vmatpush1.bf16.msra.mxu0 0
      %861 = vmatprep.subr.bf16.mxu0 0
      %862 = vmatpush1.bf16.msra.mxu0 0
      %863 = vmatprep.subr.bf16.mxu0 0
      %864 = vmatpush1.bf16.msra.mxu0 0
      %865 = vmatprep.subr.bf16.mxu0 0
      %866 = vmatpush1.bf16.msra.mxu0 0
      %867 = vmatprep.subr.bf16.mxu0 0
      %868 = vmatpush1.bf16.msra.mxu0 0
      %869 = vmatprep.subr.bf16.mxu0 0
      %870 = vmatpush1.bf16.msra.mxu0 0
      %871 = vmatprep.subr.bf16.mxu0 %v850
      %872 = vmatpush1.bf16.msra.mxu0 %v849
      %873 = vmatprep.subr.bf16.mxu0 0
      %874 = vmatpush2.bf16.msra.mxu0 0
      %875 = vmatprep.subr.bf16.mxu0 0
      %876 = vmatpush2.bf16.msra.mxu0 0
      %877 = vmatprep.subr.bf16.mxu0 0
      %878 = vmatpush2.bf16.msra.mxu0 0
      %879 = vmatprep.subr.bf16.mxu0 0
      %880 = vmatpush2.bf16.msra.mxu0 0
      %881 = vmatprep.subr.bf16.mxu0 0
      %882 = vmatpush2.bf16.msra.mxu0 0
      %883 = vmatprep.subr.bf16.mxu0 0
      %884 = vmatpush2.bf16.msra.mxu0 0
      %885 = vmatprep.subr.bf16.mxu0 0
      %886 = vmatpush2.bf16.msra.mxu0 0
      %887 = vmatprep.subr.bf16.mxu0 0
      %888 = vmatpush2.bf16.msra.mxu0 0
      %889 = vmatprep.mubr.bf16.mxu0 0
      %890 = vmatmul.mubr.bf16.gmra.mxu0 %v855
      %v891 = vpop.f32.mrf.mxu0
      %v892 = vadd.f32 0.0, %v891
      %v893 = vpop.f32.mrf.mxu0
      %v894 = vadd.f32 0.0, %v893
      %v895 = vpop.f32.mrf.mxu0
      %v896 = vadd.f32 0.0, %v895
      %v897 = vpop.f32.mrf.mxu0
      %v898 = vadd.f32 0.0, %v897
      %899 = vdwg.mxu0
      %900 = vmatprep.subr.bf16.mxu0 0
      %901 = vmatpush1.bf16.msra.mxu0 0
      %902 = vmatprep.subr.bf16.mxu0 0
      %903 = vmatpush1.bf16.msra.mxu0 0
      %904 = vmatprep.subr.bf16.mxu0 0
      %905 = vmatpush1.bf16.msra.mxu0 0
      %906 = vmatprep.subr.bf16.mxu0 0
      %907 = vmatpush1.bf16.msra.mxu0 0
      %908 = vmatprep.subr.bf16.mxu0 0
      %909 = vmatpush1.bf16.msra.mxu0 0
      %910 = vmatprep.subr.bf16.mxu0 0
      %911 = vmatpush1.bf16.msra.mxu0 0
      %912 = vmatprep.subr.bf16.mxu0 0
      %913 = vmatpush1.bf16.msra.mxu0 0
      %914 = vmatprep.subr.bf16.mxu0 0
      %915 = vmatpush1.bf16.msra.mxu0 %v847
      %916 = vmatprep.subr.bf16.mxu0 0
      %917 = vmatpush2.bf16.msra.mxu0 0
      %918 = vmatprep.subr.bf16.mxu0 0
      %919 = vmatpush2.bf16.msra.mxu0 0
      %920 = vmatprep.subr.bf16.mxu0 0
      %921 = vmatpush2.bf16.msra.mxu0 0
      %922 = vmatprep.subr.bf16.mxu0 0
      %923 = vmatpush2.bf16.msra.mxu0 0
      %924 = vmatprep.subr.bf16.mxu0 0
      %925 = vmatpush2.bf16.msra.mxu0 0
      %926 = vmatprep.subr.bf16.mxu0 0
      %927 = vmatpush2.bf16.msra.mxu0 0
      %928 = vmatprep.subr.bf16.mxu0 0
      %929 = vmatpush2.bf16.msra.mxu0 0
      %930 = vmatprep.subr.bf16.mxu0 0
      %931 = vmatpush2.bf16.msra.mxu0 0
      %932 = vmatprep.mubr.bf16.mxu0 0
      %933 = vmatmul.mubr.bf16.gmra.mxu0 %v855
      %v934 = vpop.f32.mrf.mxu0
      %v935 = vadd.f32 0.0, %v934
      %v936 = vpop.f32.mrf.mxu0
      %v937 = vpop.f32.mrf.mxu0
      %v938 = vadd.f32 0.0, %v937
      %v939 = vpop.f32.mrf.mxu0
      %940 = vdwg.mxu0
      %v941 = vadd.f32 %v828, %v892
      %v942 = vadd.f32 %v829, %v894
      %v943 = vadd.f32 %v830, %v935
      %v944 = vadd.f32 %v831, %v896
      %v945 = vadd.f32 %v832, %v898
      %v946 = vadd.f32 %v833, %v938
      %s947 = scalar_lea.vmem %s1, 48
      %v948 = vld [vmem:[%s947] sm:$0xf]
      %v949 = vld [vmem:[%s947 + $0x4] sm:$0xf]
      %v952 = vunpack.c.l.b16 %v948
      %v953 = vunpack.c.l.b16 %v949
      %v954 = vpack.c.b16 %v953, %v952
      %955 = vrot.lane.b32.xlu0 %v297, 92
      %v956 = vpop.permute.xlu0 %955
      %957 = vrot.lane.b32.xlu0 %v298, 92
      %v958 = vpop.permute.xlu0 %957
      %959 = vrot.lane.b32.xlu0 %v299, 92
      %v960 = vpop.permute.xlu0 %959
      %vm961 = vcmask 752640
      %v962 = vsel %vm961, %v956, %v958
      %v963 = vsel %vm961, %v958, %v960
      %v968 = vsel %vm312, %v954, 0
      %970 = vmatprep.subr.bf16.mxu0 0
      %971 = vmatpush1.bf16.msra.mxu0 0
      %972 = vmatprep.subr.bf16.mxu0 0
      %973 = vmatpush1.bf16.msra.mxu0 0
      %974 = vmatprep.subr.bf16.mxu0 0
      %975 = vmatpush1.bf16.msra.mxu0 0
      %976 = vmatprep.subr.bf16.mxu0 0
      %977 = vmatpush1.bf16.msra.mxu0 0
      %978 = vmatprep.subr.bf16.mxu0 0
      %979 = vmatpush1.bf16.msra.mxu0 0
      %980 = vmatprep.subr.bf16.mxu0 0
      %981 = vmatpush1.bf16.msra.mxu0 0
      %982 = vmatprep.subr.bf16.mxu0 0
      %983 = vmatpush1.bf16.msra.mxu0 0
      %984 = vmatprep.subr.bf16.mxu0 %v963
      %985 = vmatpush1.bf16.msra.mxu0 %v962
      %986 = vmatprep.subr.bf16.mxu0 0
      %987 = vmatpush2.bf16.msra.mxu0 0
      %988 = vmatprep.subr.bf16.mxu0 0
      %989 = vmatpush2.bf16.msra.mxu0 0
      %990 = vmatprep.subr.bf16.mxu0 0
      %991 = vmatpush2.bf16.msra.mxu0 0
      %992 = vmatprep.subr.bf16.mxu0 0
      %993 = vmatpush2.bf16.msra.mxu0 0
      %994 = vmatprep.subr.bf16.mxu0 0
      %995 = vmatpush2.bf16.msra.mxu0 0
      %996 = vmatprep.subr.bf16.mxu0 0
      %997 = vmatpush2.bf16.msra.mxu0 0
      %998 = vmatprep.subr.bf16.mxu0 0
      %999 = vmatpush2.bf16.msra.mxu0 0
      %1000 = vmatprep.subr.bf16.mxu0 0
      %1001 = vmatpush2.bf16.msra.mxu0 0
      %1002 = vmatprep.mubr.bf16.mxu0 0
      %1003 = vmatmul.mubr.bf16.gmra.mxu0 %v968
      %v1004 = vpop.f32.mrf.mxu0
      %v1005 = vadd.f32 0.0, %v1004
      %v1006 = vpop.f32.mrf.mxu0
      %v1007 = vadd.f32 0.0, %v1006
      %v1008 = vpop.f32.mrf.mxu0
      %v1009 = vadd.f32 0.0, %v1008
      %v1010 = vpop.f32.mrf.mxu0
      %v1011 = vadd.f32 0.0, %v1010
      %1012 = vdwg.mxu0
      %1013 = vmatprep.subr.bf16.mxu0 0
      %1014 = vmatpush1.bf16.msra.mxu0 0
      %1015 = vmatprep.subr.bf16.mxu0 0
      %1016 = vmatpush1.bf16.msra.mxu0 0
      %1017 = vmatprep.subr.bf16.mxu0 0
      %1018 = vmatpush1.bf16.msra.mxu0 0
      %1019 = vmatprep.subr.bf16.mxu0 0
      %1020 = vmatpush1.bf16.msra.mxu0 0
      %1021 = vmatprep.subr.bf16.mxu0 0
      %1022 = vmatpush1.bf16.msra.mxu0 0
      %1023 = vmatprep.subr.bf16.mxu0 0
      %1024 = vmatpush1.bf16.msra.mxu0 0
      %1025 = vmatprep.subr.bf16.mxu0 0
      %1026 = vmatpush1.bf16.msra.mxu0 0
      %1027 = vmatprep.subr.bf16.mxu0 0
      %1028 = vmatpush1.bf16.msra.mxu0 %v960
      %1029 = vmatprep.subr.bf16.mxu0 0
      %1030 = vmatpush2.bf16.msra.mxu0 0
      %1031 = vmatprep.subr.bf16.mxu0 0
      %1032 = vmatpush2.bf16.msra.mxu0 0
      %1033 = vmatprep.subr.bf16.mxu0 0
      %1034 = vmatpush2.bf16.msra.mxu0 0
      %1035 = vmatprep.subr.bf16.mxu0 0
      %1036 = vmatpush2.bf16.msra.mxu0 0
      %1037 = vmatprep.subr.bf16.mxu0 0
      %1038 = vmatpush2.bf16.msra.mxu0 0
      %1039 = vmatprep.subr.bf16.mxu0 0
      %1040 = vmatpush2.bf16.msra.mxu0 0
      %1041 = vmatprep.subr.bf16.mxu0 0
      %1042 = vmatpush2.bf16.msra.mxu0 0
      %1043 = vmatprep.subr.bf16.mxu0 0
      %1044 = vmatpush2.bf16.msra.mxu0 0
      %1045 = vmatprep.mubr.bf16.mxu0 0
      %1046 = vmatmul.mubr.bf16.gmra.mxu0 %v968
      %v1047 = vpop.f32.mrf.mxu0
      %v1048 = vadd.f32 0.0, %v1047
      %v1049 = vpop.f32.mrf.mxu0
      %v1050 = vpop.f32.mrf.mxu0
      %v1051 = vadd.f32 0.0, %v1050
      %v1052 = vpop.f32.mrf.mxu0
      %1053 = vdwg.mxu0
      %v1054 = vadd.f32 %v941, %v1005
      %v1055 = vadd.f32 %v942, %v1007
      %v1056 = vadd.f32 %v943, %v1048
      %v1057 = vadd.f32 %v944, %v1009
      %v1058 = vadd.f32 %v945, %v1011
      %v1059 = vadd.f32 %v946, %v1051
      %s1060 = scalar_lea.vmem %s1, 56
      %v1061 = vld [vmem:[%s1060] sm:$0xf]
      %v1062 = vld [vmem:[%s1060 + $0x4] sm:$0xf]
      %v1065 = vunpack.c.l.b16 %v1061
      %v1066 = vunpack.c.l.b16 %v1062
      %v1067 = vpack.c.b16 %v1066, %v1065
      %1068 = vrot.lane.b32.xlu0 %v297, 91
      %v1069 = vpop.permute.xlu0 %1068
      %1070 = vrot.lane.b32.xlu0 %v298, 91
      %v1071 = vpop.permute.xlu0 %1070
      %1072 = vrot.lane.b32.xlu0 %v299, 91
      %v1073 = vpop.permute.xlu0 %1072
      %vm1074 = vcmask 744448
      %v1075 = vsel %vm1074, %v1069, %v1071
      %v1076 = vsel %vm1074, %v1071, %v1073
      %v1081 = vsel %vm312, %v1067, 0
      %1083 = vmatprep.subr.bf16.mxu0 0
      %1084 = vmatpush1.bf16.msra.mxu0 0
      %1085 = vmatprep.subr.bf16.mxu0 0
      %1086 = vmatpush1.bf16.msra.mxu0 0
      %1087 = vmatprep.subr.bf16.mxu0 0
      %1088 = vmatpush1.bf16.msra.mxu0 0
      %1089 = vmatprep.subr.bf16.mxu0 0
      %1090 = vmatpush1.bf16.msra.mxu0 0
      %1091 = vmatprep.subr.bf16.mxu0 0
      %1092 = vmatpush1.bf16.msra.mxu0 0
      %1093 = vmatprep.subr.bf16.mxu0 0
      %1094 = vmatpush1.bf16.msra.mxu0 0
      %1095 = vmatprep.subr.bf16.mxu0 0
      %1096 = vmatpush1.bf16.msra.mxu0 0
      %1097 = vmatprep.subr.bf16.mxu0 %v1076
      %1098 = vmatpush1.bf16.msra.mxu0 %v1075
      %1099 = vmatprep.subr.bf16.mxu0 0
      %1100 = vmatpush2.bf16.msra.mxu0 0
      %1101 = vmatprep.subr.bf16.mxu0 0
      %1102 = vmatpush2.bf16.msra.mxu0 0
      %1103 = vmatprep.subr.bf16.mxu0 0
      %1104 = vmatpush2.bf16.msra.mxu0 0
      %1105 = vmatprep.subr.bf16.mxu0 0
      %1106 = vmatpush2.bf16.msra.mxu0 0
      %1107 = vmatprep.subr.bf16.mxu0 0
      %1108 = vmatpush2.bf16.msra.mxu0 0
      %1109 = vmatprep.subr.bf16.mxu0 0
      %1110 = vmatpush2.bf16.msra.mxu0 0
      %1111 = vmatprep.subr.bf16.mxu0 0
      %1112 = vmatpush2.bf16.msra.mxu0 0
      %1113 = vmatprep.subr.bf16.mxu0 0
      %1114 = vmatpush2.bf16.msra.mxu0 0
      %1115 = vmatprep.mubr.bf16.mxu0 0
      %1116 = vmatmul.mubr.bf16.gmra.mxu0 %v1081
      %v1117 = vpop.f32.mrf.mxu0
      %v1118 = vadd.f32 0.0, %v1117
      %v1119 = vpop.f32.mrf.mxu0
      %v1120 = vadd.f32 0.0, %v1119
      %v1121 = vpop.f32.mrf.mxu0
      %v1122 = vadd.f32 0.0, %v1121
      %v1123 = vpop.f32.mrf.mxu0
      %v1124 = vadd.f32 0.0, %v1123
      %1125 = vdwg.mxu0
      %1126 = vmatprep.subr.bf16.mxu0 0
      %1127 = vmatpush1.bf16.msra.mxu0 0
      %1128 = vmatprep.subr.bf16.mxu0 0
      %1129 = vmatpush1.bf16.msra.mxu0 0
      %1130 = vmatprep.subr.bf16.mxu0 0
      %1131 = vmatpush1.bf16.msra.mxu0 0
      %1132 = vmatprep.subr.bf16.mxu0 0
      %1133 = vmatpush1.bf16.msra.mxu0 0
      %1134 = vmatprep.subr.bf16.mxu0 0
      %1135 = vmatpush1.bf16.msra.mxu0 0
      %1136 = vmatprep.subr.bf16.mxu0 0
      %1137 = vmatpush1.bf16.msra.mxu0 0
      %1138 = vmatprep.subr.bf16.mxu0 0
      %1139 = vmatpush1.bf16.msra.mxu0 0
      %1140 = vmatprep.subr.bf16.mxu0 0
      %1141 = vmatpush1.bf16.msra.mxu0 %v1073
      %1142 = vmatprep.subr.bf16.mxu0 0
      %1143 = vmatpush2.bf16.msra.mxu0 0
      %1144 = vmatprep.subr.bf16.mxu0 0
      %1145 = vmatpush2.bf16.msra.mxu0 0
      %1146 = vmatprep.subr.bf16.mxu0 0
      %1147 = vmatpush2.bf16.msra.mxu0 0
      %1148 = vmatprep.subr.bf16.mxu0 0
      %1149 = vmatpush2.bf16.msra.mxu0 0
      %1150 = vmatprep.subr.bf16.mxu0 0
      %1151 = vmatpush2.bf16.msra.mxu0 0
      %1152 = vmatprep.subr.bf16.mxu0 0
      %1153 = vmatpush2.bf16.msra.mxu0 0
      %1154 = vmatprep.subr.bf16.mxu0 0
      %1155 = vmatpush2.bf16.msra.mxu0 0
      %1156 = vmatprep.subr.bf16.mxu0 0
      %1157 = vmatpush2.bf16.msra.mxu0 0
      %1158 = vmatprep.mubr.bf16.mxu0 0
      %1159 = vmatmul.mubr.bf16.gmra.mxu0 %v1081
      %v1160 = vpop.f32.mrf.mxu0
      %v1161 = vadd.f32 0.0, %v1160
      %v1162 = vpop.f32.mrf.mxu0
      %v1163 = vpop.f32.mrf.mxu0
      %v1164 = vadd.f32 0.0, %v1163
      %v1165 = vpop.f32.mrf.mxu0
      %1166 = vdwg.mxu0
      %v1167 = vadd.f32 %v1054, %v1118
      %v1168 = vadd.f32 %v1055, %v1120
      %v1169 = vadd.f32 %v1056, %v1161
      %v1170 = vadd.f32 %v1057, %v1122
      %v1171 = vadd.f32 %v1058, %v1124
      %v1172 = vadd.f32 %v1059, %v1164
      %s1173 = scalar_lea.vmem %s1, 64
      %v1174 = vld [vmem:[%s1173] sm:$0xf]
      %v1175 = vld [vmem:[%s1173 + $0x4] sm:$0xf]
      %v1178 = vunpack.c.l.b16 %v1174
      %v1179 = vunpack.c.l.b16 %v1175
      %v1180 = vpack.c.b16 %v1179, %v1178
      %1181 = vrot.lane.b32.xlu0 %v297, 90
      %v1182 = vpop.permute.xlu0 %1181
      %1183 = vrot.lane.b32.xlu0 %v298, 90
      %v1184 = vpop.permute.xlu0 %1183
      %1185 = vrot.lane.b32.xlu0 %v299, 90
      %v1186 = vpop.permute.xlu0 %1185
      %vm1187 = vcmask 736256
      %v1188 = vsel %vm1187, %v1182, %v1184
      %v1189 = vsel %vm1187, %v1184, %v1186
      %v1194 = vsel %vm312, %v1180, 0
      %1196 = vmatprep.subr.bf16.mxu0 0
      %1197 = vmatpush1.bf16.msra.mxu0 0
      %1198 = vmatprep.subr.bf16.mxu0 0
      %1199 = vmatpush1.bf16.msra.mxu0 0
      %1200 = vmatprep.subr.bf16.mxu0 0
      %1201 = vmatpush1.bf16.msra.mxu0 0
      %1202 = vmatprep.subr.bf16.mxu0 0
      %1203 = vmatpush1.bf16.msra.mxu0 0
      %1204 = vmatprep.subr.bf16.mxu0 0
      %1205 = vmatpush1.bf16.msra.mxu0 0
      %1206 = vmatprep.subr.bf16.mxu0 0
      %1207 = vmatpush1.bf16.msra.mxu0 0
      %1208 = vmatprep.subr.bf16.mxu0 0
      %1209 = vmatpush1.bf16.msra.mxu0 0
      %1210 = vmatprep.subr.bf16.mxu0 %v1189
      %1211 = vmatpush1.bf16.msra.mxu0 %v1188
      %1212 = vmatprep.subr.bf16.mxu0 0
      %1213 = vmatpush2.bf16.msra.mxu0 0
      %1214 = vmatprep.subr.bf16.mxu0 0
      %1215 = vmatpush2.bf16.msra.mxu0 0
      %1216 = vmatprep.subr.bf16.mxu0 0
      %1217 = vmatpush2.bf16.msra.mxu0 0
      %1218 = vmatprep.subr.bf16.mxu0 0
      %1219 = vmatpush2.bf16.msra.mxu0 0
      %1220 = vmatprep.subr.bf16.mxu0 0
      %1221 = vmatpush2.bf16.msra.mxu0 0
      %1222 = vmatprep.subr.bf16.mxu0 0
      %1223 = vmatpush2.bf16.msra.mxu0 0
      %1224 = vmatprep.subr.bf16.mxu0 0
      %1225 = vmatpush2.bf16.msra.mxu0 0
      %1226 = vmatprep.subr.bf16.mxu0 0
      %1227 = vmatpush2.bf16.msra.mxu0 0
      %1228 = vmatprep.mubr.bf16.mxu0 0
      %1229 = vmatmul.mubr.bf16.gmra.mxu0 %v1194
      %v1230 = vpop.f32.mrf.mxu0
      %v1231 = vadd.f32 0.0, %v1230
      %v1232 = vpop.f32.mrf.mxu0
      %v1233 = vadd.f32 0.0, %v1232
      %v1234 = vpop.f32.mrf.mxu0
      %v1235 = vadd.f32 0.0, %v1234
      %v1236 = vpop.f32.mrf.mxu0
      %v1237 = vadd.f32 0.0, %v1236
      %1238 = vdwg.mxu0
      %1239 = vmatprep.subr.bf16.mxu0 0
      %1240 = vmatpush1.bf16.msra.mxu0 0
      %1241 = vmatprep.subr.bf16.mxu0 0
      %1242 = vmatpush1.bf16.msra.mxu0 0
      %1243 = vmatprep.subr.bf16.mxu0 0
      %1244 = vmatpush1.bf16.msra.mxu0 0
      %1245 = vmatprep.subr.bf16.mxu0 0
      %1246 = vmatpush1.bf16.msra.mxu0 0
      %1247 = vmatprep.subr.bf16.mxu0 0
      %1248 = vmatpush1.bf16.msra.mxu0 0
      %1249 = vmatprep.subr.bf16.mxu0 0
      %1250 = vmatpush1.bf16.msra.mxu0 0
      %1251 = vmatprep.subr.bf16.mxu0 0
      %1252 = vmatpush1.bf16.msra.mxu0 0
      %1253 = vmatprep.subr.bf16.mxu0 0
      %1254 = vmatpush1.bf16.msra.mxu0 %v1186
      %1255 = vmatprep.subr.bf16.mxu0 0
      %1256 = vmatpush2.bf16.msra.mxu0 0
      %1257 = vmatprep.subr.bf16.mxu0 0
      %1258 = vmatpush2.bf16.msra.mxu0 0
      %1259 = vmatprep.subr.bf16.mxu0 0
      %1260 = vmatpush2.bf16.msra.mxu0 0
      %1261 = vmatprep.subr.bf16.mxu0 0
      %1262 = vmatpush2.bf16.msra.mxu0 0
      %1263 = vmatprep.subr.bf16.mxu0 0
      %1264 = vmatpush2.bf16.msra.mxu0 0
      %1265 = vmatprep.subr.bf16.mxu0 0
      %1266 = vmatpush2.bf16.msra.mxu0 0
      %1267 = vmatprep.subr.bf16.mxu0 0
      %1268 = vmatpush2.bf16.msra.mxu0 0
      %1269 = vmatprep.subr.bf16.mxu0 0
      %1270 = vmatpush2.bf16.msra.mxu0 0
      %1271 = vmatprep.mubr.bf16.mxu0 0
      %1272 = vmatmul.mubr.bf16.gmra.mxu0 %v1194
      %v1273 = vpop.f32.mrf.mxu0
      %v1274 = vadd.f32 0.0, %v1273
      %v1275 = vpop.f32.mrf.mxu0
      %v1276 = vpop.f32.mrf.mxu0
      %v1277 = vadd.f32 0.0, %v1276
      %v1278 = vpop.f32.mrf.mxu0
      %1279 = vdwg.mxu0
      %v1280 = vadd.f32 %v1167, %v1231
      %v1281 = vadd.f32 %v1168, %v1233
      %v1282 = vadd.f32 %v1169, %v1274
      %v1283 = vadd.f32 %v1170, %v1235
      %v1284 = vadd.f32 %v1171, %v1237
      %v1285 = vadd.f32 %v1172, %v1277
      %v1286 = vld [vmem:[%s4] sm:$0x7]
      %v1288 = vlaneseq
      %v1289 = vshrl.u32 %v1288, 7
      %v1290 = vsub.s32 0, %v1289
      %v1291 = vrot.slane %v1286, %v1290
      %v1292 = vlaneseq
      %v1293 = vshrl.u32 %v1292, 7
      %v1294 = vsub.s32 1, %v1293
      %v1295 = vrot.slane %v1286, %v1294
      %v1296 = vlaneseq
      %v1297 = vshrl.u32 %v1296, 7
      %v1298 = vsub.s32 2, %v1297
      %v1299 = vrot.slane %v1286, %v1298
      %v1303 = vmul.f32 %v1280, %v1291
      %v1304 = vmul.f32 %v1281, %v1295
      %v1305 = vmul.f32 %v1282, %v1299
      %v1306 = vmul.f32 %v1283, %v1291
      %v1307 = vmul.f32 %v1284, %v1295
      %v1308 = vmul.f32 %v1285, %v1299
      %v1309 = vadd.f32 %v1303, %v1304
      %vm1310 = vcmask 244736
      %v1311 = vsel %vm1310, %v1305, 0.0
      %v1312 = vadd.f32 %v1309, %v1311
      %v1313 = vadd.f32 %v1312, %v1306
      %v1314 = vadd.f32 %v1313, %v1307
      %v1315 = vsel %vm1310, %v1308, 0.0
      %v1316 = vadd.f32 %v1314, %v1315
      %1317 = vadd.xlane.f32.xlu0 %v1316
      %v1318 = vpop.xlane.xlu0 %1317
      %v1319 = vrot.slane %v1318, 4
      %v1320 = vadd.f32 %v1318, %v1319
      %v1321 = vrot.slane %v1320, 2
      %v1322 = vadd.f32 %v1320, %v1321
      %v1323 = vrot.slane %v1322, 1
      %v1324 = vadd.f32 %v1322, %v1323
      %s1325 = vtos %v1324
      %v1326 = vstv %s1325
      %v1327 = vmul.f32 %v1326, 0.00024414063
      %v1328 = vsub.f32 %v1280, %v1327
      %v1329 = vsub.f32 %v1281, %v1327
      %v1330 = vsub.f32 %v1282, %v1327
      %v1331 = vsub.f32 %v1283, %v1327
      %v1332 = vsub.f32 %v1284, %v1327
      %v1333 = vsub.f32 %v1285, %v1327
      %v1334 = vmul.f32 %v1328, %v1328
      %v1335 = vmul.f32 %v1329, %v1329
      %v1336 = vmul.f32 %v1330, %v1330
      %v1337 = vmul.f32 %v1331, %v1331
      %v1338 = vmul.f32 %v1332, %v1332
      %v1339 = vmul.f32 %v1333, %v1333
      %v1340 = vmul.f32 %v1334, %v1291
      %v1341 = vmul.f32 %v1335, %v1295
      %v1342 = vmul.f32 %v1336, %v1299
      %v1343 = vmul.f32 %v1337, %v1291
      %v1344 = vmul.f32 %v1338, %v1295
      %v1345 = vmul.f32 %v1339, %v1299
      %v1346 = vadd.f32 %v1340, %v1341
      %v1347 = vsel %vm1310, %v1342, 0.0
      %v1348 = vadd.f32 %v1346, %v1347
      %v1349 = vadd.f32 %v1348, %v1343
      %v1350 = vadd.f32 %v1349, %v1344
      %v1351 = vsel %vm1310, %v1345, 0.0
      %v1352 = vadd.f32 %v1350, %v1351
      %1353 = vadd.xlane.f32.xlu0 %v1352
      %v1354 = vpop.xlane.xlu0 %1353
      %v1355 = vrot.slane %v1354, 4
      %v1356 = vadd.f32 %v1354, %v1355
      %v1357 = vrot.slane %v1356, 2
      %v1358 = vadd.f32 %v1356, %v1357
      %v1359 = vrot.slane %v1358, 1
      %v1360 = vadd.f32 %v1358, %v1359
      %s1361 = vtos %v1360
      %v1362 = vstv %s1361
      %v1363 = vmul.f32 %v1362, 0.00024414063
      %v1364 = vadd.f32 %v1363, 1e-05
      %v1365 = vrsqrt.pop %v1364
      %v1366 = vmul.f32 %v1328, %v1365
      %v1367 = vmul.f32 %v1329, %v1365
      %v1368 = vmul.f32 %v1330, %v1365
      %v1369 = vmul.f32 %v1331, %v1365
      %v1370 = vmul.f32 %v1332, %v1365
      %v1371 = vmul.f32 %v1333, %v1365
      %v1372 = vld [vmem:[%s2] sm:$0xff]
      %v1373 = vld [vmem:[%s2 + $0x8] sm:$0xff]
      %1375 = vset.pattern.permute.xlu0 0
      %1376 = vperm.xlu0 %1375, %v1372
      %v1377 = vpop.permute.xlu0 %1376
      %1380 = vset.pattern.permute.xlu0 0
      %1381 = vperm.xlu0 %1380, %v1373
      %v1382 = vpop.permute.xlu0 %1381
      %v1384 = vmul.f32 %v1366, %v1377
      %v1385 = vmul.f32 %v1367, %v1377
      %v1386 = vmul.f32 %v1368, %v1377
      %v1387 = vmul.f32 %v1369, %v1382
      %v1388 = vmul.f32 %v1370, %v1382
      %v1389 = vmul.f32 %v1371, %v1382
      %v1390 = vld [vmem:[%s3] sm:$0xff]
      %v1391 = vld [vmem:[%s3 + $0x8] sm:$0xff]
      %1393 = vset.pattern.permute.xlu0 0
      %1394 = vperm.xlu0 %1393, %v1390
      %v1395 = vpop.permute.xlu0 %1394
      %1398 = vset.pattern.permute.xlu0 0
      %1399 = vperm.xlu0 %1398, %v1391
      %v1400 = vpop.permute.xlu0 %1399
      %v1402 = vadd.f32 %v1384, %v1395
      %v1403 = vadd.f32 %v1385, %v1395
      %v1404 = vadd.f32 %v1386, %v1395
      %v1405 = vadd.f32 %v1387, %v1400
      %v1406 = vadd.f32 %v1388, %v1400
      %v1407 = vadd.f32 %v1389, %v1400
      %v1408 = vld [vmem:[%s266] sm:$0xff]
      %v1409 = vld [vmem:[%s266 + $0x8] sm:$0xf]
      %v1410 = vld [vmem:[%s266 + $0xc] sm:$0xff]
      %v1411 = vld [vmem:[%s266 + $0x14] sm:$0xf]
      %v1412 = vunpack.c.l.bf16 %v1408
      %v1413 = vunpack.c.h.bf16 %v1408
      %v1414 = vunpack.c.l.bf16 %v1409
      %v1415 = vunpack.c.l.bf16 %v1410
      %v1416 = vunpack.c.h.bf16 %v1410
      %v1417 = vunpack.c.l.bf16 %v1411
      %1424 = vrot.lane.b32.xlu0 %v1402, 19
      %v1425 = vpop.permute.xlu0 %1424
      %1426 = vrot.lane.b32.xlu0 %v1403, 19
      %v1427 = vpop.permute.xlu0 %1426
      %1428 = vrot.lane.b32.xlu0 %v1404, 19
      %v1429 = vpop.permute.xlu0 %1428
      %1430 = vrot.lane.b32.xlu0 %v1405, 19
      %v1431 = vpop.permute.xlu0 %1430
      %1432 = vrot.lane.b32.xlu0 %v1406, 19
      %v1433 = vpop.permute.xlu0 %1432
      %1434 = vrot.lane.b32.xlu0 %v1407, 19
      %v1435 = vpop.permute.xlu0 %1434
      %vm1436 = vcmask 154624
      %v1437 = vsel %vm1436, %v1425, %v1427
      %v1438 = vsel %vm1436, %v1427, %v1429
      %v1439 = vsel %vm1436, %v1431, %v1433
      %v1440 = vsel %vm1436, %v1433, %v1435
      %v1447 = vadd.f32 %v1412, %v1425
      %v1448 = vadd.f32 %v1413, %v1437
      %v1449 = vadd.f32 %v1414, %v1438
      %v1450 = vadd.f32 %v1415, %v1431
      %v1451 = vadd.f32 %v1416, %v1439
      %v1452 = vadd.f32 %v1417, %v1440
      %v1453 = vmul.f32 %v1447, 0.5
      %v1454 = vmul.f32 %v1448, 0.5
      %v1455 = vmul.f32 %v1449, 0.5
      %v1456 = vmul.f32 %v1450, 0.5
      %v1457 = vmul.f32 %v1451, 0.5
      %v1458 = vmul.f32 %v1452, 0.5
      %v1459 = vmul.f32 %v1447, 0.70710677
      %v1460 = vmul.f32 %v1448, 0.70710677
      %v1461 = vmul.f32 %v1449, 0.70710677
      %v1462 = vmul.f32 %v1450, 0.70710677
      %v1463 = vmul.f32 %v1451, 0.70710677
      %v1464 = vmul.f32 %v1452, 0.70710677
      %vm1465 = vcmp.ge.f32.partialorder %v1459, 0.0
      %vm1466 = vcmp.ge.f32.partialorder %v1460, 0.0
      %vm1467 = vcmp.ge.f32.partialorder %v1461, 0.0
      %vm1468 = vcmp.ge.f32.partialorder %v1462, 0.0
      %vm1469 = vcmp.ge.f32.partialorder %v1463, 0.0
      %vm1470 = vcmp.ge.f32.partialorder %v1464, 0.0
      %v1471 = vsel %vm1465, 1.0, -1.0
      %v1472 = vsel %vm1466, 1.0, -1.0
      %v1473 = vsel %vm1467, 1.0, -1.0
      %v1474 = vsel %vm1468, 1.0, -1.0
      %v1475 = vsel %vm1469, 1.0, -1.0
      %v1476 = vsel %vm1470, 1.0, -1.0
      %v1477 = vmul.f32 %v1459, %v1471
      %v1478 = vmul.f32 %v1460, %v1472
      %v1479 = vmul.f32 %v1461, %v1473
      %v1480 = vmul.f32 %v1462, %v1474
      %v1481 = vmul.f32 %v1463, %v1475
      %v1482 = vmul.f32 %v1464, %v1476
      %v1483 = vmul.f32 %v1477, 0.3275911
      %v1484 = vmul.f32 %v1478, 0.3275911
      %v1485 = vmul.f32 %v1479, 0.3275911
      %v1486 = vmul.f32 %v1480, 0.3275911
      %v1487 = vmul.f32 %v1481, 0.3275911
      %v1488 = vmul.f32 %v1482, 0.3275911
      %v1489 = vadd.f32 %v1483, 1.0
      %v1490 = vadd.f32 %v1484, 1.0
      %v1491 = vadd.f32 %v1485, 1.0
      %v1492 = vadd.f32 %v1486, 1.0
      %v1493 = vadd.f32 %v1487, 1.0
      %v1494 = vadd.f32 %v1488, 1.0
      %v1495 = vrcp.pop %v1489
      %v1496 = vmul.f32 1.0, %v1495
      %v1497 = vrcp.pop %v1490
      %v1498 = vmul.f32 1.0, %v1497
      %v1499 = vrcp.pop %v1491
      %v1500 = vmul.f32 1.0, %v1499
      %v1501 = vrcp.pop %v1492
      %v1502 = vmul.f32 1.0, %v1501
      %v1503 = vrcp.pop %v1493
      %v1504 = vmul.f32 1.0, %v1503
      %v1505 = vrcp.pop %v1494
      %v1506 = vmul.f32 1.0, %v1505
      %v1507 = vmul.f32 %v1496, 1.0614054
      %v1508 = vmul.f32 %v1498, 1.0614054
      %v1509 = vmul.f32 %v1500, 1.0614054
      %v1510 = vmul.f32 %v1502, 1.0614054
      %v1511 = vmul.f32 %v1504, 1.0614054
      %v1512 = vmul.f32 %v1506, 1.0614054
      %v1513 = vadd.f32 %v1507, -1.4531521
      %v1514 = vadd.f32 %v1508, -1.4531521
      %v1515 = vadd.f32 %v1509, -1.4531521
      %v1516 = vadd.f32 %v1510, -1.4531521
      %v1517 = vadd.f32 %v1511, -1.4531521
      %v1518 = vadd.f32 %v1512, -1.4531521
      %v1519 = vmul.f32 %v1513, %v1496
      %v1520 = vmul.f32 %v1514, %v1498
      %v1521 = vmul.f32 %v1515, %v1500
      %v1522 = vmul.f32 %v1516, %v1502
      %v1523 = vmul.f32 %v1517, %v1504
      %v1524 = vmul.f32 %v1518, %v1506
      %v1525 = vadd.f32 %v1519, 1.4214138
      %v1526 = vadd.f32 %v1520, 1.4214138
      %v1527 = vadd.f32 %v1521, 1.4214138
      %v1528 = vadd.f32 %v1522, 1.4214138
      %v1529 = vadd.f32 %v1523, 1.4214138
      %v1530 = vadd.f32 %v1524, 1.4214138
      %v1531 = vmul.f32 %v1525, %v1496
      %v1532 = vmul.f32 %v1526, %v1498
      %v1533 = vmul.f32 %v1527, %v1500
      %v1534 = vmul.f32 %v1528, %v1502
      %v1535 = vmul.f32 %v1529, %v1504
      %v1536 = vmul.f32 %v1530, %v1506
      %v1537 = vadd.f32 %v1531, -0.28449672
      %v1538 = vadd.f32 %v1532, -0.28449672
      %v1539 = vadd.f32 %v1533, -0.28449672
      %v1540 = vadd.f32 %v1534, -0.28449672
      %v1541 = vadd.f32 %v1535, -0.28449672
      %v1542 = vadd.f32 %v1536, -0.28449672
      %v1543 = vmul.f32 %v1537, %v1496
      %v1544 = vmul.f32 %v1538, %v1498
      %v1545 = vmul.f32 %v1539, %v1500
      %v1546 = vmul.f32 %v1540, %v1502
      %v1547 = vmul.f32 %v1541, %v1504
      %v1548 = vmul.f32 %v1542, %v1506
      %v1549 = vadd.f32 %v1543, 0.2548296
      %v1550 = vadd.f32 %v1544, 0.2548296
      %v1551 = vadd.f32 %v1545, 0.2548296
      %v1552 = vadd.f32 %v1546, 0.2548296
      %v1553 = vadd.f32 %v1547, 0.2548296
      %v1554 = vadd.f32 %v1548, 0.2548296
      %v1555 = vmul.f32 %v1549, %v1496
      %v1556 = vmul.f32 %v1550, %v1498
      %v1557 = vmul.f32 %v1551, %v1500
      %v1558 = vmul.f32 %v1552, %v1502
      %v1559 = vmul.f32 %v1553, %v1504
      %v1560 = vmul.f32 %v1554, %v1506
      %v1561 = vsub.f32 0.0, %v1477
      %v1562 = vsub.f32 0.0, %v1478
      %v1563 = vsub.f32 0.0, %v1479
      %v1564 = vsub.f32 0.0, %v1480
      %v1565 = vsub.f32 0.0, %v1481
      %v1566 = vsub.f32 0.0, %v1482
      %v1567 = vmul.f32 %v1561, %v1477
      %v1568 = vmul.f32 %v1562, %v1478
      %v1569 = vmul.f32 %v1563, %v1479
      %v1570 = vmul.f32 %v1564, %v1480
      %v1571 = vmul.f32 %v1565, %v1481
      %v1572 = vmul.f32 %v1566, %v1482
      %v1573 = vmul.f32 %v1567, 1.442695
      %v1574 = vpow.pop %v1573
      %v1575 = vmul.f32 %v1568, 1.442695
      %v1576 = vpow.pop %v1575
      %v1577 = vmul.f32 %v1569, 1.442695
      %v1578 = vpow.pop %v1577
      %v1579 = vmul.f32 %v1570, 1.442695
      %v1580 = vpow.pop %v1579
      %v1581 = vmul.f32 %v1571, 1.442695
      %v1582 = vpow.pop %v1581
      %v1583 = vmul.f32 %v1572, 1.442695
      %v1584 = vpow.pop %v1583
      %v1585 = vmul.f32 %v1555, %v1574
      %v1586 = vmul.f32 %v1556, %v1576
      %v1587 = vmul.f32 %v1557, %v1578
      %v1588 = vmul.f32 %v1558, %v1580
      %v1589 = vmul.f32 %v1559, %v1582
      %v1590 = vmul.f32 %v1560, %v1584
      %v1591 = vsub.f32 1.0, %v1585
      %v1592 = vsub.f32 1.0, %v1586
      %v1593 = vsub.f32 1.0, %v1587
      %v1594 = vsub.f32 1.0, %v1588
      %v1595 = vsub.f32 1.0, %v1589
      %v1596 = vsub.f32 1.0, %v1590
      %v1597 = vmul.f32 %v1471, %v1591
      %v1598 = vmul.f32 %v1472, %v1592
      %v1599 = vmul.f32 %v1473, %v1593
      %v1600 = vmul.f32 %v1474, %v1594
      %v1601 = vmul.f32 %v1475, %v1595
      %v1602 = vmul.f32 %v1476, %v1596
      %v1603 = vadd.f32 %v1597, 1.0
      %v1604 = vadd.f32 %v1598, 1.0
      %v1605 = vadd.f32 %v1599, 1.0
      %v1606 = vadd.f32 %v1600, 1.0
      %v1607 = vadd.f32 %v1601, 1.0
      %v1608 = vadd.f32 %v1602, 1.0
      %v1609 = vmul.f32 %v1453, %v1603
      %v1610 = vmul.f32 %v1454, %v1604
      %v1611 = vmul.f32 %v1455, %v1605
      %v1612 = vmul.f32 %v1456, %v1606
      %v1613 = vmul.f32 %v1457, %v1607
      %v1614 = vmul.f32 %v1458, %v1608
      %1615 = vrot.lane.b32.xlu0 %v1291, 19
      %v1616 = vpop.permute.xlu0 %1615
      %1617 = vrot.lane.b32.xlu0 %v1295, 19
      %v1618 = vpop.permute.xlu0 %1617
      %1619 = vrot.lane.b32.xlu0 %v1299, 19
      %v1620 = vpop.permute.xlu0 %1619
      %v1621 = vsel %vm1436, %v1616, %v1618
      %v1622 = vsel %vm1436, %v1618, %v1620
      %v1626 = vmul.f32 %v1609, %v1616
      %v1627 = vmul.f32 %v1610, %v1621
      %v1628 = vmul.f32 %v1611, %v1622
      %v1629 = vmul.f32 %v1612, %v1616
      %v1630 = vmul.f32 %v1613, %v1621
      %v1631 = vmul.f32 %v1614, %v1622
      %1632 = vst [vmem:[%s271] sm:$0xff] 0
      %vm1633 = vcmask 551936
      %1634 = vst.msk [vmem:[%s271 + $0x8] sm:$0xf] %vm1633, 0
      %1635 = vst [vmem:[%s271 + $0xc] sm:$0xff] 0
      %1636 = vst.msk [vmem:[%s271 + $0x14] sm:$0xf] %vm1633, 0
      %v1637 = vpack.c.bf16 %v1629, %v1626
      %v1638 = vpack.c.bf16 %v1630, %v1627
      %v1639 = vpack.c.bf16 %v1631, %v1628
      %v1643 = vunpack.c.l.b16 %v1637
      %v1644 = vunpack.c.l.b16 %v1638
      %v1645 = vunpack.c.l.b16 %v1639
      %v1646 = vunpack.c.h.b16 %v1637
      %v1647 = vunpack.c.h.b16 %v1638
      %v1648 = vunpack.c.h.b16 %v1639
      %v1649 = vpack.c.b16 %v1644, %v1643
      %v1650 = vpack.c.b16 %v1645, %v1645
      %v1651 = vpack.c.b16 %v1647, %v1646
      %v1652 = vpack.c.b16 %v1648, %v1648
      %vm1657 = vcmask 1043608
      %vm1658 = vcmask 1047556
      %vm1659 = vmor %vm1658, %vm1657
      %1660 = vst.msk [vmem:[%s271] sm:$0xff] %vm1659, %v1649
      %vm1661 = vcmask 396288
      %1662 = vst.msk [vmem:[%s271 + $0x8] sm:$0xf] %vm1661, %v1650
      %1663 = vst.msk [vmem:[%s271 + $0xc] sm:$0xff] %vm1659, %v1651
      %1664 = vst.msk [vmem:[%s271 + $0x14] sm:$0xf] %vm1661, %v1652
      %p1665 = scmp.lt.s32.totalorder %s17, 1
      %s1666 = scalar_select %p1665, %s17, 1
      %s1667 = smul.addr %s1666, 6
      %s1668 = smul.addr %s1667, 4
      %s1669 = scalar_lea.vmem %s6, %s1668
      // Predicated region
      $region45: #{upscaler_forward.8} parent=43 // pred_check
        %p1670 = pneg %p171
      $region46: #{upscaler_forward.8} parent=43 // pred_check_branch
        %1672 = sbr.rel (%p1670) target = $region48
      $region47: #{upscaler_forward.8} parent=43 // pred_region
        _
      $region48: #{upscaler_forward.8} parent=43 // pred_fallthru
        _
    $region44: #{upscaler_forward.8} parent=5 // pred_fallthru
      _
    %p1673 = scmp.le.s32.totalorder 2, %s12
    // Predicated region
    $region49: #{upscaler_forward.8} parent=5 // pred_check
      %p1674 = pneg %p1673
    $region50: #{upscaler_forward.8} parent=5 // pred_check_branch
      %1676 = sbr.rel (%p1674) target = $region52
    $region51: #{upscaler_forward.8} parent=5 // pred_region
      %s1677 = ssub.s32 %s12, 2
      // Predicated region
      $region53: #{upscaler_forward.8} parent=51 // pred_check
        %p1678 = pneg %p177
      $region54: #{upscaler_forward.8} parent=51 // pred_check_branch
        %1680 = sbr.rel (%p1678) target = $region56
      $region55: #{upscaler_forward.8} parent=51 // pred_region
        %p1681 = scmp.lt.s32.totalorder %s18, 1
        %s1682 = scalar_select %p1681, %s18, 1
        %s1683 = smul.addr %s1682, 6
        %s1684 = smul.addr %s1683, 4
        %s1685 = scalar_lea.vmem %s6, %s1684
      $region56: #{upscaler_forward.8} parent=51 // pred_fallthru
        _
    $region52: #{upscaler_forward.8} parent=5 // pred_fallthru
      _
  $region6: #{upscaler_forward.8} parent=0 // loop_footer
    %s16 = sadd.s32 1, %s12
  $region7: #{upscaler_forward.8} parent=0 // loop_footer_branch
    %11 = sbr.rel target = $region3
  $region8: #{upscaler_forward.8} parent=0 // loop_exit
    _

// kernel: upscaler_forward.9
$region0: #{upscaler_forward.9}
  #allocation0 [shape = 'u32[]', space=smem, size = 0x4, offset = 0x4, fixed_abs, tag = 'smem constant byte address 0x4 - core index']
  #allocation1 [shape = 'u32[144,128]{1,0:T(1,128)}', space=vmem, size = 0x12000, scoped, tag = 'internal scratch']
  %s0 = inlined_call_operand.vmem [shape: bf16[2,16,324], index: 0, kind: input, shape index: {}]
  %s1 = inlined_call_operand.vmem [shape: bf16[9,8,16], index: 1, kind: input, shape index: {}]
  %s2 = inlined_call_operand.vmem [shape: f32[8,1], index: 2, kind: input, shape index: {}]
  %s3 = inlined_call_operand.vmem [shape: f32[8,1], index: 3, kind: input, shape index: {}]
  %s4 = inlined_call_operand.vmem [shape: f32[1,286], index: 4, kind: input, shape index: {}]
  %s5 = inlined_call_operand.vmem [shape: bf16[2,8,324], index: 5, kind: output, shape index: {}]
  %s6 = sld [smem:[#allocation0]]
  $region53: #{upscaler_forward.9} parent=0
    _
  %s8 = ssub.s32 1, %s6
  %s9 = scalar_select 0, %s8, %s6
  loop: start=0, step=1, limit=4
  $region2: #{upscaler_forward.9} parent=0 // loop_pre_header
    _
  $region3: #{upscaler_forward.9} parent=0 // loop_header
    %s11 = sphi 0, %s15
    %p12 = scmp.ge.s32.totalorder %s11, 4
    %s21 = sphi 0, %s23
    %s24 = sphi 0, %s21
    %s25 = sphi 0, %s24
    %s41 = sphi 0, %s25
    %s45 = sphi 0, %s45
    %s47 = sphi 0, %s45
    %s48 = sphi 0, %s47
    %s62 = sphi 0, %s48
    %s66 = sphi 0, %s66
    %s68 = sphi 0, %s66
    %s69 = sphi 0, %s68
    %s83 = sphi 0, %s69
    %s87 = sphi 0, %s87
    %s89 = sphi 0, %s87
    %s90 = sphi 0, %s89
    %s104 = sphi 0, %s90
    %s108 = sphi 0, %s108
    %s110 = sphi 0, %s108
    %s111 = sphi 0, %s110
    %s125 = sphi 0, %s111
    %s131 = sphi 0, %s133
    %s134 = sphi 0, %s131
    %s135 = sphi 0, %s134
    %s151 = sphi 0, %s135
  $region4: #{upscaler_forward.9} parent=0 // loop_header_branch
    %14 = sbr.rel (%p12) target = $region8
  $region5: #{upscaler_forward.9} parent=0 // loop_body
    %s16 = ssub.s32 %s11, 1
    %s17 = ssub.s32 %s11, 2
    %s18 = sadd.s32 %s11, 1
    %s19 = ssub.s32 %s11, %s18
    %p20 = scmp.eq.s32.totalorder %s19, 0
    %s22 = sadd.s32 %s21, 1
    %s23 = scalar_select %p20, %s21, %s22
    %p26 = pneg %p20
    %p27 = scmp.eq.s32.totalorder %s11, 1
    %p28 = por %p26, %p27
    %p29 = scmp.ne.s32.totalorder %s21, %s24
    %p30 = scmp.eq.s32.totalorder %s11, 0
    %p31 = por %p29, %p30
    %p32 = scmp.ne.s32.totalorder %s21, %s24
    %p33 = scmp.eq.s32.totalorder %s16, 1
    %p34 = por %p32, %p33
    %p35 = scmp.ne.s32.totalorder %s24, %s25
    %p36 = scmp.eq.s32.totalorder %s16, 0
    %p37 = por %p35, %p36
    %p38 = scmp.ne.s32.totalorder %s24, %s25
    %p39 = scmp.eq.s32.totalorder %s17, 1
    %p40 = por %p38, %p39
    %p42 = scmp.ne.s32.totalorder %s25, %s41
    %p43 = scmp.eq.s32.totalorder %s17, 0
    %p44 = por %p42, %p43
    %s46 = sadd.s32 %s45, 1
    %p49 = scmp.eq.s32.totalorder %s11, 1
    %p50 = scmp.ne.s32.totalorder %s45, %s47
    %p51 = scmp.eq.s32.totalorder %s11, 0
    %p52 = por %p50, %p51
    %p53 = scmp.ne.s32.totalorder %s45, %s47
    %p54 = scmp.eq.s32.totalorder %s16, 1
    %p55 = por %p53, %p54
    %p56 = scmp.ne.s32.totalorder %s47, %s48
    %p57 = scmp.eq.s32.totalorder %s16, 0
    %p58 = por %p56, %p57
    %p59 = scmp.ne.s32.totalorder %s47, %s48
    %p60 = scmp.eq.s32.totalorder %s17, 1
    %p61 = por %p59, %p60
    %p63 = scmp.ne.s32.totalorder %s48, %s62
    %p64 = scmp.eq.s32.totalorder %s17, 0
    %p65 = por %p63, %p64
    %s67 = sadd.s32 %s66, 1
    %p70 = scmp.eq.s32.totalorder %s11, 1
    %p71 = scmp.ne.s32.totalorder %s66, %s68
    %p72 = scmp.eq.s32.totalorder %s11, 0
    %p73 = por %p71, %p72
    %p74 = scmp.ne.s32.totalorder %s66, %s68
    %p75 = scmp.eq.s32.totalorder %s16, 1
    %p76 = por %p74, %p75
    %p77 = scmp.ne.s32.totalorder %s68, %s69
    %p78 = scmp.eq.s32.totalorder %s16, 0
    %p79 = por %p77, %p78
    %p80 = scmp.ne.s32.totalorder %s68, %s69
    %p81 = scmp.eq.s32.totalorder %s17, 1
    %p82 = por %p80, %p81
    %p84 = scmp.ne.s32.totalorder %s69, %s83
    %p85 = scmp.eq.s32.totalorder %s17, 0
    %p86 = por %p84, %p85
    %s88 = sadd.s32 %s87, 1
    %p91 = scmp.eq.s32.totalorder %s11, 1
    %p92 = scmp.ne.s32.totalorder %s87, %s89
    %p93 = scmp.eq.s32.totalorder %s11, 0
    %p94 = por %p92, %p93
    %p95 = scmp.ne.s32.totalorder %s87, %s89
    %p96 = scmp.eq.s32.totalorder %s16, 1
    %p97 = por %p95, %p96
    %p98 = scmp.ne.s32.totalorder %s89, %s90
    %p99 = scmp.eq.s32.totalorder %s16, 0
    %p100 = por %p98, %p99
    %p101 = scmp.ne.s32.totalorder %s89, %s90
    %p102 = scmp.eq.s32.totalorder %s17, 1
    %p103 = por %p101, %p102
    %p105 = scmp.ne.s32.totalorder %s90, %s104
    %p106 = scmp.eq.s32.totalorder %s17, 0
    %p107 = por %p105, %p106
    %s109 = sadd.s32 %s108, 1
    %p112 = scmp.eq.s32.totalorder %s11, 1
    %p113 = scmp.ne.s32.totalorder %s108, %s110
    %p114 = scmp.eq.s32.totalorder %s11, 0
    %p115 = por %p113, %p114
    %p116 = scmp.ne.s32.totalorder %s108, %s110
    %p117 = scmp.eq.s32.totalorder %s16, 1
    %p118 = por %p116, %p117
    %p119 = scmp.ne.s32.totalorder %s110, %s111
    %p120 = scmp.eq.s32.totalorder %s16, 0
    %p121 = por %p119, %p120
    %p122 = scmp.ne.s32.totalorder %s110, %s111
    %p123 = scmp.eq.s32.totalorder %s17, 1
    %p124 = por %p122, %p123
    %p126 = scmp.ne.s32.totalorder %s111, %s125
    %p127 = scmp.eq.s32.totalorder %s17, 0
    %p128 = por %p126, %p127
    %s129 = ssub.s32 %s11, %s18
    %p130 = scmp.eq.s32.totalorder %s129, 0
    %s132 = sadd.s32 %s131, 1
    %s133 = scalar_select %p130, %s131, %s132
    %p136 = pneg %p130
    %p137 = scmp.eq.s32.totalorder %s11, 1
    %p138 = por %p136, %p137
    %p139 = scmp.ne.s32.totalorder %s131, %s134
    %p140 = scmp.eq.s32.totalorder %s11, 0
    %p141 = por %p139, %p140
    %p142 = scmp.ne.s32.totalorder %s131, %s134
    %p143 = scmp.eq.s32.totalorder %s16, 1
    %p144 = por %p142, %p143
    %p145 = scmp.ne.s32.totalorder %s134, %s135
    %p146 = scmp.eq.s32.totalorder %s16, 0
    %p147 = por %p145, %p146
    %p148 = scmp.ne.s32.totalorder %s134, %s135
    %p149 = scmp.eq.s32.totalorder %s17, 1
    %p150 = por %p148, %p149
    %p152 = scmp.ne.s32.totalorder %s135, %s151
    %p153 = scmp.eq.s32.totalorder %s17, 0
    %p154 = por %p152, %p153
    %p155 = scmp.le.s32.totalorder 1, %s11
    %p156 = scmp.lt.s32.totalorder %s11, 3
    %p157 = pnand %p155, %p156
    %p158 = pneg %p157
    // Predicated region
    $region9: #{upscaler_forward.9} parent=5 // pred_check
      _
    $region10: #{upscaler_forward.9} parent=5 // pred_check_branch
      %160 = sbr.rel (%p157) target = $region12
    $region11: #{upscaler_forward.9} parent=5 // pred_region
      %s161 = ssub.s32 %s11, 1
      // Predicated region
      $region13: #{upscaler_forward.9} parent=11 // pred_check
        %p162 = pneg %p58
      $region14: #{upscaler_forward.9} parent=11 // pred_check_branch
        %164 = sbr.rel (%p162) target = $region16
      $region15: #{upscaler_forward.9} parent=11 // pred_region
        _
      $region16: #{upscaler_forward.9} parent=11 // pred_fallthru
        _
      // Predicated region
      $region17: #{upscaler_forward.9} parent=11 // pred_check
        %p165 = pneg %p79
      $region18: #{upscaler_forward.9} parent=11 // pred_check_branch
        %167 = sbr.rel (%p165) target = $region20
      $region19: #{upscaler_forward.9} parent=11 // pred_region
        _
      $region20: #{upscaler_forward.9} parent=11 // pred_fallthru
        _
      // Predicated region
      $region21: #{upscaler_forward.9} parent=11 // pred_check
        %p168 = pneg %p100
      $region22: #{upscaler_forward.9} parent=11 // pred_check_branch
        %170 = sbr.rel (%p168) target = $region24
      $region23: #{upscaler_forward.9} parent=11 // pred_region
        _
      $region24: #{upscaler_forward.9} parent=11 // pred_fallthru
        _
      // Predicated region
      $region25: #{upscaler_forward.9} parent=11 // pred_check
        %p171 = pneg %p121
      $region26: #{upscaler_forward.9} parent=11 // pred_check_branch
        %173 = sbr.rel (%p171) target = $region28
      $region27: #{upscaler_forward.9} parent=11 // pred_region
        _
      $region28: #{upscaler_forward.9} parent=11 // pred_fallthru
        _
    $region12: #{upscaler_forward.9} parent=5 // pred_fallthru
      _
    %p174 = scmp.lt.s32.totalorder %s11, 2
    // Predicated region
    $region29: #{upscaler_forward.9} parent=5 // pred_check
      %p175 = pneg %p174
    $region30: #{upscaler_forward.9} parent=5 // pred_check_branch
      %177 = sbr.rel (%p175) target = $region32
    $region31: #{upscaler_forward.9} parent=5 // pred_region
      // Predicated region
      $region33: #{upscaler_forward.9} parent=31 // pred_check
        %p178 = pneg %p31
      $region34: #{upscaler_forward.9} parent=31 // pred_check_branch
        %180 = sbr.rel (%p178) target = $region36
      $region35: #{upscaler_forward.9} parent=31 // pred_region
        %p181 = scmp.lt.s32.totalorder %s11, 1
        %s182 = scalar_select %p181, %s11, 1
        %s183 = smul.addr %s182, 6
        %s184 = smul.addr %s183, 4
        %s185 = scalar_lea.vmem %s0, %s184
      $region36: #{upscaler_forward.9} parent=31 // pred_fallthru
        _
    $region32: #{upscaler_forward.9} parent=5 // pred_fallthru
      _
    %p186 = scmp.le.s32.totalorder 1, %s11
    %p187 = scmp.lt.s32.totalorder %s11, 3
    %p188 = pnand %p186, %p187
    %p189 = pneg %p188
    // Predicated region
    $region37: #{upscaler_forward.9} parent=5 // pred_check
      _
    $region38: #{upscaler_forward.9} parent=5 // pred_check_branch
      %191 = sbr.rel (%p188) target = $region40
    $region39: #{upscaler_forward.9} parent=5 // pred_region
      %s192 = ssub.s32 %s11, 1
      %p193 = scmp.lt.s32.totalorder %s16, 1
      %s194 = scalar_select %p193, %s16, 1
      %s195 = smul.addr %s194, 6
      %s196 = smul.addr %s195, 4
      %s197 = scalar_lea.vmem %s0, %s196
      %p198 = pneg %p37
      %p199 = pneg %p34
      %p200 = pneg %p58
      %p201 = pneg %p55
      %p202 = pneg %p79
      %p203 = pneg %p76
      %p204 = pneg %p100
      %p205 = pneg %p97
      %p206 = pneg %p121
      %p207 = pneg %p118
      %p208 = pneg %p147
      %p209 = pneg %p144
      %p210 = scmp.lt.s32.totalorder %s16, 1
      %s211 = scalar_select %p210, %s16, 1
      %s212 = smul.addr %s211, 3
      %s213 = smul.addr %s212, 4
      %s214 = scalar_lea.vmem %s5, %s213
      %p215 = scmp.lt.s32.totalorder %s16, 1
      %s216 = scalar_select %p215, %s16, 1
      %s217 = smul.addr %s216, 6
      %s218 = smul.addr %s217, 4
      %s219 = scalar_lea.vmem %s0, %s218
      %p220 = scmp.lt.s32.totalorder %s16, 1
      %s221 = scalar_select %p220, %s16, 1
      %s222 = smul.addr %s221, 3
      %s223 = smul.addr %s222, 4
      %s224 = scalar_lea.vmem %s5, %s223
      %v226 = vld [vmem:[%s219] sm:$0xff]
      %v227 = vld [vmem:[%s219 + $0x8] sm:$0xf]
      %v228 = vld [vmem:[%s219 + $0xc] sm:$0xff]
      %v229 = vld [vmem:[%s219 + $0x14] sm:$0xf]
      %v230 = vld [vmem:[%s1] sm:$0xf]
      %s231 = scalar_lea.vmem %s1, 4
      %v232 = vld [vmem:[%s231] sm:$0xf]
      %v237 = vunpack.c.l.b16 %v226
      %v238 = vunpack.c.h.b16 %v226
      %v239 = vunpack.c.l.b16 %v227
      %v240 = vunpack.c.l.b16 %v228
      %v241 = vunpack.c.h.b16 %v228
      %v242 = vunpack.c.l.b16 %v229
      %v243 = vpack.c.b16 %v240, %v237
      %v244 = vpack.c.b16 %v241, %v238
      %v245 = vpack.c.b16 %v242, %v239
      %246 = vrot.lane.b32.xlu0 %v243, 127
      %v247 = vpop.permute.xlu0 %246
      %248 = vrot.lane.b32.xlu0 %v244, 127
      %v249 = vpop.permute.xlu0 %248
      %250 = vrot.lane.b32.xlu0 %v245, 127
      %v251 = vpop.permute.xlu0 %250
      %vm252 = vcmask 1039360
      %v253 = vsel %vm252, %v247, %v249
      %v254 = vsel %vm252, %v249, %v251
      %vm258 = vcmask 130048
      %v260 = vsel %vm258, %v232, 0
      %262 = vmatprep.subr.bf16.mxu0 0
      %263 = vmatpush1.bf16.msra.mxu0 0
      %264 = vmatprep.subr.bf16.mxu0 0
      %265 = vmatpush1.bf16.msra.mxu0 0
      %266 = vmatprep.subr.bf16.mxu0 0
      %267 = vmatpush1.bf16.msra.mxu0 0
      %268 = vmatprep.subr.bf16.mxu0 0
      %269 = vmatpush1.bf16.msra.mxu0 0
      %270 = vmatprep.subr.bf16.mxu0 0
      %271 = vmatpush1.bf16.msra.mxu0 0
      %272 = vmatprep.subr.bf16.mxu0 0
      %273 = vmatpush1.bf16.msra.mxu0 0
      %274 = vmatprep.subr.bf16.mxu0 0
      %275 = vmatpush1.bf16.msra.mxu0 0
      %276 = vmatprep.subr.bf16.mxu0 %v254
      %277 = vmatpush1.bf16.msra.mxu0 %v253
      %278 = vmatprep.subr.bf16.mxu0 0
      %279 = vmatpush2.bf16.msra.mxu0 0
      %280 = vmatprep.subr.bf16.mxu0 0
      %281 = vmatpush2.bf16.msra.mxu0 0
      %282 = vmatprep.subr.bf16.mxu0 0
      %283 = vmatpush2.bf16.msra.mxu0 0
      %284 = vmatprep.subr.bf16.mxu0 0
      %285 = vmatpush2.bf16.msra.mxu0 0
      %286 = vmatprep.subr.bf16.mxu0 0
      %287 = vmatpush2.bf16.msra.mxu0 0
      %288 = vmatprep.subr.bf16.mxu0 0
      %289 = vmatpush2.bf16.msra.mxu0 0
      %290 = vmatprep.subr.bf16.mxu0 0
      %291 = vmatpush2.bf16.msra.mxu0 0
      %292 = vmatprep.subr.bf16.mxu0 0
      %293 = vmatpush2.bf16.msra.mxu0 0
      %294 = vmatprep.mubr.bf16.mxu0 0
      %295 = vmatmul.mubr.bf16.gmra.mxu0 %v260
      %v296 = vpop.f32.mrf.mxu0
      %v297 = vadd.f32 0.0, %v296
      %v298 = vpop.f32.mrf.mxu0
      %v299 = vadd.f32 0.0, %v298
      %v300 = vpop.f32.mrf.mxu0
      %v301 = vpop.f32.mrf.mxu0
      %302 = vdwg.mxu0
      %303 = vmatprep.subr.bf16.mxu0 0
      %304 = vmatpush1.bf16.msra.mxu0 0
      %305 = vmatprep.subr.bf16.mxu0 0
      %306 = vmatpush1.bf16.msra.mxu0 0
      %307 = vmatprep.subr.bf16.mxu0 0
      %308 = vmatpush1.bf16.msra.mxu0 0
      %309 = vmatprep.subr.bf16.mxu0 0
      %310 = vmatpush1.bf16.msra.mxu0 0
      %311 = vmatprep.subr.bf16.mxu0 0
      %312 = vmatpush1.bf16.msra.mxu0 0
      %313 = vmatprep.subr.bf16.mxu0 0
      %314 = vmatpush1.bf16.msra.mxu0 0
      %315 = vmatprep.subr.bf16.mxu0 0
      %316 = vmatpush1.bf16.msra.mxu0 0
      %317 = vmatprep.subr.bf16.mxu0 0
      %318 = vmatpush1.bf16.msra.mxu0 %v251
      %319 = vmatprep.subr.bf16.mxu0 0
      %320 = vmatpush2.bf16.msra.mxu0 0
      %321 = vmatprep.subr.bf16.mxu0 0
      %322 = vmatpush2.bf16.msra.mxu0 0
      %323 = vmatprep.subr.bf16.mxu0 0
      %324 = vmatpush2.bf16.msra.mxu0 0
      %325 = vmatprep.subr.bf16.mxu0 0
      %326 = vmatpush2.bf16.msra.mxu0 0
      %327 = vmatprep.subr.bf16.mxu0 0
      %328 = vmatpush2.bf16.msra.mxu0 0
      %329 = vmatprep.subr.bf16.mxu0 0
      %330 = vmatpush2.bf16.msra.mxu0 0
      %331 = vmatprep.subr.bf16.mxu0 0
      %332 = vmatpush2.bf16.msra.mxu0 0
      %333 = vmatprep.subr.bf16.mxu0 0
      %334 = vmatpush2.bf16.msra.mxu0 0
      %335 = vmatprep.mubr.bf16.mxu0 0
      %336 = vmatmul.mubr.bf16.gmra.mxu0 %v260
      %v337 = vpop.f32.mrf.mxu0
      %v338 = vadd.f32 0.0, %v337
      %v339 = vpop.f32.mrf.mxu0
      %v340 = vpop.f32.mrf.mxu0
      %v341 = vpop.f32.mrf.mxu0
      %342 = vdwg.mxu0
      %v347 = vsel %vm258, %v230, 0
      %349 = vmatprep.subr.bf16.mxu0 0
      %350 = vmatpush1.bf16.msra.mxu0 0
      %351 = vmatprep.subr.bf16.mxu0 0
      %352 = vmatpush1.bf16.msra.mxu0 0
      %353 = vmatprep.subr.bf16.mxu0 0
      %354 = vmatpush1.bf16.msra.mxu0 0
      %355 = vmatprep.subr.bf16.mxu0 0
      %356 = vmatpush1.bf16.msra.mxu0 0
      %357 = vmatprep.subr.bf16.mxu0 0
      %358 = vmatpush1.bf16.msra.mxu0 0
      %359 = vmatprep.subr.bf16.mxu0 0
      %360 = vmatpush1.bf16.msra.mxu0 0
      %361 = vmatprep.subr.bf16.mxu0 0
      %362 = vmatpush1.bf16.msra.mxu0 0
      %363 = vmatprep.subr.bf16.mxu0 %v244
      %364 = vmatpush1.bf16.msra.mxu0 %v243
      %365 = vmatprep.subr.bf16.mxu0 0
      %366 = vmatpush2.bf16.msra.mxu0 0
      %367 = vmatprep.subr.bf16.mxu0 0
      %368 = vmatpush2.bf16.msra.mxu0 0
      %369 = vmatprep.subr.bf16.mxu0 0
      %370 = vmatpush2.bf16.msra.mxu0 0
      %371 = vmatprep.subr.bf16.mxu0 0
      %372 = vmatpush2.bf16.msra.mxu0 0
      %373 = vmatprep.subr.bf16.mxu0 0
      %374 = vmatpush2.bf16.msra.mxu0 0
      %375 = vmatprep.subr.bf16.mxu0 0
      %376 = vmatpush2.bf16.msra.mxu0 0
      %377 = vmatprep.subr.bf16.mxu0 0
      %378 = vmatpush2.bf16.msra.mxu0 0
      %379 = vmatprep.subr.bf16.mxu0 0
      %380 = vmatpush2.bf16.msra.mxu0 0
      %381 = vmatprep.mubr.bf16.mxu0 0
      %382 = vmatmul.mubr.bf16.gmra.mxu0 %v347
      %v383 = vpop.f32.mrf.mxu0
      %v384 = vadd.f32 %v297, %v383
      %v385 = vpop.f32.mrf.mxu0
      %v386 = vadd.f32 %v299, %v385
      %v387 = vpop.f32.mrf.mxu0
      %v388 = vpop.f32.mrf.mxu0
      %389 = vdwg.mxu0
      %390 = vmatprep.subr.bf16.mxu0 0
      %391 = vmatpush1.bf16.msra.mxu0 0
      %392 = vmatprep.subr.bf16.mxu0 0
      %393 = vmatpush1.bf16.msra.mxu0 0
      %394 = vmatprep.subr.bf16.mxu0 0
      %395 = vmatpush1.bf16.msra.mxu0 0
      %396 = vmatprep.subr.bf16.mxu0 0
      %397 = vmatpush1.bf16.msra.mxu0 0
      %398 = vmatprep.subr.bf16.mxu0 0
      %399 = vmatpush1.bf16.msra.mxu0 0
      %400 = vmatprep.subr.bf16.mxu0 0
      %401 = vmatpush1.bf16.msra.mxu0 0
      %402 = vmatprep.subr.bf16.mxu0 0
      %403 = vmatpush1.bf16.msra.mxu0 0
      %404 = vmatprep.subr.bf16.mxu0 0
      %405 = vmatpush1.bf16.msra.mxu0 %v245
      %406 = vmatprep.subr.bf16.mxu0 0
      %407 = vmatpush2.bf16.msra.mxu0 0
      %408 = vmatprep.subr.bf16.mxu0 0
      %409 = vmatpush2.bf16.msra.mxu0 0
      %410 = vmatprep.subr.bf16.mxu0 0
      %411 = vmatpush2.bf16.msra.mxu0 0
      %412 = vmatprep.subr.bf16.mxu0 0
      %413 = vmatpush2.bf16.msra.mxu0 0
      %414 = vmatprep.subr.bf16.mxu0 0
      %415 = vmatpush2.bf16.msra.mxu0 0
      %416 = vmatprep.subr.bf16.mxu0 0
      %417 = vmatpush2.bf16.msra.mxu0 0
      %418 = vmatprep.subr.bf16.mxu0 0
      %419 = vmatpush2.bf16.msra.mxu0 0
      %420 = vmatprep.subr.bf16.mxu0 0
      %421 = vmatpush2.bf16.msra.mxu0 0
      %422 = vmatprep.mubr.bf16.mxu0 0
      %423 = vmatmul.mubr.bf16.gmra.mxu0 %v347
      %v424 = vpop.f32.mrf.mxu0
      %v425 = vadd.f32 %v338, %v424
      %v426 = vpop.f32.mrf.mxu0
      %v427 = vpop.f32.mrf.mxu0
      %v428 = vpop.f32.mrf.mxu0
      %429 = vdwg.mxu0
      %s430 = scalar_lea.vmem %s1, 8
      %v431 = vld [vmem:[%s430] sm:$0xf]
      %432 = vrot.lane.b32.xlu0 %v243, 126
      %v433 = vpop.permute.xlu0 %432
      %434 = vrot.lane.b32.xlu0 %v244, 126
      %v435 = vpop.permute.xlu0 %434
      %436 = vrot.lane.b32.xlu0 %v245, 126
      %v437 = vpop.permute.xlu0 %436
      %vm438 = vcmask 1031168
      %v439 = vsel %vm438, %v433, %v435
      %v440 = vsel %vm438, %v435, %v437
      %v445 = vsel %vm258, %v431, 0
      %447 = vmatprep.subr.bf16.mxu0 0
      %448 = vmatpush1.bf16.msra.mxu0 0
      %449 = vmatprep.subr.bf16.mxu0 0
      %450 = vmatpush1.bf16.msra.mxu0 0
      %451 = vmatprep.subr.bf16.mxu0 0
      %452 = vmatpush1.bf16.msra.mxu0 0
      %453 = vmatprep.subr.bf16.mxu0 0
      %454 = vmatpush1.bf16.msra.mxu0 0
      %455 = vmatprep.subr.bf16.mxu0 0
      %456 = vmatpush1.bf16.msra.mxu0 0
      %457 = vmatprep.subr.bf16.mxu0 0
      %458 = vmatpush1.bf16.msra.mxu0 0
      %459 = vmatprep.subr.bf16.mxu0 0
      %460 = vmatpush1.bf16.msra.mxu0 0
      %461 = vmatprep.subr.bf16.mxu0 %v440
      %462 = vmatpush1.bf16.msra.mxu0 %v439
      %463 = vmatprep.subr.bf16.mxu0 0
      %464 = vmatpush2.bf16.msra.mxu0 0
      %465 = vmatprep.subr.bf16.mxu0 0
      %466 = vmatpush2.bf16.msra.mxu0 0
      %467 = vmatprep.subr.bf16.mxu0 0
      %468 = vmatpush2.bf16.msra.mxu0 0
      %469 = vmatprep.subr.bf16.mxu0 0
      %470 = vmatpush2.bf16.msra.mxu0 0
      %471 = vmatprep.subr.bf16.mxu0 0
      %472 = vmatpush2.bf16.msra.mxu0 0
      %473 = vmatprep.subr.bf16.mxu0 0
      %474 = vmatpush2.bf16.msra.mxu0 0
      %475 = vmatprep.subr.bf16.mxu0 0
      %476 = vmatpush2.bf16.msra.mxu0 0
      %477 = vmatprep.subr.bf16.mxu0 0
      %478 = vmatpush2.bf16.msra.mxu0 0
      %479 = vmatprep.mubr.bf16.mxu0 0
      %480 = vmatmul.mubr.bf16.gmra.mxu0 %v445
      %v481 = vpop.f32.mrf.mxu0
      %v482 = vadd.f32 0.0, %v481
      %v483 = vpop.f32.mrf.mxu0
      %v484 = vadd.f32 0.0, %v483
      %v485 = vpop.f32.mrf.mxu0
      %v486 = vpop.f32.mrf.mxu0
      %487 = vdwg.mxu0
      %488 = vmatprep.subr.bf16.mxu0 0
      %489 = vmatpush1.bf16.msra.mxu0 0
      %490 = vmatprep.subr.bf16.mxu0 0
      %491 = vmatpush1.bf16.msra.mxu0 0
      %492 = vmatprep.subr.bf16.mxu0 0
      %493 = vmatpush1.bf16.msra.mxu0 0
      %494 = vmatprep.subr.bf16.mxu0 0
      %495 = vmatpush1.bf16.msra.mxu0 0
      %496 = vmatprep.subr.bf16.mxu0 0
      %497 = vmatpush1.bf16.msra.mxu0 0
      %498 = vmatprep.subr.bf16.mxu0 0
      %499 = vmatpush1.bf16.msra.mxu0 0
      %500 = vmatprep.subr.bf16.mxu0 0
      %501 = vmatpush1.bf16.msra.mxu0 0
      %502 = vmatprep.subr.bf16.mxu0 0
      %503 = vmatpush1.bf16.msra.mxu0 %v437
      %504 = vmatprep.subr.bf16.mxu0 0
      %505 = vmatpush2.bf16.msra.mxu0 0
      %506 = vmatprep.subr.bf16.mxu0 0
      %507 = vmatpush2.bf16.msra.mxu0 0
      %508 = vmatprep.subr.bf16.mxu0 0
      %509 = vmatpush2.bf16.msra.mxu0 0
      %510 = vmatprep.subr.bf16.mxu0 0
      %511 = vmatpush2.bf16.msra.mxu0 0
      %512 = vmatprep.subr.bf16.mxu0 0
      %513 = vmatpush2.bf16.msra.mxu0 0
      %514 = vmatprep.subr.bf16.mxu0 0
      %515 = vmatpush2.bf16.msra.mxu0 0
      %516 = vmatprep.subr.bf16.mxu0 0
      %517 = vmatpush2.bf16.msra.mxu0 0
      %518 = vmatprep.subr.bf16.mxu0 0
      %519 = vmatpush2.bf16.msra.mxu0 0
      %520 = vmatprep.mubr.bf16.mxu0 0
      %521 = vmatmul.mubr.bf16.gmra.mxu0 %v445
      %v522 = vpop.f32.mrf.mxu0
      %v523 = vadd.f32 0.0, %v522
      %v524 = vpop.f32.mrf.mxu0
      %v525 = vpop.f32.mrf.mxu0
      %v526 = vpop.f32.mrf.mxu0
      %527 = vdwg.mxu0
      %v528 = vadd.f32 %v384, %v482
      %v529 = vadd.f32 %v386, %v484
      %v530 = vadd.f32 %v425, %v523
      %s531 = scalar_lea.vmem %s1, 12
      %v532 = vld [vmem:[%s531] sm:$0xf]
      %533 = vrot.lane.b32.xlu0 %v243, 110
      %v534 = vpop.permute.xlu0 %533
      %535 = vrot.lane.b32.xlu0 %v244, 110
      %v536 = vpop.permute.xlu0 %535
      %537 = vrot.lane.b32.xlu0 %v245, 110
      %v538 = vpop.permute.xlu0 %537
      %vm539 = vcmask 900096
      %v540 = vsel %vm539, %v534, %v536
      %v541 = vsel %vm539, %v536, %v538
      %v546 = vsel %vm258, %v532, 0
      %548 = vmatprep.subr.bf16.mxu0 0
      %549 = vmatpush1.bf16.msra.mxu0 0
      %550 = vmatprep.subr.bf16.mxu0 0
      %551 = vmatpush1.bf16.msra.mxu0 0
      %552 = vmatprep.subr.bf16.mxu0 0
      %553 = vmatpush1.bf16.msra.mxu0 0
      %554 = vmatprep.subr.bf16.mxu0 0
      %555 = vmatpush1.bf16.msra.mxu0 0
      %556 = vmatprep.subr.bf16.mxu0 0
      %557 = vmatpush1.bf16.msra.mxu0 0
      %558 = vmatprep.subr.bf16.mxu0 0
      %559 = vmatpush1.bf16.msra.mxu0 0
      %560 = vmatprep.subr.bf16.mxu0 0
      %561 = vmatpush1.bf16.msra.mxu0 0
      %562 = vmatprep.subr.bf16.mxu0 %v541
      %563 = vmatpush1.bf16.msra.mxu0 %v540
      %564 = vmatprep.subr.bf16.mxu0 0
      %565 = vmatpush2.bf16.msra.mxu0 0
      %566 = vmatprep.subr.bf16.mxu0 0
      %567 = vmatpush2.bf16.msra.mxu0 0
      %568 = vmatprep.subr.bf16.mxu0 0
      %569 = vmatpush2.bf16.msra.mxu0 0
      %570 = vmatprep.subr.bf16.mxu0 0
      %571 = vmatpush2.bf16.msra.mxu0 0
      %572 = vmatprep.subr.bf16.mxu0 0
      %573 = vmatpush2.bf16.msra.mxu0 0
      %574 = vmatprep.subr.bf16.mxu0 0
      %575 = vmatpush2.bf16.msra.mxu0 0
      %576 = vmatprep.subr.bf16.mxu0 0
      %577 = vmatpush2.bf16.msra.mxu0 0
      %578 = vmatprep.subr.bf16.mxu0 0
      %579 = vmatpush2.bf16.msra.mxu0 0
      %580 = vmatprep.mubr.bf16.mxu0 0
      %581 = vmatmul.mubr.bf16.gmra.mxu0 %v546
      %v582 = vpop.f32.mrf.mxu0
      %v583 = vadd.f32 0.0, %v582
      %v584 = vpop.f32.mrf.mxu0
      %v585 = vadd.f32 0.0, %v584
      %v586 = vpop.f32.mrf.mxu0
      %v587 = vpop.f32.mrf.mxu0
      %588 = vdwg.mxu0
      %589 = vmatprep.subr.bf16.mxu0 0
      %590 = vmatpush1.bf16.msra.mxu0 0
      %591 = vmatprep.subr.bf16.mxu0 0
      %592 = vmatpush1.bf16.msra.mxu0 0
      %593 = vmatprep.subr.bf16.mxu0 0
      %594 = vmatpush1.bf16.msra.mxu0 0
      %595 = vmatprep.subr.bf16.mxu0 0
      %596 = vmatpush1.bf16.msra.mxu0 0
      %597 = vmatprep.subr.bf16.mxu0 0
      %598 = vmatpush1.bf16.msra.mxu0 0
      %599 = vmatprep.subr.bf16.mxu0 0
      %600 = vmatpush1.bf16.msra.mxu0 0
      %601 = vmatprep.subr.bf16.mxu0 0
      %602 = vmatpush1.bf16.msra.mxu0 0
      %603 = vmatprep.subr.bf16.mxu0 0
      %604 = vmatpush1.bf16.msra.mxu0 %v538
      %605 = vmatprep.subr.bf16.mxu0 0
      %606 = vmatpush2.bf16.msra.mxu0 0
      %607 = vmatprep.subr.bf16.mxu0 0
      %608 = vmatpush2.bf16.msra.mxu0 0
      %609 = vmatprep.subr.bf16.mxu0 0
      %610 = vmatpush2.bf16.msra.mxu0 0
      %611 = vmatprep.subr.bf16.mxu0 0
      %612 = vmatpush2.bf16.msra.mxu0 0
      %613 = vmatprep.subr.bf16.mxu0 0
      %614 = vmatpush2.bf16.msra.mxu0 0
      %615 = vmatprep.subr.bf16.mxu0 0
      %616 = vmatpush2.bf16.msra.mxu0 0
      %617 = vmatprep.subr.bf16.mxu0 0
      %618 = vmatpush2.bf16.msra.mxu0 0
      %619 = vmatprep.subr.bf16.mxu0 0
      %620 = vmatpush2.bf16.msra.mxu0 0
      %621 = vmatprep.mubr.bf16.mxu0 0
      %622 = vmatmul.mubr.bf16.gmra.mxu0 %v546
      %v623 = vpop.f32.mrf.mxu0
      %v624 = vadd.f32 0.0, %v623
      %v625 = vpop.f32.mrf.mxu0
      %v626 = vpop.f32.mrf.mxu0
      %v627 = vpop.f32.mrf.mxu0
      %628 = vdwg.mxu0
      %v629 = vadd.f32 %v528, %v583
      %v630 = vadd.f32 %v529, %v585
      %v631 = vadd.f32 %v530, %v624
      %s632 = scalar_lea.vmem %s1, 16
      %v633 = vld [vmem:[%s632] sm:$0xf]
      %634 = vrot.lane.b32.xlu0 %v243, 109
      %v635 = vpop.permute.xlu0 %634
      %636 = vrot.lane.b32.xlu0 %v244, 109
      %v637 = vpop.permute.xlu0 %636
      %638 = vrot.lane.b32.xlu0 %v245, 109
      %v639 = vpop.permute.xlu0 %638
      %vm640 = vcmask 891904
      %v641 = vsel %vm640, %v635, %v637
      %v642 = vsel %vm640, %v637, %v639
      %v647 = vsel %vm258, %v633, 0
      %649 = vmatprep.subr.bf16.mxu0 0
      %650 = vmatpush1.bf16.msra.mxu0 0
      %651 = vmatprep.subr.bf16.mxu0 0
      %652 = vmatpush1.bf16.msra.mxu0 0
      %653 = vmatprep.subr.bf16.mxu0 0
      %654 = vmatpush1.bf16.msra.mxu0 0
      %655 = vmatprep.subr.bf16.mxu0 0
      %656 = vmatpush1.bf16.msra.mxu0 0
      %657 = vmatprep.subr.bf16.mxu0 0
      %658 = vmatpush1.bf16.msra.mxu0 0
      %659 = vmatprep.subr.bf16.mxu0 0
      %660 = vmatpush1.bf16.msra.mxu0 0
      %661 = vmatprep.subr.bf16.mxu0 0
      %662 = vmatpush1.bf16.msra.mxu0 0
      %663 = vmatprep.subr.bf16.mxu0 %v642
      %664 = vmatpush1.bf16.msra.mxu0 %v641
      %665 = vmatprep.subr.bf16.mxu0 0
      %666 = vmatpush2.bf16.msra.mxu0 0
      %667 = vmatprep.subr.bf16.mxu0 0
      %668 = vmatpush2.bf16.msra.mxu0 0
      %669 = vmatprep.subr.bf16.mxu0 0
      %670 = vmatpush2.bf16.msra.mxu0 0
      %671 = vmatprep.subr.bf16.mxu0 0
      %672 = vmatpush2.bf16.msra.mxu0 0
      %673 = vmatprep.subr.bf16.mxu0 0
      %674 = vmatpush2.bf16.msra.mxu0 0
      %675 = vmatprep.subr.bf16.mxu0 0
      %676 = vmatpush2.bf16.msra.mxu0 0
      %677 = vmatprep.subr.bf16.mxu0 0
      %678 = vmatpush2.bf16.msra.mxu0 0
      %679 = vmatprep.subr.bf16.mxu0 0
      %680 = vmatpush2.bf16.msra.mxu0 0
      %681 = vmatprep.mubr.bf16.mxu0 0
      %682 = vmatmul.mubr.bf16.gmra.mxu0 %v647
      %v683 = vpop.f32.mrf.mxu0
      %v684 = vadd.f32 0.0, %v683
      %v685 = vpop.f32.mrf.mxu0
      %v686 = vadd.f32 0.0, %v685
      %v687 = vpop.f32.mrf.mxu0
      %v688 = vpop.f32.mrf.mxu0
      %689 = vdwg.mxu0
      %690 = vmatprep.subr.bf16.mxu0 0
      %691 = vmatpush1.bf16.msra.mxu0 0
      %692 = vmatprep.subr.bf16.mxu0 0
      %693 = vmatpush1.bf16.msra.mxu0 0
      %694 = vmatprep.subr.bf16.mxu0 0
      %695 = vmatpush1.bf16.msra.mxu0 0
      %696 = vmatprep.subr.bf16.mxu0 0
      %697 = vmatpush1.bf16.msra.mxu0 0
      %698 = vmatprep.subr.bf16.mxu0 0
      %699 = vmatpush1.bf16.msra.mxu0 0
      %700 = vmatprep.subr.bf16.mxu0 0
      %701 = vmatpush1.bf16.msra.mxu0 0
      %702 = vmatprep.subr.bf16.mxu0 0
      %703 = vmatpush1.bf16.msra.mxu0 0
      %704 = vmatprep.subr.bf16.mxu0 0
      %705 = vmatpush1.bf16.msra.mxu0 %v639
      %706 = vmatprep.subr.bf16.mxu0 0
      %707 = vmatpush2.bf16.msra.mxu0 0
      %708 = vmatprep.subr.bf16.mxu0 0
      %709 = vmatpush2.bf16.msra.mxu0 0
      %710 = vmatprep.subr.bf16.mxu0 0
      %711 = vmatpush2.bf16.msra.mxu0 0
      %712 = vmatprep.subr.bf16.mxu0 0
      %713 = vmatpush2.bf16.msra.mxu0 0
      %714 = vmatprep.subr.bf16.mxu0 0
      %715 = vmatpush2.bf16.msra.mxu0 0
      %716 = vmatprep.subr.bf16.mxu0 0
      %717 = vmatpush2.bf16.msra.mxu0 0
      %718 = vmatprep.subr.bf16.mxu0 0
      %719 = vmatpush2.bf16.msra.mxu0 0
      %720 = vmatprep.subr.bf16.mxu0 0
      %721 = vmatpush2.bf16.msra.mxu0 0
      %722 = vmatprep.mubr.bf16.mxu0 0
      %723 = vmatmul.mubr.bf16.gmra.mxu0 %v647
      %v724 = vpop.f32.mrf.mxu0
      %v725 = vadd.f32 0.0, %v724
      %v726 = vpop.f32.mrf.mxu0
      %v727 = vpop.f32.mrf.mxu0
      %v728 = vpop.f32.mrf.mxu0
      %729 = vdwg.mxu0
      %v730 = vadd.f32 %v629, %v684
      %v731 = vadd.f32 %v630, %v686
      %v732 = vadd.f32 %v631, %v725
      %s733 = scalar_lea.vmem %s1, 20
      %v734 = vld [vmem:[%s733] sm:$0xf]
      %735 = vrot.lane.b32.xlu0 %v243, 108
      %v736 = vpop.permute.xlu0 %735
      %737 = vrot.lane.b32.xlu0 %v244, 108
      %v738 = vpop.permute.xlu0 %737
      %739 = vrot.lane.b32.xlu0 %v245, 108
      %v740 = vpop.permute.xlu0 %739
      %vm741 = vcmask 883712
      %v742 = vsel %vm741, %v736, %v738
      %v743 = vsel %vm741, %v738, %v740
      %v748 = vsel %vm258, %v734, 0
      %750 = vmatprep.subr.bf16.mxu0 0
      %751 = vmatpush1.bf16.msra.mxu0 0
      %752 = vmatprep.subr.bf16.mxu0 0
      %753 = vmatpush1.bf16.msra.mxu0 0
      %754 = vmatprep.subr.bf16.mxu0 0
      %755 = vmatpush1.bf16.msra.mxu0 0
      %756 = vmatprep.subr.bf16.mxu0 0
      %757 = vmatpush1.bf16.msra.mxu0 0
      %758 = vmatprep.subr.bf16.mxu0 0
      %759 = vmatpush1.bf16.msra.mxu0 0
      %760 = vmatprep.subr.bf16.mxu0 0
      %761 = vmatpush1.bf16.msra.mxu0 0
      %762 = vmatprep.subr.bf16.mxu0 0
      %763 = vmatpush1.bf16.msra.mxu0 0
      %764 = vmatprep.subr.bf16.mxu0 %v743
      %765 = vmatpush1.bf16.msra.mxu0 %v742
      %766 = vmatprep.subr.bf16.mxu0 0
      %767 = vmatpush2.bf16.msra.mxu0 0
      %768 = vmatprep.subr.bf16.mxu0 0
      %769 = vmatpush2.bf16.msra.mxu0 0
      %770 = vmatprep.subr.bf16.mxu0 0
      %771 = vmatpush2.bf16.msra.mxu0 0
      %772 = vmatprep.subr.bf16.mxu0 0
      %773 = vmatpush2.bf16.msra.mxu0 0
      %774 = vmatprep.subr.bf16.mxu0 0
      %775 = vmatpush2.bf16.msra.mxu0 0
      %776 = vmatprep.subr.bf16.mxu0 0
      %777 = vmatpush2.bf16.msra.mxu0 0
      %778 = vmatprep.subr.bf16.mxu0 0
      %779 = vmatpush2.bf16.msra.mxu0 0
      %780 = vmatprep.subr.bf16.mxu0 0
      %781 = vmatpush2.bf16.msra.mxu0 0
      %782 = vmatprep.mubr.bf16.mxu0 0
      %783 = vmatmul.mubr.bf16.gmra.mxu0 %v748
      %v784 = vpop.f32.mrf.mxu0
      %v785 = vadd.f32 0.0, %v784
      %v786 = vpop.f32.mrf.mxu0
      %v787 = vadd.f32 0.0, %v786
      %v788 = vpop.f32.mrf.mxu0
      %v789 = vpop.f32.mrf.mxu0
      %790 = vdwg.mxu0
      %791 = vmatprep.subr.bf16.mxu0 0
      %792 = vmatpush1.bf16.msra.mxu0 0
      %793 = vmatprep.subr.bf16.mxu0 0
      %794 = vmatpush1.bf16.msra.mxu0 0
      %795 = vmatprep.subr.bf16.mxu0 0
      %796 = vmatpush1.bf16.msra.mxu0 0
      %797 = vmatprep.subr.bf16.mxu0 0
      %798 = vmatpush1.bf16.msra.mxu0 0
      %799 = vmatprep.subr.bf16.mxu0 0
      %800 = vmatpush1.bf16.msra.mxu0 0
      %801 = vmatprep.subr.bf16.mxu0 0
      %802 = vmatpush1.bf16.msra.mxu0 0
      %803 = vmatprep.subr.bf16.mxu0 0
      %804 = vmatpush1.bf16.msra.mxu0 0
      %805 = vmatprep.subr.bf16.mxu0 0
      %806 = vmatpush1.bf16.msra.mxu0 %v740
      %807 = vmatprep.subr.bf16.mxu0 0
      %808 = vmatpush2.bf16.msra.mxu0 0
      %809 = vmatprep.subr.bf16.mxu0 0
      %810 = vmatpush2.bf16.msra.mxu0 0
      %811 = vmatprep.subr.bf16.mxu0 0
      %812 = vmatpush2.bf16.msra.mxu0 0
      %813 = vmatprep.subr.bf16.mxu0 0
      %814 = vmatpush2.bf16.msra.mxu0 0
      %815 = vmatprep.subr.bf16.mxu0 0
      %816 = vmatpush2.bf16.msra.mxu0 0
      %817 = vmatprep.subr.bf16.mxu0 0
      %818 = vmatpush2.bf16.msra.mxu0 0
      %819 = vmatprep.subr.bf16.mxu0 0
      %820 = vmatpush2.bf16.msra.mxu0 0
      %821 = vmatprep.subr.bf16.mxu0 0
      %822 = vmatpush2.bf16.msra.mxu0 0
      %823 = vmatprep.mubr.bf16.mxu0 0
      %824 = vmatmul.mubr.bf16.gmra.mxu0 %v748
      %v825 = vpop.f32.mrf.mxu0
      %v826 = vadd.f32 0.0, %v825
      %v827 = vpop.f32.mrf.mxu0
      %v828 = vpop.f32.mrf.mxu0
      %v829 = vpop.f32.mrf.mxu0
      %830 = vdwg.mxu0
      %v831 = vadd.f32 %v730, %v785
      %v832 = vadd.f32 %v731, %v787
      %v833 = vadd.f32 %v732, %v826
      %s834 = scalar_lea.vmem %s1, 24
      %v835 = vld [vmem:[%s834] sm:$0xf]
      %836 = vrot.lane.b32.xlu0 %v243, 92
      %v837 = vpop.permute.xlu0 %836
      %838 = vrot.lane.b32.xlu0 %v244, 92
      %v839 = vpop.permute.xlu0 %838
      %840 = vrot.lane.b32.xlu0 %v245, 92
      %v841 = vpop.permute.xlu0 %840
      %vm842 = vcmask 752640
      %v843 = vsel %vm842, %v837, %v839
      %v844 = vsel %vm842, %v839, %v841
      %v849 = vsel %vm258, %v835, 0
      %851 = vmatprep.subr.bf16.mxu0 0
      %852 = vmatpush1.bf16.msra.mxu0 0
      %853 = vmatprep.subr.bf16.mxu0 0
      %854 = vmatpush1.bf16.msra.mxu0 0
      %855 = vmatprep.subr.bf16.mxu0 0
      %856 = vmatpush1.bf16.msra.mxu0 0
      %857 = vmatprep.subr.bf16.mxu0 0
      %858 = vmatpush1.bf16.msra.mxu0 0
      %859 = vmatprep.subr.bf16.mxu0 0
      %860 = vmatpush1.bf16.msra.mxu0 0
      %861 = vmatprep.subr.bf16.mxu0 0
      %862 = vmatpush1.bf16.msra.mxu0 0
      %863 = vmatprep.subr.bf16.mxu0 0
      %864 = vmatpush1.bf16.msra.mxu0 0
      %865 = vmatprep.subr.bf16.mxu0 %v844
      %866 = vmatpush1.bf16.msra.mxu0 %v843
      %867 = vmatprep.subr.bf16.mxu0 0
      %868 = vmatpush2.bf16.msra.mxu0 0
      %869 = vmatprep.subr.bf16.mxu0 0
      %870 = vmatpush2.bf16.msra.mxu0 0
      %871 = vmatprep.subr.bf16.mxu0 0
      %872 = vmatpush2.bf16.msra.mxu0 0
      %873 = vmatprep.subr.bf16.mxu0 0
      %874 = vmatpush2.bf16.msra.mxu0 0
      %875 = vmatprep.subr.bf16.mxu0 0
      %876 = vmatpush2.bf16.msra.mxu0 0
      %877 = vmatprep.subr.bf16.mxu0 0
      %878 = vmatpush2.bf16.msra.mxu0 0
      %879 = vmatprep.subr.bf16.mxu0 0
      %880 = vmatpush2.bf16.msra.mxu0 0
      %881 = vmatprep.subr.bf16.mxu0 0
      %882 = vmatpush2.bf16.msra.mxu0 0
      %883 = vmatprep.mubr.bf16.mxu0 0
      %884 = vmatmul.mubr.bf16.gmra.mxu0 %v849
      %v885 = vpop.f32.mrf.mxu0
      %v886 = vadd.f32 0.0, %v885
      %v887 = vpop.f32.mrf.mxu0
      %v888 = vadd.f32 0.0, %v887
      %v889 = vpop.f32.mrf.mxu0
      %v890 = vpop.f32.mrf.mxu0
      %891 = vdwg.mxu0
      %892 = vmatprep.subr.bf16.mxu0 0
      %893 = vmatpush1.bf16.msra.mxu0 0
      %894 = vmatprep.subr.bf16.mxu0 0
      %895 = vmatpush1.bf16.msra.mxu0 0
      %896 = vmatprep.subr.bf16.mxu0 0
      %897 = vmatpush1.bf16.msra.mxu0 0
      %898 = vmatprep.subr.bf16.mxu0 0
      %899 = vmatpush1.bf16.msra.mxu0 0
      %900 = vmatprep.subr.bf16.mxu0 0
      %901 = vmatpush1.bf16.msra.mxu0 0
      %902 = vmatprep.subr.bf16.mxu0 0
      %903 = vmatpush1.bf16.msra.mxu0 0
      %904 = vmatprep.subr.bf16.mxu0 0
      %905 = vmatpush1.bf16.msra.mxu0 0
      %906 = vmatprep.subr.bf16.mxu0 0
      %907 = vmatpush1.bf16.msra.mxu0 %v841
      %908 = vmatprep.subr.bf16.mxu0 0
      %909 = vmatpush2.bf16.msra.mxu0 0
      %910 = vmatprep.subr.bf16.mxu0 0
      %911 = vmatpush2.bf16.msra.mxu0 0
      %912 = vmatprep.subr.bf16.mxu0 0
      %913 = vmatpush2.bf16.msra.mxu0 0
      %914 = vmatprep.subr.bf16.mxu0 0
      %915 = vmatpush2.bf16.msra.mxu0 0
      %916 = vmatprep.subr.bf16.mxu0 0
      %917 = vmatpush2.bf16.msra.mxu0 0
      %918 = vmatprep.subr.bf16.mxu0 0
      %919 = vmatpush2.bf16.msra.mxu0 0
      %920 = vmatprep.subr.bf16.mxu0 0
      %921 = vmatpush2.bf16.msra.mxu0 0
      %922 = vmatprep.subr.bf16.mxu0 0
      %923 = vmatpush2.bf16.msra.mxu0 0
      %924 = vmatprep.mubr.bf16.mxu0 0
      %925 = vmatmul.mubr.bf16.gmra.mxu0 %v849
      %v926 = vpop.f32.mrf.mxu0
      %v927 = vadd.f32 0.0, %v926
      %v928 = vpop.f32.mrf.mxu0
      %v929 = vpop.f32.mrf.mxu0
      %v930 = vpop.f32.mrf.mxu0
      %931 = vdwg.mxu0
      %v932 = vadd.f32 %v831, %v886
      %v933 = vadd.f32 %v832, %v888
      %v934 = vadd.f32 %v833, %v927
      %s935 = scalar_lea.vmem %s1, 28
      %v936 = vld [vmem:[%s935] sm:$0xf]
      %937 = vrot.lane.b32.xlu0 %v243, 91
      %v938 = vpop.permute.xlu0 %937
      %939 = vrot.lane.b32.xlu0 %v244, 91
      %v940 = vpop.permute.xlu0 %939
      %941 = vrot.lane.b32.xlu0 %v245, 91
      %v942 = vpop.permute.xlu0 %941
      %vm943 = vcmask 744448
      %v944 = vsel %vm943, %v938, %v940
      %v945 = vsel %vm943, %v940, %v942
      %v950 = vsel %vm258, %v936, 0
      %952 = vmatprep.subr.bf16.mxu0 0
      %953 = vmatpush1.bf16.msra.mxu0 0
      %954 = vmatprep.subr.bf16.mxu0 0
      %955 = vmatpush1.bf16.msra.mxu0 0
      %956 = vmatprep.subr.bf16.mxu0 0
      %957 = vmatpush1.bf16.msra.mxu0 0
      %958 = vmatprep.subr.bf16.mxu0 0
      %959 = vmatpush1.bf16.msra.mxu0 0
      %960 = vmatprep.subr.bf16.mxu0 0
      %961 = vmatpush1.bf16.msra.mxu0 0
      %962 = vmatprep.subr.bf16.mxu0 0
      %963 = vmatpush1.bf16.msra.mxu0 0
      %964 = vmatprep.subr.bf16.mxu0 0
      %965 = vmatpush1.bf16.msra.mxu0 0
      %966 = vmatprep.subr.bf16.mxu0 %v945
      %967 = vmatpush1.bf16.msra.mxu0 %v944
      %968 = vmatprep.subr.bf16.mxu0 0
      %969 = vmatpush2.bf16.msra.mxu0 0
      %970 = vmatprep.subr.bf16.mxu0 0
      %971 = vmatpush2.bf16.msra.mxu0 0
      %972 = vmatprep.subr.bf16.mxu0 0
      %973 = vmatpush2.bf16.msra.mxu0 0
      %974 = vmatprep.subr.bf16.mxu0 0
      %975 = vmatpush2.bf16.msra.mxu0 0
      %976 = vmatprep.subr.bf16.mxu0 0
      %977 = vmatpush2.bf16.msra.mxu0 0
      %978 = vmatprep.subr.bf16.mxu0 0
      %979 = vmatpush2.bf16.msra.mxu0 0
      %980 = vmatprep.subr.bf16.mxu0 0
      %981 = vmatpush2.bf16.msra.mxu0 0
      %982 = vmatprep.subr.bf16.mxu0 0
      %983 = vmatpush2.bf16.msra.mxu0 0
      %984 = vmatprep.mubr.bf16.mxu0 0
      %985 = vmatmul.mubr.bf16.gmra.mxu0 %v950
      %v986 = vpop.f32.mrf.mxu0
      %v987 = vadd.f32 0.0, %v986
      %v988 = vpop.f32.mrf.mxu0
      %v989 = vadd.f32 0.0, %v988
      %v990 = vpop.f32.mrf.mxu0
      %v991 = vpop.f32.mrf.mxu0
      %992 = vdwg.mxu0
      %993 = vmatprep.subr.bf16.mxu0 0
      %994 = vmatpush1.bf16.msra.mxu0 0
      %995 = vmatprep.subr.bf16.mxu0 0
      %996 = vmatpush1.bf16.msra.mxu0 0
      %997 = vmatprep.subr.bf16.mxu0 0
      %998 = vmatpush1.bf16.msra.mxu0 0
      %999 = vmatprep.subr.bf16.mxu0 0
      %1000 = vmatpush1.bf16.msra.mxu0 0
      %1001 = vmatprep.subr.bf16.mxu0 0
      %1002 = vmatpush1.bf16.msra.mxu0 0
      %1003 = vmatprep.subr.bf16.mxu0 0
      %1004 = vmatpush1.bf16.msra.mxu0 0
      %1005 = vmatprep.subr.bf16.mxu0 0
      %1006 = vmatpush1.bf16.msra.mxu0 0
      %1007 = vmatprep.subr.bf16.mxu0 0
      %1008 = vmatpush1.bf16.msra.mxu0 %v942
      %1009 = vmatprep.subr.bf16.mxu0 0
      %1010 = vmatpush2.bf16.msra.mxu0 0
      %1011 = vmatprep.subr.bf16.mxu0 0
      %1012 = vmatpush2.bf16.msra.mxu0 0
      %1013 = vmatprep.subr.bf16.mxu0 0
      %1014 = vmatpush2.bf16.msra.mxu0 0
      %1015 = vmatprep.subr.bf16.mxu0 0
      %1016 = vmatpush2.bf16.msra.mxu0 0
      %1017 = vmatprep.subr.bf16.mxu0 0
      %1018 = vmatpush2.bf16.msra.mxu0 0
      %1019 = vmatprep.subr.bf16.mxu0 0
      %1020 = vmatpush2.bf16.msra.mxu0 0
      %1021 = vmatprep.subr.bf16.mxu0 0
      %1022 = vmatpush2.bf16.msra.mxu0 0
      %1023 = vmatprep.subr.bf16.mxu0 0
      %1024 = vmatpush2.bf16.msra.mxu0 0
      %1025 = vmatprep.mubr.bf16.mxu0 0
      %1026 = vmatmul.mubr.bf16.gmra.mxu0 %v950
      %v1027 = vpop.f32.mrf.mxu0
      %v1028 = vadd.f32 0.0, %v1027
      %v1029 = vpop.f32.mrf.mxu0
      %v1030 = vpop.f32.mrf.mxu0
      %v1031 = vpop.f32.mrf.mxu0
      %1032 = vdwg.mxu0
      %v1033 = vadd.f32 %v932, %v987
      %v1034 = vadd.f32 %v933, %v989
      %v1035 = vadd.f32 %v934, %v1028
      %s1036 = scalar_lea.vmem %s1, 32
      %v1037 = vld [vmem:[%s1036] sm:$0xf]
      %1038 = vrot.lane.b32.xlu0 %v243, 90
      %v1039 = vpop.permute.xlu0 %1038
      %1040 = vrot.lane.b32.xlu0 %v244, 90
      %v1041 = vpop.permute.xlu0 %1040
      %1042 = vrot.lane.b32.xlu0 %v245, 90
      %v1043 = vpop.permute.xlu0 %1042
      %vm1044 = vcmask 736256
      %v1045 = vsel %vm1044, %v1039, %v1041
      %v1046 = vsel %vm1044, %v1041, %v1043
      %v1051 = vsel %vm258, %v1037, 0
      %1053 = vmatprep.subr.bf16.mxu0 0
      %1054 = vmatpush1.bf16.msra.mxu0 0
      %1055 = vmatprep.subr.bf16.mxu0 0
      %1056 = vmatpush1.bf16.msra.mxu0 0
      %1057 = vmatprep.subr.bf16.mxu0 0
      %1058 = vmatpush1.bf16.msra.mxu0 0
      %1059 = vmatprep.subr.bf16.mxu0 0
      %1060 = vmatpush1.bf16.msra.mxu0 0
      %1061 = vmatprep.subr.bf16.mxu0 0
      %1062 = vmatpush1.bf16.msra.mxu0 0
      %1063 = vmatprep.subr.bf16.mxu0 0
      %1064 = vmatpush1.bf16.msra.mxu0 0
      %1065 = vmatprep.subr.bf16.mxu0 0
      %1066 = vmatpush1.bf16.msra.mxu0 0
      %1067 = vmatprep.subr.bf16.mxu0 %v1046
      %1068 = vmatpush1.bf16.msra.mxu0 %v1045
      %1069 = vmatprep.subr.bf16.mxu0 0
      %1070 = vmatpush2.bf16.msra.mxu0 0
      %1071 = vmatprep.subr.bf16.mxu0 0
      %1072 = vmatpush2.bf16.msra.mxu0 0
      %1073 = vmatprep.subr.bf16.mxu0 0
      %1074 = vmatpush2.bf16.msra.mxu0 0
      %1075 = vmatprep.subr.bf16.mxu0 0
      %1076 = vmatpush2.bf16.msra.mxu0 0
      %1077 = vmatprep.subr.bf16.mxu0 0
      %1078 = vmatpush2.bf16.msra.mxu0 0
      %1079 = vmatprep.subr.bf16.mxu0 0
      %1080 = vmatpush2.bf16.msra.mxu0 0
      %1081 = vmatprep.subr.bf16.mxu0 0
      %1082 = vmatpush2.bf16.msra.mxu0 0
      %1083 = vmatprep.subr.bf16.mxu0 0
      %1084 = vmatpush2.bf16.msra.mxu0 0
      %1085 = vmatprep.mubr.bf16.mxu0 0
      %1086 = vmatmul.mubr.bf16.gmra.mxu0 %v1051
      %v1087 = vpop.f32.mrf.mxu0
      %v1088 = vadd.f32 0.0, %v1087
      %v1089 = vpop.f32.mrf.mxu0
      %v1090 = vadd.f32 0.0, %v1089
      %v1091 = vpop.f32.mrf.mxu0
      %v1092 = vpop.f32.mrf.mxu0
      %1093 = vdwg.mxu0
      %1094 = vmatprep.subr.bf16.mxu0 0
      %1095 = vmatpush1.bf16.msra.mxu0 0
      %1096 = vmatprep.subr.bf16.mxu0 0
      %1097 = vmatpush1.bf16.msra.mxu0 0
      %1098 = vmatprep.subr.bf16.mxu0 0
      %1099 = vmatpush1.bf16.msra.mxu0 0
      %1100 = vmatprep.subr.bf16.mxu0 0
      %1101 = vmatpush1.bf16.msra.mxu0 0
      %1102 = vmatprep.subr.bf16.mxu0 0
      %1103 = vmatpush1.bf16.msra.mxu0 0
      %1104 = vmatprep.subr.bf16.mxu0 0
      %1105 = vmatpush1.bf16.msra.mxu0 0
      %1106 = vmatprep.subr.bf16.mxu0 0
      %1107 = vmatpush1.bf16.msra.mxu0 0
      %1108 = vmatprep.subr.bf16.mxu0 0
      %1109 = vmatpush1.bf16.msra.mxu0 %v1043
      %1110 = vmatprep.subr.bf16.mxu0 0
      %1111 = vmatpush2.bf16.msra.mxu0 0
      %1112 = vmatprep.subr.bf16.mxu0 0
      %1113 = vmatpush2.bf16.msra.mxu0 0
      %1114 = vmatprep.subr.bf16.mxu0 0
      %1115 = vmatpush2.bf16.msra.mxu0 0
      %1116 = vmatprep.subr.bf16.mxu0 0
      %1117 = vmatpush2.bf16.msra.mxu0 0
      %1118 = vmatprep.subr.bf16.mxu0 0
      %1119 = vmatpush2.bf16.msra.mxu0 0
      %1120 = vmatprep.subr.bf16.mxu0 0
      %1121 = vmatpush2.bf16.msra.mxu0 0
      %1122 = vmatprep.subr.bf16.mxu0 0
      %1123 = vmatpush2.bf16.msra.mxu0 0
      %1124 = vmatprep.subr.bf16.mxu0 0
      %1125 = vmatpush2.bf16.msra.mxu0 0
      %1126 = vmatprep.mubr.bf16.mxu0 0
      %1127 = vmatmul.mubr.bf16.gmra.mxu0 %v1051
      %v1128 = vpop.f32.mrf.mxu0
      %v1129 = vadd.f32 0.0, %v1128
      %v1130 = vpop.f32.mrf.mxu0
      %v1131 = vpop.f32.mrf.mxu0
      %v1132 = vpop.f32.mrf.mxu0
      %1133 = vdwg.mxu0
      %v1134 = vadd.f32 %v1033, %v1088
      %v1135 = vadd.f32 %v1034, %v1090
      %v1136 = vadd.f32 %v1035, %v1129
      %v1137 = vld [vmem:[%s4] sm:$0x7]
      %v1139 = vlaneseq
      %v1140 = vshrl.u32 %v1139, 7
      %v1141 = vsub.s32 0, %v1140
      %v1142 = vrot.slane %v1137, %v1141
      %v1143 = vlaneseq
      %v1144 = vshrl.u32 %v1143, 7
      %v1145 = vsub.s32 1, %v1144
      %v1146 = vrot.slane %v1137, %v1145
      %v1147 = vlaneseq
      %v1148 = vshrl.u32 %v1147, 7
      %v1149 = vsub.s32 2, %v1148
      %v1150 = vrot.slane %v1137, %v1149
      %v1154 = vmul.f32 %v1134, %v1142
      %v1155 = vmul.f32 %v1135, %v1146
      %v1156 = vmul.f32 %v1136, %v1150
      %v1157 = vadd.f32 %v1154, %v1155
      %vm1158 = vcmask 244736
      %v1159 = vsel %vm1158, %v1156, 0.0
      %v1160 = vadd.f32 %v1157, %v1159
      %1161 = vadd.xlane.f32.xlu0 %v1160
      %v1162 = vpop.xlane.xlu0 %1161
      %v1163 = vrot.slane %v1162, 4
      %v1164 = vadd.f32 %v1162, %v1163
      %v1165 = vrot.slane %v1164, 2
      %v1166 = vadd.f32 %v1164, %v1165
      %v1167 = vrot.slane %v1166, 1
      %v1168 = vadd.f32 %v1166, %v1167
      %s1169 = vtos %v1168
      %v1170 = vstv %s1169
      %v1171 = vmul.f32 %v1170, 0.00048828125
      %v1172 = vsub.f32 %v1134, %v1171
      %v1173 = vsub.f32 %v1135, %v1171
      %v1174 = vsub.f32 %v1136, %v1171
      %v1175 = vmul.f32 %v1172, %v1172
      %v1176 = vmul.f32 %v1173, %v1173
      %v1177 = vmul.f32 %v1174, %v1174
      %v1178 = vmul.f32 %v1175, %v1142
      %v1179 = vmul.f32 %v1176, %v1146
      %v1180 = vmul.f32 %v1177, %v1150
      %v1181 = vadd.f32 %v1178, %v1179
      %v1182 = vsel %vm1158, %v1180, 0.0
      %v1183 = vadd.f32 %v1181, %v1182
      %1184 = vadd.xlane.f32.xlu0 %v1183
      %v1185 = vpop.xlane.xlu0 %1184
      %v1186 = vrot.slane %v1185, 4
      %v1187 = vadd.f32 %v1185, %v1186
      %v1188 = vrot.slane %v1187, 2
      %v1189 = vadd.f32 %v1187, %v1188
      %v1190 = vrot.slane %v1189, 1
      %v1191 = vadd.f32 %v1189, %v1190
      %s1192 = vtos %v1191
      %v1193 = vstv %s1192
      %v1194 = vmul.f32 %v1193, 0.00048828125
      %v1195 = vadd.f32 %v1194, 1e-05
      %v1196 = vrsqrt.pop %v1195
      %v1197 = vmul.f32 %v1172, %v1196
      %v1198 = vmul.f32 %v1173, %v1196
      %v1199 = vmul.f32 %v1174, %v1196
      %v1200 = vld [vmem:[%s2] sm:$0xff]
      %1202 = vset.pattern.permute.xlu0 0
      %1203 = vperm.xlu0 %1202, %v1200
      %v1204 = vpop.permute.xlu0 %1203
      %v1206 = vmul.f32 %v1197, %v1204
      %v1207 = vmul.f32 %v1198, %v1204
      %v1208 = vmul.f32 %v1199, %v1204
      %v1209 = vld [vmem:[%s3] sm:$0xff]
      %1211 = vset.pattern.permute.xlu0 0
      %1212 = vperm.xlu0 %1211, %v1209
      %v1213 = vpop.permute.xlu0 %1212
      %v1215 = vadd.f32 %v1206, %v1213
      %v1216 = vadd.f32 %v1207, %v1213
      %v1217 = vadd.f32 %v1208, %v1213
      %v1218 = vmul.f32 %v1215, 0.5
      %v1219 = vmul.f32 %v1216, 0.5
      %v1220 = vmul.f32 %v1217, 0.5
      %v1221 = vmul.f32 %v1215, 0.70710677
      %v1222 = vmul.f32 %v1216, 0.70710677
      %v1223 = vmul.f32 %v1217, 0.70710677
      %vm1224 = vcmp.ge.f32.partialorder %v1221, 0.0
      %vm1225 = vcmp.ge.f32.partialorder %v1222, 0.0
      %vm1226 = vcmp.ge.f32.partialorder %v1223, 0.0
      %v1227 = vsel %vm1224, 1.0, -1.0
      %v1228 = vsel %vm1225, 1.0, -1.0
      %v1229 = vsel %vm1226, 1.0, -1.0
      %v1230 = vmul.f32 %v1221, %v1227
      %v1231 = vmul.f32 %v1222, %v1228
      %v1232 = vmul.f32 %v1223, %v1229
      %v1233 = vmul.f32 %v1230, 0.3275911
      %v1234 = vmul.f32 %v1231, 0.3275911
      %v1235 = vmul.f32 %v1232, 0.3275911
      %v1236 = vadd.f32 %v1233, 1.0
      %v1237 = vadd.f32 %v1234, 1.0
      %v1238 = vadd.f32 %v1235, 1.0
      %v1239 = vrcp.pop %v1236
      %v1240 = vmul.f32 1.0, %v1239
      %v1241 = vrcp.pop %v1237
      %v1242 = vmul.f32 1.0, %v1241
      %v1243 = vrcp.pop %v1238
      %v1244 = vmul.f32 1.0, %v1243
      %v1245 = vmul.f32 %v1240, 1.0614054
      %v1246 = vmul.f32 %v1242, 1.0614054
      %v1247 = vmul.f32 %v1244, 1.0614054
      %v1248 = vadd.f32 %v1245, -1.4531521
      %v1249 = vadd.f32 %v1246, -1.4531521
      %v1250 = vadd.f32 %v1247, -1.4531521
      %v1251 = vmul.f32 %v1248, %v1240
      %v1252 = vmul.f32 %v1249, %v1242
      %v1253 = vmul.f32 %v1250, %v1244
      %v1254 = vadd.f32 %v1251, 1.4214138
      %v1255 = vadd.f32 %v1252, 1.4214138
      %v1256 = vadd.f32 %v1253, 1.4214138
      %v1257 = vmul.f32 %v1254, %v1240
      %v1258 = vmul.f32 %v1255, %v1242
      %v1259 = vmul.f32 %v1256, %v1244
      %v1260 = vadd.f32 %v1257, -0.28449672
      %v1261 = vadd.f32 %v1258, -0.28449672
      %v1262 = vadd.f32 %v1259, -0.28449672
      %v1263 = vmul.f32 %v1260, %v1240
      %v1264 = vmul.f32 %v1261, %v1242
      %v1265 = vmul.f32 %v1262, %v1244
      %v1266 = vadd.f32 %v1263, 0.2548296
      %v1267 = vadd.f32 %v1264, 0.2548296
      %v1268 = vadd.f32 %v1265, 0.2548296
      %v1269 = vmul.f32 %v1266, %v1240
      %v1270 = vmul.f32 %v1267, %v1242
      %v1271 = vmul.f32 %v1268, %v1244
      %v1272 = vsub.f32 0.0, %v1230
      %v1273 = vsub.f32 0.0, %v1231
      %v1274 = vsub.f32 0.0, %v1232
      %v1275 = vmul.f32 %v1272, %v1230
      %v1276 = vmul.f32 %v1273, %v1231
      %v1277 = vmul.f32 %v1274, %v1232
      %v1278 = vmul.f32 %v1275, 1.442695
      %v1279 = vpow.pop %v1278
      %v1280 = vmul.f32 %v1276, 1.442695
      %v1281 = vpow.pop %v1280
      %v1282 = vmul.f32 %v1277, 1.442695
      %v1283 = vpow.pop %v1282
      %v1284 = vmul.f32 %v1269, %v1279
      %v1285 = vmul.f32 %v1270, %v1281
      %v1286 = vmul.f32 %v1271, %v1283
      %v1287 = vsub.f32 1.0, %v1284
      %v1288 = vsub.f32 1.0, %v1285
      %v1289 = vsub.f32 1.0, %v1286
      %v1290 = vmul.f32 %v1227, %v1287
      %v1291 = vmul.f32 %v1228, %v1288
      %v1292 = vmul.f32 %v1229, %v1289
      %v1293 = vadd.f32 %v1290, 1.0
      %v1294 = vadd.f32 %v1291, 1.0
      %v1295 = vadd.f32 %v1292, 1.0
      %v1296 = vmul.f32 %v1218, %v1293
      %v1297 = vmul.f32 %v1219, %v1294
      %v1298 = vmul.f32 %v1220, %v1295
      %v1299 = vmul.f32 %v1296, %v1142
      %v1300 = vmul.f32 %v1297, %v1146
      %v1301 = vmul.f32 %v1298, %v1150
      %1302 = vst [vmem:[%s224] sm:$0xff] 0
      %vm1303 = vcmask 551936
      %1304 = vst.msk [vmem:[%s224 + $0x8] sm:$0xf] %vm1303, 0
      %v1305 = vpack.c.bf16 %v1299, %v1299
      %v1306 = vpack.c.bf16 %v1300, %v1300
      %v1307 = vpack.c.bf16 %v1301, %v1301
      %v1311 = vunpack.c.l.b16 %v1305
      %v1312 = vunpack.c.l.b16 %v1306
      %v1313 = vunpack.c.l.b16 %v1307
      %v1314 = vpack.c.b16 %v1312, %v1311
      %v1315 = vpack.c.b16 %v1313, %v1313
      %1316 = vrot.lane.b32.xlu0 %v1314, 19
      %v1317 = vpop.permute.xlu0 %1316
      %1318 = vrot.lane.b32.xlu0 %v1315, 19
      %v1319 = vpop.permute.xlu0 %1318
      %v1320 = vrot.slane %v1317, 4
      %vm1321 = vcmask 154624
      %v1322 = vsel %vm1321, %v1320, %v1317
      %v1323 = vsel %vm1321, %v1320, %v1319
      %vm1326 = vcmask 1043608
      %vm1327 = vcmask 1047556
      %vm1328 = vmor %vm1327, %vm1326
      %1329 = vst.msk [vmem:[%s224] sm:$0xff] %vm1328, %v1322
      %vm1330 = vcmask 396288
      %1331 = vst.msk [vmem:[%s224 + $0x8] sm:$0xf] %vm1330, %v1323
      %p1332 = scmp.lt.s32.totalorder %s16, 1
      %s1333 = scalar_select %p1332, %s16, 1
      %s1334 = smul.addr %s1333, 3
      %s1335 = smul.addr %s1334, 4
      %s1336 = scalar_lea.vmem %s5, %s1335
      // Predicated region
      $region41: #{upscaler_forward.9} parent=39 // pred_check
        %p1337 = pneg %p144
      $region42: #{upscaler_forward.9} parent=39 // pred_check_branch
        %1339 = sbr.rel (%p1337) target = $region44
      $region43: #{upscaler_forward.9} parent=39 // pred_region
        _
      $region44: #{upscaler_forward.9} parent=39 // pred_fallthru
        _
    $region40: #{upscaler_forward.9} parent=5 // pred_fallthru
      _
    %p1340 = scmp.le.s32.totalorder 2, %s11
    // Predicated region
    $region45: #{upscaler_forward.9} parent=5 // pred_check
      %p1341 = pneg %p1340
    $region46: #{upscaler_forward.9} parent=5 // pred_check_branch
      %1343 = sbr.rel (%p1341) target = $region48
    $region47: #{upscaler_forward.9} parent=5 // pred_region
      %s1344 = ssub.s32 %s11, 2
      // Predicated region
      $region49: #{upscaler_forward.9} parent=47 // pred_check
        %p1345 = pneg %p150
      $region50: #{upscaler_forward.9} parent=47 // pred_check_branch
        %1347 = sbr.rel (%p1345) target = $region52
      $region51: #{upscaler_forward.9} parent=47 // pred_region
        %p1348 = scmp.lt.s32.totalorder %s17, 1
        %s1349 = scalar_select %p1348, %s17, 1
        %s1350 = smul.addr %s1349, 3
        %s1351 = smul.addr %s1350, 4
        %s1352 = scalar_lea.vmem %s5, %s1351
      $region52: #{upscaler_forward.9} parent=47 // pred_fallthru
        _
    $region48: #{upscaler_forward.9} parent=5 // pred_fallthru
      _
  $region6: #{upscaler_forward.9} parent=0 // loop_footer
    %s15 = sadd.s32 1, %s11
  $region7: #{upscaler_forward.9} parent=0 // loop_footer_branch
    %10 = sbr.rel target = $region3
  $region8: #{upscaler_forward.9} parent=0 // loop_exit
    _

// kernel: upscaler_forward.11
$region0: #{upscaler_forward.11}
  #allocation0 [shape = 'u32[]', space=smem, size = 0x4, offset = 0x4, fixed_abs, tag = 'smem constant byte address 0x4 - core index']
  #allocation1 [shape = 'u32[144,128]{1,0:T(1,128)}', space=vmem, size = 0x12000, scoped, tag = 'internal scratch']
  %s0 = inlined_call_operand.vmem [shape: bf16[2,8,324], index: 0, kind: input, shape index: {}]
  %s1 = inlined_call_operand.vmem [shape: bf16[9,8,8], index: 1, kind: input, shape index: {}]
  %s2 = inlined_call_operand.vmem [shape: f32[8,1], index: 2, kind: input, shape index: {}]
  %s3 = inlined_call_operand.vmem [shape: f32[8,1], index: 3, kind: input, shape index: {}]
  %s4 = inlined_call_operand.vmem [shape: f32[1,286], index: 4, kind: input, shape index: {}]
  %s5 = inlined_call_operand.vmem [shape: f32[2,8,1], index: 5, kind: input, shape index: {}]
  %s6 = inlined_call_operand.vmem [shape: f32[2,8,324], index: 6, kind: output, shape index: {}]
  %s7 = sld [smem:[#allocation0]]
  $region57: #{upscaler_forward.11} parent=0
    _
  %s9 = ssub.s32 1, %s7
  %s10 = scalar_select 0, %s9, %s7
  loop: start=0, step=1, limit=4
  $region2: #{upscaler_forward.11} parent=0 // loop_pre_header
    _
  $region3: #{upscaler_forward.11} parent=0 // loop_header
    %s12 = sphi 0, %s16
    %p13 = scmp.ge.s32.totalorder %s12, 4
    %s22 = sphi 0, %s24
    %s25 = sphi 0, %s22
    %s26 = sphi 0, %s25
    %s42 = sphi 0, %s26
    %s46 = sphi 0, %s46
    %s48 = sphi 0, %s46
    %s49 = sphi 0, %s48
    %s63 = sphi 0, %s49
    %s67 = sphi 0, %s67
    %s69 = sphi 0, %s67
    %s70 = sphi 0, %s69
    %s84 = sphi 0, %s70
    %s88 = sphi 0, %s88
    %s90 = sphi 0, %s88
    %s91 = sphi 0, %s90
    %s105 = sphi 0, %s91
    %s109 = sphi 0, %s109
    %s111 = sphi 0, %s109
    %s112 = sphi 0, %s111
    %s126 = sphi 0, %s112
    %s132 = sphi 0, %s134
    %s135 = sphi 0, %s132
    %s136 = sphi 0, %s135
    %s152 = sphi 0, %s136
    %s158 = sphi 0, %s160
    %s161 = sphi 0, %s158
    %s162 = sphi 0, %s161
    %s178 = sphi 0, %s162
  $region4: #{upscaler_forward.11} parent=0 // loop_header_branch
    %15 = sbr.rel (%p13) target = $region8
  $region5: #{upscaler_forward.11} parent=0 // loop_body
    %s17 = ssub.s32 %s12, 1
    %s18 = ssub.s32 %s12, 2
    %s19 = sadd.s32 %s12, 1
    %s20 = ssub.s32 %s12, %s19
    %p21 = scmp.eq.s32.totalorder %s20, 0
    %s23 = sadd.s32 %s22, 1
    %s24 = scalar_select %p21, %s22, %s23
    %p27 = pneg %p21
    %p28 = scmp.eq.s32.totalorder %s12, 1
    %p29 = por %p27, %p28
    %p30 = scmp.ne.s32.totalorder %s22, %s25
    %p31 = scmp.eq.s32.totalorder %s12, 0
    %p32 = por %p30, %p31
    %p33 = scmp.ne.s32.totalorder %s22, %s25
    %p34 = scmp.eq.s32.totalorder %s17, 1
    %p35 = por %p33, %p34
    %p36 = scmp.ne.s32.totalorder %s25, %s26
    %p37 = scmp.eq.s32.totalorder %s17, 0
    %p38 = por %p36, %p37
    %p39 = scmp.ne.s32.totalorder %s25, %s26
    %p40 = scmp.eq.s32.totalorder %s18, 1
    %p41 = por %p39, %p40
    %p43 = scmp.ne.s32.totalorder %s26, %s42
    %p44 = scmp.eq.s32.totalorder %s18, 0
    %p45 = por %p43, %p44
    %s47 = sadd.s32 %s46, 1
    %p50 = scmp.eq.s32.totalorder %s12, 1
    %p51 = scmp.ne.s32.totalorder %s46, %s48
    %p52 = scmp.eq.s32.totalorder %s12, 0
    %p53 = por %p51, %p52
    %p54 = scmp.ne.s32.totalorder %s46, %s48
    %p55 = scmp.eq.s32.totalorder %s17, 1
    %p56 = por %p54, %p55
    %p57 = scmp.ne.s32.totalorder %s48, %s49
    %p58 = scmp.eq.s32.totalorder %s17, 0
    %p59 = por %p57, %p58
    %p60 = scmp.ne.s32.totalorder %s48, %s49
    %p61 = scmp.eq.s32.totalorder %s18, 1
    %p62 = por %p60, %p61
    %p64 = scmp.ne.s32.totalorder %s49, %s63
    %p65 = scmp.eq.s32.totalorder %s18, 0
    %p66 = por %p64, %p65
    %s68 = sadd.s32 %s67, 1
    %p71 = scmp.eq.s32.totalorder %s12, 1
    %p72 = scmp.ne.s32.totalorder %s67, %s69
    %p73 = scmp.eq.s32.totalorder %s12, 0
    %p74 = por %p72, %p73
    %p75 = scmp.ne.s32.totalorder %s67, %s69
    %p76 = scmp.eq.s32.totalorder %s17, 1
    %p77 = por %p75, %p76
    %p78 = scmp.ne.s32.totalorder %s69, %s70
    %p79 = scmp.eq.s32.totalorder %s17, 0
    %p80 = por %p78, %p79
    %p81 = scmp.ne.s32.totalorder %s69, %s70
    %p82 = scmp.eq.s32.totalorder %s18, 1
    %p83 = por %p81, %p82
    %p85 = scmp.ne.s32.totalorder %s70, %s84
    %p86 = scmp.eq.s32.totalorder %s18, 0
    %p87 = por %p85, %p86
    %s89 = sadd.s32 %s88, 1
    %p92 = scmp.eq.s32.totalorder %s12, 1
    %p93 = scmp.ne.s32.totalorder %s88, %s90
    %p94 = scmp.eq.s32.totalorder %s12, 0
    %p95 = por %p93, %p94
    %p96 = scmp.ne.s32.totalorder %s88, %s90
    %p97 = scmp.eq.s32.totalorder %s17, 1
    %p98 = por %p96, %p97
    %p99 = scmp.ne.s32.totalorder %s90, %s91
    %p100 = scmp.eq.s32.totalorder %s17, 0
    %p101 = por %p99, %p100
    %p102 = scmp.ne.s32.totalorder %s90, %s91
    %p103 = scmp.eq.s32.totalorder %s18, 1
    %p104 = por %p102, %p103
    %p106 = scmp.ne.s32.totalorder %s91, %s105
    %p107 = scmp.eq.s32.totalorder %s18, 0
    %p108 = por %p106, %p107
    %s110 = sadd.s32 %s109, 1
    %p113 = scmp.eq.s32.totalorder %s12, 1
    %p114 = scmp.ne.s32.totalorder %s109, %s111
    %p115 = scmp.eq.s32.totalorder %s12, 0
    %p116 = por %p114, %p115
    %p117 = scmp.ne.s32.totalorder %s109, %s111
    %p118 = scmp.eq.s32.totalorder %s17, 1
    %p119 = por %p117, %p118
    %p120 = scmp.ne.s32.totalorder %s111, %s112
    %p121 = scmp.eq.s32.totalorder %s17, 0
    %p122 = por %p120, %p121
    %p123 = scmp.ne.s32.totalorder %s111, %s112
    %p124 = scmp.eq.s32.totalorder %s18, 1
    %p125 = por %p123, %p124
    %p127 = scmp.ne.s32.totalorder %s112, %s126
    %p128 = scmp.eq.s32.totalorder %s18, 0
    %p129 = por %p127, %p128
    %s130 = ssub.s32 %s12, %s19
    %p131 = scmp.eq.s32.totalorder %s130, 0
    %s133 = sadd.s32 %s132, 1
    %s134 = scalar_select %p131, %s132, %s133
    %p137 = pneg %p131
    %p138 = scmp.eq.s32.totalorder %s12, 1
    %p139 = por %p137, %p138
    %p140 = scmp.ne.s32.totalorder %s132, %s135
    %p141 = scmp.eq.s32.totalorder %s12, 0
    %p142 = por %p140, %p141
    %p143 = scmp.ne.s32.totalorder %s132, %s135
    %p144 = scmp.eq.s32.totalorder %s17, 1
    %p145 = por %p143, %p144
    %p146 = scmp.ne.s32.totalorder %s135, %s136
    %p147 = scmp.eq.s32.totalorder %s17, 0
    %p148 = por %p146, %p147
    %p149 = scmp.ne.s32.totalorder %s135, %s136
    %p150 = scmp.eq.s32.totalorder %s18, 1
    %p151 = por %p149, %p150
    %p153 = scmp.ne.s32.totalorder %s136, %s152
    %p154 = scmp.eq.s32.totalorder %s18, 0
    %p155 = por %p153, %p154
    %s156 = ssub.s32 %s12, %s19
    %p157 = scmp.eq.s32.totalorder %s156, 0
    %s159 = sadd.s32 %s158, 1
    %s160 = scalar_select %p157, %s158, %s159
    %p163 = pneg %p157
    %p164 = scmp.eq.s32.totalorder %s12, 1
    %p165 = por %p163, %p164
    %p166 = scmp.ne.s32.totalorder %s158, %s161
    %p167 = scmp.eq.s32.totalorder %s12, 0
    %p168 = por %p166, %p167
    %p169 = scmp.ne.s32.totalorder %s158, %s161
    %p170 = scmp.eq.s32.totalorder %s17, 1
    %p171 = por %p169, %p170
    %p172 = scmp.ne.s32.totalorder %s161, %s162
    %p173 = scmp.eq.s32.totalorder %s17, 0
    %p174 = por %p172, %p173
    %p175 = scmp.ne.s32.totalorder %s161, %s162
    %p176 = scmp.eq.s32.totalorder %s18, 1
    %p177 = por %p175, %p176
    %p179 = scmp.ne.s32.totalorder %s162, %s178
    %p180 = scmp.eq.s32.totalorder %s18, 0
    %p181 = por %p179, %p180
    %p182 = scmp.le.s32.totalorder 1, %s12
    %p183 = scmp.lt.s32.totalorder %s12, 3
    %p184 = pnand %p182, %p183
    %p185 = pneg %p184
    // Predicated region
    $region9: #{upscaler_forward.11} parent=5 // pred_check
      _
    $region10: #{upscaler_forward.11} parent=5 // pred_check_branch
      %187 = sbr.rel (%p184) target = $region12
    $region11: #{upscaler_forward.11} parent=5 // pred_region
      %s188 = ssub.s32 %s12, 1
      // Predicated region
      $region13: #{upscaler_forward.11} parent=11 // pred_check
        %p189 = pneg %p59
      $region14: #{upscaler_forward.11} parent=11 // pred_check_branch
        %191 = sbr.rel (%p189) target = $region16
      $region15: #{upscaler_forward.11} parent=11 // pred_region
        _
      $region16: #{upscaler_forward.11} parent=11 // pred_fallthru
        _
      // Predicated region
      $region17: #{upscaler_forward.11} parent=11 // pred_check
        %p192 = pneg %p80
      $region18: #{upscaler_forward.11} parent=11 // pred_check_branch
        %194 = sbr.rel (%p192) target = $region20
      $region19: #{upscaler_forward.11} parent=11 // pred_region
        _
      $region20: #{upscaler_forward.11} parent=11 // pred_fallthru
        _
      // Predicated region
      $region21: #{upscaler_forward.11} parent=11 // pred_check
        %p195 = pneg %p101
      $region22: #{upscaler_forward.11} parent=11 // pred_check_branch
        %197 = sbr.rel (%p195) target = $region24
      $region23: #{upscaler_forward.11} parent=11 // pred_region
        _
      $region24: #{upscaler_forward.11} parent=11 // pred_fallthru
        _
      // Predicated region
      $region25: #{upscaler_forward.11} parent=11 // pred_check
        %p198 = pneg %p122
      $region26: #{upscaler_forward.11} parent=11 // pred_check_branch
        %200 = sbr.rel (%p198) target = $region28
      $region27: #{upscaler_forward.11} parent=11 // pred_region
        _
      $region28: #{upscaler_forward.11} parent=11 // pred_fallthru
        _
    $region12: #{upscaler_forward.11} parent=5 // pred_fallthru
      _
    %p201 = scmp.lt.s32.totalorder %s12, 2
    // Predicated region
    $region29: #{upscaler_forward.11} parent=5 // pred_check
      %p202 = pneg %p201
    $region30: #{upscaler_forward.11} parent=5 // pred_check_branch
      %204 = sbr.rel (%p202) target = $region32
    $region31: #{upscaler_forward.11} parent=5 // pred_region
      // Predicated region
      $region33: #{upscaler_forward.11} parent=31 // pred_check
        %p205 = pneg %p32
      $region34: #{upscaler_forward.11} parent=31 // pred_check_branch
        %207 = sbr.rel (%p205) target = $region36
      $region35: #{upscaler_forward.11} parent=31 // pred_region
        %p208 = scmp.lt.s32.totalorder %s12, 1
        %s209 = scalar_select %p208, %s12, 1
        %s210 = smul.addr %s209, 3
        %s211 = smul.addr %s210, 4
        %s212 = scalar_lea.vmem %s0, %s211
      $region36: #{upscaler_forward.11} parent=31 // pred_fallthru
        _
      // Predicated region
      $region37: #{upscaler_forward.11} parent=31 // pred_check
        %p213 = pneg %p142
      $region38: #{upscaler_forward.11} parent=31 // pred_check_branch
        %215 = sbr.rel (%p213) target = $region40
      $region39: #{upscaler_forward.11} parent=31 // pred_region
        %p216 = scmp.lt.s32.totalorder %s12, 1
        %s217 = scalar_select %p216, %s12, 1
        %s218 = smul.addr %s217, 8
        %s219 = scalar_lea.vmem %s5, %s218
      $region40: #{upscaler_forward.11} parent=31 // pred_fallthru
        _
    $region32: #{upscaler_forward.11} parent=5 // pred_fallthru
      _
    %p220 = scmp.le.s32.totalorder 1, %s12
    %p221 = scmp.lt.s32.totalorder %s12, 3
    %p222 = pnand %p220, %p221
    %p223 = pneg %p222
    // Predicated region
    $region41: #{upscaler_forward.11} parent=5 // pred_check
      _
    $region42: #{upscaler_forward.11} parent=5 // pred_check_branch
      %225 = sbr.rel (%p222) target = $region44
    $region43: #{upscaler_forward.11} parent=5 // pred_region
      %s226 = ssub.s32 %s12, 1
      %p227 = scmp.lt.s32.totalorder %s17, 1
      %s228 = scalar_select %p227, %s17, 1
      %s229 = smul.addr %s228, 3
      %s230 = smul.addr %s229, 4
      %s231 = scalar_lea.vmem %s0, %s230
      %p232 = pneg %p38
      %p233 = pneg %p35
      %p234 = pneg %p59
      %p235 = pneg %p56
      %p236 = pneg %p80
      %p237 = pneg %p77
      %p238 = pneg %p101
      %p239 = pneg %p98
      %p240 = pneg %p122
      %p241 = pneg %p119
      %p242 = scmp.lt.s32.totalorder %s17, 1
      %s243 = scalar_select %p242, %s17, 1
      %s244 = smul.addr %s243, 8
      %s245 = scalar_lea.vmem %s5, %s244
      %p246 = pneg %p148
      %p247 = pneg %p145
      %p248 = pneg %p174
      %p249 = pneg %p171
      %p250 = scmp.lt.s32.totalorder %s17, 1
      %s251 = scalar_select %p250, %s17, 1
      %s252 = smul.addr %s251, 3
      %s253 = smul.addr %s252, 8
      %s254 = scalar_lea.vmem %s6, %s253
      %p255 = scmp.lt.s32.totalorder %s17, 1
      %s256 = scalar_select %p255, %s17, 1
      %s257 = smul.addr %s256, 3
      %s258 = smul.addr %s257, 4
      %s259 = scalar_lea.vmem %s0, %s258
      %p260 = scmp.lt.s32.totalorder %s17, 1
      %s261 = scalar_select %p260, %s17, 1
      %s262 = smul.addr %s261, 8
      %s263 = scalar_lea.vmem %s5, %s262
      %p264 = scmp.lt.s32.totalorder %s17, 1
      %s265 = scalar_select %p264, %s17, 1
      %s266 = smul.addr %s265, 3
      %s267 = smul.addr %s266, 8
      %s268 = scalar_lea.vmem %s6, %s267
      %v270 = vld [vmem:[%s259] sm:$0xff]
      %v271 = vld [vmem:[%s259 + $0x8] sm:$0xf]
      %v272 = vld [vmem:[%s1] sm:$0xf]
      %s273 = scalar_lea.vmem %s1, 4
      %v274 = vld [vmem:[%s273] sm:$0xf]
      %v277 = vunpack.c.l.b16 %v270
      %v278 = vunpack.c.h.b16 %v270
      %v279 = vunpack.c.l.b16 %v271
      %v280 = vpack.c.b16 %v277, %v277
      %v281 = vpack.c.b16 %v278, %v278
      %v282 = vpack.c.b16 %v279, %v279
      %283 = vrot.lane.b32.xlu0 %v280, 127
      %v284 = vpop.permute.xlu0 %283
      %285 = vrot.lane.b32.xlu0 %v281, 127
      %v286 = vpop.permute.xlu0 %285
      %287 = vrot.lane.b32.xlu0 %v282, 127
      %v288 = vpop.permute.xlu0 %287
      %vm289 = vcmask 1039360
      %v290 = vsel %vm289, %v284, %v286
      %v291 = vsel %vm289, %v286, %v288
      %vm292 = vcmask 64512
      %v294 = vsel %vm292, %v274, 0
      %vm296 = vcmask 1043456
      %v298 = vsel %vm296, %v290, 0
      %v301 = vsel %vm296, %v291, 0
      %v304 = vsel %vm296, %v288, 0
      %306 = vmatprep.subr.bf16.mxu0 0
      %307 = vmatpush1.bf16.msra.mxu0 0
      %308 = vmatprep.subr.bf16.mxu0 0
      %309 = vmatpush1.bf16.msra.mxu0 0
      %310 = vmatprep.subr.bf16.mxu0 0
      %311 = vmatpush1.bf16.msra.mxu0 0
      %312 = vmatprep.subr.bf16.mxu0 0
      %313 = vmatpush1.bf16.msra.mxu0 0
      %314 = vmatprep.subr.bf16.mxu0 0
      %315 = vmatpush1.bf16.msra.mxu0 0
      %316 = vmatprep.subr.bf16.mxu0 0
      %317 = vmatpush1.bf16.msra.mxu0 0
      %318 = vmatprep.subr.bf16.mxu0 0
      %319 = vmatpush1.bf16.msra.mxu0 0
      %320 = vmatprep.subr.bf16.mxu0 %v301
      %321 = vmatpush1.bf16.msra.mxu0 %v298
      %322 = vmatprep.subr.bf16.mxu0 0
      %323 = vmatpush2.bf16.msra.mxu0 0
      %324 = vmatprep.subr.bf16.mxu0 0
      %325 = vmatpush2.bf16.msra.mxu0 0
      %326 = vmatprep.subr.bf16.mxu0 0
      %327 = vmatpush2.bf16.msra.mxu0 0
      %328 = vmatprep.subr.bf16.mxu0 0
      %329 = vmatpush2.bf16.msra.mxu0 0
      %330 = vmatprep.subr.bf16.mxu0 0
      %331 = vmatpush2.bf16.msra.mxu0 0
      %332 = vmatprep.subr.bf16.mxu0 0
      %333 = vmatpush2.bf16.msra.mxu0 0
      %334 = vmatprep.subr.bf16.mxu0 0
      %335 = vmatpush2.bf16.msra.mxu0 0
      %336 = vmatprep.subr.bf16.mxu0 0
      %337 = vmatpush2.bf16.msra.mxu0 0
      %338 = vmatprep.mubr.bf16.mxu0 0
      %339 = vmatmul.mubr.bf16.gmra.mxu0 %v294
      %v340 = vpop.f32.mrf.mxu0
      %v341 = vadd.f32 0.0, %v340
      %v342 = vpop.f32.mrf.mxu0
      %v343 = vadd.f32 0.0, %v342
      %v344 = vpop.f32.mrf.mxu0
      %v345 = vpop.f32.mrf.mxu0
      %346 = vdwg.mxu0
      %347 = vmatprep.subr.bf16.mxu0 0
      %348 = vmatpush1.bf16.msra.mxu0 0
      %349 = vmatprep.subr.bf16.mxu0 0
      %350 = vmatpush1.bf16.msra.mxu0 0
      %351 = vmatprep.subr.bf16.mxu0 0
      %352 = vmatpush1.bf16.msra.mxu0 0
      %353 = vmatprep.subr.bf16.mxu0 0
      %354 = vmatpush1.bf16.msra.mxu0 0
      %355 = vmatprep.subr.bf16.mxu0 0
      %356 = vmatpush1.bf16.msra.mxu0 0
      %357 = vmatprep.subr.bf16.mxu0 0
      %358 = vmatpush1.bf16.msra.mxu0 0
      %359 = vmatprep.subr.bf16.mxu0 0
      %360 = vmatpush1.bf16.msra.mxu0 0
      %361 = vmatprep.subr.bf16.mxu0 0
      %362 = vmatpush1.bf16.msra.mxu0 %v304
      %363 = vmatprep.subr.bf16.mxu0 0
      %364 = vmatpush2.bf16.msra.mxu0 0
      %365 = vmatprep.subr.bf16.mxu0 0
      %366 = vmatpush2.bf16.msra.mxu0 0
      %367 = vmatprep.subr.bf16.mxu0 0
      %368 = vmatpush2.bf16.msra.mxu0 0
      %369 = vmatprep.subr.bf16.mxu0 0
      %370 = vmatpush2.bf16.msra.mxu0 0
      %371 = vmatprep.subr.bf16.mxu0 0
      %372 = vmatpush2.bf16.msra.mxu0 0
      %373 = vmatprep.subr.bf16.mxu0 0
      %374 = vmatpush2.bf16.msra.mxu0 0
      %375 = vmatprep.subr.bf16.mxu0 0
      %376 = vmatpush2.bf16.msra.mxu0 0
      %377 = vmatprep.subr.bf16.mxu0 0
      %378 = vmatpush2.bf16.msra.mxu0 0
      %379 = vmatprep.mubr.bf16.mxu0 0
      %380 = vmatmul.mubr.bf16.gmra.mxu0 %v294
      %v381 = vpop.f32.mrf.mxu0
      %v382 = vadd.f32 0.0, %v381
      %v383 = vpop.f32.mrf.mxu0
      %v384 = vpop.f32.mrf.mxu0
      %v385 = vpop.f32.mrf.mxu0
      %386 = vdwg.mxu0
      %v388 = vsel %vm292, %v272, 0
      %v391 = vsel %vm296, %v280, 0
      %v394 = vsel %vm296, %v281, 0
      %v397 = vsel %vm296, %v282, 0
      %399 = vmatprep.subr.bf16.mxu0 0
      %400 = vmatpush1.bf16.msra.mxu0 0
      %401 = vmatprep.subr.bf16.mxu0 0
      %402 = vmatpush1.bf16.msra.mxu0 0
      %403 = vmatprep.subr.bf16.mxu0 0
      %404 = vmatpush1.bf16.msra.mxu0 0
      %405 = vmatprep.subr.bf16.mxu0 0
      %406 = vmatpush1.bf16.msra.mxu0 0
      %407 = vmatprep.subr.bf16.mxu0 0
      %408 = vmatpush1.bf16.msra.mxu0 0
      %409 = vmatprep.subr.bf16.mxu0 0
      %410 = vmatpush1.bf16.msra.mxu0 0
      %411 = vmatprep.subr.bf16.mxu0 0
      %412 = vmatpush1.bf16.msra.mxu0 0
      %413 = vmatprep.subr.bf16.mxu0 %v394
      %414 = vmatpush1.bf16.msra.mxu0 %v391
      %415 = vmatprep.subr.bf16.mxu0 0
      %416 = vmatpush2.bf16.msra.mxu0 0
      %417 = vmatprep.subr.bf16.mxu0 0
      %418 = vmatpush2.bf16.msra.mxu0 0
      %419 = vmatprep.subr.bf16.mxu0 0
      %420 = vmatpush2.bf16.msra.mxu0 0
      %421 = vmatprep.subr.bf16.mxu0 0
      %422 = vmatpush2.bf16.msra.mxu0 0
      %423 = vmatprep.subr.bf16.mxu0 0
      %424 = vmatpush2.bf16.msra.mxu0 0
      %425 = vmatprep.subr.bf16.mxu0 0
      %426 = vmatpush2.bf16.msra.mxu0 0
      %427 = vmatprep.subr.bf16.mxu0 0
      %428 = vmatpush2.bf16.msra.mxu0 0
      %429 = vmatprep.subr.bf16.mxu0 0
      %430 = vmatpush2.bf16.msra.mxu0 0
      %431 = vmatprep.mubr.bf16.mxu0 0
      %432 = vmatmul.mubr.bf16.gmra.mxu0 %v388
      %v433 = vpop.f32.mrf.mxu0
      %v434 = vadd.f32 %v341, %v433
      %v435 = vpop.f32.mrf.mxu0
      %v436 = vadd.f32 %v343, %v435
      %v437 = vpop.f32.mrf.mxu0
      %v438 = vpop.f32.mrf.mxu0
      %439 = vdwg.mxu0
      %440 = vmatprep.subr.bf16.mxu0 0
      %441 = vmatpush1.bf16.msra.mxu0 0
      %442 = vmatprep.subr.bf16.mxu0 0
      %443 = vmatpush1.bf16.msra.mxu0 0
      %444 = vmatprep.subr.bf16.mxu0 0
      %445 = vmatpush1.bf16.msra.mxu0 0
      %446 = vmatprep.subr.bf16.mxu0 0
      %447 = vmatpush1.bf16.msra.mxu0 0
      %448 = vmatprep.subr.bf16.mxu0 0
      %449 = vmatpush1.bf16.msra.mxu0 0
      %450 = vmatprep.subr.bf16.mxu0 0
      %451 = vmatpush1.bf16.msra.mxu0 0
      %452 = vmatprep.subr.bf16.mxu0 0
      %453 = vmatpush1.bf16.msra.mxu0 0
      %454 = vmatprep.subr.bf16.mxu0 0
      %455 = vmatpush1.bf16.msra.mxu0 %v397
      %456 = vmatprep.subr.bf16.mxu0 0
      %457 = vmatpush2.bf16.msra.mxu0 0
      %458 = vmatprep.subr.bf16.mxu0 0
      %459 = vmatpush2.bf16.msra.mxu0 0
      %460 = vmatprep.subr.bf16.mxu0 0
      %461 = vmatpush2.bf16.msra.mxu0 0
      %462 = vmatprep.subr.bf16.mxu0 0
      %463 = vmatpush2.bf16.msra.mxu0 0
      %464 = vmatprep.subr.bf16.mxu0 0
      %465 = vmatpush2.bf16.msra.mxu0 0
      %466 = vmatprep.subr.bf16.mxu0 0
      %467 = vmatpush2.bf16.msra.mxu0 0
      %468 = vmatprep.subr.bf16.mxu0 0
      %469 = vmatpush2.bf16.msra.mxu0 0
      %470 = vmatprep.subr.bf16.mxu0 0
      %471 = vmatpush2.bf16.msra.mxu0 0
      %472 = vmatprep.mubr.bf16.mxu0 0
      %473 = vmatmul.mubr.bf16.gmra.mxu0 %v388
      %v474 = vpop.f32.mrf.mxu0
      %v475 = vadd.f32 %v382, %v474
      %v476 = vpop.f32.mrf.mxu0
      %v477 = vpop.f32.mrf.mxu0
      %v478 = vpop.f32.mrf.mxu0
      %479 = vdwg.mxu0
      %s480 = scalar_lea.vmem %s1, 8
      %v481 = vld [vmem:[%s480] sm:$0xf]
      %482 = vrot.lane.b32.xlu0 %v280, 126
      %v483 = vpop.permute.xlu0 %482
      %484 = vrot.lane.b32.xlu0 %v281, 126
      %v485 = vpop.permute.xlu0 %484
      %486 = vrot.lane.b32.xlu0 %v282, 126
      %v487 = vpop.permute.xlu0 %486
      %vm488 = vcmask 1031168
      %v489 = vsel %vm488, %v483, %v485
      %v490 = vsel %vm488, %v485, %v487
      %v492 = vsel %vm292, %v481, 0
      %v495 = vsel %vm296, %v489, 0
      %v498 = vsel %vm296, %v490, 0
      %v501 = vsel %vm296, %v487, 0
      %503 = vmatprep.subr.bf16.mxu0 0
      %504 = vmatpush1.bf16.msra.mxu0 0
      %505 = vmatprep.subr.bf16.mxu0 0
      %506 = vmatpush1.bf16.msra.mxu0 0
      %507 = vmatprep.subr.bf16.mxu0 0
      %508 = vmatpush1.bf16.msra.mxu0 0
      %509 = vmatprep.subr.bf16.mxu0 0
      %510 = vmatpush1.bf16.msra.mxu0 0
      %511 = vmatprep.subr.bf16.mxu0 0
      %512 = vmatpush1.bf16.msra.mxu0 0
      %513 = vmatprep.subr.bf16.mxu0 0
      %514 = vmatpush1.bf16.msra.mxu0 0
      %515 = vmatprep.subr.bf16.mxu0 0
      %516 = vmatpush1.bf16.msra.mxu0 0
      %517 = vmatprep.subr.bf16.mxu0 %v498
      %518 = vmatpush1.bf16.msra.mxu0 %v495
      %519 = vmatprep.subr.bf16.mxu0 0
      %520 = vmatpush2.bf16.msra.mxu0 0
      %521 = vmatprep.subr.bf16.mxu0 0
      %522 = vmatpush2.bf16.msra.mxu0 0
      %523 = vmatprep.subr.bf16.mxu0 0
      %524 = vmatpush2.bf16.msra.mxu0 0
      %525 = vmatprep.subr.bf16.mxu0 0
      %526 = vmatpush2.bf16.msra.mxu0 0
      %527 = vmatprep.subr.bf16.mxu0 0
      %528 = vmatpush2.bf16.msra.mxu0 0
      %529 = vmatprep.subr.bf16.mxu0 0
      %530 = vmatpush2.bf16.msra.mxu0 0
      %531 = vmatprep.subr.bf16.mxu0 0
      %532 = vmatpush2.bf16.msra.mxu0 0
      %533 = vmatprep.subr.bf16.mxu0 0
      %534 = vmatpush2.bf16.msra.mxu0 0
      %535 = vmatprep.mubr.bf16.mxu0 0
      %536 = vmatmul.mubr.bf16.gmra.mxu0 %v492
      %v537 = vpop.f32.mrf.mxu0
      %v538 = vadd.f32 0.0, %v537
      %v539 = vpop.f32.mrf.mxu0
      %v540 = vadd.f32 0.0, %v539
      %v541 = vpop.f32.mrf.mxu0
      %v542 = vpop.f32.mrf.mxu0
      %543 = vdwg.mxu0
      %544 = vmatprep.subr.bf16.mxu0 0
      %545 = vmatpush1.bf16.msra.mxu0 0
      %546 = vmatprep.subr.bf16.mxu0 0
      %547 = vmatpush1.bf16.msra.mxu0 0
      %548 = vmatprep.subr.bf16.mxu0 0
      %549 = vmatpush1.bf16.msra.mxu0 0
      %550 = vmatprep.subr.bf16.mxu0 0
      %551 = vmatpush1.bf16.msra.mxu0 0
      %552 = vmatprep.subr.bf16.mxu0 0
      %553 = vmatpush1.bf16.msra.mxu0 0
      %554 = vmatprep.subr.bf16.mxu0 0
      %555 = vmatpush1.bf16.msra.mxu0 0
      %556 = vmatprep.subr.bf16.mxu0 0
      %557 = vmatpush1.bf16.msra.mxu0 0
      %558 = vmatprep.subr.bf16.mxu0 0
      %559 = vmatpush1.bf16.msra.mxu0 %v501
      %560 = vmatprep.subr.bf16.mxu0 0
      %561 = vmatpush2.bf16.msra.mxu0 0
      %562 = vmatprep.subr.bf16.mxu0 0
      %563 = vmatpush2.bf16.msra.mxu0 0
      %564 = vmatprep.subr.bf16.mxu0 0
      %565 = vmatpush2.bf16.msra.mxu0 0
      %566 = vmatprep.subr.bf16.mxu0 0
      %567 = vmatpush2.bf16.msra.mxu0 0
      %568 = vmatprep.subr.bf16.mxu0 0
      %569 = vmatpush2.bf16.msra.mxu0 0
      %570 = vmatprep.subr.bf16.mxu0 0
      %571 = vmatpush2.bf16.msra.mxu0 0
      %572 = vmatprep.subr.bf16.mxu0 0
      %573 = vmatpush2.bf16.msra.mxu0 0
      %574 = vmatprep.subr.bf16.mxu0 0
      %575 = vmatpush2.bf16.msra.mxu0 0
      %576 = vmatprep.mubr.bf16.mxu0 0
      %577 = vmatmul.mubr.bf16.gmra.mxu0 %v492
      %v578 = vpop.f32.mrf.mxu0
      %v579 = vadd.f32 0.0, %v578
      %v580 = vpop.f32.mrf.mxu0
      %v581 = vpop.f32.mrf.mxu0
      %v582 = vpop.f32.mrf.mxu0
      %583 = vdwg.mxu0
      %v584 = vadd.f32 %v434, %v538
      %v585 = vadd.f32 %v436, %v540
      %v586 = vadd.f32 %v475, %v579
      %s587 = scalar_lea.vmem %s1, 12
      %v588 = vld [vmem:[%s587] sm:$0xf]
      %589 = vrot.lane.b32.xlu0 %v280, 110
      %v590 = vpop.permute.xlu0 %589
      %591 = vrot.lane.b32.xlu0 %v281, 110
      %v592 = vpop.permute.xlu0 %591
      %593 = vrot.lane.b32.xlu0 %v282, 110
      %v594 = vpop.permute.xlu0 %593
      %vm595 = vcmask 900096
      %v596 = vsel %vm595, %v590, %v592
      %v597 = vsel %vm595, %v592, %v594
      %v599 = vsel %vm292, %v588, 0
      %v602 = vsel %vm296, %v596, 0
      %v605 = vsel %vm296, %v597, 0
      %v608 = vsel %vm296, %v594, 0
      %610 = vmatprep.subr.bf16.mxu0 0
      %611 = vmatpush1.bf16.msra.mxu0 0
      %612 = vmatprep.subr.bf16.mxu0 0
      %613 = vmatpush1.bf16.msra.mxu0 0
      %614 = vmatprep.subr.bf16.mxu0 0
      %615 = vmatpush1.bf16.msra.mxu0 0
      %616 = vmatprep.subr.bf16.mxu0 0
      %617 = vmatpush1.bf16.msra.mxu0 0
      %618 = vmatprep.subr.bf16.mxu0 0
      %619 = vmatpush1.bf16.msra.mxu0 0
      %620 = vmatprep.subr.bf16.mxu0 0
      %621 = vmatpush1.bf16.msra.mxu0 0
      %622 = vmatprep.subr.bf16.mxu0 0
      %623 = vmatpush1.bf16.msra.mxu0 0
      %624 = vmatprep.subr.bf16.mxu0 %v605
      %625 = vmatpush1.bf16.msra.mxu0 %v602
      %626 = vmatprep.subr.bf16.mxu0 0
      %627 = vmatpush2.bf16.msra.mxu0 0
      %628 = vmatprep.subr.bf16.mxu0 0
      %629 = vmatpush2.bf16.msra.mxu0 0
      %630 = vmatprep.subr.bf16.mxu0 0
      %631 = vmatpush2.bf16.msra.mxu0 0
      %632 = vmatprep.subr.bf16.mxu0 0
      %633 = vmatpush2.bf16.msra.mxu0 0
      %634 = vmatprep.subr.bf16.mxu0 0
      %635 = vmatpush2.bf16.msra.mxu0 0
      %636 = vmatprep.subr.bf16.mxu0 0
      %637 = vmatpush2.bf16.msra.mxu0 0
      %638 = vmatprep.subr.bf16.mxu0 0
      %639 = vmatpush2.bf16.msra.mxu0 0
      %640 = vmatprep.subr.bf16.mxu0 0
      %641 = vmatpush2.bf16.msra.mxu0 0
      %642 = vmatprep.mubr.bf16.mxu0 0
      %643 = vmatmul.mubr.bf16.gmra.mxu0 %v599
      %v644 = vpop.f32.mrf.mxu0
      %v645 = vadd.f32 0.0, %v644
      %v646 = vpop.f32.mrf.mxu0
      %v647 = vadd.f32 0.0, %v646
      %v648 = vpop.f32.mrf.mxu0
      %v649 = vpop.f32.mrf.mxu0
      %650 = vdwg.mxu0
      %651 = vmatprep.subr.bf16.mxu0 0
      %652 = vmatpush1.bf16.msra.mxu0 0
      %653 = vmatprep.subr.bf16.mxu0 0
      %654 = vmatpush1.bf16.msra.mxu0 0
      %655 = vmatprep.subr.bf16.mxu0 0
      %656 = vmatpush1.bf16.msra.mxu0 0
      %657 = vmatprep.subr.bf16.mxu0 0
      %658 = vmatpush1.bf16.msra.mxu0 0
      %659 = vmatprep.subr.bf16.mxu0 0
      %660 = vmatpush1.bf16.msra.mxu0 0
      %661 = vmatprep.subr.bf16.mxu0 0
      %662 = vmatpush1.bf16.msra.mxu0 0
      %663 = vmatprep.subr.bf16.mxu0 0
      %664 = vmatpush1.bf16.msra.mxu0 0
      %665 = vmatprep.subr.bf16.mxu0 0
      %666 = vmatpush1.bf16.msra.mxu0 %v608
      %667 = vmatprep.subr.bf16.mxu0 0
      %668 = vmatpush2.bf16.msra.mxu0 0
      %669 = vmatprep.subr.bf16.mxu0 0
      %670 = vmatpush2.bf16.msra.mxu0 0
      %671 = vmatprep.subr.bf16.mxu0 0
      %672 = vmatpush2.bf16.msra.mxu0 0
      %673 = vmatprep.subr.bf16.mxu0 0
      %674 = vmatpush2.bf16.msra.mxu0 0
      %675 = vmatprep.subr.bf16.mxu0 0
      %676 = vmatpush2.bf16.msra.mxu0 0
      %677 = vmatprep.subr.bf16.mxu0 0
      %678 = vmatpush2.bf16.msra.mxu0 0
      %679 = vmatprep.subr.bf16.mxu0 0
      %680 = vmatpush2.bf16.msra.mxu0 0
      %681 = vmatprep.subr.bf16.mxu0 0
      %682 = vmatpush2.bf16.msra.mxu0 0
      %683 = vmatprep.mubr.bf16.mxu0 0
      %684 = vmatmul.mubr.bf16.gmra.mxu0 %v599
      %v685 = vpop.f32.mrf.mxu0
      %v686 = vadd.f32 0.0, %v685
      %v687 = vpop.f32.mrf.mxu0
      %v688 = vpop.f32.mrf.mxu0
      %v689 = vpop.f32.mrf.mxu0
      %690 = vdwg.mxu0
      %v691 = vadd.f32 %v584, %v645
      %v692 = vadd.f32 %v585, %v647
      %v693 = vadd.f32 %v586, %v686
      %s694 = scalar_lea.vmem %s1, 16
      %v695 = vld [vmem:[%s694] sm:$0xf]
      %696 = vrot.lane.b32.xlu0 %v280, 109
      %v697 = vpop.permute.xlu0 %696
      %698 = vrot.lane.b32.xlu0 %v281, 109
      %v699 = vpop.permute.xlu0 %698
      %700 = vrot.lane.b32.xlu0 %v282, 109
      %v701 = vpop.permute.xlu0 %700
      %vm702 = vcmask 891904
      %v703 = vsel %vm702, %v697, %v699
      %v704 = vsel %vm702, %v699, %v701
      %v706 = vsel %vm292, %v695, 0
      %v709 = vsel %vm296, %v703, 0
      %v712 = vsel %vm296, %v704, 0
      %v715 = vsel %vm296, %v701, 0
      %717 = vmatprep.subr.bf16.mxu0 0
      %718 = vmatpush1.bf16.msra.mxu0 0
      %719 = vmatprep.subr.bf16.mxu0 0
      %720 = vmatpush1.bf16.msra.mxu0 0
      %721 = vmatprep.subr.bf16.mxu0 0
      %722 = vmatpush1.bf16.msra.mxu0 0
      %723 = vmatprep.subr.bf16.mxu0 0
      %724 = vmatpush1.bf16.msra.mxu0 0
      %725 = vmatprep.subr.bf16.mxu0 0
      %726 = vmatpush1.bf16.msra.mxu0 0
      %727 = vmatprep.subr.bf16.mxu0 0
      %728 = vmatpush1.bf16.msra.mxu0 0
      %729 = vmatprep.subr.bf16.mxu0 0
      %730 = vmatpush1.bf16.msra.mxu0 0
      %731 = vmatprep.subr.bf16.mxu0 %v712
      %732 = vmatpush1.bf16.msra.mxu0 %v709
      %733 = vmatprep.subr.bf16.mxu0 0
      %734 = vmatpush2.bf16.msra.mxu0 0
      %735 = vmatprep.subr.bf16.mxu0 0
      %736 = vmatpush2.bf16.msra.mxu0 0
      %737 = vmatprep.subr.bf16.mxu0 0
      %738 = vmatpush2.bf16.msra.mxu0 0
      %739 = vmatprep.subr.bf16.mxu0 0
      %740 = vmatpush2.bf16.msra.mxu0 0
      %741 = vmatprep.subr.bf16.mxu0 0
      %742 = vmatpush2.bf16.msra.mxu0 0
      %743 = vmatprep.subr.bf16.mxu0 0
      %744 = vmatpush2.bf16.msra.mxu0 0
      %745 = vmatprep.subr.bf16.mxu0 0
      %746 = vmatpush2.bf16.msra.mxu0 0
      %747 = vmatprep.subr.bf16.mxu0 0
      %748 = vmatpush2.bf16.msra.mxu0 0
      %749 = vmatprep.mubr.bf16.mxu0 0
      %750 = vmatmul.mubr.bf16.gmra.mxu0 %v706
      %v751 = vpop.f32.mrf.mxu0
      %v752 = vadd.f32 0.0, %v751
      %v753 = vpop.f32.mrf.mxu0
      %v754 = vadd.f32 0.0, %v753
      %v755 = vpop.f32.mrf.mxu0
      %v756 = vpop.f32.mrf.mxu0
      %757 = vdwg.mxu0
      %758 = vmatprep.subr.bf16.mxu0 0
      %759 = vmatpush1.bf16.msra.mxu0 0
      %760 = vmatprep.subr.bf16.mxu0 0
      %761 = vmatpush1.bf16.msra.mxu0 0
      %762 = vmatprep.subr.bf16.mxu0 0
      %763 = vmatpush1.bf16.msra.mxu0 0
      %764 = vmatprep.subr.bf16.mxu0 0
      %765 = vmatpush1.bf16.msra.mxu0 0
      %766 = vmatprep.subr.bf16.mxu0 0
      %767 = vmatpush1.bf16.msra.mxu0 0
      %768 = vmatprep.subr.bf16.mxu0 0
      %769 = vmatpush1.bf16.msra.mxu0 0
      %770 = vmatprep.subr.bf16.mxu0 0
      %771 = vmatpush1.bf16.msra.mxu0 0
      %772 = vmatprep.subr.bf16.mxu0 0
      %773 = vmatpush1.bf16.msra.mxu0 %v715
      %774 = vmatprep.subr.bf16.mxu0 0
      %775 = vmatpush2.bf16.msra.mxu0 0
      %776 = vmatprep.subr.bf16.mxu0 0
      %777 = vmatpush2.bf16.msra.mxu0 0
      %778 = vmatprep.subr.bf16.mxu0 0
      %779 = vmatpush2.bf16.msra.mxu0 0
      %780 = vmatprep.subr.bf16.mxu0 0
      %781 = vmatpush2.bf16.msra.mxu0 0
      %782 = vmatprep.subr.bf16.mxu0 0
      %783 = vmatpush2.bf16.msra.mxu0 0
      %784 = vmatprep.subr.bf16.mxu0 0
      %785 = vmatpush2.bf16.msra.mxu0 0
      %786 = vmatprep.subr.bf16.mxu0 0
      %787 = vmatpush2.bf16.msra.mxu0 0
      %788 = vmatprep.subr.bf16.mxu0 0
      %789 = vmatpush2.bf16.msra.mxu0 0
      %790 = vmatprep.mubr.bf16.mxu0 0
      %791 = vmatmul.mubr.bf16.gmra.mxu0 %v706
      %v792 = vpop.f32.mrf.mxu0
      %v793 = vadd.f32 0.0, %v792
      %v794 = vpop.f32.mrf.mxu0
      %v795 = vpop.f32.mrf.mxu0
      %v796 = vpop.f32.mrf.mxu0
      %797 = vdwg.mxu0
      %v798 = vadd.f32 %v691, %v752
      %v799 = vadd.f32 %v692, %v754
      %v800 = vadd.f32 %v693, %v793
      %s801 = scalar_lea.vmem %s1, 20
      %v802 = vld [vmem:[%s801] sm:$0xf]
      %803 = vrot.lane.b32.xlu0 %v280, 108
      %v804 = vpop.permute.xlu0 %803
      %805 = vrot.lane.b32.xlu0 %v281, 108
      %v806 = vpop.permute.xlu0 %805
      %807 = vrot.lane.b32.xlu0 %v282, 108
      %v808 = vpop.permute.xlu0 %807
      %vm809 = vcmask 883712
      %v810 = vsel %vm809, %v804, %v806
      %v811 = vsel %vm809, %v806, %v808
      %v813 = vsel %vm292, %v802, 0
      %v816 = vsel %vm296, %v810, 0
      %v819 = vsel %vm296, %v811, 0
      %v822 = vsel %vm296, %v808, 0
      %824 = vmatprep.subr.bf16.mxu0 0
      %825 = vmatpush1.bf16.msra.mxu0 0
      %826 = vmatprep.subr.bf16.mxu0 0
      %827 = vmatpush1.bf16.msra.mxu0 0
      %828 = vmatprep.subr.bf16.mxu0 0
      %829 = vmatpush1.bf16.msra.mxu0 0
      %830 = vmatprep.subr.bf16.mxu0 0
      %831 = vmatpush1.bf16.msra.mxu0 0
      %832 = vmatprep.subr.bf16.mxu0 0
      %833 = vmatpush1.bf16.msra.mxu0 0
      %834 = vmatprep.subr.bf16.mxu0 0
      %835 = vmatpush1.bf16.msra.mxu0 0
      %836 = vmatprep.subr.bf16.mxu0 0
      %837 = vmatpush1.bf16.msra.mxu0 0
      %838 = vmatprep.subr.bf16.mxu0 %v819
      %839 = vmatpush1.bf16.msra.mxu0 %v816
      %840 = vmatprep.subr.bf16.mxu0 0
      %841 = vmatpush2.bf16.msra.mxu0 0
      %842 = vmatprep.subr.bf16.mxu0 0
      %843 = vmatpush2.bf16.msra.mxu0 0
      %844 = vmatprep.subr.bf16.mxu0 0
      %845 = vmatpush2.bf16.msra.mxu0 0
      %846 = vmatprep.subr.bf16.mxu0 0
      %847 = vmatpush2.bf16.msra.mxu0 0
      %848 = vmatprep.subr.bf16.mxu0 0
      %849 = vmatpush2.bf16.msra.mxu0 0
      %850 = vmatprep.subr.bf16.mxu0 0
      %851 = vmatpush2.bf16.msra.mxu0 0
      %852 = vmatprep.subr.bf16.mxu0 0
      %853 = vmatpush2.bf16.msra.mxu0 0
      %854 = vmatprep.subr.bf16.mxu0 0
      %855 = vmatpush2.bf16.msra.mxu0 0
      %856 = vmatprep.mubr.bf16.mxu0 0
      %857 = vmatmul.mubr.bf16.gmra.mxu0 %v813
      %v858 = vpop.f32.mrf.mxu0
      %v859 = vadd.f32 0.0, %v858
      %v860 = vpop.f32.mrf.mxu0
      %v861 = vadd.f32 0.0, %v860
      %v862 = vpop.f32.mrf.mxu0
      %v863 = vpop.f32.mrf.mxu0
      %864 = vdwg.mxu0
      %865 = vmatprep.subr.bf16.mxu0 0
      %866 = vmatpush1.bf16.msra.mxu0 0
      %867 = vmatprep.subr.bf16.mxu0 0
      %868 = vmatpush1.bf16.msra.mxu0 0
      %869 = vmatprep.subr.bf16.mxu0 0
      %870 = vmatpush1.bf16.msra.mxu0 0
      %871 = vmatprep.subr.bf16.mxu0 0
      %872 = vmatpush1.bf16.msra.mxu0 0
      %873 = vmatprep.subr.bf16.mxu0 0
      %874 = vmatpush1.bf16.msra.mxu0 0
      %875 = vmatprep.subr.bf16.mxu0 0
      %876 = vmatpush1.bf16.msra.mxu0 0
      %877 = vmatprep.subr.bf16.mxu0 0
      %878 = vmatpush1.bf16.msra.mxu0 0
      %879 = vmatprep.subr.bf16.mxu0 0
      %880 = vmatpush1.bf16.msra.mxu0 %v822
      %881 = vmatprep.subr.bf16.mxu0 0
      %882 = vmatpush2.bf16.msra.mxu0 0
      %883 = vmatprep.subr.bf16.mxu0 0
      %884 = vmatpush2.bf16.msra.mxu0 0
      %885 = vmatprep.subr.bf16.mxu0 0
      %886 = vmatpush2.bf16.msra.mxu0 0
      %887 = vmatprep.subr.bf16.mxu0 0
      %888 = vmatpush2.bf16.msra.mxu0 0
      %889 = vmatprep.subr.bf16.mxu0 0
      %890 = vmatpush2.bf16.msra.mxu0 0
      %891 = vmatprep.subr.bf16.mxu0 0
      %892 = vmatpush2.bf16.msra.mxu0 0
      %893 = vmatprep.subr.bf16.mxu0 0
      %894 = vmatpush2.bf16.msra.mxu0 0
      %895 = vmatprep.subr.bf16.mxu0 0
      %896 = vmatpush2.bf16.msra.mxu0 0
      %897 = vmatprep.mubr.bf16.mxu0 0
      %898 = vmatmul.mubr.bf16.gmra.mxu0 %v813
      %v899 = vpop.f32.mrf.mxu0
      %v900 = vadd.f32 0.0, %v899
      %v901 = vpop.f32.mrf.mxu0
      %v902 = vpop.f32.mrf.mxu0
      %v903 = vpop.f32.mrf.mxu0
      %904 = vdwg.mxu0
      %v905 = vadd.f32 %v798, %v859
      %v906 = vadd.f32 %v799, %v861
      %v907 = vadd.f32 %v800, %v900
      %s908 = scalar_lea.vmem %s1, 24
      %v909 = vld [vmem:[%s908] sm:$0xf]
      %910 = vrot.lane.b32.xlu0 %v280, 92
      %v911 = vpop.permute.xlu0 %910
      %912 = vrot.lane.b32.xlu0 %v281, 92
      %v913 = vpop.permute.xlu0 %912
      %914 = vrot.lane.b32.xlu0 %v282, 92
      %v915 = vpop.permute.xlu0 %914
      %vm916 = vcmask 752640
      %v917 = vsel %vm916, %v911, %v913
      %v918 = vsel %vm916, %v913, %v915
      %v920 = vsel %vm292, %v909, 0
      %v923 = vsel %vm296, %v917, 0
      %v926 = vsel %vm296, %v918, 0
      %v929 = vsel %vm296, %v915, 0
      %931 = vmatprep.subr.bf16.mxu0 0
      %932 = vmatpush1.bf16.msra.mxu0 0
      %933 = vmatprep.subr.bf16.mxu0 0
      %934 = vmatpush1.bf16.msra.mxu0 0
      %935 = vmatprep.subr.bf16.mxu0 0
      %936 = vmatpush1.bf16.msra.mxu0 0
      %937 = vmatprep.subr.bf16.mxu0 0
      %938 = vmatpush1.bf16.msra.mxu0 0
      %939 = vmatprep.subr.bf16.mxu0 0
      %940 = vmatpush1.bf16.msra.mxu0 0
      %941 = vmatprep.subr.bf16.mxu0 0
      %942 = vmatpush1.bf16.msra.mxu0 0
      %943 = vmatprep.subr.bf16.mxu0 0
      %944 = vmatpush1.bf16.msra.mxu0 0
      %945 = vmatprep.subr.bf16.mxu0 %v926
      %946 = vmatpush1.bf16.msra.mxu0 %v923
      %947 = vmatprep.subr.bf16.mxu0 0
      %948 = vmatpush2.bf16.msra.mxu0 0
      %949 = vmatprep.subr.bf16.mxu0 0
      %950 = vmatpush2.bf16.msra.mxu0 0
      %951 = vmatprep.subr.bf16.mxu0 0
      %952 = vmatpush2.bf16.msra.mxu0 0
      %953 = vmatprep.subr.bf16.mxu0 0
      %954 = vmatpush2.bf16.msra.mxu0 0
      %955 = vmatprep.subr.bf16.mxu0 0
      %956 = vmatpush2.bf16.msra.mxu0 0
      %957 = vmatprep.subr.bf16.mxu0 0
      %958 = vmatpush2.bf16.msra.mxu0 0
      %959 = vmatprep.subr.bf16.mxu0 0
      %960 = vmatpush2.bf16.msra.mxu0 0
      %961 = vmatprep.subr.bf16.mxu0 0
      %962 = vmatpush2.bf16.msra.mxu0 0
      %963 = vmatprep.mubr.bf16.mxu0 0
      %964 = vmatmul.mubr.bf16.gmra.mxu0 %v920
      %v965 = vpop.f32.mrf.mxu0
      %v966 = vadd.f32 0.0, %v965
      %v967 = vpop.f32.mrf.mxu0
      %v968 = vadd.f32 0.0, %v967
      %v969 = vpop.f32.mrf.mxu0
      %v970 = vpop.f32.mrf.mxu0
      %971 = vdwg.mxu0
      %972 = vmatprep.subr.bf16.mxu0 0
      %973 = vmatpush1.bf16.msra.mxu0 0
      %974 = vmatprep.subr.bf16.mxu0 0
      %975 = vmatpush1.bf16.msra.mxu0 0
      %976 = vmatprep.subr.bf16.mxu0 0
      %977 = vmatpush1.bf16.msra.mxu0 0
      %978 = vmatprep.subr.bf16.mxu0 0
      %979 = vmatpush1.bf16.msra.mxu0 0
      %980 = vmatprep.subr.bf16.mxu0 0
      %981 = vmatpush1.bf16.msra.mxu0 0
      %982 = vmatprep.subr.bf16.mxu0 0
      %983 = vmatpush1.bf16.msra.mxu0 0
      %984 = vmatprep.subr.bf16.mxu0 0
      %985 = vmatpush1.bf16.msra.mxu0 0
      %986 = vmatprep.subr.bf16.mxu0 0
      %987 = vmatpush1.bf16.msra.mxu0 %v929
      %988 = vmatprep.subr.bf16.mxu0 0
      %989 = vmatpush2.bf16.msra.mxu0 0
      %990 = vmatprep.subr.bf16.mxu0 0
      %991 = vmatpush2.bf16.msra.mxu0 0
      %992 = vmatprep.subr.bf16.mxu0 0
      %993 = vmatpush2.bf16.msra.mxu0 0
      %994 = vmatprep.subr.bf16.mxu0 0
      %995 = vmatpush2.bf16.msra.mxu0 0
      %996 = vmatprep.subr.bf16.mxu0 0
      %997 = vmatpush2.bf16.msra.mxu0 0
      %998 = vmatprep.subr.bf16.mxu0 0
      %999 = vmatpush2.bf16.msra.mxu0 0
      %1000 = vmatprep.subr.bf16.mxu0 0
      %1001 = vmatpush2.bf16.msra.mxu0 0
      %1002 = vmatprep.subr.bf16.mxu0 0
      %1003 = vmatpush2.bf16.msra.mxu0 0
      %1004 = vmatprep.mubr.bf16.mxu0 0
      %1005 = vmatmul.mubr.bf16.gmra.mxu0 %v920
      %v1006 = vpop.f32.mrf.mxu0
      %v1007 = vadd.f32 0.0, %v1006
      %v1008 = vpop.f32.mrf.mxu0
      %v1009 = vpop.f32.mrf.mxu0
      %v1010 = vpop.f32.mrf.mxu0
      %1011 = vdwg.mxu0
      %v1012 = vadd.f32 %v905, %v966
      %v1013 = vadd.f32 %v906, %v968
      %v1014 = vadd.f32 %v907, %v1007
      %s1015 = scalar_lea.vmem %s1, 28
      %v1016 = vld [vmem:[%s1015] sm:$0xf]
      %1017 = vrot.lane.b32.xlu0 %v280, 91
      %v1018 = vpop.permute.xlu0 %1017
      %1019 = vrot.lane.b32.xlu0 %v281, 91
      %v1020 = vpop.permute.xlu0 %1019
      %1021 = vrot.lane.b32.xlu0 %v282, 91
      %v1022 = vpop.permute.xlu0 %1021
      %vm1023 = vcmask 744448
      %v1024 = vsel %vm1023, %v1018, %v1020
      %v1025 = vsel %vm1023, %v1020, %v1022
      %v1027 = vsel %vm292, %v1016, 0
      %v1030 = vsel %vm296, %v1024, 0
      %v1033 = vsel %vm296, %v1025, 0
      %v1036 = vsel %vm296, %v1022, 0
      %1038 = vmatprep.subr.bf16.mxu0 0
      %1039 = vmatpush1.bf16.msra.mxu0 0
      %1040 = vmatprep.subr.bf16.mxu0 0
      %1041 = vmatpush1.bf16.msra.mxu0 0
      %1042 = vmatprep.subr.bf16.mxu0 0
      %1043 = vmatpush1.bf16.msra.mxu0 0
      %1044 = vmatprep.subr.bf16.mxu0 0
      %1045 = vmatpush1.bf16.msra.mxu0 0
      %1046 = vmatprep.subr.bf16.mxu0 0
      %1047 = vmatpush1.bf16.msra.mxu0 0
      %1048 = vmatprep.subr.bf16.mxu0 0
      %1049 = vmatpush1.bf16.msra.mxu0 0
      %1050 = vmatprep.subr.bf16.mxu0 0
      %1051 = vmatpush1.bf16.msra.mxu0 0
      %1052 = vmatprep.subr.bf16.mxu0 %v1033
      %1053 = vmatpush1.bf16.msra.mxu0 %v1030
      %1054 = vmatprep.subr.bf16.mxu0 0
      %1055 = vmatpush2.bf16.msra.mxu0 0
      %1056 = vmatprep.subr.bf16.mxu0 0
      %1057 = vmatpush2.bf16.msra.mxu0 0
      %1058 = vmatprep.subr.bf16.mxu0 0
      %1059 = vmatpush2.bf16.msra.mxu0 0
      %1060 = vmatprep.subr.bf16.mxu0 0
      %1061 = vmatpush2.bf16.msra.mxu0 0
      %1062 = vmatprep.subr.bf16.mxu0 0
      %1063 = vmatpush2.bf16.msra.mxu0 0
      %1064 = vmatprep.subr.bf16.mxu0 0
      %1065 = vmatpush2.bf16.msra.mxu0 0
      %1066 = vmatprep.subr.bf16.mxu0 0
      %1067 = vmatpush2.bf16.msra.mxu0 0
      %1068 = vmatprep.subr.bf16.mxu0 0
      %1069 = vmatpush2.bf16.msra.mxu0 0
      %1070 = vmatprep.mubr.bf16.mxu0 0
      %1071 = vmatmul.mubr.bf16.gmra.mxu0 %v1027
      %v1072 = vpop.f32.mrf.mxu0
      %v1073 = vadd.f32 0.0, %v1072
      %v1074 = vpop.f32.mrf.mxu0
      %v1075 = vadd.f32 0.0, %v1074
      %v1076 = vpop.f32.mrf.mxu0
      %v1077 = vpop.f32.mrf.mxu0
      %1078 = vdwg.mxu0
      %1079 = vmatprep.subr.bf16.mxu0 0
      %1080 = vmatpush1.bf16.msra.mxu0 0
      %1081 = vmatprep.subr.bf16.mxu0 0
      %1082 = vmatpush1.bf16.msra.mxu0 0
      %1083 = vmatprep.subr.bf16.mxu0 0
      %1084 = vmatpush1.bf16.msra.mxu0 0
      %1085 = vmatprep.subr.bf16.mxu0 0
      %1086 = vmatpush1.bf16.msra.mxu0 0
      %1087 = vmatprep.subr.bf16.mxu0 0
      %1088 = vmatpush1.bf16.msra.mxu0 0
      %1089 = vmatprep.subr.bf16.mxu0 0
      %1090 = vmatpush1.bf16.msra.mxu0 0
      %1091 = vmatprep.subr.bf16.mxu0 0
      %1092 = vmatpush1.bf16.msra.mxu0 0
      %1093 = vmatprep.subr.bf16.mxu0 0
      %1094 = vmatpush1.bf16.msra.mxu0 %v1036
      %1095 = vmatprep.subr.bf16.mxu0 0
      %1096 = vmatpush2.bf16.msra.mxu0 0
      %1097 = vmatprep.subr.bf16.mxu0 0
      %1098 = vmatpush2.bf16.msra.mxu0 0
      %1099 = vmatprep.subr.bf16.mxu0 0
      %1100 = vmatpush2.bf16.msra.mxu0 0
      %1101 = vmatprep.subr.bf16.mxu0 0
      %1102 = vmatpush2.bf16.msra.mxu0 0
      %1103 = vmatprep.subr.bf16.mxu0 0
      %1104 = vmatpush2.bf16.msra.mxu0 0
      %1105 = vmatprep.subr.bf16.mxu0 0
      %1106 = vmatpush2.bf16.msra.mxu0 0
      %1107 = vmatprep.subr.bf16.mxu0 0
      %1108 = vmatpush2.bf16.msra.mxu0 0
      %1109 = vmatprep.subr.bf16.mxu0 0
      %1110 = vmatpush2.bf16.msra.mxu0 0
      %1111 = vmatprep.mubr.bf16.mxu0 0
      %1112 = vmatmul.mubr.bf16.gmra.mxu0 %v1027
      %v1113 = vpop.f32.mrf.mxu0
      %v1114 = vadd.f32 0.0, %v1113
      %v1115 = vpop.f32.mrf.mxu0
      %v1116 = vpop.f32.mrf.mxu0
      %v1117 = vpop.f32.mrf.mxu0
      %1118 = vdwg.mxu0
      %v1119 = vadd.f32 %v1012, %v1073
      %v1120 = vadd.f32 %v1013, %v1075
      %v1121 = vadd.f32 %v1014, %v1114
      %s1122 = scalar_lea.vmem %s1, 32
      %v1123 = vld [vmem:[%s1122] sm:$0xf]
      %1124 = vrot.lane.b32.xlu0 %v280, 90
      %v1125 = vpop.permute.xlu0 %1124
      %1126 = vrot.lane.b32.xlu0 %v281, 90
      %v1127 = vpop.permute.xlu0 %1126
      %1128 = vrot.lane.b32.xlu0 %v282, 90
      %v1129 = vpop.permute.xlu0 %1128
      %vm1130 = vcmask 736256
      %v1131 = vsel %vm1130, %v1125, %v1127
      %v1132 = vsel %vm1130, %v1127, %v1129
      %v1134 = vsel %vm292, %v1123, 0
      %v1137 = vsel %vm296, %v1131, 0
      %v1140 = vsel %vm296, %v1132, 0
      %v1143 = vsel %vm296, %v1129, 0
      %1145 = vmatprep.subr.bf16.mxu0 0
      %1146 = vmatpush1.bf16.msra.mxu0 0
      %1147 = vmatprep.subr.bf16.mxu0 0
      %1148 = vmatpush1.bf16.msra.mxu0 0
      %1149 = vmatprep.subr.bf16.mxu0 0
      %1150 = vmatpush1.bf16.msra.mxu0 0
      %1151 = vmatprep.subr.bf16.mxu0 0
      %1152 = vmatpush1.bf16.msra.mxu0 0
      %1153 = vmatprep.subr.bf16.mxu0 0
      %1154 = vmatpush1.bf16.msra.mxu0 0
      %1155 = vmatprep.subr.bf16.mxu0 0
      %1156 = vmatpush1.bf16.msra.mxu0 0
      %1157 = vmatprep.subr.bf16.mxu0 0
      %1158 = vmatpush1.bf16.msra.mxu0 0
      %1159 = vmatprep.subr.bf16.mxu0 %v1140
      %1160 = vmatpush1.bf16.msra.mxu0 %v1137
      %1161 = vmatprep.subr.bf16.mxu0 0
      %1162 = vmatpush2.bf16.msra.mxu0 0
      %1163 = vmatprep.subr.bf16.mxu0 0
      %1164 = vmatpush2.bf16.msra.mxu0 0
      %1165 = vmatprep.subr.bf16.mxu0 0
      %1166 = vmatpush2.bf16.msra.mxu0 0
      %1167 = vmatprep.subr.bf16.mxu0 0
      %1168 = vmatpush2.bf16.msra.mxu0 0
      %1169 = vmatprep.subr.bf16.mxu0 0
      %1170 = vmatpush2.bf16.msra.mxu0 0
      %1171 = vmatprep.subr.bf16.mxu0 0
      %1172 = vmatpush2.bf16.msra.mxu0 0
      %1173 = vmatprep.subr.bf16.mxu0 0
      %1174 = vmatpush2.bf16.msra.mxu0 0
      %1175 = vmatprep.subr.bf16.mxu0 0
      %1176 = vmatpush2.bf16.msra.mxu0 0
      %1177 = vmatprep.mubr.bf16.mxu0 0
      %1178 = vmatmul.mubr.bf16.gmra.mxu0 %v1134
      %v1179 = vpop.f32.mrf.mxu0
      %v1180 = vadd.f32 0.0, %v1179
      %v1181 = vpop.f32.mrf.mxu0
      %v1182 = vadd.f32 0.0, %v1181
      %v1183 = vpop.f32.mrf.mxu0
      %v1184 = vpop.f32.mrf.mxu0
      %1185 = vdwg.mxu0
      %1186 = vmatprep.subr.bf16.mxu0 0
      %1187 = vmatpush1.bf16.msra.mxu0 0
      %1188 = vmatprep.subr.bf16.mxu0 0
      %1189 = vmatpush1.bf16.msra.mxu0 0
      %1190 = vmatprep.subr.bf16.mxu0 0
      %1191 = vmatpush1.bf16.msra.mxu0 0
      %1192 = vmatprep.subr.bf16.mxu0 0
      %1193 = vmatpush1.bf16.msra.mxu0 0
      %1194 = vmatprep.subr.bf16.mxu0 0
      %1195 = vmatpush1.bf16.msra.mxu0 0
      %1196 = vmatprep.subr.bf16.mxu0 0
      %1197 = vmatpush1.bf16.msra.mxu0 0
      %1198 = vmatprep.subr.bf16.mxu0 0
      %1199 = vmatpush1.bf16.msra.mxu0 0
      %1200 = vmatprep.subr.bf16.mxu0 0
      %1201 = vmatpush1.bf16.msra.mxu0 %v1143
      %1202 = vmatprep.subr.bf16.mxu0 0
      %1203 = vmatpush2.bf16.msra.mxu0 0
      %1204 = vmatprep.subr.bf16.mxu0 0
      %1205 = vmatpush2.bf16.msra.mxu0 0
      %1206 = vmatprep.subr.bf16.mxu0 0
      %1207 = vmatpush2.bf16.msra.mxu0 0
      %1208 = vmatprep.subr.bf16.mxu0 0
      %1209 = vmatpush2.bf16.msra.mxu0 0
      %1210 = vmatprep.subr.bf16.mxu0 0
      %1211 = vmatpush2.bf16.msra.mxu0 0
      %1212 = vmatprep.subr.bf16.mxu0 0
      %1213 = vmatpush2.bf16.msra.mxu0 0
      %1214 = vmatprep.subr.bf16.mxu0 0
      %1215 = vmatpush2.bf16.msra.mxu0 0
      %1216 = vmatprep.subr.bf16.mxu0 0
      %1217 = vmatpush2.bf16.msra.mxu0 0
      %1218 = vmatprep.mubr.bf16.mxu0 0
      %1219 = vmatmul.mubr.bf16.gmra.mxu0 %v1134
      %v1220 = vpop.f32.mrf.mxu0
      %v1221 = vadd.f32 0.0, %v1220
      %v1222 = vpop.f32.mrf.mxu0
      %v1223 = vpop.f32.mrf.mxu0
      %v1224 = vpop.f32.mrf.mxu0
      %1225 = vdwg.mxu0
      %v1226 = vadd.f32 %v1119, %v1180
      %v1227 = vadd.f32 %v1120, %v1182
      %v1228 = vadd.f32 %v1121, %v1221
      %v1229 = vld [vmem:[%s4] sm:$0x7]
      %v1231 = vlaneseq
      %v1232 = vshrl.u32 %v1231, 7
      %v1233 = vsub.s32 0, %v1232
      %v1234 = vrot.slane %v1229, %v1233
      %v1235 = vlaneseq
      %v1236 = vshrl.u32 %v1235, 7
      %v1237 = vsub.s32 1, %v1236
      %v1238 = vrot.slane %v1229, %v1237
      %v1239 = vlaneseq
      %v1240 = vshrl.u32 %v1239, 7
      %v1241 = vsub.s32 2, %v1240
      %v1242 = vrot.slane %v1229, %v1241
      %v1246 = vmul.f32 %v1226, %v1234
      %v1247 = vmul.f32 %v1227, %v1238
      %v1248 = vmul.f32 %v1228, %v1242
      %v1249 = vadd.f32 %v1246, %v1247
      %vm1250 = vcmask 244736
      %v1251 = vsel %vm1250, %v1248, 0.0
      %v1252 = vadd.f32 %v1249, %v1251
      %1253 = vadd.xlane.f32.xlu0 %v1252
      %v1254 = vpop.xlane.xlu0 %1253
      %v1255 = vrot.slane %v1254, 4
      %v1256 = vadd.f32 %v1254, %v1255
      %v1257 = vrot.slane %v1256, 2
      %v1258 = vadd.f32 %v1256, %v1257
      %v1259 = vrot.slane %v1258, 1
      %v1260 = vadd.f32 %v1258, %v1259
      %s1261 = vtos %v1260
      %v1262 = vstv %s1261
      %v1263 = vmul.f32 %v1262, 0.00048828125
      %v1264 = vsub.f32 %v1226, %v1263
      %v1265 = vsub.f32 %v1227, %v1263
      %v1266 = vsub.f32 %v1228, %v1263
      %v1267 = vmul.f32 %v1264, %v1264
      %v1268 = vmul.f32 %v1265, %v1265
      %v1269 = vmul.f32 %v1266, %v1266
      %v1270 = vmul.f32 %v1267, %v1234
      %v1271 = vmul.f32 %v1268, %v1238
      %v1272 = vmul.f32 %v1269, %v1242
      %v1273 = vadd.f32 %v1270, %v1271
      %v1274 = vsel %vm1250, %v1272, 0.0
      %v1275 = vadd.f32 %v1273, %v1274
      %1276 = vadd.xlane.f32.xlu0 %v1275
      %v1277 = vpop.xlane.xlu0 %1276
      %v1278 = vrot.slane %v1277, 4
      %v1279 = vadd.f32 %v1277, %v1278
      %v1280 = vrot.slane %v1279, 2
      %v1281 = vadd.f32 %v1279, %v1280
      %v1282 = vrot.slane %v1281, 1
      %v1283 = vadd.f32 %v1281, %v1282
      %s1284 = vtos %v1283
      %v1285 = vstv %s1284
      %v1286 = vmul.f32 %v1285, 0.00048828125
      %v1287 = vadd.f32 %v1286, 1e-05
      %v1288 = vrsqrt.pop %v1287
      %v1289 = vmul.f32 %v1264, %v1288
      %v1290 = vmul.f32 %v1265, %v1288
      %v1291 = vmul.f32 %v1266, %v1288
      %v1292 = vld [vmem:[%s2] sm:$0xff]
      %1294 = vset.pattern.permute.xlu0 0
      %1295 = vperm.xlu0 %1294, %v1292
      %v1296 = vpop.permute.xlu0 %1295
      %v1298 = vmul.f32 %v1289, %v1296
      %v1299 = vmul.f32 %v1290, %v1296
      %v1300 = vmul.f32 %v1291, %v1296
      %v1301 = vld [vmem:[%s3] sm:$0xff]
      %1303 = vset.pattern.permute.xlu0 0
      %1304 = vperm.xlu0 %1303, %v1301
      %v1305 = vpop.permute.xlu0 %1304
      %v1307 = vadd.f32 %v1298, %v1305
      %v1308 = vadd.f32 %v1299, %v1305
      %v1309 = vadd.f32 %v1300, %v1305
      %v1310 = vld [vmem:[%s263] sm:$0xff]
      %1312 = vset.pattern.permute.xlu0 0
      %1313 = vperm.xlu0 %1312, %v1310
      %v1314 = vpop.permute.xlu0 %1313
      %v1316 = vadd.f32 %v1307, %v1314
      %v1317 = vadd.f32 %v1308, %v1314
      %v1318 = vadd.f32 %v1309, %v1314
      %v1319 = vmul.f32 %v1316, %v1234
      %v1320 = vmul.f32 %v1317, %v1238
      %v1321 = vmul.f32 %v1318, %v1242
      %1322 = vst [vmem:[%s268] sm:$0xff] 0.0
      %1323 = vst [vmem:[%s268 + $0x8] sm:$0xff] 0.0
      %vm1324 = vcmask 556032
      %1325 = vst.msk [vmem:[%s268 + $0x10] sm:$0xff] %vm1324, 0.0
      %1329 = vrot.lane.b32.xlu0 %v1319, 19
      %v1330 = vpop.permute.xlu0 %1329
      %1331 = vrot.lane.b32.xlu0 %v1320, 19
      %v1332 = vpop.permute.xlu0 %1331
      %1333 = vrot.lane.b32.xlu0 %v1321, 19
      %v1334 = vpop.permute.xlu0 %1333
      %vm1335 = vcmask 154624
      %v1336 = vsel %vm1335, %v1330, %v1332
      %v1337 = vsel %vm1335, %v1332, %v1334
      %vm1341 = vcmask 1047704
      %1342 = vst.msk [vmem:[%s268] sm:$0xff] %vm1341, %v1330
      %1343 = vst [vmem:[%s268 + $0x8] sm:$0xff] %v1336
      %vm1344 = vcmask 400384
      %1345 = vst.msk [vmem:[%s268 + $0x10] sm:$0xff] %vm1344, %v1337
      %p1346 = scmp.lt.s32.totalorder %s17, 1
      %s1347 = scalar_select %p1346, %s17, 1
      %s1348 = smul.addr %s1347, 3
      %s1349 = smul.addr %s1348, 8
      %s1350 = scalar_lea.vmem %s6, %s1349
      // Predicated region
      $region45: #{upscaler_forward.11} parent=43 // pred_check
        %p1351 = pneg %p171
      $region46: #{upscaler_forward.11} parent=43 // pred_check_branch
        %1353 = sbr.rel (%p1351) target = $region48
      $region47: #{upscaler_forward.11} parent=43 // pred_region
        _
      $region48: #{upscaler_forward.11} parent=43 // pred_fallthru
        _
    $region44: #{upscaler_forward.11} parent=5 // pred_fallthru
      _
    %p1354 = scmp.le.s32.totalorder 2, %s12
    // Predicated region
    $region49: #{upscaler_forward.11} parent=5 // pred_check
      %p1355 = pneg %p1354
    $region50: #{upscaler_forward.11} parent=5 // pred_check_branch
      %1357 = sbr.rel (%p1355) target = $region52
    $region51: #{upscaler_forward.11} parent=5 // pred_region
      %s1358 = ssub.s32 %s12, 2
      // Predicated region
      $region53: #{upscaler_forward.11} parent=51 // pred_check
        %p1359 = pneg %p177
      $region54: #{upscaler_forward.11} parent=51 // pred_check_branch
        %1361 = sbr.rel (%p1359) target = $region56
      $region55: #{upscaler_forward.11} parent=51 // pred_region
        %p1362 = scmp.lt.s32.totalorder %s18, 1
        %s1363 = scalar_select %p1362, %s18, 1
        %s1364 = smul.addr %s1363, 3
        %s1365 = smul.addr %s1364, 8
        %s1366 = scalar_lea.vmem %s6, %s1365
      $region56: #{upscaler_forward.11} parent=51 // pred_fallthru
        _
    $region52: #{upscaler_forward.11} parent=5 // pred_fallthru
      _
  $region6: #{upscaler_forward.11} parent=0 // loop_footer
    %s16 = sadd.s32 1, %s12
  $region7: #{upscaler_forward.11} parent=0 // loop_footer_branch
    %11 = sbr.rel target = $region3
  $region8: #{upscaler_forward.11} parent=0 // loop_exit
    _

</llo_original>
